<compile_context>
chip_gen: v7x
topology: tpu7x:2x2x1
jax: 0.10.0
libtpu: 0.0.40
codegen_flags: <defaults>
</compile_context>

<pallas_src>
import numpy as np
import jax
import jax.numpy as jnp
from jax import lax
from jax.experimental import pallas as pl
from jax.experimental.pallas import tpu as pltpu

LN_EPS = 1e-5          # torch.nn.LayerNorm default
LANE = 128
SUBLANE = 8
# Scratch budget sized for v7x's 64 MiB physical VMEM (leaves headroom for
# weights + double-buffered x/out blocks); v5e/v6e (128 MiB) trivially fit.
SCRATCH_BUDGET_BYTES = 40 * 1024 * 1024


def _round_up(x, m):
    return (x + m - 1) // m * m


def _pick_block(b_pad, T, Hp):
    """Batch block size (rows, multiple of 8).

    Never split small batches: a split would under-feed the MXU rows and (on
    single-TC v5e/v6e) only add ~0.35us per grid step.  Only split when the
    per-block scratch (pre-gates f32 + seq bf16) would exceed the v7x-safe
    VMEM budget, and then keep blocks as large as that budget allows.
    """
    per_row = T * (4 * Hp * 4 + Hp * 2)      # pre_ref (f32) + seq_ref (bf16) per row
    cap = max(SUBLANE, (SCRATCH_BUDGET_BYTES // per_row) // SUBLANE * SUBLANE)
    return min(b_pad, cap)


def _pad_gate_cols(w, H, Hp):
    """(rows, 4*H) -> (rows, 4*Hp): zero-pad each PyTorch gate block (i, f, g, o)."""
    if Hp == H:
        return w
    rows = w.shape[0]
    w4 = w.reshape(rows, 4, H)
    return jnp.pad(w4, ((0, 0), (0, 0), (0, Hp - H))).reshape(rows, 4 * Hp)


def make_kernel(num_layers, T, tb, in_size, H, Hp):
    """Fused LSTM + attention + LayerNorm forward for one batch block of tb rows."""
    split_gates = tb >= 128   # gate-at-a-time keeps live vregs ~4x lower at big tb

    def kernel(*refs):
        # ---- unpack: x, (w_ih, w_hh, b) * L, ln_g, ln_b, out, scratch ----
        x_ref = refs[0]                              # (T, tb, in_size) bf16
        lstm = []
        idx = 1
        for _ in range(num_layers):
            lstm.append((refs[idx], refs[idx + 1], refs[idx + 2]))
            idx += 3
        ln_g, ln_b = refs[idx], refs[idx + 1]        # (1, Hp) f32, zero-padded
        out_ref = refs[idx + 2]                      # (tb, Hp) f32 (lane-dense)
        seq_ref = refs[idx + 3]                      # (T, tb, Hp) bf16 layer output
        pre_ref = refs[idx + 4]                      # (T, tb, 4*Hp) f32 pre-gates

        h_last = None
        for l in range(num_layers):
            w_ih_ref, w_hh_ref, b_ref = lstm[l]      # bf16, bf16, f32

            # -- hoisted input projection: ONE bf16 MXU matmul for all T steps --
            if l == 0:
                x2d = x_ref[...].reshape(T * tb, in_size)
            else:
                x2d = seq_ref[...].reshape(T * tb, Hp)
            pre = jnp.dot(x2d, w_ih_ref[...],
                          preferred_element_type=jnp.float32) + b_ref[...]
            pre_ref[...] = pre.reshape(T, tb, 4 * Hp)

            # -- serial recurrence: h/c carried in vregs, loop fully unrolled --
            def step(t, carry):
                h, c = carry
                h_b = h.astype(jnp.bfloat16)         # bf16 MXU pass, f32 accumulate
                if split_gates:
                    # Per-gate 128-col blocks: never materialize (tb, 4*Hp) f32.
                    def gate(g):
                        return (pre_ref[t, :, g * Hp:(g + 1) * Hp]
                                + jnp.dot(h_b, w_hh_ref[:, g * Hp:(g + 1) * Hp],
                                          preferred_element_type=jnp.float32))
                    i_g = jax.nn.sigmoid(gate(0))
                    f_g = jax.nn.sigmoid(gate(1))
                    g_g = jnp.tanh(gate(2))
                    o_g = jax.nn.sigmoid(gate(3))
                else:
                    gates = pre_ref[t] + jnp.dot(h_b, w_hh_ref[...],
                                                 preferred_element_type=jnp.float32)
                    # PyTorch gate order: input, forget, cell(g), output.
                    # Hp == 128 so every slice is a whole 128-lane-aligned block.
                    i_g = jax.nn.sigmoid(gates[:, 0 * Hp:1 * Hp])
                    f_g = jax.nn.sigmoid(gates[:, 1 * Hp:2 * Hp])
                    g_g = jnp.tanh(gates[:, 2 * Hp:3 * Hp])
                    o_g = jax.nn.sigmoid(gates[:, 3 * Hp:4 * Hp])
                c = f_g * c + i_g * g_g
                h = o_g * jnp.tanh(c)
                seq_ref[t] = h.astype(jnp.bfloat16)  # lane-dense (tb, 128) store
                return h, c

            z = jnp.zeros((tb, Hp), jnp.float32)
            h_last, _ = lax.fori_loop(0, T, step, (z, z), unroll=True)

        # ---- attention: score_t = <o_t, h_last>, softmax over time ----
        o_seq = seq_ref[...]                                           # (T, tb, Hp) bf16
        score = jnp.sum(o_seq * h_last[None, :, :], axis=-1,
                        keepdims=True)                                 # (T, tb, 1) f32
        score = score - jnp.max(score, axis=0, keepdims=True)
        p = jnp.exp(score)
        attn = p / jnp.sum(p, axis=0, keepdims=True)                   # (T, tb, 1)
        context = jnp.sum(attn * o_seq, axis=0)                        # (tb, Hp) f32

        # ---- LayerNorm over the real H dims, written lane-dense (tb, Hp) ----
        # context padded lanes are exactly zero, so the mean sum needs no mask;
        # variance is masked; zero-padded gamma/beta zero out the padded lanes.
        lane = lax.broadcasted_iota(jnp.int32, (1, Hp), 1)
        lane_mask = (lane < H).astype(jnp.float32)
        mu = jnp.sum(context, axis=-1, keepdims=True) * (1.0 / H)
        diff = (context - mu) * lane_mask
        var = jnp.sum(diff * diff, axis=-1, keepdims=True) * (1.0 / H)
        out_ref[...] = diff * lax.rsqrt(var + LN_EPS) * ln_g[...] + ln_b[...]

    return kernel


def lstm_attention_forward(x_bti, params, num_layers):
    """x_bti: (B, T, input_size) like the PyTorch forward. Returns normed_context (B, H)."""
    B, T, I = x_bti.shape
    H = params["ln_g"].shape[-1]
    Hp = _round_up(H, LANE)

    tb = _pick_block(_round_up(B, SUBLANE), T, Hp)
    B_pad = _round_up(B, tb)
    grid = (B_pad // tb,)

    x = x_bti.astype(jnp.bfloat16)                           # bf16 on the host
    if B_pad != B:
        x = jnp.pad(x, ((0, B_pad - B), (0, 0), (0, 0)))
    x_tbi = jnp.transpose(x, (1, 0, 2))                      # time-major (T, B_pad, I)

    flat = [x_tbi]
    in_specs = [pl.BlockSpec((T, tb, I), lambda i: (0, i, 0))]
    for l in range(num_layers):
        # zero-pad per-gate columns to Hp, and w_hh / layer>0 w_ih rows to Hp;
        # padded hidden lanes then stay exactly zero through the recurrence.
        w_ih = _pad_gate_cols(params[f"w_ih{l}"], H, Hp)     # (in_dim, 4*Hp)
        if l > 0:
            w_ih = jnp.pad(w_ih, ((0, Hp - H), (0, 0)))
        w_hh = jnp.pad(_pad_gate_cols(params[f"w_hh{l}"], H, Hp),
                       ((0, Hp - H), (0, 0)))                # (Hp, 4*Hp)
        b = _pad_gate_cols(params[f"b{l}"], H, Hp)           # (1, 4*Hp) f32 (=b_ih+b_hh)
        flat += [w_ih.astype(jnp.bfloat16), w_hh.astype(jnp.bfloat16), b]
        in_specs += [pl.BlockSpec(w_ih.shape, lambda i: (0, 0)),
                     pl.BlockSpec(w_hh.shape, lambda i: (0, 0)),
                     pl.BlockSpec(b.shape, lambda i: (0, 0))]
    ln_g = jnp.pad(params["ln_g"], ((0, 0), (0, Hp - H)))    # zero-padded gamma
    ln_b = jnp.pad(params["ln_b"], ((0, 0), (0, Hp - H)))    # zero-padded beta
    flat += [ln_g, ln_b]
    in_specs += [pl.BlockSpec((1, Hp), lambda i: (0, 0)),
                 pl.BlockSpec((1, Hp), lambda i: (0, 0))]

    # ---- VMEM budget (generation-aware-ish: clamp to 32..100 MiB) ----
    scratch_bytes = T * tb * Hp * 2 + T * tb * 4 * Hp * 4    # seq bf16 + pre f32
    x_block_bytes = T * tb * I * 2
    weight_bytes = sum(int(np.prod(a.shape)) * a.dtype.itemsize for a in flat[1:])
    out_block_bytes = tb * Hp * 4
    vmem_need = scratch_bytes + 2 * (x_block_bytes + weight_bytes + out_block_bytes)
    vmem_limit = int(min(100 * 1024 * 1024,
                         max(32 * 1024 * 1024, int(1.3 * vmem_need))))

    # cost hint so XLA schedules surrounding ops around this long serial call
    flops = 0
    for l in range(num_layers):
        in_dim = I if l == 0 else Hp
        flops += 2 * T * B_pad * in_dim * 4 * Hp             # hoisted input projection
        flops += 2 * T * B_pad * Hp * 4 * Hp                 # recurrent h @ W_hh
    flops += 4 * T * B_pad * Hp                              # attention score + context
    trans = 5 * num_layers * T * B_pad * Hp + T * B_pad
    bytes_accessed = sum(int(np.prod(a.shape)) * a.dtype.itemsize for a in flat)
    bytes_accessed += B_pad * Hp * 4

    out = pl.pallas_call(
        make_kernel(num_layers, T, tb, I, H, Hp),
        grid=grid,
        out_shape=jax.ShapeDtypeStruct((B_pad, Hp), jnp.float32),
        in_specs=in_specs,
        out_specs=pl.BlockSpec((tb, Hp), lambda i: (i, 0)),
        scratch_shapes=[
            pltpu.VMEM((T, tb, Hp), jnp.bfloat16),           # layer output sequence
            pltpu.VMEM((T, tb, 4 * Hp), jnp.float32),        # hoisted pre-gates
        ],
        compiler_params=pltpu.CompilerParams(
            dimension_semantics=("parallel",),               # batch blocks independent
            vmem_limit_bytes=vmem_limit,
        ),
        cost_estimate=pl.CostEstimate(
            flops=flops, transcendentals=trans, bytes_accessed=bytes_accessed),
    )(*flat)

    return out[:B, :H]


def init_params(key, input_size, hidden_size, num_layers):
    """Synthetic params matching nn.LSTM / nn.LayerNorm shapes.
    b{l} stands for the combined torch bias b_ih + b_hh."""
    H = hidden_size
    bound = 1.0 / float(H) ** 0.5
    keys = jax.random.split(key, num_layers)
    params = {}
    for l in range(num_layers):
        in_dim = input_size if l == 0 else H
        k0, k1, k2 = jax.random.split(keys[l], 3)
        params[f"w_ih{l}"] = jax.random.uniform(k0, (in_dim, 4 * H), jnp.float32, -bound, bound)
        params[f"w_hh{l}"] = jax.random.uniform(k1, (H, 4 * H), jnp.float32, -bound, bound)
        params[f"b{l}"] = jax.random.uniform(k2, (1, 4 * H), jnp.float32, -bound, bound)
    params["ln_g"] = jnp.ones((1, H), jnp.float32)
    params["ln_b"] = jnp.zeros((1, H), jnp.float32)
    return params


def _layer_norm_ref(x, gamma, beta):
    mu = jnp.mean(x, axis=-1, keepdims=True)
    var = jnp.mean((x - mu) ** 2, axis=-1, keepdims=True)
    return (x - mu) * lax.rsqrt(var + LN_EPS) * gamma + beta


def reference_forward(x_bti, params, num_layers):
    """Pure-JAX (f32, HIGHEST precision) mirror of the PyTorch LSTMAttention.forward."""
    B, T, _ = x_bti.shape
    H = params["ln_g"].shape[-1]
    hp = lax.Precision.HIGHEST
    seq = jnp.transpose(x_bti.astype(jnp.float32), (1, 0, 2))
    h = jnp.zeros((B, H), jnp.float32)
    for l in range(num_layers):
        w_ih, w_hh, b = params[f"w_ih{l}"], params[f"w_hh{l}"], params[f"b{l}"]
        h = jnp.zeros((B, H), jnp.float32)
        c = jnp.zeros((B, H), jnp.float32)
        outs = []
        for t in range(T):
            gates = (jnp.dot(seq[t], w_ih, precision=hp)
                     + jnp.dot(h, w_hh, precision=hp) + b)
            i_g = jax.nn.sigmoid(gates[:, :H])
            f_g = jax.nn.sigmoid(gates[:, H:2 * H])
            g_g = jnp.tanh(gates[:, 2 * H:3 * H])
            o_g = jax.nn.sigmoid(gates[:, 3 * H:])
            c = f_g * c + i_g * g_g
            h = o_g * jnp.tanh(c)
            outs.append(h)
        seq = jnp.stack(outs, axis=0)
    score = jnp.sum(seq * h[None], axis=-1)                  # (T, B)
    attn = jax.nn.softmax(score, axis=0)
    context = jnp.sum(attn[:, :, None] * seq, axis=0)        # (B, H)
    return _layer_norm_ref(context, params["ln_g"], params["ln_b"])


if __name__ == "__main__":
    B, T, I = 16, 8, 16          # batch, seq length, input_size
    H, L = 32, 2                 # hidden_size, num_layers

    key = jax.random.PRNGKey(0)
    kx, kp = jax.random.split(key)
    x = jax.random.normal(kx, (B, T, I), dtype=jnp.float32)
    params = init_params(kp, I, H, L)

    out = jax.block_until_ready(lstm_attention_forward(x, params, L))
    ref = jax.block_until_ready(reference_forward(x, params, L))

    # bf16 input projection, bf16 recurrent matmul and bf16 sequence storage
    # (all with f32 accumulation / f32 gate math) vs. a pure-f32 HIGHEST
    # reference => mixed-precision tolerance.
    np.testing.assert_allclose(np.asarray(out), np.asarray(ref), rtol=5e-2, atol=5e-2)
    print("KERNEL_OK")
</pallas_src>

<mosaic_0001>
module attributes {stable_mosaic.version = 11 : i64} {
  func.func @kernel(%arg0: i32, %arg1: memref<8x16x16xbf16, #tpu.memory_space<vmem>>, %arg2: memref<16x512xbf16, #tpu.memory_space<vmem>>, %arg3: memref<128x512xbf16, #tpu.memory_space<vmem>>, %arg4: memref<1x512xf32, #tpu.memory_space<vmem>>, %arg5: memref<128x512xbf16, #tpu.memory_space<vmem>>, %arg6: memref<128x512xbf16, #tpu.memory_space<vmem>>, %arg7: memref<1x512xf32, #tpu.memory_space<vmem>>, %arg8: memref<1x128xf32, #tpu.memory_space<vmem>>, %arg9: memref<1x128xf32, #tpu.memory_space<vmem>>, %arg10: memref<16x128xf32, #tpu.memory_space<vmem>>, %arg11: memref<8x16x128xbf16, #tpu.memory_space<vmem>>, %arg12: memref<8x16x512xf32, #tpu.memory_space<vmem>>) attributes {dimension_semantics = [#tpu.dimension_semantics<parallel>], iteration_bounds = array<i64: 1>, scalar_prefetch = 0 : i64, scratch_operands = 2 : i64, tpu.core_type = #tpu.core_type<tc>, window_params = [{transform_indices = @transform_0, window_bounds = array<i64: 8, 16, 16>}, {pipeline_mode = #tpu.pipeline_mode<synchronous>, transform_indices = @transform_1, window_bounds = array<i64: 16, 512>}, {pipeline_mode = #tpu.pipeline_mode<synchronous>, transform_indices = @transform_2, window_bounds = array<i64: 128, 512>}, {pipeline_mode = #tpu.pipeline_mode<synchronous>, transform_indices = @transform_3, window_bounds = array<i64: 1, 512>}, {pipeline_mode = #tpu.pipeline_mode<synchronous>, transform_indices = @transform_4, window_bounds = array<i64: 128, 512>}, {pipeline_mode = #tpu.pipeline_mode<synchronous>, transform_indices = @transform_5, window_bounds = array<i64: 128, 512>}, {pipeline_mode = #tpu.pipeline_mode<synchronous>, transform_indices = @transform_6, window_bounds = array<i64: 1, 512>}, {pipeline_mode = #tpu.pipeline_mode<synchronous>, transform_indices = @transform_7, window_bounds = array<i64: 1, 128>}, {pipeline_mode = #tpu.pipeline_mode<synchronous>, transform_indices = @transform_8, window_bounds = array<i64: 1, 128>}, {transform_indices = @transform_9, window_bounds = array<i64: 16, 128>}]} {
    %c0 = arith.constant 0 : index
    %c0_0 = arith.constant 0 : index
    %c0_1 = arith.constant 0 : index
    %0 = vector.load %arg1[%c0, %c0_0, %c0_1] : memref<8x16x16xbf16, #tpu.memory_space<vmem>>, vector<8x16x16xbf16>
    %1 = vector.shape_cast %0 : vector<8x16x16xbf16> to vector<128x16xbf16>
    %c0_2 = arith.constant 0 : index
    %c0_3 = arith.constant 0 : index
    %2 = vector.load %arg2[%c0_2, %c0_3] : memref<16x512xbf16, #tpu.memory_space<vmem>>, vector<16x512xbf16>
    %cst = arith.constant dense<0.000000e+00> : vector<128x512xf32>
    %3 = tpu.matmul %1, %2, %cst {dimension_numbers = #tpu.dot_dimension_numbers<[1], [0], [0], [1], [0, 0, 1, 1], [], []>} : vector<128x16xbf16>, vector<16x512xbf16>, vector<128x512xf32> -> vector<128x512xf32>
    %c0_4 = arith.constant 0 : index
    %c0_5 = arith.constant 0 : index
    %4 = vector.load %arg4[%c0_4, %c0_5] : memref<1x512xf32, #tpu.memory_space<vmem>>, vector<1x512xf32>
    %5 = vector.broadcast %4 : vector<1x512xf32> to vector<128x512xf32>
    %6 = arith.addf %3, %5 : vector<128x512xf32>
    %7 = vector.shape_cast %6 : vector<128x512xf32> to vector<8x16x512xf32>
    %c0_6 = arith.constant 0 : index
    %c0_7 = arith.constant 0 : index
    %c0_8 = arith.constant 0 : index
    %8 = vector.load %arg12[%c0_6, %c0_7, %c0_8] : memref<8x16x512xf32, #tpu.memory_space<vmem>>, vector<8x16x512xf32>
    tpu.vector_store %arg12[%c0_6, %c0_7, %c0_8], %7 {strides = array<i32>} : memref<8x16x512xf32, #tpu.memory_space<vmem>>, vector<8x16x512xf32>,
    %cst_9 = arith.constant 0.000000e+00 : f32
    %9 = vector.broadcast %cst_9 : f32 to vector<16x128xf32>
    %c0_i32 = arith.constant 0 : i32
    %10 = arith.truncf %9 : vector<16x128xf32> to vector<16x128xbf16>
    %11 = arith.index_cast %c0_i32 : i32 to index
    %c0_10 = arith.constant 0 : index
    %c0_11 = arith.constant 0 : index
    %12 = vector.load %arg12[%11, %c0_10, %c0_11] : memref<8x16x512xf32, #tpu.memory_space<vmem>>, vector<1x16x512xf32>
    %13 = vector.shape_cast %12 : vector<1x16x512xf32> to vector<16x512xf32>
    %c0_12 = arith.constant 0 : index
    %c0_13 = arith.constant 0 : index
    %14 = vector.load %arg3[%c0_12, %c0_13] : memref<128x512xbf16, #tpu.memory_space<vmem>>, vector<128x512xbf16>
    %cst_14 = arith.constant dense<0.000000e+00> : vector<16x512xf32>
    %15 = tpu.matmul %10, %14, %cst_14 {dimension_numbers = #tpu.dot_dimension_numbers<[1], [0], [0], [1], [0, 0, 1, 1], [], []>} : vector<16x128xbf16>, vector<128x512xbf16>, vector<16x512xf32> -> vector<16x512xf32>
    %16 = arith.addf %13, %15 : vector<16x512xf32>
    %17 = vector.extract_strided_slice %16 {offsets = [0, 0], sizes = [16, 128], strides = [1, 1]} : vector<16x512xf32> to vector<16x128xf32>
    %18 = arith.negf %17 : vector<16x128xf32>
    %19 = math.exp %18 : vector<16x128xf32>
    %cst_15 = arith.constant 1.000000e+00 : f32
    %20 = vector.broadcast %cst_15 : f32 to vector<16x128xf32>
    %21 = arith.addf %20, %19 : vector<16x128xf32>
    %22 = arith.divf %20, %21 : vector<16x128xf32>
    %23 = vector.extract_strided_slice %16 {offsets = [0, 128], sizes = [16, 128], strides = [1, 1]} : vector<16x512xf32> to vector<16x128xf32>
    %24 = arith.negf %23 : vector<16x128xf32>
    %25 = math.exp %24 : vector<16x128xf32>
    %cst_16 = arith.constant 1.000000e+00 : f32
    %26 = vector.broadcast %cst_16 : f32 to vector<16x128xf32>
    %27 = arith.addf %26, %25 : vector<16x128xf32>
    %28 = arith.divf %26, %27 : vector<16x128xf32>
    %29 = vector.extract_strided_slice %16 {offsets = [0, 256], sizes = [16, 128], strides = [1, 1]} : vector<16x512xf32> to vector<16x128xf32>
    %30 = math.tanh %29 : vector<16x128xf32>
    %31 = vector.extract_strided_slice %16 {offsets = [0, 384], sizes = [16, 128], strides = [1, 1]} : vector<16x512xf32> to vector<16x128xf32>
    %32 = arith.negf %31 : vector<16x128xf32>
    %33 = math.exp %32 : vector<16x128xf32>
    %cst_17 = arith.constant 1.000000e+00 : f32
    %34 = vector.broadcast %cst_17 : f32 to vector<16x128xf32>
    %35 = arith.addf %34, %33 : vector<16x128xf32>
    %36 = arith.divf %34, %35 : vector<16x128xf32>
    %37 = arith.mulf %28, %9 : vector<16x128xf32>
    %38 = arith.mulf %22, %30 : vector<16x128xf32>
    %39 = arith.addf %37, %38 : vector<16x128xf32>
    %40 = math.tanh %39 : vector<16x128xf32>
    %41 = arith.mulf %36, %40 : vector<16x128xf32>
    %42 = arith.truncf %41 : vector<16x128xf32> to vector<16x128xbf16>
    %43 = arith.index_cast %c0_i32 : i32 to index
    %c0_18 = arith.constant 0 : index
    %c0_19 = arith.constant 0 : index
    %44 = vector.load %arg11[%43, %c0_18, %c0_19] : memref<8x16x128xbf16, #tpu.memory_space<vmem>>, vector<1x16x128xbf16>
    %45 = vector.shape_cast %44 : vector<1x16x128xbf16> to vector<16x128xbf16>
    %46 = vector.shape_cast %42 : vector<16x128xbf16> to vector<1x16x128xbf16>
    tpu.vector_store %arg11[%43, %c0_18, %c0_19], %46 {strides = array<i32>} : memref<8x16x128xbf16, #tpu.memory_space<vmem>>, vector<1x16x128xbf16>,
    %c1_i32 = arith.constant 1 : i32
    %47 = arith.truncf %41 : vector<16x128xf32> to vector<16x128xbf16>
    %48 = arith.index_cast %c1_i32 : i32 to index
    %c0_20 = arith.constant 0 : index
    %c0_21 = arith.constant 0 : index
    %49 = vector.load %arg12[%48, %c0_20, %c0_21] : memref<8x16x512xf32, #tpu.memory_space<vmem>>, vector<1x16x512xf32>
    %50 = vector.shape_cast %49 : vector<1x16x512xf32> to vector<16x512xf32>
    %c0_22 = arith.constant 0 : index
    %c0_23 = arith.constant 0 : index
    %51 = vector.load %arg3[%c0_22, %c0_23] : memref<128x512xbf16, #tpu.memory_space<vmem>>, vector<128x512xbf16>
    %cst_24 = arith.constant dense<0.000000e+00> : vector<16x512xf32>
    %52 = tpu.matmul %47, %51, %cst_24 {dimension_numbers = #tpu.dot_dimension_numbers<[1], [0], [0], [1], [0, 0, 1, 1], [], []>} : vector<16x128xbf16>, vector<128x512xbf16>, vector<16x512xf32> -> vector<16x512xf32>
    %53 = arith.addf %50, %52 : vector<16x512xf32>
    %54 = vector.extract_strided_slice %53 {offsets = [0, 0], sizes = [16, 128], strides = [1, 1]} : vector<16x512xf32> to vector<16x128xf32>
    %55 = arith.negf %54 : vector<16x128xf32>
    %56 = math.exp %55 : vector<16x128xf32>
    %cst_25 = arith.constant 1.000000e+00 : f32
    %57 = vector.broadcast %cst_25 : f32 to vector<16x128xf32>
    %58 = arith.addf %57, %56 : vector<16x128xf32>
    %59 = arith.divf %57, %58 : vector<16x128xf32>
    %60 = vector.extract_strided_slice %53 {offsets = [0, 128], sizes = [16, 128], strides = [1, 1]} : vector<16x512xf32> to vector<16x128xf32>
    %61 = arith.negf %60 : vector<16x128xf32>
    %62 = math.exp %61 : vector<16x128xf32>
    %cst_26 = arith.constant 1.000000e+00 : f32
    %63 = vector.broadcast %cst_26 : f32 to vector<16x128xf32>
    %64 = arith.addf %63, %62 : vector<16x128xf32>
    %65 = arith.divf %63, %64 : vector<16x128xf32>
    %66 = vector.extract_strided_slice %53 {offsets = [0, 256], sizes = [16, 128], strides = [1, 1]} : vector<16x512xf32> to vector<16x128xf32>
    %67 = math.tanh %66 : vector<16x128xf32>
    %68 = vector.extract_strided_slice %53 {offsets = [0, 384], sizes = [16, 128], strides = [1, 1]} : vector<16x512xf32> to vector<16x128xf32>
    %69 = arith.negf %68 : vector<16x128xf32>
    %70 = math.exp %69 : vector<16x128xf32>
    %cst_27 = arith.constant 1.000000e+00 : f32
    %71 = vector.broadcast %cst_27 : f32 to vector<16x128xf32>
    %72 = arith.addf %71, %70 : vector<16x128xf32>
    %73 = arith.divf %71, %72 : vector<16x128xf32>
    %74 = arith.mulf %65, %39 : vector<16x128xf32>
    %75 = arith.mulf %59, %67 : vector<16x128xf32>
    %76 = arith.addf %74, %75 : vector<16x128xf32>
    %77 = math.tanh %76 : vector<16x128xf32>
    %78 = arith.mulf %73, %77 : vector<16x128xf32>
    %79 = arith.truncf %78 : vector<16x128xf32> to vector<16x128xbf16>
    %80 = arith.index_cast %c1_i32 : i32 to index
    %c0_28 = arith.constant 0 : index
    %c0_29 = arith.constant 0 : index
    %81 = vector.load %arg11[%80, %c0_28, %c0_29] : memref<8x16x128xbf16, #tpu.memory_space<vmem>>, vector<1x16x128xbf16>
    %82 = vector.shape_cast %81 : vector<1x16x128xbf16> to vector<16x128xbf16>
    %83 = vector.shape_cast %79 : vector<16x128xbf16> to vector<1x16x128xbf16>
    tpu.vector_store %arg11[%80, %c0_28, %c0_29], %83 {strides = array<i32>} : memref<8x16x128xbf16, #tpu.memory_space<vmem>>, vector<1x16x128xbf16>,
    %c2_i32 = arith.constant 2 : i32
    %84 = arith.truncf %78 : vector<16x128xf32> to vector<16x128xbf16>
    %85 = arith.index_cast %c2_i32 : i32 to index
    %c0_30 = arith.constant 0 : index
    %c0_31 = arith.constant 0 : index
    %86 = vector.load %arg12[%85, %c0_30, %c0_31] : memref<8x16x512xf32, #tpu.memory_space<vmem>>, vector<1x16x512xf32>
    %87 = vector.shape_cast %86 : vector<1x16x512xf32> to vector<16x512xf32>
    %c0_32 = arith.constant 0 : index
    %c0_33 = arith.constant 0 : index
    %88 = vector.load %arg3[%c0_32, %c0_33] : memref<128x512xbf16, #tpu.memory_space<vmem>>, vector<128x512xbf16>
    %cst_34 = arith.constant dense<0.000000e+00> : vector<16x512xf32>
    %89 = tpu.matmul %84, %88, %cst_34 {dimension_numbers = #tpu.dot_dimension_numbers<[1], [0], [0], [1], [0, 0, 1, 1], [], []>} : vector<16x128xbf16>, vector<128x512xbf16>, vector<16x512xf32> -> vector<16x512xf32>
    %90 = arith.addf %87, %89 : vector<16x512xf32>
    %91 = vector.extract_strided_slice %90 {offsets = [0, 0], sizes = [16, 128], strides = [1, 1]} : vector<16x512xf32> to vector<16x128xf32>
    %92 = arith.negf %91 : vector<16x128xf32>
    %93 = math.exp %92 : vector<16x128xf32>
    %cst_35 = arith.constant 1.000000e+00 : f32
    %94 = vector.broadcast %cst_35 : f32 to vector<16x128xf32>
    %95 = arith.addf %94, %93 : vector<16x128xf32>
    %96 = arith.divf %94, %95 : vector<16x128xf32>
    %97 = vector.extract_strided_slice %90 {offsets = [0, 128], sizes = [16, 128], strides = [1, 1]} : vector<16x512xf32> to vector<16x128xf32>
    %98 = arith.negf %97 : vector<16x128xf32>
    %99 = math.exp %98 : vector<16x128xf32>
    %cst_36 = arith.constant 1.000000e+00 : f32
    %100 = vector.broadcast %cst_36 : f32 to vector<16x128xf32>
    %101 = arith.addf %100, %99 : vector<16x128xf32>
    %102 = arith.divf %100, %101 : vector<16x128xf32>
    %103 = vector.extract_strided_slice %90 {offsets = [0, 256], sizes = [16, 128], strides = [1, 1]} : vector<16x512xf32> to vector<16x128xf32>
    %104 = math.tanh %103 : vector<16x128xf32>
    %105 = vector.extract_strided_slice %90 {offsets = [0, 384], sizes = [16, 128], strides = [1, 1]} : vector<16x512xf32> to vector<16x128xf32>
    %106 = arith.negf %105 : vector<16x128xf32>
    %107 = math.exp %106 : vector<16x128xf32>
    %cst_37 = arith.constant 1.000000e+00 : f32
    %108 = vector.broadcast %cst_37 : f32 to vector<16x128xf32>
    %109 = arith.addf %108, %107 : vector<16x128xf32>
    %110 = arith.divf %108, %109 : vector<16x128xf32>
    %111 = arith.mulf %102, %76 : vector<16x128xf32>
    %112 = arith.mulf %96, %104 : vector<16x128xf32>
    %113 = arith.addf %111, %112 : vector<16x128xf32>
    %114 = math.tanh %113 : vector<16x128xf32>
    %115 = arith.mulf %110, %114 : vector<16x128xf32>
    %116 = arith.truncf %115 : vector<16x128xf32> to vector<16x128xbf16>
    %117 = arith.index_cast %c2_i32 : i32 to index
    %c0_38 = arith.constant 0 : index
    %c0_39 = arith.constant 0 : index
    %118 = vector.load %arg11[%117, %c0_38, %c0_39] : memref<8x16x128xbf16, #tpu.memory_space<vmem>>, vector<1x16x128xbf16>
    %119 = vector.shape_cast %118 : vector<1x16x128xbf16> to vector<16x128xbf16>
    %120 = vector.shape_cast %116 : vector<16x128xbf16> to vector<1x16x128xbf16>
    tpu.vector_store %arg11[%117, %c0_38, %c0_39], %120 {strides = array<i32>} : memref<8x16x128xbf16, #tpu.memory_space<vmem>>, vector<1x16x128xbf16>,
    %c3_i32 = arith.constant 3 : i32
    %121 = arith.truncf %115 : vector<16x128xf32> to vector<16x128xbf16>
    %122 = arith.index_cast %c3_i32 : i32 to index
    %c0_40 = arith.constant 0 : index
    %c0_41 = arith.constant 0 : index
    %123 = vector.load %arg12[%122, %c0_40, %c0_41] : memref<8x16x512xf32, #tpu.memory_space<vmem>>, vector<1x16x512xf32>
    %124 = vector.shape_cast %123 : vector<1x16x512xf32> to vector<16x512xf32>
    %c0_42 = arith.constant 0 : index
    %c0_43 = arith.constant 0 : index
    %125 = vector.load %arg3[%c0_42, %c0_43] : memref<128x512xbf16, #tpu.memory_space<vmem>>, vector<128x512xbf16>
    %cst_44 = arith.constant dense<0.000000e+00> : vector<16x512xf32>
    %126 = tpu.matmul %121, %125, %cst_44 {dimension_numbers = #tpu.dot_dimension_numbers<[1], [0], [0], [1], [0, 0, 1, 1], [], []>} : vector<16x128xbf16>, vector<128x512xbf16>, vector<16x512xf32> -> vector<16x512xf32>
    %127 = arith.addf %124, %126 : vector<16x512xf32>
    %128 = vector.extract_strided_slice %127 {offsets = [0, 0], sizes = [16, 128], strides = [1, 1]} : vector<16x512xf32> to vector<16x128xf32>
    %129 = arith.negf %128 : vector<16x128xf32>
    %130 = math.exp %129 : vector<16x128xf32>
    %cst_45 = arith.constant 1.000000e+00 : f32
    %131 = vector.broadcast %cst_45 : f32 to vector<16x128xf32>
    %132 = arith.addf %131, %130 : vector<16x128xf32>
    %133 = arith.divf %131, %132 : vector<16x128xf32>
    %134 = vector.extract_strided_slice %127 {offsets = [0, 128], sizes = [16, 128], strides = [1, 1]} : vector<16x512xf32> to vector<16x128xf32>
    %135 = arith.negf %134 : vector<16x128xf32>
    %136 = math.exp %135 : vector<16x128xf32>
    %cst_46 = arith.constant 1.000000e+00 : f32
    %137 = vector.broadcast %cst_46 : f32 to vector<16x128xf32>
    %138 = arith.addf %137, %136 : vector<16x128xf32>
    %139 = arith.divf %137, %138 : vector<16x128xf32>
    %140 = vector.extract_strided_slice %127 {offsets = [0, 256], sizes = [16, 128], strides = [1, 1]} : vector<16x512xf32> to vector<16x128xf32>
    %141 = math.tanh %140 : vector<16x128xf32>
    %142 = vector.extract_strided_slice %127 {offsets = [0, 384], sizes = [16, 128], strides = [1, 1]} : vector<16x512xf32> to vector<16x128xf32>
    %143 = arith.negf %142 : vector<16x128xf32>
    %144 = math.exp %143 : vector<16x128xf32>
    %cst_47 = arith.constant 1.000000e+00 : f32
    %145 = vector.broadcast %cst_47 : f32 to vector<16x128xf32>
    %146 = arith.addf %145, %144 : vector<16x128xf32>
    %147 = arith.divf %145, %146 : vector<16x128xf32>
    %148 = arith.mulf %139, %113 : vector<16x128xf32>
    %149 = arith.mulf %133, %141 : vector<16x128xf32>
    %150 = arith.addf %148, %149 : vector<16x128xf32>
    %151 = math.tanh %150 : vector<16x128xf32>
    %152 = arith.mulf %147, %151 : vector<16x128xf32>
    %153 = arith.truncf %152 : vector<16x128xf32> to vector<16x128xbf16>
    %154 = arith.index_cast %c3_i32 : i32 to index
    %c0_48 = arith.constant 0 : index
    %c0_49 = arith.constant 0 : index
    %155 = vector.load %arg11[%154, %c0_48, %c0_49] : memref<8x16x128xbf16, #tpu.memory_space<vmem>>, vector<1x16x128xbf16>
    %156 = vector.shape_cast %155 : vector<1x16x128xbf16> to vector<16x128xbf16>
    %157 = vector.shape_cast %153 : vector<16x128xbf16> to vector<1x16x128xbf16>
    tpu.vector_store %arg11[%154, %c0_48, %c0_49], %157 {strides = array<i32>} : memref<8x16x128xbf16, #tpu.memory_space<vmem>>, vector<1x16x128xbf16>,
    %c4_i32 = arith.constant 4 : i32
    %158 = arith.truncf %152 : vector<16x128xf32> to vector<16x128xbf16>
    %159 = arith.index_cast %c4_i32 : i32 to index
    %c0_50 = arith.constant 0 : index
    %c0_51 = arith.constant 0 : index
    %160 = vector.load %arg12[%159, %c0_50, %c0_51] : memref<8x16x512xf32, #tpu.memory_space<vmem>>, vector<1x16x512xf32>
    %161 = vector.shape_cast %160 : vector<1x16x512xf32> to vector<16x512xf32>
    %c0_52 = arith.constant 0 : index
    %c0_53 = arith.constant 0 : index
    %162 = vector.load %arg3[%c0_52, %c0_53] : memref<128x512xbf16, #tpu.memory_space<vmem>>, vector<128x512xbf16>
    %cst_54 = arith.constant dense<0.000000e+00> : vector<16x512xf32>
    %163 = tpu.matmul %158, %162, %cst_54 {dimension_numbers = #tpu.dot_dimension_numbers<[1], [0], [0], [1], [0, 0, 1, 1], [], []>} : vector<16x128xbf16>, vector<128x512xbf16>, vector<16x512xf32> -> vector<16x512xf32>
    %164 = arith.addf %161, %163 : vector<16x512xf32>
    %165 = vector.extract_strided_slice %164 {offsets = [0, 0], sizes = [16, 128], strides = [1, 1]} : vector<16x512xf32> to vector<16x128xf32>
    %166 = arith.negf %165 : vector<16x128xf32>
    %167 = math.exp %166 : vector<16x128xf32>
    %cst_55 = arith.constant 1.000000e+00 : f32
    %168 = vector.broadcast %cst_55 : f32 to vector<16x128xf32>
    %169 = arith.addf %168, %167 : vector<16x128xf32>
    %170 = arith.divf %168, %169 : vector<16x128xf32>
    %171 = vector.extract_strided_slice %164 {offsets = [0, 128], sizes = [16, 128], strides = [1, 1]} : vector<16x512xf32> to vector<16x128xf32>
    %172 = arith.negf %171 : vector<16x128xf32>
    %173 = math.exp %172 : vector<16x128xf32>
    %cst_56 = arith.constant 1.000000e+00 : f32
    %174 = vector.broadcast %cst_56 : f32 to vector<16x128xf32>
    %175 = arith.addf %174, %173 : vector<16x128xf32>
    %176 = arith.divf %174, %175 : vector<16x128xf32>
    %177 = vector.extract_strided_slice %164 {offsets = [0, 256], sizes = [16, 128], strides = [1, 1]} : vector<16x512xf32> to vector<16x128xf32>
    %178 = math.tanh %177 : vector<16x128xf32>
    %179 = vector.extract_strided_slice %164 {offsets = [0, 384], sizes = [16, 128], strides = [1, 1]} : vector<16x512xf32> to vector<16x128xf32>
    %180 = arith.negf %179 : vector<16x128xf32>
    %181 = math.exp %180 : vector<16x128xf32>
    %cst_57 = arith.constant 1.000000e+00 : f32
    %182 = vector.broadcast %cst_57 : f32 to vector<16x128xf32>
    %183 = arith.addf %182, %181 : vector<16x128xf32>
    %184 = arith.divf %182, %183 : vector<16x128xf32>
    %185 = arith.mulf %176, %150 : vector<16x128xf32>
    %186 = arith.mulf %170, %178 : vector<16x128xf32>
    %187 = arith.addf %185, %186 : vector<16x128xf32>
    %188 = math.tanh %187 : vector<16x128xf32>
    %189 = arith.mulf %184, %188 : vector<16x128xf32>
    %190 = arith.truncf %189 : vector<16x128xf32> to vector<16x128xbf16>
    %191 = arith.index_cast %c4_i32 : i32 to index
    %c0_58 = arith.constant 0 : index
    %c0_59 = arith.constant 0 : index
    %192 = vector.load %arg11[%191, %c0_58, %c0_59] : memref<8x16x128xbf16, #tpu.memory_space<vmem>>, vector<1x16x128xbf16>
    %193 = vector.shape_cast %192 : vector<1x16x128xbf16> to vector<16x128xbf16>
    %194 = vector.shape_cast %190 : vector<16x128xbf16> to vector<1x16x128xbf16>
    tpu.vector_store %arg11[%191, %c0_58, %c0_59], %194 {strides = array<i32>} : memref<8x16x128xbf16, #tpu.memory_space<vmem>>, vector<1x16x128xbf16>,
    %c5_i32 = arith.constant 5 : i32
    %195 = arith.truncf %189 : vector<16x128xf32> to vector<16x128xbf16>
    %196 = arith.index_cast %c5_i32 : i32 to index
    %c0_60 = arith.constant 0 : index
    %c0_61 = arith.constant 0 : index
    %197 = vector.load %arg12[%196, %c0_60, %c0_61] : memref<8x16x512xf32, #tpu.memory_space<vmem>>, vector<1x16x512xf32>
    %198 = vector.shape_cast %197 : vector<1x16x512xf32> to vector<16x512xf32>
    %c0_62 = arith.constant 0 : index
    %c0_63 = arith.constant 0 : index
    %199 = vector.load %arg3[%c0_62, %c0_63] : memref<128x512xbf16, #tpu.memory_space<vmem>>, vector<128x512xbf16>
    %cst_64 = arith.constant dense<0.000000e+00> : vector<16x512xf32>
    %200 = tpu.matmul %195, %199, %cst_64 {dimension_numbers = #tpu.dot_dimension_numbers<[1], [0], [0], [1], [0, 0, 1, 1], [], []>} : vector<16x128xbf16>, vector<128x512xbf16>, vector<16x512xf32> -> vector<16x512xf32>
    %201 = arith.addf %198, %200 : vector<16x512xf32>
    %202 = vector.extract_strided_slice %201 {offsets = [0, 0], sizes = [16, 128], strides = [1, 1]} : vector<16x512xf32> to vector<16x128xf32>
    %203 = arith.negf %202 : vector<16x128xf32>
    %204 = math.exp %203 : vector<16x128xf32>
    %cst_65 = arith.constant 1.000000e+00 : f32
    %205 = vector.broadcast %cst_65 : f32 to vector<16x128xf32>
    %206 = arith.addf %205, %204 : vector<16x128xf32>
    %207 = arith.divf %205, %206 : vector<16x128xf32>
    %208 = vector.extract_strided_slice %201 {offsets = [0, 128], sizes = [16, 128], strides = [1, 1]} : vector<16x512xf32> to vector<16x128xf32>
    %209 = arith.negf %208 : vector<16x128xf32>
    %210 = math.exp %209 : vector<16x128xf32>
    %cst_66 = arith.constant 1.000000e+00 : f32
    %211 = vector.broadcast %cst_66 : f32 to vector<16x128xf32>
    %212 = arith.addf %211, %210 : vector<16x128xf32>
    %213 = arith.divf %211, %212 : vector<16x128xf32>
    %214 = vector.extract_strided_slice %201 {offsets = [0, 256], sizes = [16, 128], strides = [1, 1]} : vector<16x512xf32> to vector<16x128xf32>
    %215 = math.tanh %214 : vector<16x128xf32>
    %216 = vector.extract_strided_slice %201 {offsets = [0, 384], sizes = [16, 128], strides = [1, 1]} : vector<16x512xf32> to vector<16x128xf32>
    %217 = arith.negf %216 : vector<16x128xf32>
    %218 = math.exp %217 : vector<16x128xf32>
    %cst_67 = arith.constant 1.000000e+00 : f32
    %219 = vector.broadcast %cst_67 : f32 to vector<16x128xf32>
    %220 = arith.addf %219, %218 : vector<16x128xf32>
    %221 = arith.divf %219, %220 : vector<16x128xf32>
    %222 = arith.mulf %213, %187 : vector<16x128xf32>
    %223 = arith.mulf %207, %215 : vector<16x128xf32>
    %224 = arith.addf %222, %223 : vector<16x128xf32>
    %225 = math.tanh %224 : vector<16x128xf32>
    %226 = arith.mulf %221, %225 : vector<16x128xf32>
    %227 = arith.truncf %226 : vector<16x128xf32> to vector<16x128xbf16>
    %228 = arith.index_cast %c5_i32 : i32 to index
    %c0_68 = arith.constant 0 : index
    %c0_69 = arith.constant 0 : index
    %229 = vector.load %arg11[%228, %c0_68, %c0_69] : memref<8x16x128xbf16, #tpu.memory_space<vmem>>, vector<1x16x128xbf16>
    %230 = vector.shape_cast %229 : vector<1x16x128xbf16> to vector<16x128xbf16>
    %231 = vector.shape_cast %227 : vector<16x128xbf16> to vector<1x16x128xbf16>
    tpu.vector_store %arg11[%228, %c0_68, %c0_69], %231 {strides = array<i32>} : memref<8x16x128xbf16, #tpu.memory_space<vmem>>, vector<1x16x128xbf16>,
    %c6_i32 = arith.constant 6 : i32
    %232 = arith.truncf %226 : vector<16x128xf32> to vector<16x128xbf16>
    %233 = arith.index_cast %c6_i32 : i32 to index
    %c0_70 = arith.constant 0 : index
    %c0_71 = arith.constant 0 : index
    %234 = vector.load %arg12[%233, %c0_70, %c0_71] : memref<8x16x512xf32, #tpu.memory_space<vmem>>, vector<1x16x512xf32>
    %235 = vector.shape_cast %234 : vector<1x16x512xf32> to vector<16x512xf32>
    %c0_72 = arith.constant 0 : index
    %c0_73 = arith.constant 0 : index
    %236 = vector.load %arg3[%c0_72, %c0_73] : memref<128x512xbf16, #tpu.memory_space<vmem>>, vector<128x512xbf16>
    %cst_74 = arith.constant dense<0.000000e+00> : vector<16x512xf32>
    %237 = tpu.matmul %232, %236, %cst_74 {dimension_numbers = #tpu.dot_dimension_numbers<[1], [0], [0], [1], [0, 0, 1, 1], [], []>} : vector<16x128xbf16>, vector<128x512xbf16>, vector<16x512xf32> -> vector<16x512xf32>
    %238 = arith.addf %235, %237 : vector<16x512xf32>
    %239 = vector.extract_strided_slice %238 {offsets = [0, 0], sizes = [16, 128], strides = [1, 1]} : vector<16x512xf32> to vector<16x128xf32>
    %240 = arith.negf %239 : vector<16x128xf32>
    %241 = math.exp %240 : vector<16x128xf32>
    %cst_75 = arith.constant 1.000000e+00 : f32
    %242 = vector.broadcast %cst_75 : f32 to vector<16x128xf32>
    %243 = arith.addf %242, %241 : vector<16x128xf32>
    %244 = arith.divf %242, %243 : vector<16x128xf32>
    %245 = vector.extract_strided_slice %238 {offsets = [0, 128], sizes = [16, 128], strides = [1, 1]} : vector<16x512xf32> to vector<16x128xf32>
    %246 = arith.negf %245 : vector<16x128xf32>
    %247 = math.exp %246 : vector<16x128xf32>
    %cst_76 = arith.constant 1.000000e+00 : f32
    %248 = vector.broadcast %cst_76 : f32 to vector<16x128xf32>
    %249 = arith.addf %248, %247 : vector<16x128xf32>
    %250 = arith.divf %248, %249 : vector<16x128xf32>
    %251 = vector.extract_strided_slice %238 {offsets = [0, 256], sizes = [16, 128], strides = [1, 1]} : vector<16x512xf32> to vector<16x128xf32>
    %252 = math.tanh %251 : vector<16x128xf32>
    %253 = vector.extract_strided_slice %238 {offsets = [0, 384], sizes = [16, 128], strides = [1, 1]} : vector<16x512xf32> to vector<16x128xf32>
    %254 = arith.negf %253 : vector<16x128xf32>
    %255 = math.exp %254 : vector<16x128xf32>
    %cst_77 = arith.constant 1.000000e+00 : f32
    %256 = vector.broadcast %cst_77 : f32 to vector<16x128xf32>
    %257 = arith.addf %256, %255 : vector<16x128xf32>
    %258 = arith.divf %256, %257 : vector<16x128xf32>
    %259 = arith.mulf %250, %224 : vector<16x128xf32>
    %260 = arith.mulf %244, %252 : vector<16x128xf32>
    %261 = arith.addf %259, %260 : vector<16x128xf32>
    %262 = math.tanh %261 : vector<16x128xf32>
    %263 = arith.mulf %258, %262 : vector<16x128xf32>
    %264 = arith.truncf %263 : vector<16x128xf32> to vector<16x128xbf16>
    %265 = arith.index_cast %c6_i32 : i32 to index
    %c0_78 = arith.constant 0 : index
    %c0_79 = arith.constant 0 : index
    %266 = vector.load %arg11[%265, %c0_78, %c0_79] : memref<8x16x128xbf16, #tpu.memory_space<vmem>>, vector<1x16x128xbf16>
    %267 = vector.shape_cast %266 : vector<1x16x128xbf16> to vector<16x128xbf16>
    %268 = vector.shape_cast %264 : vector<16x128xbf16> to vector<1x16x128xbf16>
    tpu.vector_store %arg11[%265, %c0_78, %c0_79], %268 {strides = array<i32>} : memref<8x16x128xbf16, #tpu.memory_space<vmem>>, vector<1x16x128xbf16>,
    %c7_i32 = arith.constant 7 : i32
    %269 = arith.truncf %263 : vector<16x128xf32> to vector<16x128xbf16>
    %270 = arith.index_cast %c7_i32 : i32 to index
    %c0_80 = arith.constant 0 : index
    %c0_81 = arith.constant 0 : index
    %271 = vector.load %arg12[%270, %c0_80, %c0_81] : memref<8x16x512xf32, #tpu.memory_space<vmem>>, vector<1x16x512xf32>
    %272 = vector.shape_cast %271 : vector<1x16x512xf32> to vector<16x512xf32>
    %c0_82 = arith.constant 0 : index
    %c0_83 = arith.constant 0 : index
    %273 = vector.load %arg3[%c0_82, %c0_83] : memref<128x512xbf16, #tpu.memory_space<vmem>>, vector<128x512xbf16>
    %cst_84 = arith.constant dense<0.000000e+00> : vector<16x512xf32>
    %274 = tpu.matmul %269, %273, %cst_84 {dimension_numbers = #tpu.dot_dimension_numbers<[1], [0], [0], [1], [0, 0, 1, 1], [], []>} : vector<16x128xbf16>, vector<128x512xbf16>, vector<16x512xf32> -> vector<16x512xf32>
    %275 = arith.addf %272, %274 : vector<16x512xf32>
    %276 = vector.extract_strided_slice %275 {offsets = [0, 0], sizes = [16, 128], strides = [1, 1]} : vector<16x512xf32> to vector<16x128xf32>
    %277 = arith.negf %276 : vector<16x128xf32>
    %278 = math.exp %277 : vector<16x128xf32>
    %cst_85 = arith.constant 1.000000e+00 : f32
    %279 = vector.broadcast %cst_85 : f32 to vector<16x128xf32>
    %280 = arith.addf %279, %278 : vector<16x128xf32>
    %281 = arith.divf %279, %280 : vector<16x128xf32>
    %282 = vector.extract_strided_slice %275 {offsets = [0, 128], sizes = [16, 128], strides = [1, 1]} : vector<16x512xf32> to vector<16x128xf32>
    %283 = arith.negf %282 : vector<16x128xf32>
    %284 = math.exp %283 : vector<16x128xf32>
    %cst_86 = arith.constant 1.000000e+00 : f32
    %285 = vector.broadcast %cst_86 : f32 to vector<16x128xf32>
    %286 = arith.addf %285, %284 : vector<16x128xf32>
    %287 = arith.divf %285, %286 : vector<16x128xf32>
    %288 = vector.extract_strided_slice %275 {offsets = [0, 256], sizes = [16, 128], strides = [1, 1]} : vector<16x512xf32> to vector<16x128xf32>
    %289 = math.tanh %288 : vector<16x128xf32>
    %290 = vector.extract_strided_slice %275 {offsets = [0, 384], sizes = [16, 128], strides = [1, 1]} : vector<16x512xf32> to vector<16x128xf32>
    %291 = arith.negf %290 : vector<16x128xf32>
    %292 = math.exp %291 : vector<16x128xf32>
    %cst_87 = arith.constant 1.000000e+00 : f32
    %293 = vector.broadcast %cst_87 : f32 to vector<16x128xf32>
    %294 = arith.addf %293, %292 : vector<16x128xf32>
    %295 = arith.divf %293, %294 : vector<16x128xf32>
    %296 = arith.mulf %287, %261 : vector<16x128xf32>
    %297 = arith.mulf %281, %289 : vector<16x128xf32>
    %298 = arith.addf %296, %297 : vector<16x128xf32>
    %299 = math.tanh %298 : vector<16x128xf32>
    %300 = arith.mulf %295, %299 : vector<16x128xf32>
    %301 = arith.truncf %300 : vector<16x128xf32> to vector<16x128xbf16>
    %302 = arith.index_cast %c7_i32 : i32 to index
    %c0_88 = arith.constant 0 : index
    %c0_89 = arith.constant 0 : index
    %303 = vector.load %arg11[%302, %c0_88, %c0_89] : memref<8x16x128xbf16, #tpu.memory_space<vmem>>, vector<1x16x128xbf16>
    %304 = vector.shape_cast %303 : vector<1x16x128xbf16> to vector<16x128xbf16>
    %305 = vector.shape_cast %301 : vector<16x128xbf16> to vector<1x16x128xbf16>
    tpu.vector_store %arg11[%302, %c0_88, %c0_89], %305 {strides = array<i32>} : memref<8x16x128xbf16, #tpu.memory_space<vmem>>, vector<1x16x128xbf16>,
    %c8_i32 = arith.constant 8 : i32
    %c0_90 = arith.constant 0 : index
    %c0_91 = arith.constant 0 : index
    %c0_92 = arith.constant 0 : index
    %306 = vector.load %arg11[%c0_90, %c0_91, %c0_92] : memref<8x16x128xbf16, #tpu.memory_space<vmem>>, vector<8x16x128xbf16>
    %307 = vector.shape_cast %306 : vector<8x16x128xbf16> to vector<128x128xbf16>
    %c0_93 = arith.constant 0 : index
    %c0_94 = arith.constant 0 : index
    %308 = vector.load %arg5[%c0_93, %c0_94] : memref<128x512xbf16, #tpu.memory_space<vmem>>, vector<128x512xbf16>
    %cst_95 = arith.constant dense<0.000000e+00> : vector<128x512xf32>
    %309 = tpu.matmul %307, %308, %cst_95 {dimension_numbers = #tpu.dot_dimension_numbers<[1], [0], [0], [1], [0, 0, 1, 1], [], []>} : vector<128x128xbf16>, vector<128x512xbf16>, vector<128x512xf32> -> vector<128x512xf32>
    %c0_96 = arith.constant 0 : index
    %c0_97 = arith.constant 0 : index
    %310 = vector.load %arg7[%c0_96, %c0_97] : memref<1x512xf32, #tpu.memory_space<vmem>>, vector<1x512xf32>
    %311 = vector.broadcast %310 : vector<1x512xf32> to vector<128x512xf32>
    %312 = arith.addf %309, %311 : vector<128x512xf32>
    %313 = vector.shape_cast %312 : vector<128x512xf32> to vector<8x16x512xf32>
    %c0_98 = arith.constant 0 : index
    %c0_99 = arith.constant 0 : index
    %c0_100 = arith.constant 0 : index
    %314 = vector.load %arg12[%c0_98, %c0_99, %c0_100] : memref<8x16x512xf32, #tpu.memory_space<vmem>>, vector<8x16x512xf32>
    tpu.vector_store %arg12[%c0_98, %c0_99, %c0_100], %313 {strides = array<i32>} : memref<8x16x512xf32, #tpu.memory_space<vmem>>, vector<8x16x512xf32>,
    %cst_101 = arith.constant 0.000000e+00 : f32
    %315 = vector.broadcast %cst_101 : f32 to vector<16x128xf32>
    %c0_i32_102 = arith.constant 0 : i32
    %316 = arith.truncf %315 : vector<16x128xf32> to vector<16x128xbf16>
    %317 = arith.index_cast %c0_i32_102 : i32 to index
    %c0_103 = arith.constant 0 : index
    %c0_104 = arith.constant 0 : index
    %318 = vector.load %arg12[%317, %c0_103, %c0_104] : memref<8x16x512xf32, #tpu.memory_space<vmem>>, vector<1x16x512xf32>
    %319 = vector.shape_cast %318 : vector<1x16x512xf32> to vector<16x512xf32>
    %c0_105 = arith.constant 0 : index
    %c0_106 = arith.constant 0 : index
    %320 = vector.load %arg6[%c0_105, %c0_106] : memref<128x512xbf16, #tpu.memory_space<vmem>>, vector<128x512xbf16>
    %cst_107 = arith.constant dense<0.000000e+00> : vector<16x512xf32>
    %321 = tpu.matmul %316, %320, %cst_107 {dimension_numbers = #tpu.dot_dimension_numbers<[1], [0], [0], [1], [0, 0, 1, 1], [], []>} : vector<16x128xbf16>, vector<128x512xbf16>, vector<16x512xf32> -> vector<16x512xf32>
    %322 = arith.addf %319, %321 : vector<16x512xf32>
    %323 = vector.extract_strided_slice %322 {offsets = [0, 0], sizes = [16, 128], strides = [1, 1]} : vector<16x512xf32> to vector<16x128xf32>
    %324 = arith.negf %323 : vector<16x128xf32>
    %325 = math.exp %324 : vector<16x128xf32>
    %cst_108 = arith.constant 1.000000e+00 : f32
    %326 = vector.broadcast %cst_108 : f32 to vector<16x128xf32>
    %327 = arith.addf %326, %325 : vector<16x128xf32>
    %328 = arith.divf %326, %327 : vector<16x128xf32>
    %329 = vector.extract_strided_slice %322 {offsets = [0, 128], sizes = [16, 128], strides = [1, 1]} : vector<16x512xf32> to vector<16x128xf32>
    %330 = arith.negf %329 : vector<16x128xf32>
    %331 = math.exp %330 : vector<16x128xf32>
    %cst_109 = arith.constant 1.000000e+00 : f32
    %332 = vector.broadcast %cst_109 : f32 to vector<16x128xf32>
    %333 = arith.addf %332, %331 : vector<16x128xf32>
    %334 = arith.divf %332, %333 : vector<16x128xf32>
    %335 = vector.extract_strided_slice %322 {offsets = [0, 256], sizes = [16, 128], strides = [1, 1]} : vector<16x512xf32> to vector<16x128xf32>
    %336 = math.tanh %335 : vector<16x128xf32>
    %337 = vector.extract_strided_slice %322 {offsets = [0, 384], sizes = [16, 128], strides = [1, 1]} : vector<16x512xf32> to vector<16x128xf32>
    %338 = arith.negf %337 : vector<16x128xf32>
    %339 = math.exp %338 : vector<16x128xf32>
    %cst_110 = arith.constant 1.000000e+00 : f32
    %340 = vector.broadcast %cst_110 : f32 to vector<16x128xf32>
    %341 = arith.addf %340, %339 : vector<16x128xf32>
    %342 = arith.divf %340, %341 : vector<16x128xf32>
    %343 = arith.mulf %334, %315 : vector<16x128xf32>
    %344 = arith.mulf %328, %336 : vector<16x128xf32>
    %345 = arith.addf %343, %344 : vector<16x128xf32>
    %346 = math.tanh %345 : vector<16x128xf32>
    %347 = arith.mulf %342, %346 : vector<16x128xf32>
    %348 = arith.truncf %347 : vector<16x128xf32> to vector<16x128xbf16>
    %349 = arith.index_cast %c0_i32_102 : i32 to index
    %c0_111 = arith.constant 0 : index
    %c0_112 = arith.constant 0 : index
    %350 = vector.load %arg11[%349, %c0_111, %c0_112] : memref<8x16x128xbf16, #tpu.memory_space<vmem>>, vector<1x16x128xbf16>
    %351 = vector.shape_cast %350 : vector<1x16x128xbf16> to vector<16x128xbf16>
    %352 = vector.shape_cast %348 : vector<16x128xbf16> to vector<1x16x128xbf16>
    tpu.vector_store %arg11[%349, %c0_111, %c0_112], %352 {strides = array<i32>} : memref<8x16x128xbf16, #tpu.memory_space<vmem>>, vector<1x16x128xbf16>,
    %c1_i32_113 = arith.constant 1 : i32
    %353 = arith.truncf %347 : vector<16x128xf32> to vector<16x128xbf16>
    %354 = arith.index_cast %c1_i32_113 : i32 to index
    %c0_114 = arith.constant 0 : index
    %c0_115 = arith.constant 0 : index
    %355 = vector.load %arg12[%354, %c0_114, %c0_115] : memref<8x16x512xf32, #tpu.memory_space<vmem>>, vector<1x16x512xf32>
    %356 = vector.shape_cast %355 : vector<1x16x512xf32> to vector<16x512xf32>
    %c0_116 = arith.constant 0 : index
    %c0_117 = arith.constant 0 : index
    %357 = vector.load %arg6[%c0_116, %c0_117] : memref<128x512xbf16, #tpu.memory_space<vmem>>, vector<128x512xbf16>
    %cst_118 = arith.constant dense<0.000000e+00> : vector<16x512xf32>
    %358 = tpu.matmul %353, %357, %cst_118 {dimension_numbers = #tpu.dot_dimension_numbers<[1], [0], [0], [1], [0, 0, 1, 1], [], []>} : vector<16x128xbf16>, vector<128x512xbf16>, vector<16x512xf32> -> vector<16x512xf32>
    %359 = arith.addf %356, %358 : vector<16x512xf32>
    %360 = vector.extract_strided_slice %359 {offsets = [0, 0], sizes = [16, 128], strides = [1, 1]} : vector<16x512xf32> to vector<16x128xf32>
    %361 = arith.negf %360 : vector<16x128xf32>
    %362 = math.exp %361 : vector<16x128xf32>
    %cst_119 = arith.constant 1.000000e+00 : f32
    %363 = vector.broadcast %cst_119 : f32 to vector<16x128xf32>
    %364 = arith.addf %363, %362 : vector<16x128xf32>
    %365 = arith.divf %363, %364 : vector<16x128xf32>
    %366 = vector.extract_strided_slice %359 {offsets = [0, 128], sizes = [16, 128], strides = [1, 1]} : vector<16x512xf32> to vector<16x128xf32>
    %367 = arith.negf %366 : vector<16x128xf32>
    %368 = math.exp %367 : vector<16x128xf32>
    %cst_120 = arith.constant 1.000000e+00 : f32
    %369 = vector.broadcast %cst_120 : f32 to vector<16x128xf32>
    %370 = arith.addf %369, %368 : vector<16x128xf32>
    %371 = arith.divf %369, %370 : vector<16x128xf32>
    %372 = vector.extract_strided_slice %359 {offsets = [0, 256], sizes = [16, 128], strides = [1, 1]} : vector<16x512xf32> to vector<16x128xf32>
    %373 = math.tanh %372 : vector<16x128xf32>
    %374 = vector.extract_strided_slice %359 {offsets = [0, 384], sizes = [16, 128], strides = [1, 1]} : vector<16x512xf32> to vector<16x128xf32>
    %375 = arith.negf %374 : vector<16x128xf32>
    %376 = math.exp %375 : vector<16x128xf32>
    %cst_121 = arith.constant 1.000000e+00 : f32
    %377 = vector.broadcast %cst_121 : f32 to vector<16x128xf32>
    %378 = arith.addf %377, %376 : vector<16x128xf32>
    %379 = arith.divf %377, %378 : vector<16x128xf32>
    %380 = arith.mulf %371, %345 : vector<16x128xf32>
    %381 = arith.mulf %365, %373 : vector<16x128xf32>
    %382 = arith.addf %380, %381 : vector<16x128xf32>
    %383 = math.tanh %382 : vector<16x128xf32>
    %384 = arith.mulf %379, %383 : vector<16x128xf32>
    %385 = arith.truncf %384 : vector<16x128xf32> to vector<16x128xbf16>
    %386 = arith.index_cast %c1_i32_113 : i32 to index
    %c0_122 = arith.constant 0 : index
    %c0_123 = arith.constant 0 : index
    %387 = vector.load %arg11[%386, %c0_122, %c0_123] : memref<8x16x128xbf16, #tpu.memory_space<vmem>>, vector<1x16x128xbf16>
    %388 = vector.shape_cast %387 : vector<1x16x128xbf16> to vector<16x128xbf16>
    %389 = vector.shape_cast %385 : vector<16x128xbf16> to vector<1x16x128xbf16>
    tpu.vector_store %arg11[%386, %c0_122, %c0_123], %389 {strides = array<i32>} : memref<8x16x128xbf16, #tpu.memory_space<vmem>>, vector<1x16x128xbf16>,
    %c2_i32_124 = arith.constant 2 : i32
    %390 = arith.truncf %384 : vector<16x128xf32> to vector<16x128xbf16>
    %391 = arith.index_cast %c2_i32_124 : i32 to index
    %c0_125 = arith.constant 0 : index
    %c0_126 = arith.constant 0 : index
    %392 = vector.load %arg12[%391, %c0_125, %c0_126] : memref<8x16x512xf32, #tpu.memory_space<vmem>>, vector<1x16x512xf32>
    %393 = vector.shape_cast %392 : vector<1x16x512xf32> to vector<16x512xf32>
    %c0_127 = arith.constant 0 : index
    %c0_128 = arith.constant 0 : index
    %394 = vector.load %arg6[%c0_127, %c0_128] : memref<128x512xbf16, #tpu.memory_space<vmem>>, vector<128x512xbf16>
    %cst_129 = arith.constant dense<0.000000e+00> : vector<16x512xf32>
    %395 = tpu.matmul %390, %394, %cst_129 {dimension_numbers = #tpu.dot_dimension_numbers<[1], [0], [0], [1], [0, 0, 1, 1], [], []>} : vector<16x128xbf16>, vector<128x512xbf16>, vector<16x512xf32> -> vector<16x512xf32>
    %396 = arith.addf %393, %395 : vector<16x512xf32>
    %397 = vector.extract_strided_slice %396 {offsets = [0, 0], sizes = [16, 128], strides = [1, 1]} : vector<16x512xf32> to vector<16x128xf32>
    %398 = arith.negf %397 : vector<16x128xf32>
    %399 = math.exp %398 : vector<16x128xf32>
    %cst_130 = arith.constant 1.000000e+00 : f32
    %400 = vector.broadcast %cst_130 : f32 to vector<16x128xf32>
    %401 = arith.addf %400, %399 : vector<16x128xf32>
    %402 = arith.divf %400, %401 : vector<16x128xf32>
    %403 = vector.extract_strided_slice %396 {offsets = [0, 128], sizes = [16, 128], strides = [1, 1]} : vector<16x512xf32> to vector<16x128xf32>
    %404 = arith.negf %403 : vector<16x128xf32>
    %405 = math.exp %404 : vector<16x128xf32>
    %cst_131 = arith.constant 1.000000e+00 : f32
    %406 = vector.broadcast %cst_131 : f32 to vector<16x128xf32>
    %407 = arith.addf %406, %405 : vector<16x128xf32>
    %408 = arith.divf %406, %407 : vector<16x128xf32>
    %409 = vector.extract_strided_slice %396 {offsets = [0, 256], sizes = [16, 128], strides = [1, 1]} : vector<16x512xf32> to vector<16x128xf32>
    %410 = math.tanh %409 : vector<16x128xf32>
    %411 = vector.extract_strided_slice %396 {offsets = [0, 384], sizes = [16, 128], strides = [1, 1]} : vector<16x512xf32> to vector<16x128xf32>
    %412 = arith.negf %411 : vector<16x128xf32>
    %413 = math.exp %412 : vector<16x128xf32>
    %cst_132 = arith.constant 1.000000e+00 : f32
    %414 = vector.broadcast %cst_132 : f32 to vector<16x128xf32>
    %415 = arith.addf %414, %413 : vector<16x128xf32>
    %416 = arith.divf %414, %415 : vector<16x128xf32>
    %417 = arith.mulf %408, %382 : vector<16x128xf32>
    %418 = arith.mulf %402, %410 : vector<16x128xf32>
    %419 = arith.addf %417, %418 : vector<16x128xf32>
    %420 = math.tanh %419 : vector<16x128xf32>
    %421 = arith.mulf %416, %420 : vector<16x128xf32>
    %422 = arith.truncf %421 : vector<16x128xf32> to vector<16x128xbf16>
    %423 = arith.index_cast %c2_i32_124 : i32 to index
    %c0_133 = arith.constant 0 : index
    %c0_134 = arith.constant 0 : index
    %424 = vector.load %arg11[%423, %c0_133, %c0_134] : memref<8x16x128xbf16, #tpu.memory_space<vmem>>, vector<1x16x128xbf16>
    %425 = vector.shape_cast %424 : vector<1x16x128xbf16> to vector<16x128xbf16>
    %426 = vector.shape_cast %422 : vector<16x128xbf16> to vector<1x16x128xbf16>
    tpu.vector_store %arg11[%423, %c0_133, %c0_134], %426 {strides = array<i32>} : memref<8x16x128xbf16, #tpu.memory_space<vmem>>, vector<1x16x128xbf16>,
    %c3_i32_135 = arith.constant 3 : i32
    %427 = arith.truncf %421 : vector<16x128xf32> to vector<16x128xbf16>
    %428 = arith.index_cast %c3_i32_135 : i32 to index
    %c0_136 = arith.constant 0 : index
    %c0_137 = arith.constant 0 : index
    %429 = vector.load %arg12[%428, %c0_136, %c0_137] : memref<8x16x512xf32, #tpu.memory_space<vmem>>, vector<1x16x512xf32>
    %430 = vector.shape_cast %429 : vector<1x16x512xf32> to vector<16x512xf32>
    %c0_138 = arith.constant 0 : index
    %c0_139 = arith.constant 0 : index
    %431 = vector.load %arg6[%c0_138, %c0_139] : memref<128x512xbf16, #tpu.memory_space<vmem>>, vector<128x512xbf16>
    %cst_140 = arith.constant dense<0.000000e+00> : vector<16x512xf32>
    %432 = tpu.matmul %427, %431, %cst_140 {dimension_numbers = #tpu.dot_dimension_numbers<[1], [0], [0], [1], [0, 0, 1, 1], [], []>} : vector<16x128xbf16>, vector<128x512xbf16>, vector<16x512xf32> -> vector<16x512xf32>
    %433 = arith.addf %430, %432 : vector<16x512xf32>
    %434 = vector.extract_strided_slice %433 {offsets = [0, 0], sizes = [16, 128], strides = [1, 1]} : vector<16x512xf32> to vector<16x128xf32>
    %435 = arith.negf %434 : vector<16x128xf32>
    %436 = math.exp %435 : vector<16x128xf32>
    %cst_141 = arith.constant 1.000000e+00 : f32
    %437 = vector.broadcast %cst_141 : f32 to vector<16x128xf32>
    %438 = arith.addf %437, %436 : vector<16x128xf32>
    %439 = arith.divf %437, %438 : vector<16x128xf32>
    %440 = vector.extract_strided_slice %433 {offsets = [0, 128], sizes = [16, 128], strides = [1, 1]} : vector<16x512xf32> to vector<16x128xf32>
    %441 = arith.negf %440 : vector<16x128xf32>
    %442 = math.exp %441 : vector<16x128xf32>
    %cst_142 = arith.constant 1.000000e+00 : f32
    %443 = vector.broadcast %cst_142 : f32 to vector<16x128xf32>
    %444 = arith.addf %443, %442 : vector<16x128xf32>
    %445 = arith.divf %443, %444 : vector<16x128xf32>
    %446 = vector.extract_strided_slice %433 {offsets = [0, 256], sizes = [16, 128], strides = [1, 1]} : vector<16x512xf32> to vector<16x128xf32>
    %447 = math.tanh %446 : vector<16x128xf32>
    %448 = vector.extract_strided_slice %433 {offsets = [0, 384], sizes = [16, 128], strides = [1, 1]} : vector<16x512xf32> to vector<16x128xf32>
    %449 = arith.negf %448 : vector<16x128xf32>
    %450 = math.exp %449 : vector<16x128xf32>
    %cst_143 = arith.constant 1.000000e+00 : f32
    %451 = vector.broadcast %cst_143 : f32 to vector<16x128xf32>
    %452 = arith.addf %451, %450 : vector<16x128xf32>
    %453 = arith.divf %451, %452 : vector<16x128xf32>
    %454 = arith.mulf %445, %419 : vector<16x128xf32>
    %455 = arith.mulf %439, %447 : vector<16x128xf32>
    %456 = arith.addf %454, %455 : vector<16x128xf32>
    %457 = math.tanh %456 : vector<16x128xf32>
    %458 = arith.mulf %453, %457 : vector<16x128xf32>
    %459 = arith.truncf %458 : vector<16x128xf32> to vector<16x128xbf16>
    %460 = arith.index_cast %c3_i32_135 : i32 to index
    %c0_144 = arith.constant 0 : index
    %c0_145 = arith.constant 0 : index
    %461 = vector.load %arg11[%460, %c0_144, %c0_145] : memref<8x16x128xbf16, #tpu.memory_space<vmem>>, vector<1x16x128xbf16>
    %462 = vector.shape_cast %461 : vector<1x16x128xbf16> to vector<16x128xbf16>
    %463 = vector.shape_cast %459 : vector<16x128xbf16> to vector<1x16x128xbf16>
    tpu.vector_store %arg11[%460, %c0_144, %c0_145], %463 {strides = array<i32>} : memref<8x16x128xbf16, #tpu.memory_space<vmem>>, vector<1x16x128xbf16>,
    %c4_i32_146 = arith.constant 4 : i32
    %464 = arith.truncf %458 : vector<16x128xf32> to vector<16x128xbf16>
    %465 = arith.index_cast %c4_i32_146 : i32 to index
    %c0_147 = arith.constant 0 : index
    %c0_148 = arith.constant 0 : index
    %466 = vector.load %arg12[%465, %c0_147, %c0_148] : memref<8x16x512xf32, #tpu.memory_space<vmem>>, vector<1x16x512xf32>
    %467 = vector.shape_cast %466 : vector<1x16x512xf32> to vector<16x512xf32>
    %c0_149 = arith.constant 0 : index
    %c0_150 = arith.constant 0 : index
    %468 = vector.load %arg6[%c0_149, %c0_150] : memref<128x512xbf16, #tpu.memory_space<vmem>>, vector<128x512xbf16>
    %cst_151 = arith.constant dense<0.000000e+00> : vector<16x512xf32>
    %469 = tpu.matmul %464, %468, %cst_151 {dimension_numbers = #tpu.dot_dimension_numbers<[1], [0], [0], [1], [0, 0, 1, 1], [], []>} : vector<16x128xbf16>, vector<128x512xbf16>, vector<16x512xf32> -> vector<16x512xf32>
    %470 = arith.addf %467, %469 : vector<16x512xf32>
    %471 = vector.extract_strided_slice %470 {offsets = [0, 0], sizes = [16, 128], strides = [1, 1]} : vector<16x512xf32> to vector<16x128xf32>
    %472 = arith.negf %471 : vector<16x128xf32>
    %473 = math.exp %472 : vector<16x128xf32>
    %cst_152 = arith.constant 1.000000e+00 : f32
    %474 = vector.broadcast %cst_152 : f32 to vector<16x128xf32>
    %475 = arith.addf %474, %473 : vector<16x128xf32>
    %476 = arith.divf %474, %475 : vector<16x128xf32>
    %477 = vector.extract_strided_slice %470 {offsets = [0, 128], sizes = [16, 128], strides = [1, 1]} : vector<16x512xf32> to vector<16x128xf32>
    %478 = arith.negf %477 : vector<16x128xf32>
    %479 = math.exp %478 : vector<16x128xf32>
    %cst_153 = arith.constant 1.000000e+00 : f32
    %480 = vector.broadcast %cst_153 : f32 to vector<16x128xf32>
    %481 = arith.addf %480, %479 : vector<16x128xf32>
    %482 = arith.divf %480, %481 : vector<16x128xf32>
    %483 = vector.extract_strided_slice %470 {offsets = [0, 256], sizes = [16, 128], strides = [1, 1]} : vector<16x512xf32> to vector<16x128xf32>
    %484 = math.tanh %483 : vector<16x128xf32>
    %485 = vector.extract_strided_slice %470 {offsets = [0, 384], sizes = [16, 128], strides = [1, 1]} : vector<16x512xf32> to vector<16x128xf32>
    %486 = arith.negf %485 : vector<16x128xf32>
    %487 = math.exp %486 : vector<16x128xf32>
    %cst_154 = arith.constant 1.000000e+00 : f32
    %488 = vector.broadcast %cst_154 : f32 to vector<16x128xf32>
    %489 = arith.addf %488, %487 : vector<16x128xf32>
    %490 = arith.divf %488, %489 : vector<16x128xf32>
    %491 = arith.mulf %482, %456 : vector<16x128xf32>
    %492 = arith.mulf %476, %484 : vector<16x128xf32>
    %493 = arith.addf %491, %492 : vector<16x128xf32>
    %494 = math.tanh %493 : vector<16x128xf32>
    %495 = arith.mulf %490, %494 : vector<16x128xf32>
    %496 = arith.truncf %495 : vector<16x128xf32> to vector<16x128xbf16>
    %497 = arith.index_cast %c4_i32_146 : i32 to index
    %c0_155 = arith.constant 0 : index
    %c0_156 = arith.constant 0 : index
    %498 = vector.load %arg11[%497, %c0_155, %c0_156] : memref<8x16x128xbf16, #tpu.memory_space<vmem>>, vector<1x16x128xbf16>
    %499 = vector.shape_cast %498 : vector<1x16x128xbf16> to vector<16x128xbf16>
    %500 = vector.shape_cast %496 : vector<16x128xbf16> to vector<1x16x128xbf16>
    tpu.vector_store %arg11[%497, %c0_155, %c0_156], %500 {strides = array<i32>} : memref<8x16x128xbf16, #tpu.memory_space<vmem>>, vector<1x16x128xbf16>,
    %c5_i32_157 = arith.constant 5 : i32
    %501 = arith.truncf %495 : vector<16x128xf32> to vector<16x128xbf16>
    %502 = arith.index_cast %c5_i32_157 : i32 to index
    %c0_158 = arith.constant 0 : index
    %c0_159 = arith.constant 0 : index
    %503 = vector.load %arg12[%502, %c0_158, %c0_159] : memref<8x16x512xf32, #tpu.memory_space<vmem>>, vector<1x16x512xf32>
    %504 = vector.shape_cast %503 : vector<1x16x512xf32> to vector<16x512xf32>
    %c0_160 = arith.constant 0 : index
    %c0_161 = arith.constant 0 : index
    %505 = vector.load %arg6[%c0_160, %c0_161] : memref<128x512xbf16, #tpu.memory_space<vmem>>, vector<128x512xbf16>
    %cst_162 = arith.constant dense<0.000000e+00> : vector<16x512xf32>
    %506 = tpu.matmul %501, %505, %cst_162 {dimension_numbers = #tpu.dot_dimension_numbers<[1], [0], [0], [1], [0, 0, 1, 1], [], []>} : vector<16x128xbf16>, vector<128x512xbf16>, vector<16x512xf32> -> vector<16x512xf32>
    %507 = arith.addf %504, %506 : vector<16x512xf32>
    %508 = vector.extract_strided_slice %507 {offsets = [0, 0], sizes = [16, 128], strides = [1, 1]} : vector<16x512xf32> to vector<16x128xf32>
    %509 = arith.negf %508 : vector<16x128xf32>
    %510 = math.exp %509 : vector<16x128xf32>
    %cst_163 = arith.constant 1.000000e+00 : f32
    %511 = vector.broadcast %cst_163 : f32 to vector<16x128xf32>
    %512 = arith.addf %511, %510 : vector<16x128xf32>
    %513 = arith.divf %511, %512 : vector<16x128xf32>
    %514 = vector.extract_strided_slice %507 {offsets = [0, 128], sizes = [16, 128], strides = [1, 1]} : vector<16x512xf32> to vector<16x128xf32>
    %515 = arith.negf %514 : vector<16x128xf32>
    %516 = math.exp %515 : vector<16x128xf32>
    %cst_164 = arith.constant 1.000000e+00 : f32
    %517 = vector.broadcast %cst_164 : f32 to vector<16x128xf32>
    %518 = arith.addf %517, %516 : vector<16x128xf32>
    %519 = arith.divf %517, %518 : vector<16x128xf32>
    %520 = vector.extract_strided_slice %507 {offsets = [0, 256], sizes = [16, 128], strides = [1, 1]} : vector<16x512xf32> to vector<16x128xf32>
    %521 = math.tanh %520 : vector<16x128xf32>
    %522 = vector.extract_strided_slice %507 {offsets = [0, 384], sizes = [16, 128], strides = [1, 1]} : vector<16x512xf32> to vector<16x128xf32>
    %523 = arith.negf %522 : vector<16x128xf32>
    %524 = math.exp %523 : vector<16x128xf32>
    %cst_165 = arith.constant 1.000000e+00 : f32
    %525 = vector.broadcast %cst_165 : f32 to vector<16x128xf32>
    %526 = arith.addf %525, %524 : vector<16x128xf32>
    %527 = arith.divf %525, %526 : vector<16x128xf32>
    %528 = arith.mulf %519, %493 : vector<16x128xf32>
    %529 = arith.mulf %513, %521 : vector<16x128xf32>
    %530 = arith.addf %528, %529 : vector<16x128xf32>
    %531 = math.tanh %530 : vector<16x128xf32>
    %532 = arith.mulf %527, %531 : vector<16x128xf32>
    %533 = arith.truncf %532 : vector<16x128xf32> to vector<16x128xbf16>
    %534 = arith.index_cast %c5_i32_157 : i32 to index
    %c0_166 = arith.constant 0 : index
    %c0_167 = arith.constant 0 : index
    %535 = vector.load %arg11[%534, %c0_166, %c0_167] : memref<8x16x128xbf16, #tpu.memory_space<vmem>>, vector<1x16x128xbf16>
    %536 = vector.shape_cast %535 : vector<1x16x128xbf16> to vector<16x128xbf16>
    %537 = vector.shape_cast %533 : vector<16x128xbf16> to vector<1x16x128xbf16>
    tpu.vector_store %arg11[%534, %c0_166, %c0_167], %537 {strides = array<i32>} : memref<8x16x128xbf16, #tpu.memory_space<vmem>>, vector<1x16x128xbf16>,
    %c6_i32_168 = arith.constant 6 : i32
    %538 = arith.truncf %532 : vector<16x128xf32> to vector<16x128xbf16>
    %539 = arith.index_cast %c6_i32_168 : i32 to index
    %c0_169 = arith.constant 0 : index
    %c0_170 = arith.constant 0 : index
    %540 = vector.load %arg12[%539, %c0_169, %c0_170] : memref<8x16x512xf32, #tpu.memory_space<vmem>>, vector<1x16x512xf32>
    %541 = vector.shape_cast %540 : vector<1x16x512xf32> to vector<16x512xf32>
    %c0_171 = arith.constant 0 : index
    %c0_172 = arith.constant 0 : index
    %542 = vector.load %arg6[%c0_171, %c0_172] : memref<128x512xbf16, #tpu.memory_space<vmem>>, vector<128x512xbf16>
    %cst_173 = arith.constant dense<0.000000e+00> : vector<16x512xf32>
    %543 = tpu.matmul %538, %542, %cst_173 {dimension_numbers = #tpu.dot_dimension_numbers<[1], [0], [0], [1], [0, 0, 1, 1], [], []>} : vector<16x128xbf16>, vector<128x512xbf16>, vector<16x512xf32> -> vector<16x512xf32>
    %544 = arith.addf %541, %543 : vector<16x512xf32>
    %545 = vector.extract_strided_slice %544 {offsets = [0, 0], sizes = [16, 128], strides = [1, 1]} : vector<16x512xf32> to vector<16x128xf32>
    %546 = arith.negf %545 : vector<16x128xf32>
    %547 = math.exp %546 : vector<16x128xf32>
    %cst_174 = arith.constant 1.000000e+00 : f32
    %548 = vector.broadcast %cst_174 : f32 to vector<16x128xf32>
    %549 = arith.addf %548, %547 : vector<16x128xf32>
    %550 = arith.divf %548, %549 : vector<16x128xf32>
    %551 = vector.extract_strided_slice %544 {offsets = [0, 128], sizes = [16, 128], strides = [1, 1]} : vector<16x512xf32> to vector<16x128xf32>
    %552 = arith.negf %551 : vector<16x128xf32>
    %553 = math.exp %552 : vector<16x128xf32>
    %cst_175 = arith.constant 1.000000e+00 : f32
    %554 = vector.broadcast %cst_175 : f32 to vector<16x128xf32>
    %555 = arith.addf %554, %553 : vector<16x128xf32>
    %556 = arith.divf %554, %555 : vector<16x128xf32>
    %557 = vector.extract_strided_slice %544 {offsets = [0, 256], sizes = [16, 128], strides = [1, 1]} : vector<16x512xf32> to vector<16x128xf32>
    %558 = math.tanh %557 : vector<16x128xf32>
    %559 = vector.extract_strided_slice %544 {offsets = [0, 384], sizes = [16, 128], strides = [1, 1]} : vector<16x512xf32> to vector<16x128xf32>
    %560 = arith.negf %559 : vector<16x128xf32>
    %561 = math.exp %560 : vector<16x128xf32>
    %cst_176 = arith.constant 1.000000e+00 : f32
    %562 = vector.broadcast %cst_176 : f32 to vector<16x128xf32>
    %563 = arith.addf %562, %561 : vector<16x128xf32>
    %564 = arith.divf %562, %563 : vector<16x128xf32>
    %565 = arith.mulf %556, %530 : vector<16x128xf32>
    %566 = arith.mulf %550, %558 : vector<16x128xf32>
    %567 = arith.addf %565, %566 : vector<16x128xf32>
    %568 = math.tanh %567 : vector<16x128xf32>
    %569 = arith.mulf %564, %568 : vector<16x128xf32>
    %570 = arith.truncf %569 : vector<16x128xf32> to vector<16x128xbf16>
    %571 = arith.index_cast %c6_i32_168 : i32 to index
    %c0_177 = arith.constant 0 : index
    %c0_178 = arith.constant 0 : index
    %572 = vector.load %arg11[%571, %c0_177, %c0_178] : memref<8x16x128xbf16, #tpu.memory_space<vmem>>, vector<1x16x128xbf16>
    %573 = vector.shape_cast %572 : vector<1x16x128xbf16> to vector<16x128xbf16>
    %574 = vector.shape_cast %570 : vector<16x128xbf16> to vector<1x16x128xbf16>
    tpu.vector_store %arg11[%571, %c0_177, %c0_178], %574 {strides = array<i32>} : memref<8x16x128xbf16, #tpu.memory_space<vmem>>, vector<1x16x128xbf16>,
    %c7_i32_179 = arith.constant 7 : i32
    %575 = arith.truncf %569 : vector<16x128xf32> to vector<16x128xbf16>
    %576 = arith.index_cast %c7_i32_179 : i32 to index
    %c0_180 = arith.constant 0 : index
    %c0_181 = arith.constant 0 : index
    %577 = vector.load %arg12[%576, %c0_180, %c0_181] : memref<8x16x512xf32, #tpu.memory_space<vmem>>, vector<1x16x512xf32>
    %578 = vector.shape_cast %577 : vector<1x16x512xf32> to vector<16x512xf32>
    %c0_182 = arith.constant 0 : index
    %c0_183 = arith.constant 0 : index
    %579 = vector.load %arg6[%c0_182, %c0_183] : memref<128x512xbf16, #tpu.memory_space<vmem>>, vector<128x512xbf16>
    %cst_184 = arith.constant dense<0.000000e+00> : vector<16x512xf32>
    %580 = tpu.matmul %575, %579, %cst_184 {dimension_numbers = #tpu.dot_dimension_numbers<[1], [0], [0], [1], [0, 0, 1, 1], [], []>} : vector<16x128xbf16>, vector<128x512xbf16>, vector<16x512xf32> -> vector<16x512xf32>
    %581 = arith.addf %578, %580 : vector<16x512xf32>
    %582 = vector.extract_strided_slice %581 {offsets = [0, 0], sizes = [16, 128], strides = [1, 1]} : vector<16x512xf32> to vector<16x128xf32>
    %583 = arith.negf %582 : vector<16x128xf32>
    %584 = math.exp %583 : vector<16x128xf32>
    %cst_185 = arith.constant 1.000000e+00 : f32
    %585 = vector.broadcast %cst_185 : f32 to vector<16x128xf32>
    %586 = arith.addf %585, %584 : vector<16x128xf32>
    %587 = arith.divf %585, %586 : vector<16x128xf32>
    %588 = vector.extract_strided_slice %581 {offsets = [0, 128], sizes = [16, 128], strides = [1, 1]} : vector<16x512xf32> to vector<16x128xf32>
    %589 = arith.negf %588 : vector<16x128xf32>
    %590 = math.exp %589 : vector<16x128xf32>
    %cst_186 = arith.constant 1.000000e+00 : f32
    %591 = vector.broadcast %cst_186 : f32 to vector<16x128xf32>
    %592 = arith.addf %591, %590 : vector<16x128xf32>
    %593 = arith.divf %591, %592 : vector<16x128xf32>
    %594 = vector.extract_strided_slice %581 {offsets = [0, 256], sizes = [16, 128], strides = [1, 1]} : vector<16x512xf32> to vector<16x128xf32>
    %595 = math.tanh %594 : vector<16x128xf32>
    %596 = vector.extract_strided_slice %581 {offsets = [0, 384], sizes = [16, 128], strides = [1, 1]} : vector<16x512xf32> to vector<16x128xf32>
    %597 = arith.negf %596 : vector<16x128xf32>
    %598 = math.exp %597 : vector<16x128xf32>
    %cst_187 = arith.constant 1.000000e+00 : f32
    %599 = vector.broadcast %cst_187 : f32 to vector<16x128xf32>
    %600 = arith.addf %599, %598 : vector<16x128xf32>
    %601 = arith.divf %599, %600 : vector<16x128xf32>
    %602 = arith.mulf %593, %567 : vector<16x128xf32>
    %603 = arith.mulf %587, %595 : vector<16x128xf32>
    %604 = arith.addf %602, %603 : vector<16x128xf32>
    %605 = math.tanh %604 : vector<16x128xf32>
    %606 = arith.mulf %601, %605 : vector<16x128xf32>
    %607 = arith.truncf %606 : vector<16x128xf32> to vector<16x128xbf16>
    %608 = arith.index_cast %c7_i32_179 : i32 to index
    %c0_188 = arith.constant 0 : index
    %c0_189 = arith.constant 0 : index
    %609 = vector.load %arg11[%608, %c0_188, %c0_189] : memref<8x16x128xbf16, #tpu.memory_space<vmem>>, vector<1x16x128xbf16>
    %610 = vector.shape_cast %609 : vector<1x16x128xbf16> to vector<16x128xbf16>
    %611 = vector.shape_cast %607 : vector<16x128xbf16> to vector<1x16x128xbf16>
    tpu.vector_store %arg11[%608, %c0_188, %c0_189], %611 {strides = array<i32>} : memref<8x16x128xbf16, #tpu.memory_space<vmem>>, vector<1x16x128xbf16>,
    %c8_i32_190 = arith.constant 8 : i32
    %c0_191 = arith.constant 0 : index
    %c0_192 = arith.constant 0 : index
    %c0_193 = arith.constant 0 : index
    %612 = vector.load %arg11[%c0_191, %c0_192, %c0_193] : memref<8x16x128xbf16, #tpu.memory_space<vmem>>, vector<8x16x128xbf16>
    %613 = vector.shape_cast %606 : vector<16x128xf32> to vector<1x16x128xf32>
    %614 = arith.extf %612 : vector<8x16x128xbf16> to vector<8x16x128xf32>
    %615 = vector.broadcast %613 : vector<1x16x128xf32> to vector<8x16x128xf32>
    %616 = arith.mulf %614, %615 : vector<8x16x128xf32>
    %cst_194 = arith.constant dense<0.000000e+00> : vector<8x16xf32>
    %617 = vector.multi_reduction <add>, %616, %cst_194 [2] : vector<8x16x128xf32> to vector<8x16xf32>
    %618 = vector.shape_cast %617 : vector<8x16xf32> to vector<8x16x1xf32>
    %cst_195 = arith.constant dense<0xFF800000> : vector<16x1xf32>
    %619 = vector.multi_reduction <maximumf>, %618, %cst_195 [0] : vector<8x16x1xf32> to vector<16x1xf32>
    %620 = vector.shape_cast %619 : vector<16x1xf32> to vector<1x16x1xf32>
    %621 = vector.broadcast %620 : vector<1x16x1xf32> to vector<8x16x1xf32>
    %622 = arith.subf %618, %621 : vector<8x16x1xf32>
    %623 = math.exp %622 : vector<8x16x1xf32>
    %cst_196 = arith.constant dense<0.000000e+00> : vector<16x1xf32>
    %624 = vector.multi_reduction <add>, %623, %cst_196 [0] : vector<8x16x1xf32> to vector<16x1xf32>
    %625 = vector.shape_cast %624 : vector<16x1xf32> to vector<1x16x1xf32>
    %626 = vector.broadcast %625 : vector<1x16x1xf32> to vector<8x16x1xf32>
    %627 = arith.divf %623, %626 : vector<8x16x1xf32>
    %628 = arith.extf %612 : vector<8x16x128xbf16> to vector<8x16x128xf32>
    %629 = vector.broadcast %627 : vector<8x16x1xf32> to vector<8x16x128xf32>
    %630 = arith.mulf %629, %628 : vector<8x16x128xf32>
    %cst_197 = arith.constant dense<0.000000e+00> : vector<16x128xf32>
    %631 = vector.multi_reduction <add>, %630, %cst_197 [0] : vector<8x16x128xf32> to vector<16x128xf32>
    %632 = tpu.iota {dimensions = array<i32: 1>} : vector<1x128xi32>
    %c32_i32 = arith.constant 32 : i32
    %633 = vector.broadcast %c32_i32 : i32 to vector<1x128xi32>
    %634 = arith.cmpi slt, %632, %633 : vector<1x128xi32>
    %635 = arith.extui %634 : vector<1x128xi1> to vector<1x128xi32>
    %636 = arith.sitofp %635 : vector<1x128xi32> to vector<1x128xf32>
    %cst_198 = arith.constant dense<0.000000e+00> : vector<16xf32>
    %637 = vector.multi_reduction <add>, %631, %cst_198 [1] : vector<16x128xf32> to vector<16xf32>
    %638 = vector.shape_cast %637 : vector<16xf32> to vector<16x1xf32>
    %cst_199 = arith.constant 3.125000e-02 : f32
    %639 = vector.broadcast %cst_199 : f32 to vector<16x1xf32>
    %640 = arith.mulf %638, %639 : vector<16x1xf32>
    %641 = vector.broadcast %640 : vector<16x1xf32> to vector<16x128xf32>
    %642 = arith.subf %631, %641 : vector<16x128xf32>
    %643 = vector.broadcast %636 : vector<1x128xf32> to vector<16x128xf32>
    %644 = arith.mulf %642, %643 : vector<16x128xf32>
    %645 = arith.mulf %644, %644 : vector<16x128xf32>
    %cst_200 = arith.constant dense<0.000000e+00> : vector<16xf32>
    %646 = vector.multi_reduction <add>, %645, %cst_200 [1] : vector<16x128xf32> to vector<16xf32>
    %647 = vector.shape_cast %646 : vector<16xf32> to vector<16x1xf32>
    %cst_201 = arith.constant 3.125000e-02 : f32
    %648 = vector.broadcast %cst_201 : f32 to vector<16x1xf32>
    %649 = arith.mulf %647, %648 : vector<16x1xf32>
    %cst_202 = arith.constant 9.99999974E-6 : f32
    %650 = vector.broadcast %cst_202 : f32 to vector<16x1xf32>
    %651 = arith.addf %649, %650 : vector<16x1xf32>
    %652 = math.rsqrt %651 : vector<16x1xf32>
    %653 = vector.broadcast %652 : vector<16x1xf32> to vector<16x128xf32>
    %654 = arith.mulf %644, %653 : vector<16x128xf32>
    %c0_203 = arith.constant 0 : index
    %c0_204 = arith.constant 0 : index
    %655 = vector.load %arg8[%c0_203, %c0_204] : memref<1x128xf32, #tpu.memory_space<vmem>>, vector<1x128xf32>
    %656 = vector.broadcast %655 : vector<1x128xf32> to vector<16x128xf32>
    %657 = arith.mulf %654, %656 : vector<16x128xf32>
    %c0_205 = arith.constant 0 : index
    %c0_206 = arith.constant 0 : index
    %658 = vector.load %arg9[%c0_205, %c0_206] : memref<1x128xf32, #tpu.memory_space<vmem>>, vector<1x128xf32>
    %659 = vector.broadcast %658 : vector<1x128xf32> to vector<16x128xf32>
    %660 = arith.addf %657, %659 : vector<16x128xf32>
    %c0_207 = arith.constant 0 : index
    %c0_208 = arith.constant 0 : index
    %661 = vector.load %arg10[%c0_207, %c0_208] : memref<16x128xf32, #tpu.memory_space<vmem>>, vector<16x128xf32>
    tpu.vector_store %arg10[%c0_207, %c0_208], %660 {strides = array<i32>} : memref<16x128xf32, #tpu.memory_space<vmem>>, vector<16x128xf32>,
    return
  }
  func.func @transform_0(%arg0: i32) -> (i32, i32, i32) {
    %c0_i32 = arith.constant 0 : i32
    %c0_i32_0 = arith.constant 0 : i32
    %c0_i32_1 = arith.constant 0 : i32
    return %c0_i32, %arg0, %c0_i32_0 : i32, i32, i32
  }
  func.func @transform_1(%arg0: i32) -> (i32, i32) {
    %c0_i32 = arith.constant 0 : i32
    %c0_i32_0 = arith.constant 0 : i32
    %c0_i32_1 = arith.constant 0 : i32
    return %c0_i32, %c0_i32_0 : i32, i32
  }
  func.func @transform_2(%arg0: i32) -> (i32, i32) {
    %c0_i32 = arith.constant 0 : i32
    %c0_i32_0 = arith.constant 0 : i32
    %c0_i32_1 = arith.constant 0 : i32
    return %c0_i32, %c0_i32_0 : i32, i32
  }
  func.func @transform_3(%arg0: i32) -> (i32, i32) {
    %c0_i32 = arith.constant 0 : i32
    %c0_i32_0 = arith.constant 0 : i32
    %c0_i32_1 = arith.constant 0 : i32
    return %c0_i32, %c0_i32_0 : i32, i32
  }
  func.func @transform_4(%arg0: i32) -> (i32, i32) {
    %c0_i32 = arith.constant 0 : i32
    %c0_i32_0 = arith.constant 0 : i32
    %c0_i32_1 = arith.constant 0 : i32
    return %c0_i32, %c0_i32_0 : i32, i32
  }
  func.func @transform_5(%arg0: i32) -> (i32, i32) {
    %c0_i32 = arith.constant 0 : i32
    %c0_i32_0 = arith.constant 0 : i32
    %c0_i32_1 = arith.constant 0 : i32
    return %c0_i32, %c0_i32_0 : i32, i32
  }
  func.func @transform_6(%arg0: i32) -> (i32, i32) {
    %c0_i32 = arith.constant 0 : i32
    %c0_i32_0 = arith.constant 0 : i32
    %c0_i32_1 = arith.constant 0 : i32
    return %c0_i32, %c0_i32_0 : i32, i32
  }
  func.func @transform_7(%arg0: i32) -> (i32, i32) {
    %c0_i32 = arith.constant 0 : i32
    %c0_i32_0 = arith.constant 0 : i32
    %c0_i32_1 = arith.constant 0 : i32
    return %c0_i32, %c0_i32_0 : i32, i32
  }
  func.func @transform_8(%arg0: i32) -> (i32, i32) {
    %c0_i32 = arith.constant 0 : i32
    %c0_i32_0 = arith.constant 0 : i32
    %c0_i32_1 = arith.constant 0 : i32
    return %c0_i32, %c0_i32_0 : i32, i32
  }
  func.func @transform_9(%arg0: i32) -> (i32, i32) {
    %c0_i32 = arith.constant 0 : i32
    %c0_i32_0 = arith.constant 0 : i32
    return %arg0, %c0_i32 : i32, i32
  }
}

</mosaic_0001>

<llo_original>
// kernel: tpu_custom_call.1
$region0: #{tpu_custom_call.1}
  #allocation0 [shape = 'u32[]', space=smem, size = 0x4, offset = 0x4, fixed_abs, tag = 'smem constant byte address 0x4 - core index']
  #allocation1 [shape = 'u32[144,128]{1,0:T(1,128)}', space=vmem, size = 0x12000, scoped, tag = 'internal scratch']
  #allocation2 [shape = 'bf16[8,16,128]{2,1,0:T(16,128)(2,1)}', space=vmem, size = 0x8000, scoped, tag = 'scratch operand']
  #allocation3 [shape = 'f32[8,16,512]{2,1,0:T(8,128)}', space=vmem, size = 0x40000, scoped, tag = 'scratch operand']
  %s0 = inlined_call_operand.hbm [shape: bf16[8,16,16], index: 0, kind: input, shape index: {}]
  %s1 = inlined_call_operand.hbm [shape: bf16[16,512], index: 1, kind: input, shape index: {}]
  %s2 = inlined_call_operand.hbm [shape: bf16[128,512], index: 2, kind: input, shape index: {}]
  %s3 = inlined_call_operand.vmem [shape: f32[1,512], index: 3, kind: input, shape index: {}]
  %s4 = inlined_call_operand.hbm [shape: bf16[128,512], index: 4, kind: input, shape index: {}]
  %s5 = inlined_call_operand.hbm [shape: bf16[128,512], index: 5, kind: input, shape index: {}]
  %s6 = inlined_call_operand.vmem [shape: f32[1,512], index: 6, kind: input, shape index: {}]
  %s7 = inlined_call_operand.vmem [shape: f32[1,128], index: 7, kind: input, shape index: {}]
  %s8 = inlined_call_operand.vmem [shape: f32[1,128], index: 8, kind: input, shape index: {}]
  %s9 = inlined_call_operand.hbm [shape: f32[16,128], index: 9, kind: output, shape index: {}]
  %s10 = sld [smem:[#allocation0]]
  $region66: #{tpu_custom_call.1} parent=0
    _
  %s12 = ssub.s32 1, %s10
  %s13 = scalar_select 0, %s12, %s10
  $region1: #{tpu_custom_call.1} parent=0
    #allocation4 [shape = 'u8[32768]{0}', space=vmem, size = 0x8000, scoped, tag = 'input window, operand 0, single buffered']
    #allocation5 [shape = 's32[1]{0}', space=sflag, size = 0x4, scoped, tag = 'scoped memory for tpu_custom_call.1']
    #allocation6 [shape = 's32[1]{0}', space=sflag, size = 0x4, scoped, tag = 'scoped memory for tpu_custom_call.1']
    #allocation7 [shape = 'u8[16384]{0}', space=vmem, size = 0x4000, scoped, tag = 'input window, operand 1, single buffered']
    #allocation8 [shape = 's32[1]{0}', space=sflag, size = 0x4, scoped, tag = 'scoped memory for tpu_custom_call.1']
    #allocation9 [shape = 'u8[131072]{0}', space=vmem, size = 0x20000, scoped, tag = 'input window, operand 2, single buffered']
    #allocation10 [shape = 'u8[131072]{0}', space=vmem, size = 0x20000, scoped, tag = 'input window, operand 4, single buffered']
    #allocation11 [shape = 's32[1]{0}', space=sflag, size = 0x4, scoped, tag = 'scoped memory for tpu_custom_call.1']
    #allocation12 [shape = 'u8[131072]{0}', space=vmem, size = 0x20000, scoped, tag = 'input window, operand 5, single buffered']
    #allocation13 [shape = 'u8[8192]{0}', space=vmem, size = 0x2000, scoped, tag = 'output window, operand 0, single buffered']
    %14 = vsyncpa [#allocation5], 0
    %15 = vsyncpa [#allocation8], 0
    %16 = vsyncpa [#allocation11], 0
    %17 = vsyncpa [#allocation6], 0
    // Predicated region
    $region2: #{tpu_custom_call.1} parent=1 // pred_check
      _
    $region3: #{tpu_custom_call.1} parent=1 // pred_check_branch
      %19 = sbr.rel (0) target = $region5
    $region4: #{tpu_custom_call.1} parent=1 // pred_region
      %s21 = ssub.s32 1024, 1024
      %22 = vsyncadd [#allocation5], %s21
      %s23 = sshll.u32 [#allocation4], 4
      %s24 = int_to_ptr.vmem [resolvable:$true] %s23
      %29 = dma.hbm_to_vmem [thread:$0]  %s0, 1024, %s24, [#allocation5], 64, 64, 4
    $region5: #{tpu_custom_call.1} parent=1 // pred_fallthru
      _
    // Predicated region
    $region6: #{tpu_custom_call.1} parent=1 // pred_check
      _
    $region7: #{tpu_custom_call.1} parent=1 // pred_check_branch
      %31 = sbr.rel (0) target = $region9
    $region8: #{tpu_custom_call.1} parent=1 // pred_region
      %s33 = ssub.s32 512, 512
      %34 = vsyncadd [#allocation8], %s33
      %s35 = sshll.u32 [#allocation7], 4
      %s36 = int_to_ptr.vmem [resolvable:$true] %s35
      %41 = dma.hbm_to_vmem [thread:$0]  %s1, 512, %s36, [#allocation8], 256, 256, 16
    $region9: #{tpu_custom_call.1} parent=1 // pred_fallthru
      _
    // Predicated region
    $region10: #{tpu_custom_call.1} parent=1 // pred_check
      _
    $region11: #{tpu_custom_call.1} parent=1 // pred_check_branch
      %43 = sbr.rel (0) target = $region13
    $region12: #{tpu_custom_call.1} parent=1 // pred_region
      %s45 = ssub.s32 4096, 4096
      %46 = vsyncadd [#allocation8], %s45
      %s47 = sshll.u32 [#allocation9], 4
      %s48 = int_to_ptr.vmem [resolvable:$true] %s47
      %53 = dma.hbm_to_vmem [thread:$0]  %s2, 4096, %s48, [#allocation8], 256, 256, 16
    $region13: #{tpu_custom_call.1} parent=1 // pred_fallthru
      _
    // Predicated region
    $region14: #{tpu_custom_call.1} parent=1 // pred_check
      _
    $region15: #{tpu_custom_call.1} parent=1 // pred_check_branch
      %55 = sbr.rel (0) target = $region17
    $region16: #{tpu_custom_call.1} parent=1 // pred_region
      _
    $region17: #{tpu_custom_call.1} parent=1 // pred_fallthru
      _
    // Predicated region
    $region18: #{tpu_custom_call.1} parent=1 // pred_check
      _
    $region19: #{tpu_custom_call.1} parent=1 // pred_check_branch
      %57 = sbr.rel (0) target = $region21
    $region20: #{tpu_custom_call.1} parent=1 // pred_region
      %s59 = ssub.s32 4096, 4096
      %60 = vsyncadd [#allocation11], %s59
      %s61 = sshll.u32 [#allocation10], 4
      %s62 = int_to_ptr.vmem [resolvable:$true] %s61
      %67 = dma.hbm_to_vmem [thread:$0]  %s4, 4096, %s62, [#allocation11], 256, 256, 16
    $region21: #{tpu_custom_call.1} parent=1 // pred_fallthru
      _
    // Predicated region
    $region22: #{tpu_custom_call.1} parent=1 // pred_check
      _
    $region23: #{tpu_custom_call.1} parent=1 // pred_check_branch
      %69 = sbr.rel (0) target = $region25
    $region24: #{tpu_custom_call.1} parent=1 // pred_region
      %s71 = ssub.s32 4096, 4096
      %72 = vsyncadd [#allocation11], %s71
      %s73 = sshll.u32 [#allocation12], 4
      %s74 = int_to_ptr.vmem [resolvable:$true] %s73
      %79 = dma.hbm_to_vmem [thread:$0]  %s5, 4096, %s74, [#allocation11], 256, 256, 16
    $region25: #{tpu_custom_call.1} parent=1 // pred_fallthru
      _
    // Predicated region
    $region26: #{tpu_custom_call.1} parent=1 // pred_check
      _
    $region27: #{tpu_custom_call.1} parent=1 // pred_check_branch
      %81 = sbr.rel (0) target = $region29
    $region28: #{tpu_custom_call.1} parent=1 // pred_region
      _
    $region29: #{tpu_custom_call.1} parent=1 // pred_fallthru
      _
    // Predicated region
    $region30: #{tpu_custom_call.1} parent=1 // pred_check
      _
    $region31: #{tpu_custom_call.1} parent=1 // pred_check_branch
      %83 = sbr.rel (0) target = $region33
    $region32: #{tpu_custom_call.1} parent=1 // pred_region
      _
    $region33: #{tpu_custom_call.1} parent=1 // pred_fallthru
      _
    // Predicated region
    $region34: #{tpu_custom_call.1} parent=1 // pred_check
      _
    $region35: #{tpu_custom_call.1} parent=1 // pred_check_branch
      %85 = sbr.rel (0) target = $region37
    $region36: #{tpu_custom_call.1} parent=1 // pred_region
      _
    $region37: #{tpu_custom_call.1} parent=1 // pred_fallthru
      _
    // Predicated region
    $region38: #{tpu_custom_call.1} parent=1 // pred_check
      _
    $region39: #{tpu_custom_call.1} parent=1 // pred_check_branch
      %87 = sbr.rel (0) target = $region41
    $region40: #{tpu_custom_call.1} parent=1 // pred_region
      %88 = dma.done [#allocation5], 1024
    $region41: #{tpu_custom_call.1} parent=1 // pred_fallthru
      _
    // Predicated region
    $region42: #{tpu_custom_call.1} parent=1 // pred_check
      _
    $region43: #{tpu_custom_call.1} parent=1 // pred_check_branch
      %90 = sbr.rel (0) target = $region45
    $region44: #{tpu_custom_call.1} parent=1 // pred_region
      %91 = dma.done [#allocation8], 512
    $region45: #{tpu_custom_call.1} parent=1 // pred_fallthru
      _
    // Predicated region
    $region46: #{tpu_custom_call.1} parent=1 // pred_check
      _
    $region47: #{tpu_custom_call.1} parent=1 // pred_check_branch
      %93 = sbr.rel (0) target = $region49
    $region48: #{tpu_custom_call.1} parent=1 // pred_region
      %94 = dma.done [#allocation8], 4096
    $region49: #{tpu_custom_call.1} parent=1 // pred_fallthru
      _
    // Predicated region
    $region50: #{tpu_custom_call.1} parent=1 // pred_check
      _
    $region51: #{tpu_custom_call.1} parent=1 // pred_check_branch
      %96 = sbr.rel (0) target = $region53
    $region52: #{tpu_custom_call.1} parent=1 // pred_region
      %97 = dma.done [#allocation11], 4096
    $region53: #{tpu_custom_call.1} parent=1 // pred_fallthru
      _
    // Predicated region
    $region54: #{tpu_custom_call.1} parent=1 // pred_check
      _
    $region55: #{tpu_custom_call.1} parent=1 // pred_check_branch
      %99 = sbr.rel (0) target = $region57
    $region56: #{tpu_custom_call.1} parent=1 // pred_region
      %100 = dma.done [#allocation11], 4096
    $region57: #{tpu_custom_call.1} parent=1 // pred_fallthru
      _
    %v102 = vld [vmem:[#allocation4] sm:$0xf]
    %v103 = vld [vmem:[#allocation4 + $0x4] sm:$0xf]
    %v104 = vld [vmem:[#allocation4 + $0x8] sm:$0xf]
    %v105 = vld [vmem:[#allocation4 + $0xc] sm:$0xf]
    %v106 = vld [vmem:[#allocation4 + $0x10] sm:$0xf]
    %v107 = vld [vmem:[#allocation4 + $0x14] sm:$0xf]
    %v108 = vld [vmem:[#allocation4 + $0x18] sm:$0xf]
    %v109 = vld [vmem:[#allocation4 + $0x1c] sm:$0xf]
    %v110 = vld [vmem:[#allocation4 + $0x20] sm:$0xf]
    %v111 = vld [vmem:[#allocation4 + $0x24] sm:$0xf]
    %v112 = vld [vmem:[#allocation4 + $0x28] sm:$0xf]
    %v113 = vld [vmem:[#allocation4 + $0x2c] sm:$0xf]
    %v114 = vld [vmem:[#allocation4 + $0x30] sm:$0xf]
    %v115 = vld [vmem:[#allocation4 + $0x34] sm:$0xf]
    %v116 = vld [vmem:[#allocation4 + $0x38] sm:$0xf]
    %v117 = vld [vmem:[#allocation4 + $0x3c] sm:$0xf]
    %v118 = vld [vmem:[#allocation7] sm:$0xff]
    %v119 = vld [vmem:[#allocation7 + $0x8] sm:$0xff]
    %v120 = vld [vmem:[#allocation7 + $0x10] sm:$0xff]
    %v121 = vld [vmem:[#allocation7 + $0x18] sm:$0xff]
    %v122 = vld [vmem:[%s3] sm:$0xf]
    %v124 = vlaneseq
    %v125 = vshrl.u32 %v124, 7
    %v126 = vsub.s32 0, %v125
    %v127 = vrot.slane %v122, %v126
    %v128 = vlaneseq
    %v129 = vshrl.u32 %v128, 7
    %v130 = vsub.s32 1, %v129
    %v131 = vrot.slane %v122, %v130
    %v132 = vlaneseq
    %v133 = vshrl.u32 %v132, 7
    %v134 = vsub.s32 2, %v133
    %v135 = vrot.slane %v122, %v134
    %v136 = vlaneseq
    %v137 = vshrl.u32 %v136, 7
    %v138 = vsub.s32 3, %v137
    %v139 = vrot.slane %v122, %v138
    %v160 = vunpack.c.l.b16 %v102
    %v161 = vunpack.c.l.b16 %v103
    %v162 = vunpack.c.l.b16 %v104
    %v163 = vunpack.c.l.b16 %v105
    %v164 = vunpack.c.l.b16 %v106
    %v165 = vunpack.c.l.b16 %v107
    %v166 = vunpack.c.l.b16 %v108
    %v167 = vunpack.c.l.b16 %v109
    %v168 = vunpack.c.l.b16 %v110
    %v169 = vunpack.c.l.b16 %v111
    %v170 = vunpack.c.l.b16 %v112
    %v171 = vunpack.c.l.b16 %v113
    %v172 = vunpack.c.l.b16 %v114
    %v173 = vunpack.c.l.b16 %v115
    %v174 = vunpack.c.l.b16 %v116
    %v175 = vunpack.c.l.b16 %v117
    %v176 = vpack.c.b16 %v161, %v160
    %v177 = vpack.c.b16 %v163, %v162
    %v178 = vpack.c.b16 %v165, %v164
    %v179 = vpack.c.b16 %v167, %v166
    %v180 = vpack.c.b16 %v169, %v168
    %v181 = vpack.c.b16 %v171, %v170
    %v182 = vpack.c.b16 %v173, %v172
    %v183 = vpack.c.b16 %v175, %v174
    %v188 = vunpack.c.l.b16 %v118
    %v189 = vunpack.c.h.b16 %v118
    %v190 = vunpack.c.l.b16 %v119
    %v191 = vunpack.c.h.b16 %v119
    %v192 = vunpack.c.l.b16 %v120
    %v193 = vunpack.c.h.b16 %v120
    %v194 = vunpack.c.l.b16 %v121
    %v195 = vunpack.c.h.b16 %v121
    %v196 = vpack.c.b16 %v192, %v188
    %v197 = vpack.c.b16 %v193, %v189
    %v198 = vpack.c.b16 %v194, %v190
    %v199 = vpack.c.b16 %v195, %v191
    %vm204 = vcmask 130048
    %v206 = vsel %vm204, %v176, 0
    %v209 = vsel %vm204, %v177, 0
    %v212 = vsel %vm204, %v178, 0
    %v215 = vsel %vm204, %v179, 0
    %v218 = vsel %vm204, %v180, 0
    %v221 = vsel %vm204, %v181, 0
    %v224 = vsel %vm204, %v182, 0
    %v227 = vsel %vm204, %v183, 0
    %229 = vmatprep.subr.bf16.mxu0 %v197
    %230 = vmatpush1.bf16.msra.mxu0 %v196
    %231 = vmatprep.subr.bf16.mxu0 0
    %232 = vmatpush1.bf16.msra.mxu0 0
    %233 = vmatprep.subr.bf16.mxu0 0
    %234 = vmatpush1.bf16.msra.mxu0 0
    %235 = vmatprep.subr.bf16.mxu0 0
    %236 = vmatpush1.bf16.msra.mxu0 0
    %237 = vmatprep.subr.bf16.mxu0 0
    %238 = vmatpush1.bf16.msra.mxu0 0
    %239 = vmatprep.subr.bf16.mxu0 0
    %240 = vmatpush1.bf16.msra.mxu0 0
    %241 = vmatprep.subr.bf16.mxu0 0
    %242 = vmatpush1.bf16.msra.mxu0 0
    %243 = vmatprep.subr.bf16.mxu0 0
    %244 = vmatpush1.bf16.msra.mxu0 0
    %245 = vmatprep.subr.bf16.mxu0 0
    %246 = vmatpush1.bf16.msra.mxu0 0
    %247 = vmatprep.subr.bf16.mxu0 0
    %248 = vmatpush1.bf16.msra.mxu0 0
    %249 = vmatprep.subr.bf16.mxu0 0
    %250 = vmatpush1.bf16.msra.mxu0 0
    %251 = vmatprep.subr.bf16.mxu0 0
    %252 = vmatpush1.bf16.msra.mxu0 0
    %253 = vmatprep.subr.bf16.mxu0 0
    %254 = vmatpush1.bf16.msra.mxu0 0
    %255 = vmatprep.subr.bf16.mxu0 0
    %256 = vmatpush1.bf16.msra.mxu0 0
    %257 = vmatprep.subr.bf16.mxu0 0
    %258 = vmatpush1.bf16.msra.mxu0 0
    %259 = vmatprep.subr.bf16.mxu0 0
    %260 = vmatpush1.bf16.msra.mxu0 0
    %261 = vmatprep.mubr.bf16.mxu0 0
    %262 = vmatmul.mubr.bf16.gmra.mrb[0].mxu0 %v206
    %v263 = vpop.f32.mrb[0].mxu0
    %v264 = vadd.f32 %v127, %v263
    %v265 = vpop.f32.mrb[0].mxu0
    %v266 = vadd.f32 %v131, %v265
    %v267 = vpop.f32.mrb[0].mxu0
    %v268 = vadd.f32 %v127, %v267
    %v269 = vpop.f32.mrb[0].mxu0
    %v270 = vadd.f32 %v131, %v269
    %271 = vmatprep.mubr.bf16.mxu0 0
    %272 = vmatmul.mubr.bf16.gmra.mrb[0].mxu0 %v209
    %v273 = vpop.f32.mrb[0].mxu0
    %v274 = vadd.f32 %v127, %v273
    %v275 = vpop.f32.mrb[0].mxu0
    %v276 = vadd.f32 %v131, %v275
    %v277 = vpop.f32.mrb[0].mxu0
    %v278 = vadd.f32 %v127, %v277
    %v279 = vpop.f32.mrb[0].mxu0
    %v280 = vadd.f32 %v131, %v279
    %281 = vmatprep.mubr.bf16.mxu0 0
    %282 = vmatmul.mubr.bf16.gmra.mrb[0].mxu0 %v212
    %v283 = vpop.f32.mrb[0].mxu0
    %v284 = vadd.f32 %v127, %v283
    %v285 = vpop.f32.mrb[0].mxu0
    %v286 = vadd.f32 %v131, %v285
    %v287 = vpop.f32.mrb[0].mxu0
    %v288 = vadd.f32 %v127, %v287
    %v289 = vpop.f32.mrb[0].mxu0
    %v290 = vadd.f32 %v131, %v289
    %291 = vmatprep.mubr.bf16.mxu0 0
    %292 = vmatmul.mubr.bf16.gmra.mrb[0].mxu0 %v215
    %v293 = vpop.f32.mrb[0].mxu0
    %v294 = vadd.f32 %v127, %v293
    %v295 = vpop.f32.mrb[0].mxu0
    %v296 = vadd.f32 %v131, %v295
    %v297 = vpop.f32.mrb[0].mxu0
    %v298 = vadd.f32 %v127, %v297
    %v299 = vpop.f32.mrb[0].mxu0
    %v300 = vadd.f32 %v131, %v299
    %301 = vmatprep.mubr.bf16.mxu0 0
    %302 = vmatmul.mubr.bf16.gmra.mrb[0].mxu0 %v218
    %v303 = vpop.f32.mrb[0].mxu0
    %v304 = vadd.f32 %v127, %v303
    %v305 = vpop.f32.mrb[0].mxu0
    %v306 = vadd.f32 %v131, %v305
    %v307 = vpop.f32.mrb[0].mxu0
    %v308 = vadd.f32 %v127, %v307
    %v309 = vpop.f32.mrb[0].mxu0
    %v310 = vadd.f32 %v131, %v309
    %311 = vmatprep.mubr.bf16.mxu0 0
    %312 = vmatmul.mubr.bf16.gmra.mrb[0].mxu0 %v221
    %v313 = vpop.f32.mrb[0].mxu0
    %v314 = vadd.f32 %v127, %v313
    %v315 = vpop.f32.mrb[0].mxu0
    %v316 = vadd.f32 %v131, %v315
    %v317 = vpop.f32.mrb[0].mxu0
    %v318 = vadd.f32 %v127, %v317
    %v319 = vpop.f32.mrb[0].mxu0
    %v320 = vadd.f32 %v131, %v319
    %321 = vmatprep.mubr.bf16.mxu0 0
    %322 = vmatmul.mubr.bf16.gmra.mrb[0].mxu0 %v224
    %v323 = vpop.f32.mrb[0].mxu0
    %v324 = vadd.f32 %v127, %v323
    %v325 = vpop.f32.mrb[0].mxu0
    %v326 = vadd.f32 %v131, %v325
    %v327 = vpop.f32.mrb[0].mxu0
    %v328 = vadd.f32 %v127, %v327
    %v329 = vpop.f32.mrb[0].mxu0
    %v330 = vadd.f32 %v131, %v329
    %331 = vmatprep.mubr.bf16.mxu0 0
    %332 = vmatmul.mubr.bf16.gmra.mrb[0].mxu0 %v227
    %v333 = vpop.f32.mrb[0].mxu0
    %v334 = vadd.f32 %v127, %v333
    %v335 = vpop.f32.mrb[0].mxu0
    %v336 = vadd.f32 %v131, %v335
    %v337 = vpop.f32.mrb[0].mxu0
    %v338 = vadd.f32 %v127, %v337
    %v339 = vpop.f32.mrb[0].mxu0
    %v340 = vadd.f32 %v131, %v339
    %341 = vdwg.mxu0
    %342 = vmatprep.subr.bf16.mxu0 %v199
    %343 = vmatpush1.bf16.msra.mxu0 %v198
    %344 = vmatprep.subr.bf16.mxu0 0
    %345 = vmatpush1.bf16.msra.mxu0 0
    %346 = vmatprep.subr.bf16.mxu0 0
    %347 = vmatpush1.bf16.msra.mxu0 0
    %348 = vmatprep.subr.bf16.mxu0 0
    %349 = vmatpush1.bf16.msra.mxu0 0
    %350 = vmatprep.subr.bf16.mxu0 0
    %351 = vmatpush1.bf16.msra.mxu0 0
    %352 = vmatprep.subr.bf16.mxu0 0
    %353 = vmatpush1.bf16.msra.mxu0 0
    %354 = vmatprep.subr.bf16.mxu0 0
    %355 = vmatpush1.bf16.msra.mxu0 0
    %356 = vmatprep.subr.bf16.mxu0 0
    %357 = vmatpush1.bf16.msra.mxu0 0
    %358 = vmatprep.subr.bf16.mxu0 0
    %359 = vmatpush1.bf16.msra.mxu0 0
    %360 = vmatprep.subr.bf16.mxu0 0
    %361 = vmatpush1.bf16.msra.mxu0 0
    %362 = vmatprep.subr.bf16.mxu0 0
    %363 = vmatpush1.bf16.msra.mxu0 0
    %364 = vmatprep.subr.bf16.mxu0 0
    %365 = vmatpush1.bf16.msra.mxu0 0
    %366 = vmatprep.subr.bf16.mxu0 0
    %367 = vmatpush1.bf16.msra.mxu0 0
    %368 = vmatprep.subr.bf16.mxu0 0
    %369 = vmatpush1.bf16.msra.mxu0 0
    %370 = vmatprep.subr.bf16.mxu0 0
    %371 = vmatpush1.bf16.msra.mxu0 0
    %372 = vmatprep.subr.bf16.mxu0 0
    %373 = vmatpush1.bf16.msra.mxu0 0
    %374 = vmatprep.mubr.bf16.mxu0 0
    %375 = vmatmul.mubr.bf16.gmra.mrb[0].mxu0 %v206
    %v376 = vpop.f32.mrb[0].mxu0
    %v377 = vadd.f32 %v135, %v376
    %v378 = vpop.f32.mrb[0].mxu0
    %v379 = vadd.f32 %v139, %v378
    %v380 = vpop.f32.mrb[0].mxu0
    %v381 = vadd.f32 %v135, %v380
    %v382 = vpop.f32.mrb[0].mxu0
    %v383 = vadd.f32 %v139, %v382
    %384 = vmatprep.mubr.bf16.mxu0 0
    %385 = vmatmul.mubr.bf16.gmra.mrb[0].mxu0 %v209
    %v386 = vpop.f32.mrb[0].mxu0
    %v387 = vadd.f32 %v135, %v386
    %v388 = vpop.f32.mrb[0].mxu0
    %v389 = vadd.f32 %v139, %v388
    %v390 = vpop.f32.mrb[0].mxu0
    %v391 = vadd.f32 %v135, %v390
    %v392 = vpop.f32.mrb[0].mxu0
    %v393 = vadd.f32 %v139, %v392
    %394 = vmatprep.mubr.bf16.mxu0 0
    %395 = vmatmul.mubr.bf16.gmra.mrb[0].mxu0 %v212
    %v396 = vpop.f32.mrb[0].mxu0
    %v397 = vadd.f32 %v135, %v396
    %v398 = vpop.f32.mrb[0].mxu0
    %v399 = vadd.f32 %v139, %v398
    %v400 = vpop.f32.mrb[0].mxu0
    %v401 = vadd.f32 %v135, %v400
    %v402 = vpop.f32.mrb[0].mxu0
    %v403 = vadd.f32 %v139, %v402
    %404 = vmatprep.mubr.bf16.mxu0 0
    %405 = vmatmul.mubr.bf16.gmra.mrb[0].mxu0 %v215
    %v406 = vpop.f32.mrb[0].mxu0
    %v407 = vadd.f32 %v135, %v406
    %v408 = vpop.f32.mrb[0].mxu0
    %v409 = vadd.f32 %v139, %v408
    %v410 = vpop.f32.mrb[0].mxu0
    %v411 = vadd.f32 %v135, %v410
    %v412 = vpop.f32.mrb[0].mxu0
    %v413 = vadd.f32 %v139, %v412
    %414 = vmatprep.mubr.bf16.mxu0 0
    %415 = vmatmul.mubr.bf16.gmra.mrb[0].mxu0 %v218
    %v416 = vpop.f32.mrb[0].mxu0
    %v417 = vadd.f32 %v135, %v416
    %v418 = vpop.f32.mrb[0].mxu0
    %v419 = vadd.f32 %v139, %v418
    %v420 = vpop.f32.mrb[0].mxu0
    %v421 = vadd.f32 %v135, %v420
    %v422 = vpop.f32.mrb[0].mxu0
    %v423 = vadd.f32 %v139, %v422
    %424 = vmatprep.mubr.bf16.mxu0 0
    %425 = vmatmul.mubr.bf16.gmra.mrb[0].mxu0 %v221
    %v426 = vpop.f32.mrb[0].mxu0
    %v427 = vadd.f32 %v135, %v426
    %v428 = vpop.f32.mrb[0].mxu0
    %v429 = vadd.f32 %v139, %v428
    %v430 = vpop.f32.mrb[0].mxu0
    %v431 = vadd.f32 %v135, %v430
    %v432 = vpop.f32.mrb[0].mxu0
    %v433 = vadd.f32 %v139, %v432
    %434 = vmatprep.mubr.bf16.mxu0 0
    %435 = vmatmul.mubr.bf16.gmra.mrb[0].mxu0 %v224
    %v436 = vpop.f32.mrb[0].mxu0
    %v437 = vadd.f32 %v135, %v436
    %v438 = vpop.f32.mrb[0].mxu0
    %v439 = vadd.f32 %v139, %v438
    %v440 = vpop.f32.mrb[0].mxu0
    %v441 = vadd.f32 %v135, %v440
    %v442 = vpop.f32.mrb[0].mxu0
    %v443 = vadd.f32 %v139, %v442
    %444 = vmatprep.mubr.bf16.mxu0 0
    %445 = vmatmul.mubr.bf16.gmra.mrb[0].mxu0 %v227
    %v446 = vpop.f32.mrb[0].mxu0
    %v447 = vadd.f32 %v135, %v446
    %v448 = vpop.f32.mrb[0].mxu0
    %v449 = vadd.f32 %v139, %v448
    %v450 = vpop.f32.mrb[0].mxu0
    %v451 = vadd.f32 %v135, %v450
    %v452 = vpop.f32.mrb[0].mxu0
    %v453 = vadd.f32 %v139, %v452
    %454 = vdwg.mxu0
    %455 = vst [vmem:[#allocation3] sm:$0xff] %v264
    %456 = vst [vmem:[#allocation3 + $0x8] sm:$0xff] %v266
    %457 = vst [vmem:[#allocation3 + $0x10] sm:$0xff] %v377
    %458 = vst [vmem:[#allocation3 + $0x18] sm:$0xff] %v379
    %459 = vst [vmem:[#allocation3 + $0x20] sm:$0xff] %v268
    %460 = vst [vmem:[#allocation3 + $0x28] sm:$0xff] %v270
    %461 = vst [vmem:[#allocation3 + $0x30] sm:$0xff] %v381
    %462 = vst [vmem:[#allocation3 + $0x38] sm:$0xff] %v383
    %463 = vst [vmem:[#allocation3 + $0x40] sm:$0xff] %v274
    %464 = vst [vmem:[#allocation3 + $0x48] sm:$0xff] %v276
    %465 = vst [vmem:[#allocation3 + $0x50] sm:$0xff] %v387
    %466 = vst [vmem:[#allocation3 + $0x58] sm:$0xff] %v389
    %467 = vst [vmem:[#allocation3 + $0x60] sm:$0xff] %v278
    %468 = vst [vmem:[#allocation3 + $0x68] sm:$0xff] %v280
    %469 = vst [vmem:[#allocation3 + $0x70] sm:$0xff] %v391
    %470 = vst [vmem:[#allocation3 + $0x78] sm:$0xff] %v393
    %471 = vst [vmem:[#allocation3 + $0x80] sm:$0xff] %v284
    %472 = vst [vmem:[#allocation3 + $0x88] sm:$0xff] %v286
    %473 = vst [vmem:[#allocation3 + $0x90] sm:$0xff] %v397
    %474 = vst [vmem:[#allocation3 + $0x98] sm:$0xff] %v399
    %475 = vst [vmem:[#allocation3 + $0xa0] sm:$0xff] %v288
    %476 = vst [vmem:[#allocation3 + $0xa8] sm:$0xff] %v290
    %477 = vst [vmem:[#allocation3 + $0xb0] sm:$0xff] %v401
    %478 = vst [vmem:[#allocation3 + $0xb8] sm:$0xff] %v403
    %479 = vst [vmem:[#allocation3 + $0xc0] sm:$0xff] %v294
    %480 = vst [vmem:[#allocation3 + $0xc8] sm:$0xff] %v296
    %481 = vst [vmem:[#allocation3 + $0xd0] sm:$0xff] %v407
    %482 = vst [vmem:[#allocation3 + $0xd8] sm:$0xff] %v409
    %483 = vst [vmem:[#allocation3 + $0xe0] sm:$0xff] %v298
    %484 = vst [vmem:[#allocation3 + $0xe8] sm:$0xff] %v300
    %485 = vst [vmem:[#allocation3 + $0xf0] sm:$0xff] %v411
    %486 = vst [vmem:[#allocation3 + $0xf8] sm:$0xff] %v413
    %487 = vst [vmem:[#allocation3 + $0x100] sm:$0xff] %v304
    %488 = vst [vmem:[#allocation3 + $0x108] sm:$0xff] %v306
    %489 = vst [vmem:[#allocation3 + $0x110] sm:$0xff] %v417
    %490 = vst [vmem:[#allocation3 + $0x118] sm:$0xff] %v419
    %491 = vst [vmem:[#allocation3 + $0x120] sm:$0xff] %v308
    %492 = vst [vmem:[#allocation3 + $0x128] sm:$0xff] %v310
    %493 = vst [vmem:[#allocation3 + $0x130] sm:$0xff] %v421
    %494 = vst [vmem:[#allocation3 + $0x138] sm:$0xff] %v423
    %495 = vst [vmem:[#allocation3 + $0x140] sm:$0xff] %v314
    %496 = vst [vmem:[#allocation3 + $0x148] sm:$0xff] %v316
    %497 = vst [vmem:[#allocation3 + $0x150] sm:$0xff] %v427
    %498 = vst [vmem:[#allocation3 + $0x158] sm:$0xff] %v429
    %499 = vst [vmem:[#allocation3 + $0x160] sm:$0xff] %v318
    %500 = vst [vmem:[#allocation3 + $0x168] sm:$0xff] %v320
    %501 = vst [vmem:[#allocation3 + $0x170] sm:$0xff] %v431
    %502 = vst [vmem:[#allocation3 + $0x178] sm:$0xff] %v433
    %503 = vst [vmem:[#allocation3 + $0x180] sm:$0xff] %v324
    %504 = vst [vmem:[#allocation3 + $0x188] sm:$0xff] %v326
    %505 = vst [vmem:[#allocation3 + $0x190] sm:$0xff] %v437
    %506 = vst [vmem:[#allocation3 + $0x198] sm:$0xff] %v439
    %507 = vst [vmem:[#allocation3 + $0x1a0] sm:$0xff] %v328
    %508 = vst [vmem:[#allocation3 + $0x1a8] sm:$0xff] %v330
    %509 = vst [vmem:[#allocation3 + $0x1b0] sm:$0xff] %v441
    %510 = vst [vmem:[#allocation3 + $0x1b8] sm:$0xff] %v443
    %511 = vst [vmem:[#allocation3 + $0x1c0] sm:$0xff] %v334
    %512 = vst [vmem:[#allocation3 + $0x1c8] sm:$0xff] %v336
    %513 = vst [vmem:[#allocation3 + $0x1d0] sm:$0xff] %v447
    %514 = vst [vmem:[#allocation3 + $0x1d8] sm:$0xff] %v449
    %515 = vst [vmem:[#allocation3 + $0x1e0] sm:$0xff] %v338
    %516 = vst [vmem:[#allocation3 + $0x1e8] sm:$0xff] %v340
    %517 = vst [vmem:[#allocation3 + $0x1f0] sm:$0xff] %v451
    %518 = vst [vmem:[#allocation3 + $0x1f8] sm:$0xff] %v453
    %v519 = vld [vmem:[#allocation3] sm:$0xff]
    %v520 = vld [vmem:[#allocation3 + $0x8] sm:$0xff]
    %v521 = vld [vmem:[#allocation3 + $0x10] sm:$0xff]
    %v522 = vld [vmem:[#allocation3 + $0x18] sm:$0xff]
    %v523 = vld [vmem:[#allocation3 + $0x20] sm:$0xff]
    %v524 = vld [vmem:[#allocation3 + $0x28] sm:$0xff]
    %v525 = vld [vmem:[#allocation3 + $0x30] sm:$0xff]
    %v526 = vld [vmem:[#allocation3 + $0x38] sm:$0xff]
    %v527 = vld [vmem:[#allocation9] sm:$0xff]
    %v528 = vld [vmem:[#allocation9 + $0x8] sm:$0xff]
    %v529 = vld [vmem:[#allocation9 + $0x10] sm:$0xff]
    %v530 = vld [vmem:[#allocation9 + $0x18] sm:$0xff]
    %v531 = vld [vmem:[#allocation9 + $0x20] sm:$0xff]
    %v532 = vld [vmem:[#allocation9 + $0x28] sm:$0xff]
    %v533 = vld [vmem:[#allocation9 + $0x30] sm:$0xff]
    %v534 = vld [vmem:[#allocation9 + $0x38] sm:$0xff]
    %v535 = vld [vmem:[#allocation9 + $0x40] sm:$0xff]
    %v536 = vld [vmem:[#allocation9 + $0x48] sm:$0xff]
    %v537 = vld [vmem:[#allocation9 + $0x50] sm:$0xff]
    %v538 = vld [vmem:[#allocation9 + $0x58] sm:$0xff]
    %v539 = vld [vmem:[#allocation9 + $0x60] sm:$0xff]
    %v540 = vld [vmem:[#allocation9 + $0x68] sm:$0xff]
    %v541 = vld [vmem:[#allocation9 + $0x70] sm:$0xff]
    %v542 = vld [vmem:[#allocation9 + $0x78] sm:$0xff]
    %v543 = vld [vmem:[#allocation9 + $0x80] sm:$0xff]
    %v544 = vld [vmem:[#allocation9 + $0x88] sm:$0xff]
    %v545 = vld [vmem:[#allocation9 + $0x90] sm:$0xff]
    %v546 = vld [vmem:[#allocation9 + $0x98] sm:$0xff]
    %v547 = vld [vmem:[#allocation9 + $0xa0] sm:$0xff]
    %v548 = vld [vmem:[#allocation9 + $0xa8] sm:$0xff]
    %v549 = vld [vmem:[#allocation9 + $0xb0] sm:$0xff]
    %v550 = vld [vmem:[#allocation9 + $0xb8] sm:$0xff]
    %v551 = vld [vmem:[#allocation9 + $0xc0] sm:$0xff]
    %v552 = vld [vmem:[#allocation9 + $0xc8] sm:$0xff]
    %v553 = vld [vmem:[#allocation9 + $0xd0] sm:$0xff]
    %v554 = vld [vmem:[#allocation9 + $0xd8] sm:$0xff]
    %v555 = vld [vmem:[#allocation9 + $0xe0] sm:$0xff]
    %v556 = vld [vmem:[#allocation9 + $0xe8] sm:$0xff]
    %v557 = vld [vmem:[#allocation9 + $0xf0] sm:$0xff]
    %v558 = vld [vmem:[#allocation9 + $0xf8] sm:$0xff]
    %v591 = vunpack.c.l.b16 %v527
    %v592 = vunpack.c.h.b16 %v527
    %v593 = vunpack.c.l.b16 %v528
    %v594 = vunpack.c.h.b16 %v528
    %v595 = vunpack.c.l.b16 %v529
    %v596 = vunpack.c.h.b16 %v529
    %v597 = vunpack.c.l.b16 %v530
    %v598 = vunpack.c.h.b16 %v530
    %v599 = vunpack.c.l.b16 %v531
    %v600 = vunpack.c.h.b16 %v531
    %v601 = vunpack.c.l.b16 %v532
    %v602 = vunpack.c.h.b16 %v532
    %v603 = vunpack.c.l.b16 %v533
    %v604 = vunpack.c.h.b16 %v533
    %v605 = vunpack.c.l.b16 %v534
    %v606 = vunpack.c.h.b16 %v534
    %v607 = vunpack.c.l.b16 %v535
    %v608 = vunpack.c.h.b16 %v535
    %v609 = vunpack.c.l.b16 %v536
    %v610 = vunpack.c.h.b16 %v536
    %v611 = vunpack.c.l.b16 %v537
    %v612 = vunpack.c.h.b16 %v537
    %v613 = vunpack.c.l.b16 %v538
    %v614 = vunpack.c.h.b16 %v538
    %v615 = vunpack.c.l.b16 %v539
    %v616 = vunpack.c.h.b16 %v539
    %v617 = vunpack.c.l.b16 %v540
    %v618 = vunpack.c.h.b16 %v540
    %v619 = vunpack.c.l.b16 %v541
    %v620 = vunpack.c.h.b16 %v541
    %v621 = vunpack.c.l.b16 %v542
    %v622 = vunpack.c.h.b16 %v542
    %v623 = vunpack.c.l.b16 %v543
    %v624 = vunpack.c.h.b16 %v543
    %v625 = vunpack.c.l.b16 %v544
    %v626 = vunpack.c.h.b16 %v544
    %v627 = vunpack.c.l.b16 %v545
    %v628 = vunpack.c.h.b16 %v545
    %v629 = vunpack.c.l.b16 %v546
    %v630 = vunpack.c.h.b16 %v546
    %v631 = vunpack.c.l.b16 %v547
    %v632 = vunpack.c.h.b16 %v547
    %v633 = vunpack.c.l.b16 %v548
    %v634 = vunpack.c.h.b16 %v548
    %v635 = vunpack.c.l.b16 %v549
    %v636 = vunpack.c.h.b16 %v549
    %v637 = vunpack.c.l.b16 %v550
    %v638 = vunpack.c.h.b16 %v550
    %v639 = vunpack.c.l.b16 %v551
    %v640 = vunpack.c.h.b16 %v551
    %v641 = vunpack.c.l.b16 %v552
    %v642 = vunpack.c.h.b16 %v552
    %v643 = vunpack.c.l.b16 %v553
    %v644 = vunpack.c.h.b16 %v553
    %v645 = vunpack.c.l.b16 %v554
    %v646 = vunpack.c.h.b16 %v554
    %v647 = vunpack.c.l.b16 %v555
    %v648 = vunpack.c.h.b16 %v555
    %v649 = vunpack.c.l.b16 %v556
    %v650 = vunpack.c.h.b16 %v556
    %v651 = vunpack.c.l.b16 %v557
    %v652 = vunpack.c.h.b16 %v557
    %v653 = vunpack.c.l.b16 %v558
    %v654 = vunpack.c.h.b16 %v558
    %v655 = vpack.c.b16 %v595, %v591
    %v656 = vpack.c.b16 %v596, %v592
    %v657 = vpack.c.b16 %v597, %v593
    %v658 = vpack.c.b16 %v598, %v594
    %v659 = vpack.c.b16 %v603, %v599
    %v660 = vpack.c.b16 %v604, %v600
    %v661 = vpack.c.b16 %v605, %v601
    %v662 = vpack.c.b16 %v606, %v602
    %v663 = vpack.c.b16 %v611, %v607
    %v664 = vpack.c.b16 %v612, %v608
    %v665 = vpack.c.b16 %v613, %v609
    %v666 = vpack.c.b16 %v614, %v610
    %v667 = vpack.c.b16 %v619, %v615
    %v668 = vpack.c.b16 %v620, %v616
    %v669 = vpack.c.b16 %v621, %v617
    %v670 = vpack.c.b16 %v622, %v618
    %v671 = vpack.c.b16 %v627, %v623
    %v672 = vpack.c.b16 %v628, %v624
    %v673 = vpack.c.b16 %v629, %v625
    %v674 = vpack.c.b16 %v630, %v626
    %v675 = vpack.c.b16 %v635, %v631
    %v676 = vpack.c.b16 %v636, %v632
    %v677 = vpack.c.b16 %v637, %v633
    %v678 = vpack.c.b16 %v638, %v634
    %v679 = vpack.c.b16 %v643, %v639
    %v680 = vpack.c.b16 %v644, %v640
    %v681 = vpack.c.b16 %v645, %v641
    %v682 = vpack.c.b16 %v646, %v642
    %v683 = vpack.c.b16 %v651, %v647
    %v684 = vpack.c.b16 %v652, %v648
    %v685 = vpack.c.b16 %v653, %v649
    %v686 = vpack.c.b16 %v654, %v650
    %719 = vmatprep.subr.bf16.mxu0 %v656
    %720 = vmatpush1.bf16.msra.mxu0 %v655
    %721 = vmatprep.subr.bf16.mxu0 %v660
    %722 = vmatpush1.bf16.msra.mxu0 %v659
    %723 = vmatprep.subr.bf16.mxu0 %v664
    %724 = vmatpush1.bf16.msra.mxu0 %v663
    %725 = vmatprep.subr.bf16.mxu0 %v668
    %726 = vmatpush1.bf16.msra.mxu0 %v667
    %727 = vmatprep.subr.bf16.mxu0 %v672
    %728 = vmatpush1.bf16.msra.mxu0 %v671
    %729 = vmatprep.subr.bf16.mxu0 %v676
    %730 = vmatpush1.bf16.msra.mxu0 %v675
    %731 = vmatprep.subr.bf16.mxu0 %v680
    %732 = vmatpush1.bf16.msra.mxu0 %v679
    %733 = vmatprep.subr.bf16.mxu0 %v684
    %734 = vmatpush1.bf16.msra.mxu0 %v683
    %735 = vmatprep.subr.bf16.mxu0 0
    %736 = vmatpush1.bf16.msra.mxu0 0
    %737 = vmatprep.subr.bf16.mxu0 0
    %738 = vmatpush1.bf16.msra.mxu0 0
    %739 = vmatprep.subr.bf16.mxu0 0
    %740 = vmatpush1.bf16.msra.mxu0 0
    %741 = vmatprep.subr.bf16.mxu0 0
    %742 = vmatpush1.bf16.msra.mxu0 0
    %743 = vmatprep.subr.bf16.mxu0 0
    %744 = vmatpush1.bf16.msra.mxu0 0
    %745 = vmatprep.subr.bf16.mxu0 0
    %746 = vmatpush1.bf16.msra.mxu0 0
    %747 = vmatprep.subr.bf16.mxu0 0
    %748 = vmatpush1.bf16.msra.mxu0 0
    %749 = vmatprep.subr.bf16.mxu0 0
    %750 = vmatpush1.bf16.msra.mxu0 0
    %751 = vmatprep.mubr.bf16.mxu0 0
    %752 = vmatmul.mubr.bf16.gmra.mrb[0].mxu0 0
    %v753 = vpop.f32.mrb[0].mxu0
    %v754 = vadd.f32 0.0, %v753
    %v755 = vpop.f32.mrb[0].mxu0
    %v756 = vadd.f32 0.0, %v755
    %v757 = vpop.f32.mrb[0].mxu0
    %v758 = vadd.f32 0.0, %v757
    %v759 = vpop.f32.mrb[0].mxu0
    %v760 = vadd.f32 0.0, %v759
    %761 = vdwg.mxu0
    %762 = vmatprep.subr.bf16.mxu0 %v658
    %763 = vmatpush1.bf16.msra.mxu0 %v657
    %764 = vmatprep.subr.bf16.mxu0 %v662
    %765 = vmatpush1.bf16.msra.mxu0 %v661
    %766 = vmatprep.subr.bf16.mxu0 %v666
    %767 = vmatpush1.bf16.msra.mxu0 %v665
    %768 = vmatprep.subr.bf16.mxu0 %v670
    %769 = vmatpush1.bf16.msra.mxu0 %v669
    %770 = vmatprep.subr.bf16.mxu0 %v674
    %771 = vmatpush1.bf16.msra.mxu0 %v673
    %772 = vmatprep.subr.bf16.mxu0 %v678
    %773 = vmatpush1.bf16.msra.mxu0 %v677
    %774 = vmatprep.subr.bf16.mxu0 %v682
    %775 = vmatpush1.bf16.msra.mxu0 %v681
    %776 = vmatprep.subr.bf16.mxu0 %v686
    %777 = vmatpush1.bf16.msra.mxu0 %v685
    %778 = vmatprep.subr.bf16.mxu0 0
    %779 = vmatpush1.bf16.msra.mxu0 0
    %780 = vmatprep.subr.bf16.mxu0 0
    %781 = vmatpush1.bf16.msra.mxu0 0
    %782 = vmatprep.subr.bf16.mxu0 0
    %783 = vmatpush1.bf16.msra.mxu0 0
    %784 = vmatprep.subr.bf16.mxu0 0
    %785 = vmatpush1.bf16.msra.mxu0 0
    %786 = vmatprep.subr.bf16.mxu0 0
    %787 = vmatpush1.bf16.msra.mxu0 0
    %788 = vmatprep.subr.bf16.mxu0 0
    %789 = vmatpush1.bf16.msra.mxu0 0
    %790 = vmatprep.subr.bf16.mxu0 0
    %791 = vmatpush1.bf16.msra.mxu0 0
    %792 = vmatprep.subr.bf16.mxu0 0
    %793 = vmatpush1.bf16.msra.mxu0 0
    %794 = vmatprep.mubr.bf16.mxu0 0
    %795 = vmatmul.mubr.bf16.gmra.mrb[0].mxu0 0
    %v796 = vpop.f32.mrb[0].mxu0
    %v797 = vadd.f32 0.0, %v796
    %v798 = vpop.f32.mrb[0].mxu0
    %v799 = vadd.f32 0.0, %v798
    %v800 = vpop.f32.mrb[0].mxu0
    %v801 = vadd.f32 0.0, %v800
    %v802 = vpop.f32.mrb[0].mxu0
    %v803 = vadd.f32 0.0, %v802
    %804 = vdwg.mxu0
    %v805 = vadd.f32 %v519, %v754
    %v806 = vadd.f32 %v520, %v756
    %v807 = vadd.f32 %v521, %v797
    %v808 = vadd.f32 %v522, %v799
    %v809 = vadd.f32 %v523, %v758
    %v810 = vadd.f32 %v524, %v760
    %v811 = vadd.f32 %v525, %v801
    %v812 = vadd.f32 %v526, %v803
    %v813 = vxor.u32 %v805, 2147483648
    %v814 = vxor.u32 %v809, 2147483648
    %v815 = vmul.f32 %v813, 1.442695
    %v816 = vpow.pop %v815
    %v817 = vmul.f32 %v814, 1.442695
    %v818 = vpow.pop %v817
    %v819 = vadd.f32 %v816, 1.0
    %v820 = vadd.f32 %v818, 1.0
    %v821 = vrcp.pop %v819
    %v822 = vmul.f32 1.0, %v821
    %v823 = vrcp.pop %v820
    %v824 = vmul.f32 1.0, %v823
    %v825 = vxor.u32 %v806, 2147483648
    %v826 = vxor.u32 %v810, 2147483648
    %v827 = vmul.f32 %v825, 1.442695
    %v828 = vpow.pop %v827
    %v829 = vmul.f32 %v826, 1.442695
    %v830 = vpow.pop %v829
    %v831 = vadd.f32 %v828, 1.0
    %v832 = vadd.f32 %v830, 1.0
    %v833 = vrcp.pop %v831
    %v834 = vmul.f32 1.0, %v833
    %v835 = vrcp.pop %v832
    %v836 = vmul.f32 1.0, %v835
    %v837 = vtanh.pop %v807
    %v838 = vtanh.pop %v811
    %v839 = vxor.u32 %v808, 2147483648
    %v840 = vxor.u32 %v812, 2147483648
    %v841 = vmul.f32 %v839, 1.442695
    %v842 = vpow.pop %v841
    %v843 = vmul.f32 %v840, 1.442695
    %v844 = vpow.pop %v843
    %v845 = vadd.f32 %v842, 1.0
    %v846 = vadd.f32 %v844, 1.0
    %v847 = vrcp.pop %v845
    %v848 = vmul.f32 1.0, %v847
    %v849 = vrcp.pop %v846
    %v850 = vmul.f32 1.0, %v849
    %v851 = vmul.f32 %v834, 0.0
    %v852 = vmul.f32 %v836, 0.0
    %v853 = vmul.f32 %v822, %v837
    %v854 = vmul.f32 %v824, %v838
    %v855 = vadd.f32 %v851, %v853
    %v856 = vadd.f32 %v852, %v854
    %v857 = vtanh.pop %v855
    %v858 = vtanh.pop %v856
    %v859 = vmul.f32 %v848, %v857
    %v860 = vmul.f32 %v850, %v858
    %v861 = vpack.c.bf16 %v860, %v859
    %862 = vst [vmem:[#allocation2] sm:$0xff] %v861
    %s863 = scalar_lea.vmem [#allocation3], 64
    %v864 = vld [vmem:[%s863] sm:$0xff]
    %v865 = vld [vmem:[%s863 + $0x8] sm:$0xff]
    %v866 = vld [vmem:[%s863 + $0x10] sm:$0xff]
    %v867 = vld [vmem:[%s863 + $0x18] sm:$0xff]
    %v868 = vld [vmem:[%s863 + $0x20] sm:$0xff]
    %v869 = vld [vmem:[%s863 + $0x28] sm:$0xff]
    %v870 = vld [vmem:[%s863 + $0x30] sm:$0xff]
    %v871 = vld [vmem:[%s863 + $0x38] sm:$0xff]
    %v872 = vld [vmem:[#allocation9] sm:$0xff]
    %v873 = vld [vmem:[#allocation9 + $0x8] sm:$0xff]
    %v874 = vld [vmem:[#allocation9 + $0x10] sm:$0xff]
    %v875 = vld [vmem:[#allocation9 + $0x18] sm:$0xff]
    %v876 = vld [vmem:[#allocation9 + $0x20] sm:$0xff]
    %v877 = vld [vmem:[#allocation9 + $0x28] sm:$0xff]
    %v878 = vld [vmem:[#allocation9 + $0x30] sm:$0xff]
    %v879 = vld [vmem:[#allocation9 + $0x38] sm:$0xff]
    %v880 = vld [vmem:[#allocation9 + $0x40] sm:$0xff]
    %v881 = vld [vmem:[#allocation9 + $0x48] sm:$0xff]
    %v882 = vld [vmem:[#allocation9 + $0x50] sm:$0xff]
    %v883 = vld [vmem:[#allocation9 + $0x58] sm:$0xff]
    %v884 = vld [vmem:[#allocation9 + $0x60] sm:$0xff]
    %v885 = vld [vmem:[#allocation9 + $0x68] sm:$0xff]
    %v886 = vld [vmem:[#allocation9 + $0x70] sm:$0xff]
    %v887 = vld [vmem:[#allocation9 + $0x78] sm:$0xff]
    %v888 = vld [vmem:[#allocation9 + $0x80] sm:$0xff]
    %v889 = vld [vmem:[#allocation9 + $0x88] sm:$0xff]
    %v890 = vld [vmem:[#allocation9 + $0x90] sm:$0xff]
    %v891 = vld [vmem:[#allocation9 + $0x98] sm:$0xff]
    %v892 = vld [vmem:[#allocation9 + $0xa0] sm:$0xff]
    %v893 = vld [vmem:[#allocation9 + $0xa8] sm:$0xff]
    %v894 = vld [vmem:[#allocation9 + $0xb0] sm:$0xff]
    %v895 = vld [vmem:[#allocation9 + $0xb8] sm:$0xff]
    %v896 = vld [vmem:[#allocation9 + $0xc0] sm:$0xff]
    %v897 = vld [vmem:[#allocation9 + $0xc8] sm:$0xff]
    %v898 = vld [vmem:[#allocation9 + $0xd0] sm:$0xff]
    %v899 = vld [vmem:[#allocation9 + $0xd8] sm:$0xff]
    %v900 = vld [vmem:[#allocation9 + $0xe0] sm:$0xff]
    %v901 = vld [vmem:[#allocation9 + $0xe8] sm:$0xff]
    %v902 = vld [vmem:[#allocation9 + $0xf0] sm:$0xff]
    %v903 = vld [vmem:[#allocation9 + $0xf8] sm:$0xff]
    %v936 = vunpack.c.l.b16 %v872
    %v937 = vunpack.c.h.b16 %v872
    %v938 = vunpack.c.l.b16 %v873
    %v939 = vunpack.c.h.b16 %v873
    %v940 = vunpack.c.l.b16 %v874
    %v941 = vunpack.c.h.b16 %v874
    %v942 = vunpack.c.l.b16 %v875
    %v943 = vunpack.c.h.b16 %v875
    %v944 = vunpack.c.l.b16 %v876
    %v945 = vunpack.c.h.b16 %v876
    %v946 = vunpack.c.l.b16 %v877
    %v947 = vunpack.c.h.b16 %v877
    %v948 = vunpack.c.l.b16 %v878
    %v949 = vunpack.c.h.b16 %v878
    %v950 = vunpack.c.l.b16 %v879
    %v951 = vunpack.c.h.b16 %v879
    %v952 = vunpack.c.l.b16 %v880
    %v953 = vunpack.c.h.b16 %v880
    %v954 = vunpack.c.l.b16 %v881
    %v955 = vunpack.c.h.b16 %v881
    %v956 = vunpack.c.l.b16 %v882
    %v957 = vunpack.c.h.b16 %v882
    %v958 = vunpack.c.l.b16 %v883
    %v959 = vunpack.c.h.b16 %v883
    %v960 = vunpack.c.l.b16 %v884
    %v961 = vunpack.c.h.b16 %v884
    %v962 = vunpack.c.l.b16 %v885
    %v963 = vunpack.c.h.b16 %v885
    %v964 = vunpack.c.l.b16 %v886
    %v965 = vunpack.c.h.b16 %v886
    %v966 = vunpack.c.l.b16 %v887
    %v967 = vunpack.c.h.b16 %v887
    %v968 = vunpack.c.l.b16 %v888
    %v969 = vunpack.c.h.b16 %v888
    %v970 = vunpack.c.l.b16 %v889
    %v971 = vunpack.c.h.b16 %v889
    %v972 = vunpack.c.l.b16 %v890
    %v973 = vunpack.c.h.b16 %v890
    %v974 = vunpack.c.l.b16 %v891
    %v975 = vunpack.c.h.b16 %v891
    %v976 = vunpack.c.l.b16 %v892
    %v977 = vunpack.c.h.b16 %v892
    %v978 = vunpack.c.l.b16 %v893
    %v979 = vunpack.c.h.b16 %v893
    %v980 = vunpack.c.l.b16 %v894
    %v981 = vunpack.c.h.b16 %v894
    %v982 = vunpack.c.l.b16 %v895
    %v983 = vunpack.c.h.b16 %v895
    %v984 = vunpack.c.l.b16 %v896
    %v985 = vunpack.c.h.b16 %v896
    %v986 = vunpack.c.l.b16 %v897
    %v987 = vunpack.c.h.b16 %v897
    %v988 = vunpack.c.l.b16 %v898
    %v989 = vunpack.c.h.b16 %v898
    %v990 = vunpack.c.l.b16 %v899
    %v991 = vunpack.c.h.b16 %v899
    %v992 = vunpack.c.l.b16 %v900
    %v993 = vunpack.c.h.b16 %v900
    %v994 = vunpack.c.l.b16 %v901
    %v995 = vunpack.c.h.b16 %v901
    %v996 = vunpack.c.l.b16 %v902
    %v997 = vunpack.c.h.b16 %v902
    %v998 = vunpack.c.l.b16 %v903
    %v999 = vunpack.c.h.b16 %v903
    %v1000 = vpack.c.b16 %v940, %v936
    %v1001 = vpack.c.b16 %v941, %v937
    %v1002 = vpack.c.b16 %v942, %v938
    %v1003 = vpack.c.b16 %v943, %v939
    %v1004 = vpack.c.b16 %v948, %v944
    %v1005 = vpack.c.b16 %v949, %v945
    %v1006 = vpack.c.b16 %v950, %v946
    %v1007 = vpack.c.b16 %v951, %v947
    %v1008 = vpack.c.b16 %v956, %v952
    %v1009 = vpack.c.b16 %v957, %v953
    %v1010 = vpack.c.b16 %v958, %v954
    %v1011 = vpack.c.b16 %v959, %v955
    %v1012 = vpack.c.b16 %v964, %v960
    %v1013 = vpack.c.b16 %v965, %v961
    %v1014 = vpack.c.b16 %v966, %v962
    %v1015 = vpack.c.b16 %v967, %v963
    %v1016 = vpack.c.b16 %v972, %v968
    %v1017 = vpack.c.b16 %v973, %v969
    %v1018 = vpack.c.b16 %v974, %v970
    %v1019 = vpack.c.b16 %v975, %v971
    %v1020 = vpack.c.b16 %v980, %v976
    %v1021 = vpack.c.b16 %v981, %v977
    %v1022 = vpack.c.b16 %v982, %v978
    %v1023 = vpack.c.b16 %v983, %v979
    %v1024 = vpack.c.b16 %v988, %v984
    %v1025 = vpack.c.b16 %v989, %v985
    %v1026 = vpack.c.b16 %v990, %v986
    %v1027 = vpack.c.b16 %v991, %v987
    %v1028 = vpack.c.b16 %v996, %v992
    %v1029 = vpack.c.b16 %v997, %v993
    %v1030 = vpack.c.b16 %v998, %v994
    %v1031 = vpack.c.b16 %v999, %v995
    %1064 = vmatprep.subr.bf16.mxu0 %v1001
    %1065 = vmatpush1.bf16.msra.mxu0 %v1000
    %1066 = vmatprep.subr.bf16.mxu0 %v1005
    %1067 = vmatpush1.bf16.msra.mxu0 %v1004
    %1068 = vmatprep.subr.bf16.mxu0 %v1009
    %1069 = vmatpush1.bf16.msra.mxu0 %v1008
    %1070 = vmatprep.subr.bf16.mxu0 %v1013
    %1071 = vmatpush1.bf16.msra.mxu0 %v1012
    %1072 = vmatprep.subr.bf16.mxu0 %v1017
    %1073 = vmatpush1.bf16.msra.mxu0 %v1016
    %1074 = vmatprep.subr.bf16.mxu0 %v1021
    %1075 = vmatpush1.bf16.msra.mxu0 %v1020
    %1076 = vmatprep.subr.bf16.mxu0 %v1025
    %1077 = vmatpush1.bf16.msra.mxu0 %v1024
    %1078 = vmatprep.subr.bf16.mxu0 %v1029
    %1079 = vmatpush1.bf16.msra.mxu0 %v1028
    %1080 = vmatprep.subr.bf16.mxu0 0
    %1081 = vmatpush1.bf16.msra.mxu0 0
    %1082 = vmatprep.subr.bf16.mxu0 0
    %1083 = vmatpush1.bf16.msra.mxu0 0
    %1084 = vmatprep.subr.bf16.mxu0 0
    %1085 = vmatpush1.bf16.msra.mxu0 0
    %1086 = vmatprep.subr.bf16.mxu0 0
    %1087 = vmatpush1.bf16.msra.mxu0 0
    %1088 = vmatprep.subr.bf16.mxu0 0
    %1089 = vmatpush1.bf16.msra.mxu0 0
    %1090 = vmatprep.subr.bf16.mxu0 0
    %1091 = vmatpush1.bf16.msra.mxu0 0
    %1092 = vmatprep.subr.bf16.mxu0 0
    %1093 = vmatpush1.bf16.msra.mxu0 0
    %1094 = vmatprep.subr.bf16.mxu0 0
    %1095 = vmatpush1.bf16.msra.mxu0 0
    %1096 = vmatprep.mubr.bf16.mxu0 0
    %1097 = vmatmul.mubr.bf16.gmra.mrb[0].mxu0 %v861
    %v1098 = vpop.f32.mrb[0].mxu0
    %v1099 = vadd.f32 0.0, %v1098
    %v1100 = vpop.f32.mrb[0].mxu0
    %v1101 = vadd.f32 0.0, %v1100
    %v1102 = vpop.f32.mrb[0].mxu0
    %v1103 = vadd.f32 0.0, %v1102
    %v1104 = vpop.f32.mrb[0].mxu0
    %v1105 = vadd.f32 0.0, %v1104
    %1106 = vdwg.mxu0
    %1107 = vmatprep.subr.bf16.mxu0 %v1003
    %1108 = vmatpush1.bf16.msra.mxu0 %v1002
    %1109 = vmatprep.subr.bf16.mxu0 %v1007
    %1110 = vmatpush1.bf16.msra.mxu0 %v1006
    %1111 = vmatprep.subr.bf16.mxu0 %v1011
    %1112 = vmatpush1.bf16.msra.mxu0 %v1010
    %1113 = vmatprep.subr.bf16.mxu0 %v1015
    %1114 = vmatpush1.bf16.msra.mxu0 %v1014
    %1115 = vmatprep.subr.bf16.mxu0 %v1019
    %1116 = vmatpush1.bf16.msra.mxu0 %v1018
    %1117 = vmatprep.subr.bf16.mxu0 %v1023
    %1118 = vmatpush1.bf16.msra.mxu0 %v1022
    %1119 = vmatprep.subr.bf16.mxu0 %v1027
    %1120 = vmatpush1.bf16.msra.mxu0 %v1026
    %1121 = vmatprep.subr.bf16.mxu0 %v1031
    %1122 = vmatpush1.bf16.msra.mxu0 %v1030
    %1123 = vmatprep.subr.bf16.mxu0 0
    %1124 = vmatpush1.bf16.msra.mxu0 0
    %1125 = vmatprep.subr.bf16.mxu0 0
    %1126 = vmatpush1.bf16.msra.mxu0 0
    %1127 = vmatprep.subr.bf16.mxu0 0
    %1128 = vmatpush1.bf16.msra.mxu0 0
    %1129 = vmatprep.subr.bf16.mxu0 0
    %1130 = vmatpush1.bf16.msra.mxu0 0
    %1131 = vmatprep.subr.bf16.mxu0 0
    %1132 = vmatpush1.bf16.msra.mxu0 0
    %1133 = vmatprep.subr.bf16.mxu0 0
    %1134 = vmatpush1.bf16.msra.mxu0 0
    %1135 = vmatprep.subr.bf16.mxu0 0
    %1136 = vmatpush1.bf16.msra.mxu0 0
    %1137 = vmatprep.subr.bf16.mxu0 0
    %1138 = vmatpush1.bf16.msra.mxu0 0
    %1139 = vmatprep.mubr.bf16.mxu0 0
    %1140 = vmatmul.mubr.bf16.gmra.mrb[0].mxu0 %v861
    %v1141 = vpop.f32.mrb[0].mxu0
    %v1142 = vadd.f32 0.0, %v1141
    %v1143 = vpop.f32.mrb[0].mxu0
    %v1144 = vadd.f32 0.0, %v1143
    %v1145 = vpop.f32.mrb[0].mxu0
    %v1146 = vadd.f32 0.0, %v1145
    %v1147 = vpop.f32.mrb[0].mxu0
    %v1148 = vadd.f32 0.0, %v1147
    %1149 = vdwg.mxu0
    %v1150 = vadd.f32 %v864, %v1099
    %v1151 = vadd.f32 %v865, %v1101
    %v1152 = vadd.f32 %v866, %v1142
    %v1153 = vadd.f32 %v867, %v1144
    %v1154 = vadd.f32 %v868, %v1103
    %v1155 = vadd.f32 %v869, %v1105
    %v1156 = vadd.f32 %v870, %v1146
    %v1157 = vadd.f32 %v871, %v1148
    %v1158 = vxor.u32 %v1150, 2147483648
    %v1159 = vxor.u32 %v1154, 2147483648
    %v1160 = vmul.f32 %v1158, 1.442695
    %v1161 = vpow.pop %v1160
    %v1162 = vmul.f32 %v1159, 1.442695
    %v1163 = vpow.pop %v1162
    %v1164 = vadd.f32 %v1161, 1.0
    %v1165 = vadd.f32 %v1163, 1.0
    %v1166 = vrcp.pop %v1164
    %v1167 = vmul.f32 1.0, %v1166
    %v1168 = vrcp.pop %v1165
    %v1169 = vmul.f32 1.0, %v1168
    %v1170 = vxor.u32 %v1151, 2147483648
    %v1171 = vxor.u32 %v1155, 2147483648
    %v1172 = vmul.f32 %v1170, 1.442695
    %v1173 = vpow.pop %v1172
    %v1174 = vmul.f32 %v1171, 1.442695
    %v1175 = vpow.pop %v1174
    %v1176 = vadd.f32 %v1173, 1.0
    %v1177 = vadd.f32 %v1175, 1.0
    %v1178 = vrcp.pop %v1176
    %v1179 = vmul.f32 1.0, %v1178
    %v1180 = vrcp.pop %v1177
    %v1181 = vmul.f32 1.0, %v1180
    %v1182 = vtanh.pop %v1152
    %v1183 = vtanh.pop %v1156
    %v1184 = vxor.u32 %v1153, 2147483648
    %v1185 = vxor.u32 %v1157, 2147483648
    %v1186 = vmul.f32 %v1184, 1.442695
    %v1187 = vpow.pop %v1186
    %v1188 = vmul.f32 %v1185, 1.442695
    %v1189 = vpow.pop %v1188
    %v1190 = vadd.f32 %v1187, 1.0
    %v1191 = vadd.f32 %v1189, 1.0
    %v1192 = vrcp.pop %v1190
    %v1193 = vmul.f32 1.0, %v1192
    %v1194 = vrcp.pop %v1191
    %v1195 = vmul.f32 1.0, %v1194
    %v1196 = vmul.f32 %v1179, %v855
    %v1197 = vmul.f32 %v1181, %v856
    %v1198 = vmul.f32 %v1167, %v1182
    %v1199 = vmul.f32 %v1169, %v1183
    %v1200 = vadd.f32 %v1196, %v1198
    %v1201 = vadd.f32 %v1197, %v1199
    %v1202 = vtanh.pop %v1200
    %v1203 = vtanh.pop %v1201
    %v1204 = vmul.f32 %v1193, %v1202
    %v1205 = vmul.f32 %v1195, %v1203
    %v1206 = vpack.c.bf16 %v1205, %v1204
    %s1207 = scalar_lea.vmem [#allocation2], 8
    %1208 = vst [vmem:[%s1207] sm:$0xff] %v1206
    %s1209 = scalar_lea.vmem [#allocation3], 128
    %v1210 = vld [vmem:[%s1209] sm:$0xff]
    %v1211 = vld [vmem:[%s1209 + $0x8] sm:$0xff]
    %v1212 = vld [vmem:[%s1209 + $0x10] sm:$0xff]
    %v1213 = vld [vmem:[%s1209 + $0x18] sm:$0xff]
    %v1214 = vld [vmem:[%s1209 + $0x20] sm:$0xff]
    %v1215 = vld [vmem:[%s1209 + $0x28] sm:$0xff]
    %v1216 = vld [vmem:[%s1209 + $0x30] sm:$0xff]
    %v1217 = vld [vmem:[%s1209 + $0x38] sm:$0xff]
    %v1218 = vld [vmem:[#allocation9] sm:$0xff]
    %v1219 = vld [vmem:[#allocation9 + $0x8] sm:$0xff]
    %v1220 = vld [vmem:[#allocation9 + $0x10] sm:$0xff]
    %v1221 = vld [vmem:[#allocation9 + $0x18] sm:$0xff]
    %v1222 = vld [vmem:[#allocation9 + $0x20] sm:$0xff]
    %v1223 = vld [vmem:[#allocation9 + $0x28] sm:$0xff]
    %v1224 = vld [vmem:[#allocation9 + $0x30] sm:$0xff]
    %v1225 = vld [vmem:[#allocation9 + $0x38] sm:$0xff]
    %v1226 = vld [vmem:[#allocation9 + $0x40] sm:$0xff]
    %v1227 = vld [vmem:[#allocation9 + $0x48] sm:$0xff]
    %v1228 = vld [vmem:[#allocation9 + $0x50] sm:$0xff]
    %v1229 = vld [vmem:[#allocation9 + $0x58] sm:$0xff]
    %v1230 = vld [vmem:[#allocation9 + $0x60] sm:$0xff]
    %v1231 = vld [vmem:[#allocation9 + $0x68] sm:$0xff]
    %v1232 = vld [vmem:[#allocation9 + $0x70] sm:$0xff]
    %v1233 = vld [vmem:[#allocation9 + $0x78] sm:$0xff]
    %v1234 = vld [vmem:[#allocation9 + $0x80] sm:$0xff]
    %v1235 = vld [vmem:[#allocation9 + $0x88] sm:$0xff]
    %v1236 = vld [vmem:[#allocation9 + $0x90] sm:$0xff]
    %v1237 = vld [vmem:[#allocation9 + $0x98] sm:$0xff]
    %v1238 = vld [vmem:[#allocation9 + $0xa0] sm:$0xff]
    %v1239 = vld [vmem:[#allocation9 + $0xa8] sm:$0xff]
    %v1240 = vld [vmem:[#allocation9 + $0xb0] sm:$0xff]
    %v1241 = vld [vmem:[#allocation9 + $0xb8] sm:$0xff]
    %v1242 = vld [vmem:[#allocation9 + $0xc0] sm:$0xff]
    %v1243 = vld [vmem:[#allocation9 + $0xc8] sm:$0xff]
    %v1244 = vld [vmem:[#allocation9 + $0xd0] sm:$0xff]
    %v1245 = vld [vmem:[#allocation9 + $0xd8] sm:$0xff]
    %v1246 = vld [vmem:[#allocation9 + $0xe0] sm:$0xff]
    %v1247 = vld [vmem:[#allocation9 + $0xe8] sm:$0xff]
    %v1248 = vld [vmem:[#allocation9 + $0xf0] sm:$0xff]
    %v1249 = vld [vmem:[#allocation9 + $0xf8] sm:$0xff]
    %v1282 = vunpack.c.l.b16 %v1218
    %v1283 = vunpack.c.h.b16 %v1218
    %v1284 = vunpack.c.l.b16 %v1219
    %v1285 = vunpack.c.h.b16 %v1219
    %v1286 = vunpack.c.l.b16 %v1220
    %v1287 = vunpack.c.h.b16 %v1220
    %v1288 = vunpack.c.l.b16 %v1221
    %v1289 = vunpack.c.h.b16 %v1221
    %v1290 = vunpack.c.l.b16 %v1222
    %v1291 = vunpack.c.h.b16 %v1222
    %v1292 = vunpack.c.l.b16 %v1223
    %v1293 = vunpack.c.h.b16 %v1223
    %v1294 = vunpack.c.l.b16 %v1224
    %v1295 = vunpack.c.h.b16 %v1224
    %v1296 = vunpack.c.l.b16 %v1225
    %v1297 = vunpack.c.h.b16 %v1225
    %v1298 = vunpack.c.l.b16 %v1226
    %v1299 = vunpack.c.h.b16 %v1226
    %v1300 = vunpack.c.l.b16 %v1227
    %v1301 = vunpack.c.h.b16 %v1227
    %v1302 = vunpack.c.l.b16 %v1228
    %v1303 = vunpack.c.h.b16 %v1228
    %v1304 = vunpack.c.l.b16 %v1229
    %v1305 = vunpack.c.h.b16 %v1229
    %v1306 = vunpack.c.l.b16 %v1230
    %v1307 = vunpack.c.h.b16 %v1230
    %v1308 = vunpack.c.l.b16 %v1231
    %v1309 = vunpack.c.h.b16 %v1231
    %v1310 = vunpack.c.l.b16 %v1232
    %v1311 = vunpack.c.h.b16 %v1232
    %v1312 = vunpack.c.l.b16 %v1233
    %v1313 = vunpack.c.h.b16 %v1233
    %v1314 = vunpack.c.l.b16 %v1234
    %v1315 = vunpack.c.h.b16 %v1234
    %v1316 = vunpack.c.l.b16 %v1235
    %v1317 = vunpack.c.h.b16 %v1235
    %v1318 = vunpack.c.l.b16 %v1236
    %v1319 = vunpack.c.h.b16 %v1236
    %v1320 = vunpack.c.l.b16 %v1237
    %v1321 = vunpack.c.h.b16 %v1237
    %v1322 = vunpack.c.l.b16 %v1238
    %v1323 = vunpack.c.h.b16 %v1238
    %v1324 = vunpack.c.l.b16 %v1239
    %v1325 = vunpack.c.h.b16 %v1239
    %v1326 = vunpack.c.l.b16 %v1240
    %v1327 = vunpack.c.h.b16 %v1240
    %v1328 = vunpack.c.l.b16 %v1241
    %v1329 = vunpack.c.h.b16 %v1241
    %v1330 = vunpack.c.l.b16 %v1242
    %v1331 = vunpack.c.h.b16 %v1242
    %v1332 = vunpack.c.l.b16 %v1243
    %v1333 = vunpack.c.h.b16 %v1243
    %v1334 = vunpack.c.l.b16 %v1244
    %v1335 = vunpack.c.h.b16 %v1244
    %v1336 = vunpack.c.l.b16 %v1245
    %v1337 = vunpack.c.h.b16 %v1245
    %v1338 = vunpack.c.l.b16 %v1246
    %v1339 = vunpack.c.h.b16 %v1246
    %v1340 = vunpack.c.l.b16 %v1247
    %v1341 = vunpack.c.h.b16 %v1247
    %v1342 = vunpack.c.l.b16 %v1248
    %v1343 = vunpack.c.h.b16 %v1248
    %v1344 = vunpack.c.l.b16 %v1249
    %v1345 = vunpack.c.h.b16 %v1249
    %v1346 = vpack.c.b16 %v1286, %v1282
    %v1347 = vpack.c.b16 %v1287, %v1283
    %v1348 = vpack.c.b16 %v1288, %v1284
    %v1349 = vpack.c.b16 %v1289, %v1285
    %v1350 = vpack.c.b16 %v1294, %v1290
    %v1351 = vpack.c.b16 %v1295, %v1291
    %v1352 = vpack.c.b16 %v1296, %v1292
    %v1353 = vpack.c.b16 %v1297, %v1293
    %v1354 = vpack.c.b16 %v1302, %v1298
    %v1355 = vpack.c.b16 %v1303, %v1299
    %v1356 = vpack.c.b16 %v1304, %v1300
    %v1357 = vpack.c.b16 %v1305, %v1301
    %v1358 = vpack.c.b16 %v1310, %v1306
    %v1359 = vpack.c.b16 %v1311, %v1307
    %v1360 = vpack.c.b16 %v1312, %v1308
    %v1361 = vpack.c.b16 %v1313, %v1309
    %v1362 = vpack.c.b16 %v1318, %v1314
    %v1363 = vpack.c.b16 %v1319, %v1315
    %v1364 = vpack.c.b16 %v1320, %v1316
    %v1365 = vpack.c.b16 %v1321, %v1317
    %v1366 = vpack.c.b16 %v1326, %v1322
    %v1367 = vpack.c.b16 %v1327, %v1323
    %v1368 = vpack.c.b16 %v1328, %v1324
    %v1369 = vpack.c.b16 %v1329, %v1325
    %v1370 = vpack.c.b16 %v1334, %v1330
    %v1371 = vpack.c.b16 %v1335, %v1331
    %v1372 = vpack.c.b16 %v1336, %v1332
    %v1373 = vpack.c.b16 %v1337, %v1333
    %v1374 = vpack.c.b16 %v1342, %v1338
    %v1375 = vpack.c.b16 %v1343, %v1339
    %v1376 = vpack.c.b16 %v1344, %v1340
    %v1377 = vpack.c.b16 %v1345, %v1341
    %1410 = vmatprep.subr.bf16.mxu0 %v1347
    %1411 = vmatpush1.bf16.msra.mxu0 %v1346
    %1412 = vmatprep.subr.bf16.mxu0 %v1351
    %1413 = vmatpush1.bf16.msra.mxu0 %v1350
    %1414 = vmatprep.subr.bf16.mxu0 %v1355
    %1415 = vmatpush1.bf16.msra.mxu0 %v1354
    %1416 = vmatprep.subr.bf16.mxu0 %v1359
    %1417 = vmatpush1.bf16.msra.mxu0 %v1358
    %1418 = vmatprep.subr.bf16.mxu0 %v1363
    %1419 = vmatpush1.bf16.msra.mxu0 %v1362
    %1420 = vmatprep.subr.bf16.mxu0 %v1367
    %1421 = vmatpush1.bf16.msra.mxu0 %v1366
    %1422 = vmatprep.subr.bf16.mxu0 %v1371
    %1423 = vmatpush1.bf16.msra.mxu0 %v1370
    %1424 = vmatprep.subr.bf16.mxu0 %v1375
    %1425 = vmatpush1.bf16.msra.mxu0 %v1374
    %1426 = vmatprep.subr.bf16.mxu0 0
    %1427 = vmatpush1.bf16.msra.mxu0 0
    %1428 = vmatprep.subr.bf16.mxu0 0
    %1429 = vmatpush1.bf16.msra.mxu0 0
    %1430 = vmatprep.subr.bf16.mxu0 0
    %1431 = vmatpush1.bf16.msra.mxu0 0
    %1432 = vmatprep.subr.bf16.mxu0 0
    %1433 = vmatpush1.bf16.msra.mxu0 0
    %1434 = vmatprep.subr.bf16.mxu0 0
    %1435 = vmatpush1.bf16.msra.mxu0 0
    %1436 = vmatprep.subr.bf16.mxu0 0
    %1437 = vmatpush1.bf16.msra.mxu0 0
    %1438 = vmatprep.subr.bf16.mxu0 0
    %1439 = vmatpush1.bf16.msra.mxu0 0
    %1440 = vmatprep.subr.bf16.mxu0 0
    %1441 = vmatpush1.bf16.msra.mxu0 0
    %1442 = vmatprep.mubr.bf16.mxu0 0
    %1443 = vmatmul.mubr.bf16.gmra.mrb[0].mxu0 %v1206
    %v1444 = vpop.f32.mrb[0].mxu0
    %v1445 = vadd.f32 0.0, %v1444
    %v1446 = vpop.f32.mrb[0].mxu0
    %v1447 = vadd.f32 0.0, %v1446
    %v1448 = vpop.f32.mrb[0].mxu0
    %v1449 = vadd.f32 0.0, %v1448
    %v1450 = vpop.f32.mrb[0].mxu0
    %v1451 = vadd.f32 0.0, %v1450
    %1452 = vdwg.mxu0
    %1453 = vmatprep.subr.bf16.mxu0 %v1349
    %1454 = vmatpush1.bf16.msra.mxu0 %v1348
    %1455 = vmatprep.subr.bf16.mxu0 %v1353
    %1456 = vmatpush1.bf16.msra.mxu0 %v1352
    %1457 = vmatprep.subr.bf16.mxu0 %v1357
    %1458 = vmatpush1.bf16.msra.mxu0 %v1356
    %1459 = vmatprep.subr.bf16.mxu0 %v1361
    %1460 = vmatpush1.bf16.msra.mxu0 %v1360
    %1461 = vmatprep.subr.bf16.mxu0 %v1365
    %1462 = vmatpush1.bf16.msra.mxu0 %v1364
    %1463 = vmatprep.subr.bf16.mxu0 %v1369
    %1464 = vmatpush1.bf16.msra.mxu0 %v1368
    %1465 = vmatprep.subr.bf16.mxu0 %v1373
    %1466 = vmatpush1.bf16.msra.mxu0 %v1372
    %1467 = vmatprep.subr.bf16.mxu0 %v1377
    %1468 = vmatpush1.bf16.msra.mxu0 %v1376
    %1469 = vmatprep.subr.bf16.mxu0 0
    %1470 = vmatpush1.bf16.msra.mxu0 0
    %1471 = vmatprep.subr.bf16.mxu0 0
    %1472 = vmatpush1.bf16.msra.mxu0 0
    %1473 = vmatprep.subr.bf16.mxu0 0
    %1474 = vmatpush1.bf16.msra.mxu0 0
    %1475 = vmatprep.subr.bf16.mxu0 0
    %1476 = vmatpush1.bf16.msra.mxu0 0
    %1477 = vmatprep.subr.bf16.mxu0 0
    %1478 = vmatpush1.bf16.msra.mxu0 0
    %1479 = vmatprep.subr.bf16.mxu0 0
    %1480 = vmatpush1.bf16.msra.mxu0 0
    %1481 = vmatprep.subr.bf16.mxu0 0
    %1482 = vmatpush1.bf16.msra.mxu0 0
    %1483 = vmatprep.subr.bf16.mxu0 0
    %1484 = vmatpush1.bf16.msra.mxu0 0
    %1485 = vmatprep.mubr.bf16.mxu0 0
    %1486 = vmatmul.mubr.bf16.gmra.mrb[0].mxu0 %v1206
    %v1487 = vpop.f32.mrb[0].mxu0
    %v1488 = vadd.f32 0.0, %v1487
    %v1489 = vpop.f32.mrb[0].mxu0
    %v1490 = vadd.f32 0.0, %v1489
    %v1491 = vpop.f32.mrb[0].mxu0
    %v1492 = vadd.f32 0.0, %v1491
    %v1493 = vpop.f32.mrb[0].mxu0
    %v1494 = vadd.f32 0.0, %v1493
    %1495 = vdwg.mxu0
    %v1496 = vadd.f32 %v1210, %v1445
    %v1497 = vadd.f32 %v1211, %v1447
    %v1498 = vadd.f32 %v1212, %v1488
    %v1499 = vadd.f32 %v1213, %v1490
    %v1500 = vadd.f32 %v1214, %v1449
    %v1501 = vadd.f32 %v1215, %v1451
    %v1502 = vadd.f32 %v1216, %v1492
    %v1503 = vadd.f32 %v1217, %v1494
    %v1504 = vxor.u32 %v1496, 2147483648
    %v1505 = vxor.u32 %v1500, 2147483648
    %v1506 = vmul.f32 %v1504, 1.442695
    %v1507 = vpow.pop %v1506
    %v1508 = vmul.f32 %v1505, 1.442695
    %v1509 = vpow.pop %v1508
    %v1510 = vadd.f32 %v1507, 1.0
    %v1511 = vadd.f32 %v1509, 1.0
    %v1512 = vrcp.pop %v1510
    %v1513 = vmul.f32 1.0, %v1512
    %v1514 = vrcp.pop %v1511
    %v1515 = vmul.f32 1.0, %v1514
    %v1516 = vxor.u32 %v1497, 2147483648
    %v1517 = vxor.u32 %v1501, 2147483648
    %v1518 = vmul.f32 %v1516, 1.442695
    %v1519 = vpow.pop %v1518
    %v1520 = vmul.f32 %v1517, 1.442695
    %v1521 = vpow.pop %v1520
    %v1522 = vadd.f32 %v1519, 1.0
    %v1523 = vadd.f32 %v1521, 1.0
    %v1524 = vrcp.pop %v1522
    %v1525 = vmul.f32 1.0, %v1524
    %v1526 = vrcp.pop %v1523
    %v1527 = vmul.f32 1.0, %v1526
    %v1528 = vtanh.pop %v1498
    %v1529 = vtanh.pop %v1502
    %v1530 = vxor.u32 %v1499, 2147483648
    %v1531 = vxor.u32 %v1503, 2147483648
    %v1532 = vmul.f32 %v1530, 1.442695
    %v1533 = vpow.pop %v1532
    %v1534 = vmul.f32 %v1531, 1.442695
    %v1535 = vpow.pop %v1534
    %v1536 = vadd.f32 %v1533, 1.0
    %v1537 = vadd.f32 %v1535, 1.0
    %v1538 = vrcp.pop %v1536
    %v1539 = vmul.f32 1.0, %v1538
    %v1540 = vrcp.pop %v1537
    %v1541 = vmul.f32 1.0, %v1540
    %v1542 = vmul.f32 %v1525, %v1200
    %v1543 = vmul.f32 %v1527, %v1201
    %v1544 = vmul.f32 %v1513, %v1528
    %v1545 = vmul.f32 %v1515, %v1529
    %v1546 = vadd.f32 %v1542, %v1544
    %v1547 = vadd.f32 %v1543, %v1545
    %v1548 = vtanh.pop %v1546
    %v1549 = vtanh.pop %v1547
    %v1550 = vmul.f32 %v1539, %v1548
    %v1551 = vmul.f32 %v1541, %v1549
    %v1552 = vpack.c.bf16 %v1551, %v1550
    %s1553 = scalar_lea.vmem [#allocation2], 16
    %1554 = vst [vmem:[%s1553] sm:$0xff] %v1552
    %s1555 = scalar_lea.vmem [#allocation3], 192
    %v1556 = vld [vmem:[%s1555] sm:$0xff]
    %v1557 = vld [vmem:[%s1555 + $0x8] sm:$0xff]
    %v1558 = vld [vmem:[%s1555 + $0x10] sm:$0xff]
    %v1559 = vld [vmem:[%s1555 + $0x18] sm:$0xff]
    %v1560 = vld [vmem:[%s1555 + $0x20] sm:$0xff]
    %v1561 = vld [vmem:[%s1555 + $0x28] sm:$0xff]
    %v1562 = vld [vmem:[%s1555 + $0x30] sm:$0xff]
    %v1563 = vld [vmem:[%s1555 + $0x38] sm:$0xff]
    %v1564 = vld [vmem:[#allocation9] sm:$0xff]
    %v1565 = vld [vmem:[#allocation9 + $0x8] sm:$0xff]
    %v1566 = vld [vmem:[#allocation9 + $0x10] sm:$0xff]
    %v1567 = vld [vmem:[#allocation9 + $0x18] sm:$0xff]
    %v1568 = vld [vmem:[#allocation9 + $0x20] sm:$0xff]
    %v1569 = vld [vmem:[#allocation9 + $0x28] sm:$0xff]
    %v1570 = vld [vmem:[#allocation9 + $0x30] sm:$0xff]
    %v1571 = vld [vmem:[#allocation9 + $0x38] sm:$0xff]
    %v1572 = vld [vmem:[#allocation9 + $0x40] sm:$0xff]
    %v1573 = vld [vmem:[#allocation9 + $0x48] sm:$0xff]
    %v1574 = vld [vmem:[#allocation9 + $0x50] sm:$0xff]
    %v1575 = vld [vmem:[#allocation9 + $0x58] sm:$0xff]
    %v1576 = vld [vmem:[#allocation9 + $0x60] sm:$0xff]
    %v1577 = vld [vmem:[#allocation9 + $0x68] sm:$0xff]
    %v1578 = vld [vmem:[#allocation9 + $0x70] sm:$0xff]
    %v1579 = vld [vmem:[#allocation9 + $0x78] sm:$0xff]
    %v1580 = vld [vmem:[#allocation9 + $0x80] sm:$0xff]
    %v1581 = vld [vmem:[#allocation9 + $0x88] sm:$0xff]
    %v1582 = vld [vmem:[#allocation9 + $0x90] sm:$0xff]
    %v1583 = vld [vmem:[#allocation9 + $0x98] sm:$0xff]
    %v1584 = vld [vmem:[#allocation9 + $0xa0] sm:$0xff]
    %v1585 = vld [vmem:[#allocation9 + $0xa8] sm:$0xff]
    %v1586 = vld [vmem:[#allocation9 + $0xb0] sm:$0xff]
    %v1587 = vld [vmem:[#allocation9 + $0xb8] sm:$0xff]
    %v1588 = vld [vmem:[#allocation9 + $0xc0] sm:$0xff]
    %v1589 = vld [vmem:[#allocation9 + $0xc8] sm:$0xff]
    %v1590 = vld [vmem:[#allocation9 + $0xd0] sm:$0xff]
    %v1591 = vld [vmem:[#allocation9 + $0xd8] sm:$0xff]
    %v1592 = vld [vmem:[#allocation9 + $0xe0] sm:$0xff]
    %v1593 = vld [vmem:[#allocation9 + $0xe8] sm:$0xff]
    %v1594 = vld [vmem:[#allocation9 + $0xf0] sm:$0xff]
    %v1595 = vld [vmem:[#allocation9 + $0xf8] sm:$0xff]
    %v1628 = vunpack.c.l.b16 %v1564
    %v1629 = vunpack.c.h.b16 %v1564
    %v1630 = vunpack.c.l.b16 %v1565
    %v1631 = vunpack.c.h.b16 %v1565
    %v1632 = vunpack.c.l.b16 %v1566
    %v1633 = vunpack.c.h.b16 %v1566
    %v1634 = vunpack.c.l.b16 %v1567
    %v1635 = vunpack.c.h.b16 %v1567
    %v1636 = vunpack.c.l.b16 %v1568
    %v1637 = vunpack.c.h.b16 %v1568
    %v1638 = vunpack.c.l.b16 %v1569
    %v1639 = vunpack.c.h.b16 %v1569
    %v1640 = vunpack.c.l.b16 %v1570
    %v1641 = vunpack.c.h.b16 %v1570
    %v1642 = vunpack.c.l.b16 %v1571
    %v1643 = vunpack.c.h.b16 %v1571
    %v1644 = vunpack.c.l.b16 %v1572
    %v1645 = vunpack.c.h.b16 %v1572
    %v1646 = vunpack.c.l.b16 %v1573
    %v1647 = vunpack.c.h.b16 %v1573
    %v1648 = vunpack.c.l.b16 %v1574
    %v1649 = vunpack.c.h.b16 %v1574
    %v1650 = vunpack.c.l.b16 %v1575
    %v1651 = vunpack.c.h.b16 %v1575
    %v1652 = vunpack.c.l.b16 %v1576
    %v1653 = vunpack.c.h.b16 %v1576
    %v1654 = vunpack.c.l.b16 %v1577
    %v1655 = vunpack.c.h.b16 %v1577
    %v1656 = vunpack.c.l.b16 %v1578
    %v1657 = vunpack.c.h.b16 %v1578
    %v1658 = vunpack.c.l.b16 %v1579
    %v1659 = vunpack.c.h.b16 %v1579
    %v1660 = vunpack.c.l.b16 %v1580
    %v1661 = vunpack.c.h.b16 %v1580
    %v1662 = vunpack.c.l.b16 %v1581
    %v1663 = vunpack.c.h.b16 %v1581
    %v1664 = vunpack.c.l.b16 %v1582
    %v1665 = vunpack.c.h.b16 %v1582
    %v1666 = vunpack.c.l.b16 %v1583
    %v1667 = vunpack.c.h.b16 %v1583
    %v1668 = vunpack.c.l.b16 %v1584
    %v1669 = vunpack.c.h.b16 %v1584
    %v1670 = vunpack.c.l.b16 %v1585
    %v1671 = vunpack.c.h.b16 %v1585
    %v1672 = vunpack.c.l.b16 %v1586
    %v1673 = vunpack.c.h.b16 %v1586
    %v1674 = vunpack.c.l.b16 %v1587
    %v1675 = vunpack.c.h.b16 %v1587
    %v1676 = vunpack.c.l.b16 %v1588
    %v1677 = vunpack.c.h.b16 %v1588
    %v1678 = vunpack.c.l.b16 %v1589
    %v1679 = vunpack.c.h.b16 %v1589
    %v1680 = vunpack.c.l.b16 %v1590
    %v1681 = vunpack.c.h.b16 %v1590
    %v1682 = vunpack.c.l.b16 %v1591
    %v1683 = vunpack.c.h.b16 %v1591
    %v1684 = vunpack.c.l.b16 %v1592
    %v1685 = vunpack.c.h.b16 %v1592
    %v1686 = vunpack.c.l.b16 %v1593
    %v1687 = vunpack.c.h.b16 %v1593
    %v1688 = vunpack.c.l.b16 %v1594
    %v1689 = vunpack.c.h.b16 %v1594
    %v1690 = vunpack.c.l.b16 %v1595
    %v1691 = vunpack.c.h.b16 %v1595
    %v1692 = vpack.c.b16 %v1632, %v1628
    %v1693 = vpack.c.b16 %v1633, %v1629
    %v1694 = vpack.c.b16 %v1634, %v1630
    %v1695 = vpack.c.b16 %v1635, %v1631
    %v1696 = vpack.c.b16 %v1640, %v1636
    %v1697 = vpack.c.b16 %v1641, %v1637
    %v1698 = vpack.c.b16 %v1642, %v1638
    %v1699 = vpack.c.b16 %v1643, %v1639
    %v1700 = vpack.c.b16 %v1648, %v1644
    %v1701 = vpack.c.b16 %v1649, %v1645
    %v1702 = vpack.c.b16 %v1650, %v1646
    %v1703 = vpack.c.b16 %v1651, %v1647
    %v1704 = vpack.c.b16 %v1656, %v1652
    %v1705 = vpack.c.b16 %v1657, %v1653
    %v1706 = vpack.c.b16 %v1658, %v1654
    %v1707 = vpack.c.b16 %v1659, %v1655
    %v1708 = vpack.c.b16 %v1664, %v1660
    %v1709 = vpack.c.b16 %v1665, %v1661
    %v1710 = vpack.c.b16 %v1666, %v1662
    %v1711 = vpack.c.b16 %v1667, %v1663
    %v1712 = vpack.c.b16 %v1672, %v1668
    %v1713 = vpack.c.b16 %v1673, %v1669
    %v1714 = vpack.c.b16 %v1674, %v1670
    %v1715 = vpack.c.b16 %v1675, %v1671
    %v1716 = vpack.c.b16 %v1680, %v1676
    %v1717 = vpack.c.b16 %v1681, %v1677
    %v1718 = vpack.c.b16 %v1682, %v1678
    %v1719 = vpack.c.b16 %v1683, %v1679
    %v1720 = vpack.c.b16 %v1688, %v1684
    %v1721 = vpack.c.b16 %v1689, %v1685
    %v1722 = vpack.c.b16 %v1690, %v1686
    %v1723 = vpack.c.b16 %v1691, %v1687
    %1756 = vmatprep.subr.bf16.mxu0 %v1693
    %1757 = vmatpush1.bf16.msra.mxu0 %v1692
    %1758 = vmatprep.subr.bf16.mxu0 %v1697
    %1759 = vmatpush1.bf16.msra.mxu0 %v1696
    %1760 = vmatprep.subr.bf16.mxu0 %v1701
    %1761 = vmatpush1.bf16.msra.mxu0 %v1700
    %1762 = vmatprep.subr.bf16.mxu0 %v1705
    %1763 = vmatpush1.bf16.msra.mxu0 %v1704
    %1764 = vmatprep.subr.bf16.mxu0 %v1709
    %1765 = vmatpush1.bf16.msra.mxu0 %v1708
    %1766 = vmatprep.subr.bf16.mxu0 %v1713
    %1767 = vmatpush1.bf16.msra.mxu0 %v1712
    %1768 = vmatprep.subr.bf16.mxu0 %v1717
    %1769 = vmatpush1.bf16.msra.mxu0 %v1716
    %1770 = vmatprep.subr.bf16.mxu0 %v1721
    %1771 = vmatpush1.bf16.msra.mxu0 %v1720
    %1772 = vmatprep.subr.bf16.mxu0 0
    %1773 = vmatpush1.bf16.msra.mxu0 0
    %1774 = vmatprep.subr.bf16.mxu0 0
    %1775 = vmatpush1.bf16.msra.mxu0 0
    %1776 = vmatprep.subr.bf16.mxu0 0
    %1777 = vmatpush1.bf16.msra.mxu0 0
    %1778 = vmatprep.subr.bf16.mxu0 0
    %1779 = vmatpush1.bf16.msra.mxu0 0
    %1780 = vmatprep.subr.bf16.mxu0 0
    %1781 = vmatpush1.bf16.msra.mxu0 0
    %1782 = vmatprep.subr.bf16.mxu0 0
    %1783 = vmatpush1.bf16.msra.mxu0 0
    %1784 = vmatprep.subr.bf16.mxu0 0
    %1785 = vmatpush1.bf16.msra.mxu0 0
    %1786 = vmatprep.subr.bf16.mxu0 0
    %1787 = vmatpush1.bf16.msra.mxu0 0
    %1788 = vmatprep.mubr.bf16.mxu0 0
    %1789 = vmatmul.mubr.bf16.gmra.mrb[0].mxu0 %v1552
    %v1790 = vpop.f32.mrb[0].mxu0
    %v1791 = vadd.f32 0.0, %v1790
    %v1792 = vpop.f32.mrb[0].mxu0
    %v1793 = vadd.f32 0.0, %v1792
    %v1794 = vpop.f32.mrb[0].mxu0
    %v1795 = vadd.f32 0.0, %v1794
    %v1796 = vpop.f32.mrb[0].mxu0
    %v1797 = vadd.f32 0.0, %v1796
    %1798 = vdwg.mxu0
    %1799 = vmatprep.subr.bf16.mxu0 %v1695
    %1800 = vmatpush1.bf16.msra.mxu0 %v1694
    %1801 = vmatprep.subr.bf16.mxu0 %v1699
    %1802 = vmatpush1.bf16.msra.mxu0 %v1698
    %1803 = vmatprep.subr.bf16.mxu0 %v1703
    %1804 = vmatpush1.bf16.msra.mxu0 %v1702
    %1805 = vmatprep.subr.bf16.mxu0 %v1707
    %1806 = vmatpush1.bf16.msra.mxu0 %v1706
    %1807 = vmatprep.subr.bf16.mxu0 %v1711
    %1808 = vmatpush1.bf16.msra.mxu0 %v1710
    %1809 = vmatprep.subr.bf16.mxu0 %v1715
    %1810 = vmatpush1.bf16.msra.mxu0 %v1714
    %1811 = vmatprep.subr.bf16.mxu0 %v1719
    %1812 = vmatpush1.bf16.msra.mxu0 %v1718
    %1813 = vmatprep.subr.bf16.mxu0 %v1723
    %1814 = vmatpush1.bf16.msra.mxu0 %v1722
    %1815 = vmatprep.subr.bf16.mxu0 0
    %1816 = vmatpush1.bf16.msra.mxu0 0
    %1817 = vmatprep.subr.bf16.mxu0 0
    %1818 = vmatpush1.bf16.msra.mxu0 0
    %1819 = vmatprep.subr.bf16.mxu0 0
    %1820 = vmatpush1.bf16.msra.mxu0 0
    %1821 = vmatprep.subr.bf16.mxu0 0
    %1822 = vmatpush1.bf16.msra.mxu0 0
    %1823 = vmatprep.subr.bf16.mxu0 0
    %1824 = vmatpush1.bf16.msra.mxu0 0
    %1825 = vmatprep.subr.bf16.mxu0 0
    %1826 = vmatpush1.bf16.msra.mxu0 0
    %1827 = vmatprep.subr.bf16.mxu0 0
    %1828 = vmatpush1.bf16.msra.mxu0 0
    %1829 = vmatprep.subr.bf16.mxu0 0
    %1830 = vmatpush1.bf16.msra.mxu0 0
    %1831 = vmatprep.mubr.bf16.mxu0 0
    %1832 = vmatmul.mubr.bf16.gmra.mrb[0].mxu0 %v1552
    %v1833 = vpop.f32.mrb[0].mxu0
    %v1834 = vadd.f32 0.0, %v1833
    %v1835 = vpop.f32.mrb[0].mxu0
    %v1836 = vadd.f32 0.0, %v1835
    %v1837 = vpop.f32.mrb[0].mxu0
    %v1838 = vadd.f32 0.0, %v1837
    %v1839 = vpop.f32.mrb[0].mxu0
    %v1840 = vadd.f32 0.0, %v1839
    %1841 = vdwg.mxu0
    %v1842 = vadd.f32 %v1556, %v1791
    %v1843 = vadd.f32 %v1557, %v1793
    %v1844 = vadd.f32 %v1558, %v1834
    %v1845 = vadd.f32 %v1559, %v1836
    %v1846 = vadd.f32 %v1560, %v1795
    %v1847 = vadd.f32 %v1561, %v1797
    %v1848 = vadd.f32 %v1562, %v1838
    %v1849 = vadd.f32 %v1563, %v1840
    %v1850 = vxor.u32 %v1842, 2147483648
    %v1851 = vxor.u32 %v1846, 2147483648
    %v1852 = vmul.f32 %v1850, 1.442695
    %v1853 = vpow.pop %v1852
    %v1854 = vmul.f32 %v1851, 1.442695
    %v1855 = vpow.pop %v1854
    %v1856 = vadd.f32 %v1853, 1.0
    %v1857 = vadd.f32 %v1855, 1.0
    %v1858 = vrcp.pop %v1856
    %v1859 = vmul.f32 1.0, %v1858
    %v1860 = vrcp.pop %v1857
    %v1861 = vmul.f32 1.0, %v1860
    %v1862 = vxor.u32 %v1843, 2147483648
    %v1863 = vxor.u32 %v1847, 2147483648
    %v1864 = vmul.f32 %v1862, 1.442695
    %v1865 = vpow.pop %v1864
    %v1866 = vmul.f32 %v1863, 1.442695
    %v1867 = vpow.pop %v1866
    %v1868 = vadd.f32 %v1865, 1.0
    %v1869 = vadd.f32 %v1867, 1.0
    %v1870 = vrcp.pop %v1868
    %v1871 = vmul.f32 1.0, %v1870
    %v1872 = vrcp.pop %v1869
    %v1873 = vmul.f32 1.0, %v1872
    %v1874 = vtanh.pop %v1844
    %v1875 = vtanh.pop %v1848
    %v1876 = vxor.u32 %v1845, 2147483648
    %v1877 = vxor.u32 %v1849, 2147483648
    %v1878 = vmul.f32 %v1876, 1.442695
    %v1879 = vpow.pop %v1878
    %v1880 = vmul.f32 %v1877, 1.442695
    %v1881 = vpow.pop %v1880
    %v1882 = vadd.f32 %v1879, 1.0
    %v1883 = vadd.f32 %v1881, 1.0
    %v1884 = vrcp.pop %v1882
    %v1885 = vmul.f32 1.0, %v1884
    %v1886 = vrcp.pop %v1883
    %v1887 = vmul.f32 1.0, %v1886
    %v1888 = vmul.f32 %v1871, %v1546
    %v1889 = vmul.f32 %v1873, %v1547
    %v1890 = vmul.f32 %v1859, %v1874
    %v1891 = vmul.f32 %v1861, %v1875
    %v1892 = vadd.f32 %v1888, %v1890
    %v1893 = vadd.f32 %v1889, %v1891
    %v1894 = vtanh.pop %v1892
    %v1895 = vtanh.pop %v1893
    %v1896 = vmul.f32 %v1885, %v1894
    %v1897 = vmul.f32 %v1887, %v1895
    %v1898 = vpack.c.bf16 %v1897, %v1896
    %s1899 = scalar_lea.vmem [#allocation2], 24
    %1900 = vst [vmem:[%s1899] sm:$0xff] %v1898
    %s1901 = scalar_lea.vmem [#allocation3], 256
    %v1902 = vld [vmem:[%s1901] sm:$0xff]
    %v1903 = vld [vmem:[%s1901 + $0x8] sm:$0xff]
    %v1904 = vld [vmem:[%s1901 + $0x10] sm:$0xff]
    %v1905 = vld [vmem:[%s1901 + $0x18] sm:$0xff]
    %v1906 = vld [vmem:[%s1901 + $0x20] sm:$0xff]
    %v1907 = vld [vmem:[%s1901 + $0x28] sm:$0xff]
    %v1908 = vld [vmem:[%s1901 + $0x30] sm:$0xff]
    %v1909 = vld [vmem:[%s1901 + $0x38] sm:$0xff]
    %v1910 = vld [vmem:[#allocation9] sm:$0xff]
    %v1911 = vld [vmem:[#allocation9 + $0x8] sm:$0xff]
    %v1912 = vld [vmem:[#allocation9 + $0x10] sm:$0xff]
    %v1913 = vld [vmem:[#allocation9 + $0x18] sm:$0xff]
    %v1914 = vld [vmem:[#allocation9 + $0x20] sm:$0xff]
    %v1915 = vld [vmem:[#allocation9 + $0x28] sm:$0xff]
    %v1916 = vld [vmem:[#allocation9 + $0x30] sm:$0xff]
    %v1917 = vld [vmem:[#allocation9 + $0x38] sm:$0xff]
    %v1918 = vld [vmem:[#allocation9 + $0x40] sm:$0xff]
    %v1919 = vld [vmem:[#allocation9 + $0x48] sm:$0xff]
    %v1920 = vld [vmem:[#allocation9 + $0x50] sm:$0xff]
    %v1921 = vld [vmem:[#allocation9 + $0x58] sm:$0xff]
    %v1922 = vld [vmem:[#allocation9 + $0x60] sm:$0xff]
    %v1923 = vld [vmem:[#allocation9 + $0x68] sm:$0xff]
    %v1924 = vld [vmem:[#allocation9 + $0x70] sm:$0xff]
    %v1925 = vld [vmem:[#allocation9 + $0x78] sm:$0xff]
    %v1926 = vld [vmem:[#allocation9 + $0x80] sm:$0xff]
    %v1927 = vld [vmem:[#allocation9 + $0x88] sm:$0xff]
    %v1928 = vld [vmem:[#allocation9 + $0x90] sm:$0xff]
    %v1929 = vld [vmem:[#allocation9 + $0x98] sm:$0xff]
    %v1930 = vld [vmem:[#allocation9 + $0xa0] sm:$0xff]
    %v1931 = vld [vmem:[#allocation9 + $0xa8] sm:$0xff]
    %v1932 = vld [vmem:[#allocation9 + $0xb0] sm:$0xff]
    %v1933 = vld [vmem:[#allocation9 + $0xb8] sm:$0xff]
    %v1934 = vld [vmem:[#allocation9 + $0xc0] sm:$0xff]
    %v1935 = vld [vmem:[#allocation9 + $0xc8] sm:$0xff]
    %v1936 = vld [vmem:[#allocation9 + $0xd0] sm:$0xff]
    %v1937 = vld [vmem:[#allocation9 + $0xd8] sm:$0xff]
    %v1938 = vld [vmem:[#allocation9 + $0xe0] sm:$0xff]
    %v1939 = vld [vmem:[#allocation9 + $0xe8] sm:$0xff]
    %v1940 = vld [vmem:[#allocation9 + $0xf0] sm:$0xff]
    %v1941 = vld [vmem:[#allocation9 + $0xf8] sm:$0xff]
    %v1974 = vunpack.c.l.b16 %v1910
    %v1975 = vunpack.c.h.b16 %v1910
    %v1976 = vunpack.c.l.b16 %v1911
    %v1977 = vunpack.c.h.b16 %v1911
    %v1978 = vunpack.c.l.b16 %v1912
    %v1979 = vunpack.c.h.b16 %v1912
    %v1980 = vunpack.c.l.b16 %v1913
    %v1981 = vunpack.c.h.b16 %v1913
    %v1982 = vunpack.c.l.b16 %v1914
    %v1983 = vunpack.c.h.b16 %v1914
    %v1984 = vunpack.c.l.b16 %v1915
    %v1985 = vunpack.c.h.b16 %v1915
    %v1986 = vunpack.c.l.b16 %v1916
    %v1987 = vunpack.c.h.b16 %v1916
    %v1988 = vunpack.c.l.b16 %v1917
    %v1989 = vunpack.c.h.b16 %v1917
    %v1990 = vunpack.c.l.b16 %v1918
    %v1991 = vunpack.c.h.b16 %v1918
    %v1992 = vunpack.c.l.b16 %v1919
    %v1993 = vunpack.c.h.b16 %v1919
    %v1994 = vunpack.c.l.b16 %v1920
    %v1995 = vunpack.c.h.b16 %v1920
    %v1996 = vunpack.c.l.b16 %v1921
    %v1997 = vunpack.c.h.b16 %v1921
    %v1998 = vunpack.c.l.b16 %v1922
    %v1999 = vunpack.c.h.b16 %v1922
    %v2000 = vunpack.c.l.b16 %v1923
    %v2001 = vunpack.c.h.b16 %v1923
    %v2002 = vunpack.c.l.b16 %v1924
    %v2003 = vunpack.c.h.b16 %v1924
    %v2004 = vunpack.c.l.b16 %v1925
    %v2005 = vunpack.c.h.b16 %v1925
    %v2006 = vunpack.c.l.b16 %v1926
    %v2007 = vunpack.c.h.b16 %v1926
    %v2008 = vunpack.c.l.b16 %v1927
    %v2009 = vunpack.c.h.b16 %v1927
    %v2010 = vunpack.c.l.b16 %v1928
    %v2011 = vunpack.c.h.b16 %v1928
    %v2012 = vunpack.c.l.b16 %v1929
    %v2013 = vunpack.c.h.b16 %v1929
    %v2014 = vunpack.c.l.b16 %v1930
    %v2015 = vunpack.c.h.b16 %v1930
    %v2016 = vunpack.c.l.b16 %v1931
    %v2017 = vunpack.c.h.b16 %v1931
    %v2018 = vunpack.c.l.b16 %v1932
    %v2019 = vunpack.c.h.b16 %v1932
    %v2020 = vunpack.c.l.b16 %v1933
    %v2021 = vunpack.c.h.b16 %v1933
    %v2022 = vunpack.c.l.b16 %v1934
    %v2023 = vunpack.c.h.b16 %v1934
    %v2024 = vunpack.c.l.b16 %v1935
    %v2025 = vunpack.c.h.b16 %v1935
    %v2026 = vunpack.c.l.b16 %v1936
    %v2027 = vunpack.c.h.b16 %v1936
    %v2028 = vunpack.c.l.b16 %v1937
    %v2029 = vunpack.c.h.b16 %v1937
    %v2030 = vunpack.c.l.b16 %v1938
    %v2031 = vunpack.c.h.b16 %v1938
    %v2032 = vunpack.c.l.b16 %v1939
    %v2033 = vunpack.c.h.b16 %v1939
    %v2034 = vunpack.c.l.b16 %v1940
    %v2035 = vunpack.c.h.b16 %v1940
    %v2036 = vunpack.c.l.b16 %v1941
    %v2037 = vunpack.c.h.b16 %v1941
    %v2038 = vpack.c.b16 %v1978, %v1974
    %v2039 = vpack.c.b16 %v1979, %v1975
    %v2040 = vpack.c.b16 %v1980, %v1976
    %v2041 = vpack.c.b16 %v1981, %v1977
    %v2042 = vpack.c.b16 %v1986, %v1982
    %v2043 = vpack.c.b16 %v1987, %v1983
    %v2044 = vpack.c.b16 %v1988, %v1984
    %v2045 = vpack.c.b16 %v1989, %v1985
    %v2046 = vpack.c.b16 %v1994, %v1990
    %v2047 = vpack.c.b16 %v1995, %v1991
    %v2048 = vpack.c.b16 %v1996, %v1992
    %v2049 = vpack.c.b16 %v1997, %v1993
    %v2050 = vpack.c.b16 %v2002, %v1998
    %v2051 = vpack.c.b16 %v2003, %v1999
    %v2052 = vpack.c.b16 %v2004, %v2000
    %v2053 = vpack.c.b16 %v2005, %v2001
    %v2054 = vpack.c.b16 %v2010, %v2006
    %v2055 = vpack.c.b16 %v2011, %v2007
    %v2056 = vpack.c.b16 %v2012, %v2008
    %v2057 = vpack.c.b16 %v2013, %v2009
    %v2058 = vpack.c.b16 %v2018, %v2014
    %v2059 = vpack.c.b16 %v2019, %v2015
    %v2060 = vpack.c.b16 %v2020, %v2016
    %v2061 = vpack.c.b16 %v2021, %v2017
    %v2062 = vpack.c.b16 %v2026, %v2022
    %v2063 = vpack.c.b16 %v2027, %v2023
    %v2064 = vpack.c.b16 %v2028, %v2024
    %v2065 = vpack.c.b16 %v2029, %v2025
    %v2066 = vpack.c.b16 %v2034, %v2030
    %v2067 = vpack.c.b16 %v2035, %v2031
    %v2068 = vpack.c.b16 %v2036, %v2032
    %v2069 = vpack.c.b16 %v2037, %v2033
    %2102 = vmatprep.subr.bf16.mxu0 %v2039
    %2103 = vmatpush1.bf16.msra.mxu0 %v2038
    %2104 = vmatprep.subr.bf16.mxu0 %v2043
    %2105 = vmatpush1.bf16.msra.mxu0 %v2042
    %2106 = vmatprep.subr.bf16.mxu0 %v2047
    %2107 = vmatpush1.bf16.msra.mxu0 %v2046
    %2108 = vmatprep.subr.bf16.mxu0 %v2051
    %2109 = vmatpush1.bf16.msra.mxu0 %v2050
    %2110 = vmatprep.subr.bf16.mxu0 %v2055
    %2111 = vmatpush1.bf16.msra.mxu0 %v2054
    %2112 = vmatprep.subr.bf16.mxu0 %v2059
    %2113 = vmatpush1.bf16.msra.mxu0 %v2058
    %2114 = vmatprep.subr.bf16.mxu0 %v2063
    %2115 = vmatpush1.bf16.msra.mxu0 %v2062
    %2116 = vmatprep.subr.bf16.mxu0 %v2067
    %2117 = vmatpush1.bf16.msra.mxu0 %v2066
    %2118 = vmatprep.subr.bf16.mxu0 0
    %2119 = vmatpush1.bf16.msra.mxu0 0
    %2120 = vmatprep.subr.bf16.mxu0 0
    %2121 = vmatpush1.bf16.msra.mxu0 0
    %2122 = vmatprep.subr.bf16.mxu0 0
    %2123 = vmatpush1.bf16.msra.mxu0 0
    %2124 = vmatprep.subr.bf16.mxu0 0
    %2125 = vmatpush1.bf16.msra.mxu0 0
    %2126 = vmatprep.subr.bf16.mxu0 0
    %2127 = vmatpush1.bf16.msra.mxu0 0
    %2128 = vmatprep.subr.bf16.mxu0 0
    %2129 = vmatpush1.bf16.msra.mxu0 0
    %2130 = vmatprep.subr.bf16.mxu0 0
    %2131 = vmatpush1.bf16.msra.mxu0 0
    %2132 = vmatprep.subr.bf16.mxu0 0
    %2133 = vmatpush1.bf16.msra.mxu0 0
    %2134 = vmatprep.mubr.bf16.mxu0 0
    %2135 = vmatmul.mubr.bf16.gmra.mrb[0].mxu0 %v1898
    %v2136 = vpop.f32.mrb[0].mxu0
    %v2137 = vadd.f32 0.0, %v2136
    %v2138 = vpop.f32.mrb[0].mxu0
    %v2139 = vadd.f32 0.0, %v2138
    %v2140 = vpop.f32.mrb[0].mxu0
    %v2141 = vadd.f32 0.0, %v2140
    %v2142 = vpop.f32.mrb[0].mxu0
    %v2143 = vadd.f32 0.0, %v2142
    %2144 = vdwg.mxu0
    %2145 = vmatprep.subr.bf16.mxu0 %v2041
    %2146 = vmatpush1.bf16.msra.mxu0 %v2040
    %2147 = vmatprep.subr.bf16.mxu0 %v2045
    %2148 = vmatpush1.bf16.msra.mxu0 %v2044
    %2149 = vmatprep.subr.bf16.mxu0 %v2049
    %2150 = vmatpush1.bf16.msra.mxu0 %v2048
    %2151 = vmatprep.subr.bf16.mxu0 %v2053
    %2152 = vmatpush1.bf16.msra.mxu0 %v2052
    %2153 = vmatprep.subr.bf16.mxu0 %v2057
    %2154 = vmatpush1.bf16.msra.mxu0 %v2056
    %2155 = vmatprep.subr.bf16.mxu0 %v2061
    %2156 = vmatpush1.bf16.msra.mxu0 %v2060
    %2157 = vmatprep.subr.bf16.mxu0 %v2065
    %2158 = vmatpush1.bf16.msra.mxu0 %v2064
    %2159 = vmatprep.subr.bf16.mxu0 %v2069
    %2160 = vmatpush1.bf16.msra.mxu0 %v2068
    %2161 = vmatprep.subr.bf16.mxu0 0
    %2162 = vmatpush1.bf16.msra.mxu0 0
    %2163 = vmatprep.subr.bf16.mxu0 0
    %2164 = vmatpush1.bf16.msra.mxu0 0
    %2165 = vmatprep.subr.bf16.mxu0 0
    %2166 = vmatpush1.bf16.msra.mxu0 0
    %2167 = vmatprep.subr.bf16.mxu0 0
    %2168 = vmatpush1.bf16.msra.mxu0 0
    %2169 = vmatprep.subr.bf16.mxu0 0
    %2170 = vmatpush1.bf16.msra.mxu0 0
    %2171 = vmatprep.subr.bf16.mxu0 0
    %2172 = vmatpush1.bf16.msra.mxu0 0
    %2173 = vmatprep.subr.bf16.mxu0 0
    %2174 = vmatpush1.bf16.msra.mxu0 0
    %2175 = vmatprep.subr.bf16.mxu0 0
    %2176 = vmatpush1.bf16.msra.mxu0 0
    %2177 = vmatprep.mubr.bf16.mxu0 0
    %2178 = vmatmul.mubr.bf16.gmra.mrb[0].mxu0 %v1898
    %v2179 = vpop.f32.mrb[0].mxu0
    %v2180 = vadd.f32 0.0, %v2179
    %v2181 = vpop.f32.mrb[0].mxu0
    %v2182 = vadd.f32 0.0, %v2181
    %v2183 = vpop.f32.mrb[0].mxu0
    %v2184 = vadd.f32 0.0, %v2183
    %v2185 = vpop.f32.mrb[0].mxu0
    %v2186 = vadd.f32 0.0, %v2185
    %2187 = vdwg.mxu0
    %v2188 = vadd.f32 %v1902, %v2137
    %v2189 = vadd.f32 %v1903, %v2139
    %v2190 = vadd.f32 %v1904, %v2180
    %v2191 = vadd.f32 %v1905, %v2182
    %v2192 = vadd.f32 %v1906, %v2141
    %v2193 = vadd.f32 %v1907, %v2143
    %v2194 = vadd.f32 %v1908, %v2184
    %v2195 = vadd.f32 %v1909, %v2186
    %v2196 = vxor.u32 %v2188, 2147483648
    %v2197 = vxor.u32 %v2192, 2147483648
    %v2198 = vmul.f32 %v2196, 1.442695
    %v2199 = vpow.pop %v2198
    %v2200 = vmul.f32 %v2197, 1.442695
    %v2201 = vpow.pop %v2200
    %v2202 = vadd.f32 %v2199, 1.0
    %v2203 = vadd.f32 %v2201, 1.0
    %v2204 = vrcp.pop %v2202
    %v2205 = vmul.f32 1.0, %v2204
    %v2206 = vrcp.pop %v2203
    %v2207 = vmul.f32 1.0, %v2206
    %v2208 = vxor.u32 %v2189, 2147483648
    %v2209 = vxor.u32 %v2193, 2147483648
    %v2210 = vmul.f32 %v2208, 1.442695
    %v2211 = vpow.pop %v2210
    %v2212 = vmul.f32 %v2209, 1.442695
    %v2213 = vpow.pop %v2212
    %v2214 = vadd.f32 %v2211, 1.0
    %v2215 = vadd.f32 %v2213, 1.0
    %v2216 = vrcp.pop %v2214
    %v2217 = vmul.f32 1.0, %v2216
    %v2218 = vrcp.pop %v2215
    %v2219 = vmul.f32 1.0, %v2218
    %v2220 = vtanh.pop %v2190
    %v2221 = vtanh.pop %v2194
    %v2222 = vxor.u32 %v2191, 2147483648
    %v2223 = vxor.u32 %v2195, 2147483648
    %v2224 = vmul.f32 %v2222, 1.442695
    %v2225 = vpow.pop %v2224
    %v2226 = vmul.f32 %v2223, 1.442695
    %v2227 = vpow.pop %v2226
    %v2228 = vadd.f32 %v2225, 1.0
    %v2229 = vadd.f32 %v2227, 1.0
    %v2230 = vrcp.pop %v2228
    %v2231 = vmul.f32 1.0, %v2230
    %v2232 = vrcp.pop %v2229
    %v2233 = vmul.f32 1.0, %v2232
    %v2234 = vmul.f32 %v2217, %v1892
    %v2235 = vmul.f32 %v2219, %v1893
    %v2236 = vmul.f32 %v2205, %v2220
    %v2237 = vmul.f32 %v2207, %v2221
    %v2238 = vadd.f32 %v2234, %v2236
    %v2239 = vadd.f32 %v2235, %v2237
    %v2240 = vtanh.pop %v2238
    %v2241 = vtanh.pop %v2239
    %v2242 = vmul.f32 %v2231, %v2240
    %v2243 = vmul.f32 %v2233, %v2241
    %v2244 = vpack.c.bf16 %v2243, %v2242
    %s2245 = scalar_lea.vmem [#allocation2], 32
    %2246 = vst [vmem:[%s2245] sm:$0xff] %v2244
    %s2247 = scalar_lea.vmem [#allocation3], 320
    %v2248 = vld [vmem:[%s2247] sm:$0xff]
    %v2249 = vld [vmem:[%s2247 + $0x8] sm:$0xff]
    %v2250 = vld [vmem:[%s2247 + $0x10] sm:$0xff]
    %v2251 = vld [vmem:[%s2247 + $0x18] sm:$0xff]
    %v2252 = vld [vmem:[%s2247 + $0x20] sm:$0xff]
    %v2253 = vld [vmem:[%s2247 + $0x28] sm:$0xff]
    %v2254 = vld [vmem:[%s2247 + $0x30] sm:$0xff]
    %v2255 = vld [vmem:[%s2247 + $0x38] sm:$0xff]
    %v2256 = vld [vmem:[#allocation9] sm:$0xff]
    %v2257 = vld [vmem:[#allocation9 + $0x8] sm:$0xff]
    %v2258 = vld [vmem:[#allocation9 + $0x10] sm:$0xff]
    %v2259 = vld [vmem:[#allocation9 + $0x18] sm:$0xff]
    %v2260 = vld [vmem:[#allocation9 + $0x20] sm:$0xff]
    %v2261 = vld [vmem:[#allocation9 + $0x28] sm:$0xff]
    %v2262 = vld [vmem:[#allocation9 + $0x30] sm:$0xff]
    %v2263 = vld [vmem:[#allocation9 + $0x38] sm:$0xff]
    %v2264 = vld [vmem:[#allocation9 + $0x40] sm:$0xff]
    %v2265 = vld [vmem:[#allocation9 + $0x48] sm:$0xff]
    %v2266 = vld [vmem:[#allocation9 + $0x50] sm:$0xff]
    %v2267 = vld [vmem:[#allocation9 + $0x58] sm:$0xff]
    %v2268 = vld [vmem:[#allocation9 + $0x60] sm:$0xff]
    %v2269 = vld [vmem:[#allocation9 + $0x68] sm:$0xff]
    %v2270 = vld [vmem:[#allocation9 + $0x70] sm:$0xff]
    %v2271 = vld [vmem:[#allocation9 + $0x78] sm:$0xff]
    %v2272 = vld [vmem:[#allocation9 + $0x80] sm:$0xff]
    %v2273 = vld [vmem:[#allocation9 + $0x88] sm:$0xff]
    %v2274 = vld [vmem:[#allocation9 + $0x90] sm:$0xff]
    %v2275 = vld [vmem:[#allocation9 + $0x98] sm:$0xff]
    %v2276 = vld [vmem:[#allocation9 + $0xa0] sm:$0xff]
    %v2277 = vld [vmem:[#allocation9 + $0xa8] sm:$0xff]
    %v2278 = vld [vmem:[#allocation9 + $0xb0] sm:$0xff]
    %v2279 = vld [vmem:[#allocation9 + $0xb8] sm:$0xff]
    %v2280 = vld [vmem:[#allocation9 + $0xc0] sm:$0xff]
    %v2281 = vld [vmem:[#allocation9 + $0xc8] sm:$0xff]
    %v2282 = vld [vmem:[#allocation9 + $0xd0] sm:$0xff]
    %v2283 = vld [vmem:[#allocation9 + $0xd8] sm:$0xff]
    %v2284 = vld [vmem:[#allocation9 + $0xe0] sm:$0xff]
    %v2285 = vld [vmem:[#allocation9 + $0xe8] sm:$0xff]
    %v2286 = vld [vmem:[#allocation9 + $0xf0] sm:$0xff]
    %v2287 = vld [vmem:[#allocation9 + $0xf8] sm:$0xff]
    %v2320 = vunpack.c.l.b16 %v2256
    %v2321 = vunpack.c.h.b16 %v2256
    %v2322 = vunpack.c.l.b16 %v2257
    %v2323 = vunpack.c.h.b16 %v2257
    %v2324 = vunpack.c.l.b16 %v2258
    %v2325 = vunpack.c.h.b16 %v2258
    %v2326 = vunpack.c.l.b16 %v2259
    %v2327 = vunpack.c.h.b16 %v2259
    %v2328 = vunpack.c.l.b16 %v2260
    %v2329 = vunpack.c.h.b16 %v2260
    %v2330 = vunpack.c.l.b16 %v2261
    %v2331 = vunpack.c.h.b16 %v2261
    %v2332 = vunpack.c.l.b16 %v2262
    %v2333 = vunpack.c.h.b16 %v2262
    %v2334 = vunpack.c.l.b16 %v2263
    %v2335 = vunpack.c.h.b16 %v2263
    %v2336 = vunpack.c.l.b16 %v2264
    %v2337 = vunpack.c.h.b16 %v2264
    %v2338 = vunpack.c.l.b16 %v2265
    %v2339 = vunpack.c.h.b16 %v2265
    %v2340 = vunpack.c.l.b16 %v2266
    %v2341 = vunpack.c.h.b16 %v2266
    %v2342 = vunpack.c.l.b16 %v2267
    %v2343 = vunpack.c.h.b16 %v2267
    %v2344 = vunpack.c.l.b16 %v2268
    %v2345 = vunpack.c.h.b16 %v2268
    %v2346 = vunpack.c.l.b16 %v2269
    %v2347 = vunpack.c.h.b16 %v2269
    %v2348 = vunpack.c.l.b16 %v2270
    %v2349 = vunpack.c.h.b16 %v2270
    %v2350 = vunpack.c.l.b16 %v2271
    %v2351 = vunpack.c.h.b16 %v2271
    %v2352 = vunpack.c.l.b16 %v2272
    %v2353 = vunpack.c.h.b16 %v2272
    %v2354 = vunpack.c.l.b16 %v2273
    %v2355 = vunpack.c.h.b16 %v2273
    %v2356 = vunpack.c.l.b16 %v2274
    %v2357 = vunpack.c.h.b16 %v2274
    %v2358 = vunpack.c.l.b16 %v2275
    %v2359 = vunpack.c.h.b16 %v2275
    %v2360 = vunpack.c.l.b16 %v2276
    %v2361 = vunpack.c.h.b16 %v2276
    %v2362 = vunpack.c.l.b16 %v2277
    %v2363 = vunpack.c.h.b16 %v2277
    %v2364 = vunpack.c.l.b16 %v2278
    %v2365 = vunpack.c.h.b16 %v2278
    %v2366 = vunpack.c.l.b16 %v2279
    %v2367 = vunpack.c.h.b16 %v2279
    %v2368 = vunpack.c.l.b16 %v2280
    %v2369 = vunpack.c.h.b16 %v2280
    %v2370 = vunpack.c.l.b16 %v2281
    %v2371 = vunpack.c.h.b16 %v2281
    %v2372 = vunpack.c.l.b16 %v2282
    %v2373 = vunpack.c.h.b16 %v2282
    %v2374 = vunpack.c.l.b16 %v2283
    %v2375 = vunpack.c.h.b16 %v2283
    %v2376 = vunpack.c.l.b16 %v2284
    %v2377 = vunpack.c.h.b16 %v2284
    %v2378 = vunpack.c.l.b16 %v2285
    %v2379 = vunpack.c.h.b16 %v2285
    %v2380 = vunpack.c.l.b16 %v2286
    %v2381 = vunpack.c.h.b16 %v2286
    %v2382 = vunpack.c.l.b16 %v2287
    %v2383 = vunpack.c.h.b16 %v2287
    %v2384 = vpack.c.b16 %v2324, %v2320
    %v2385 = vpack.c.b16 %v2325, %v2321
    %v2386 = vpack.c.b16 %v2326, %v2322
    %v2387 = vpack.c.b16 %v2327, %v2323
    %v2388 = vpack.c.b16 %v2332, %v2328
    %v2389 = vpack.c.b16 %v2333, %v2329
    %v2390 = vpack.c.b16 %v2334, %v2330
    %v2391 = vpack.c.b16 %v2335, %v2331
    %v2392 = vpack.c.b16 %v2340, %v2336
    %v2393 = vpack.c.b16 %v2341, %v2337
    %v2394 = vpack.c.b16 %v2342, %v2338
    %v2395 = vpack.c.b16 %v2343, %v2339
    %v2396 = vpack.c.b16 %v2348, %v2344
    %v2397 = vpack.c.b16 %v2349, %v2345
    %v2398 = vpack.c.b16 %v2350, %v2346
    %v2399 = vpack.c.b16 %v2351, %v2347
    %v2400 = vpack.c.b16 %v2356, %v2352
    %v2401 = vpack.c.b16 %v2357, %v2353
    %v2402 = vpack.c.b16 %v2358, %v2354
    %v2403 = vpack.c.b16 %v2359, %v2355
    %v2404 = vpack.c.b16 %v2364, %v2360
    %v2405 = vpack.c.b16 %v2365, %v2361
    %v2406 = vpack.c.b16 %v2366, %v2362
    %v2407 = vpack.c.b16 %v2367, %v2363
    %v2408 = vpack.c.b16 %v2372, %v2368
    %v2409 = vpack.c.b16 %v2373, %v2369
    %v2410 = vpack.c.b16 %v2374, %v2370
    %v2411 = vpack.c.b16 %v2375, %v2371
    %v2412 = vpack.c.b16 %v2380, %v2376
    %v2413 = vpack.c.b16 %v2381, %v2377
    %v2414 = vpack.c.b16 %v2382, %v2378
    %v2415 = vpack.c.b16 %v2383, %v2379
    %2448 = vmatprep.subr.bf16.mxu0 %v2385
    %2449 = vmatpush1.bf16.msra.mxu0 %v2384
    %2450 = vmatprep.subr.bf16.mxu0 %v2389
    %2451 = vmatpush1.bf16.msra.mxu0 %v2388
    %2452 = vmatprep.subr.bf16.mxu0 %v2393
    %2453 = vmatpush1.bf16.msra.mxu0 %v2392
    %2454 = vmatprep.subr.bf16.mxu0 %v2397
    %2455 = vmatpush1.bf16.msra.mxu0 %v2396
    %2456 = vmatprep.subr.bf16.mxu0 %v2401
    %2457 = vmatpush1.bf16.msra.mxu0 %v2400
    %2458 = vmatprep.subr.bf16.mxu0 %v2405
    %2459 = vmatpush1.bf16.msra.mxu0 %v2404
    %2460 = vmatprep.subr.bf16.mxu0 %v2409
    %2461 = vmatpush1.bf16.msra.mxu0 %v2408
    %2462 = vmatprep.subr.bf16.mxu0 %v2413
    %2463 = vmatpush1.bf16.msra.mxu0 %v2412
    %2464 = vmatprep.subr.bf16.mxu0 0
    %2465 = vmatpush1.bf16.msra.mxu0 0
    %2466 = vmatprep.subr.bf16.mxu0 0
    %2467 = vmatpush1.bf16.msra.mxu0 0
    %2468 = vmatprep.subr.bf16.mxu0 0
    %2469 = vmatpush1.bf16.msra.mxu0 0
    %2470 = vmatprep.subr.bf16.mxu0 0
    %2471 = vmatpush1.bf16.msra.mxu0 0
    %2472 = vmatprep.subr.bf16.mxu0 0
    %2473 = vmatpush1.bf16.msra.mxu0 0
    %2474 = vmatprep.subr.bf16.mxu0 0
    %2475 = vmatpush1.bf16.msra.mxu0 0
    %2476 = vmatprep.subr.bf16.mxu0 0
    %2477 = vmatpush1.bf16.msra.mxu0 0
    %2478 = vmatprep.subr.bf16.mxu0 0
    %2479 = vmatpush1.bf16.msra.mxu0 0
    %2480 = vmatprep.mubr.bf16.mxu0 0
    %2481 = vmatmul.mubr.bf16.gmra.mrb[0].mxu0 %v2244
    %v2482 = vpop.f32.mrb[0].mxu0
    %v2483 = vadd.f32 0.0, %v2482
    %v2484 = vpop.f32.mrb[0].mxu0
    %v2485 = vadd.f32 0.0, %v2484
    %v2486 = vpop.f32.mrb[0].mxu0
    %v2487 = vadd.f32 0.0, %v2486
    %v2488 = vpop.f32.mrb[0].mxu0
    %v2489 = vadd.f32 0.0, %v2488
    %2490 = vdwg.mxu0
    %2491 = vmatprep.subr.bf16.mxu0 %v2387
    %2492 = vmatpush1.bf16.msra.mxu0 %v2386
    %2493 = vmatprep.subr.bf16.mxu0 %v2391
    %2494 = vmatpush1.bf16.msra.mxu0 %v2390
    %2495 = vmatprep.subr.bf16.mxu0 %v2395
    %2496 = vmatpush1.bf16.msra.mxu0 %v2394
    %2497 = vmatprep.subr.bf16.mxu0 %v2399
    %2498 = vmatpush1.bf16.msra.mxu0 %v2398
    %2499 = vmatprep.subr.bf16.mxu0 %v2403
    %2500 = vmatpush1.bf16.msra.mxu0 %v2402
    %2501 = vmatprep.subr.bf16.mxu0 %v2407
    %2502 = vmatpush1.bf16.msra.mxu0 %v2406
    %2503 = vmatprep.subr.bf16.mxu0 %v2411
    %2504 = vmatpush1.bf16.msra.mxu0 %v2410
    %2505 = vmatprep.subr.bf16.mxu0 %v2415
    %2506 = vmatpush1.bf16.msra.mxu0 %v2414
    %2507 = vmatprep.subr.bf16.mxu0 0
    %2508 = vmatpush1.bf16.msra.mxu0 0
    %2509 = vmatprep.subr.bf16.mxu0 0
    %2510 = vmatpush1.bf16.msra.mxu0 0
    %2511 = vmatprep.subr.bf16.mxu0 0
    %2512 = vmatpush1.bf16.msra.mxu0 0
    %2513 = vmatprep.subr.bf16.mxu0 0
    %2514 = vmatpush1.bf16.msra.mxu0 0
    %2515 = vmatprep.subr.bf16.mxu0 0
    %2516 = vmatpush1.bf16.msra.mxu0 0
    %2517 = vmatprep.subr.bf16.mxu0 0
    %2518 = vmatpush1.bf16.msra.mxu0 0
    %2519 = vmatprep.subr.bf16.mxu0 0
    %2520 = vmatpush1.bf16.msra.mxu0 0
    %2521 = vmatprep.subr.bf16.mxu0 0
    %2522 = vmatpush1.bf16.msra.mxu0 0
    %2523 = vmatprep.mubr.bf16.mxu0 0
    %2524 = vmatmul.mubr.bf16.gmra.mrb[0].mxu0 %v2244
    %v2525 = vpop.f32.mrb[0].mxu0
    %v2526 = vadd.f32 0.0, %v2525
    %v2527 = vpop.f32.mrb[0].mxu0
    %v2528 = vadd.f32 0.0, %v2527
    %v2529 = vpop.f32.mrb[0].mxu0
    %v2530 = vadd.f32 0.0, %v2529
    %v2531 = vpop.f32.mrb[0].mxu0
    %v2532 = vadd.f32 0.0, %v2531
    %2533 = vdwg.mxu0
    %v2534 = vadd.f32 %v2248, %v2483
    %v2535 = vadd.f32 %v2249, %v2485
    %v2536 = vadd.f32 %v2250, %v2526
    %v2537 = vadd.f32 %v2251, %v2528
    %v2538 = vadd.f32 %v2252, %v2487
    %v2539 = vadd.f32 %v2253, %v2489
    %v2540 = vadd.f32 %v2254, %v2530
    %v2541 = vadd.f32 %v2255, %v2532
    %v2542 = vxor.u32 %v2534, 2147483648
    %v2543 = vxor.u32 %v2538, 2147483648
    %v2544 = vmul.f32 %v2542, 1.442695
    %v2545 = vpow.pop %v2544
    %v2546 = vmul.f32 %v2543, 1.442695
    %v2547 = vpow.pop %v2546
    %v2548 = vadd.f32 %v2545, 1.0
    %v2549 = vadd.f32 %v2547, 1.0
    %v2550 = vrcp.pop %v2548
    %v2551 = vmul.f32 1.0, %v2550
    %v2552 = vrcp.pop %v2549
    %v2553 = vmul.f32 1.0, %v2552
    %v2554 = vxor.u32 %v2535, 2147483648
    %v2555 = vxor.u32 %v2539, 2147483648
    %v2556 = vmul.f32 %v2554, 1.442695
    %v2557 = vpow.pop %v2556
    %v2558 = vmul.f32 %v2555, 1.442695
    %v2559 = vpow.pop %v2558
    %v2560 = vadd.f32 %v2557, 1.0
    %v2561 = vadd.f32 %v2559, 1.0
    %v2562 = vrcp.pop %v2560
    %v2563 = vmul.f32 1.0, %v2562
    %v2564 = vrcp.pop %v2561
    %v2565 = vmul.f32 1.0, %v2564
    %v2566 = vtanh.pop %v2536
    %v2567 = vtanh.pop %v2540
    %v2568 = vxor.u32 %v2537, 2147483648
    %v2569 = vxor.u32 %v2541, 2147483648
    %v2570 = vmul.f32 %v2568, 1.442695
    %v2571 = vpow.pop %v2570
    %v2572 = vmul.f32 %v2569, 1.442695
    %v2573 = vpow.pop %v2572
    %v2574 = vadd.f32 %v2571, 1.0
    %v2575 = vadd.f32 %v2573, 1.0
    %v2576 = vrcp.pop %v2574
    %v2577 = vmul.f32 1.0, %v2576
    %v2578 = vrcp.pop %v2575
    %v2579 = vmul.f32 1.0, %v2578
    %v2580 = vmul.f32 %v2563, %v2238
    %v2581 = vmul.f32 %v2565, %v2239
    %v2582 = vmul.f32 %v2551, %v2566
    %v2583 = vmul.f32 %v2553, %v2567
    %v2584 = vadd.f32 %v2580, %v2582
    %v2585 = vadd.f32 %v2581, %v2583
    %v2586 = vtanh.pop %v2584
    %v2587 = vtanh.pop %v2585
    %v2588 = vmul.f32 %v2577, %v2586
    %v2589 = vmul.f32 %v2579, %v2587
    %v2590 = vpack.c.bf16 %v2589, %v2588
    %s2591 = scalar_lea.vmem [#allocation2], 40
    %2592 = vst [vmem:[%s2591] sm:$0xff] %v2590
    %s2593 = scalar_lea.vmem [#allocation3], 384
    %v2594 = vld [vmem:[%s2593] sm:$0xff]
    %v2595 = vld [vmem:[%s2593 + $0x8] sm:$0xff]
    %v2596 = vld [vmem:[%s2593 + $0x10] sm:$0xff]
    %v2597 = vld [vmem:[%s2593 + $0x18] sm:$0xff]
    %v2598 = vld [vmem:[%s2593 + $0x20] sm:$0xff]
    %v2599 = vld [vmem:[%s2593 + $0x28] sm:$0xff]
    %v2600 = vld [vmem:[%s2593 + $0x30] sm:$0xff]
    %v2601 = vld [vmem:[%s2593 + $0x38] sm:$0xff]
    %v2602 = vld [vmem:[#allocation9] sm:$0xff]
    %v2603 = vld [vmem:[#allocation9 + $0x8] sm:$0xff]
    %v2604 = vld [vmem:[#allocation9 + $0x10] sm:$0xff]
    %v2605 = vld [vmem:[#allocation9 + $0x18] sm:$0xff]
    %v2606 = vld [vmem:[#allocation9 + $0x20] sm:$0xff]
    %v2607 = vld [vmem:[#allocation9 + $0x28] sm:$0xff]
    %v2608 = vld [vmem:[#allocation9 + $0x30] sm:$0xff]
    %v2609 = vld [vmem:[#allocation9 + $0x38] sm:$0xff]
    %v2610 = vld [vmem:[#allocation9 + $0x40] sm:$0xff]
    %v2611 = vld [vmem:[#allocation9 + $0x48] sm:$0xff]
    %v2612 = vld [vmem:[#allocation9 + $0x50] sm:$0xff]
    %v2613 = vld [vmem:[#allocation9 + $0x58] sm:$0xff]
    %v2614 = vld [vmem:[#allocation9 + $0x60] sm:$0xff]
    %v2615 = vld [vmem:[#allocation9 + $0x68] sm:$0xff]
    %v2616 = vld [vmem:[#allocation9 + $0x70] sm:$0xff]
    %v2617 = vld [vmem:[#allocation9 + $0x78] sm:$0xff]
    %v2618 = vld [vmem:[#allocation9 + $0x80] sm:$0xff]
    %v2619 = vld [vmem:[#allocation9 + $0x88] sm:$0xff]
    %v2620 = vld [vmem:[#allocation9 + $0x90] sm:$0xff]
    %v2621 = vld [vmem:[#allocation9 + $0x98] sm:$0xff]
    %v2622 = vld [vmem:[#allocation9 + $0xa0] sm:$0xff]
    %v2623 = vld [vmem:[#allocation9 + $0xa8] sm:$0xff]
    %v2624 = vld [vmem:[#allocation9 + $0xb0] sm:$0xff]
    %v2625 = vld [vmem:[#allocation9 + $0xb8] sm:$0xff]
    %v2626 = vld [vmem:[#allocation9 + $0xc0] sm:$0xff]
    %v2627 = vld [vmem:[#allocation9 + $0xc8] sm:$0xff]
    %v2628 = vld [vmem:[#allocation9 + $0xd0] sm:$0xff]
    %v2629 = vld [vmem:[#allocation9 + $0xd8] sm:$0xff]
    %v2630 = vld [vmem:[#allocation9 + $0xe0] sm:$0xff]
    %v2631 = vld [vmem:[#allocation9 + $0xe8] sm:$0xff]
    %v2632 = vld [vmem:[#allocation9 + $0xf0] sm:$0xff]
    %v2633 = vld [vmem:[#allocation9 + $0xf8] sm:$0xff]
    %v2666 = vunpack.c.l.b16 %v2602
    %v2667 = vunpack.c.h.b16 %v2602
    %v2668 = vunpack.c.l.b16 %v2603
    %v2669 = vunpack.c.h.b16 %v2603
    %v2670 = vunpack.c.l.b16 %v2604
    %v2671 = vunpack.c.h.b16 %v2604
    %v2672 = vunpack.c.l.b16 %v2605
    %v2673 = vunpack.c.h.b16 %v2605
    %v2674 = vunpack.c.l.b16 %v2606
    %v2675 = vunpack.c.h.b16 %v2606
    %v2676 = vunpack.c.l.b16 %v2607
    %v2677 = vunpack.c.h.b16 %v2607
    %v2678 = vunpack.c.l.b16 %v2608
    %v2679 = vunpack.c.h.b16 %v2608
    %v2680 = vunpack.c.l.b16 %v2609
    %v2681 = vunpack.c.h.b16 %v2609
    %v2682 = vunpack.c.l.b16 %v2610
    %v2683 = vunpack.c.h.b16 %v2610
    %v2684 = vunpack.c.l.b16 %v2611
    %v2685 = vunpack.c.h.b16 %v2611
    %v2686 = vunpack.c.l.b16 %v2612
    %v2687 = vunpack.c.h.b16 %v2612
    %v2688 = vunpack.c.l.b16 %v2613
    %v2689 = vunpack.c.h.b16 %v2613
    %v2690 = vunpack.c.l.b16 %v2614
    %v2691 = vunpack.c.h.b16 %v2614
    %v2692 = vunpack.c.l.b16 %v2615
    %v2693 = vunpack.c.h.b16 %v2615
    %v2694 = vunpack.c.l.b16 %v2616
    %v2695 = vunpack.c.h.b16 %v2616
    %v2696 = vunpack.c.l.b16 %v2617
    %v2697 = vunpack.c.h.b16 %v2617
    %v2698 = vunpack.c.l.b16 %v2618
    %v2699 = vunpack.c.h.b16 %v2618
    %v2700 = vunpack.c.l.b16 %v2619
    %v2701 = vunpack.c.h.b16 %v2619
    %v2702 = vunpack.c.l.b16 %v2620
    %v2703 = vunpack.c.h.b16 %v2620
    %v2704 = vunpack.c.l.b16 %v2621
    %v2705 = vunpack.c.h.b16 %v2621
    %v2706 = vunpack.c.l.b16 %v2622
    %v2707 = vunpack.c.h.b16 %v2622
    %v2708 = vunpack.c.l.b16 %v2623
    %v2709 = vunpack.c.h.b16 %v2623
    %v2710 = vunpack.c.l.b16 %v2624
    %v2711 = vunpack.c.h.b16 %v2624
    %v2712 = vunpack.c.l.b16 %v2625
    %v2713 = vunpack.c.h.b16 %v2625
    %v2714 = vunpack.c.l.b16 %v2626
    %v2715 = vunpack.c.h.b16 %v2626
    %v2716 = vunpack.c.l.b16 %v2627
    %v2717 = vunpack.c.h.b16 %v2627
    %v2718 = vunpack.c.l.b16 %v2628
    %v2719 = vunpack.c.h.b16 %v2628
    %v2720 = vunpack.c.l.b16 %v2629
    %v2721 = vunpack.c.h.b16 %v2629
    %v2722 = vunpack.c.l.b16 %v2630
    %v2723 = vunpack.c.h.b16 %v2630
    %v2724 = vunpack.c.l.b16 %v2631
    %v2725 = vunpack.c.h.b16 %v2631
    %v2726 = vunpack.c.l.b16 %v2632
    %v2727 = vunpack.c.h.b16 %v2632
    %v2728 = vunpack.c.l.b16 %v2633
    %v2729 = vunpack.c.h.b16 %v2633
    %v2730 = vpack.c.b16 %v2670, %v2666
    %v2731 = vpack.c.b16 %v2671, %v2667
    %v2732 = vpack.c.b16 %v2672, %v2668
    %v2733 = vpack.c.b16 %v2673, %v2669
    %v2734 = vpack.c.b16 %v2678, %v2674
    %v2735 = vpack.c.b16 %v2679, %v2675
    %v2736 = vpack.c.b16 %v2680, %v2676
    %v2737 = vpack.c.b16 %v2681, %v2677
    %v2738 = vpack.c.b16 %v2686, %v2682
    %v2739 = vpack.c.b16 %v2687, %v2683
    %v2740 = vpack.c.b16 %v2688, %v2684
    %v2741 = vpack.c.b16 %v2689, %v2685
    %v2742 = vpack.c.b16 %v2694, %v2690
    %v2743 = vpack.c.b16 %v2695, %v2691
    %v2744 = vpack.c.b16 %v2696, %v2692
    %v2745 = vpack.c.b16 %v2697, %v2693
    %v2746 = vpack.c.b16 %v2702, %v2698
    %v2747 = vpack.c.b16 %v2703, %v2699
    %v2748 = vpack.c.b16 %v2704, %v2700
    %v2749 = vpack.c.b16 %v2705, %v2701
    %v2750 = vpack.c.b16 %v2710, %v2706
    %v2751 = vpack.c.b16 %v2711, %v2707
    %v2752 = vpack.c.b16 %v2712, %v2708
    %v2753 = vpack.c.b16 %v2713, %v2709
    %v2754 = vpack.c.b16 %v2718, %v2714
    %v2755 = vpack.c.b16 %v2719, %v2715
    %v2756 = vpack.c.b16 %v2720, %v2716
    %v2757 = vpack.c.b16 %v2721, %v2717
    %v2758 = vpack.c.b16 %v2726, %v2722
    %v2759 = vpack.c.b16 %v2727, %v2723
    %v2760 = vpack.c.b16 %v2728, %v2724
    %v2761 = vpack.c.b16 %v2729, %v2725
    %2794 = vmatprep.subr.bf16.mxu0 %v2731
    %2795 = vmatpush1.bf16.msra.mxu0 %v2730
    %2796 = vmatprep.subr.bf16.mxu0 %v2735
    %2797 = vmatpush1.bf16.msra.mxu0 %v2734
    %2798 = vmatprep.subr.bf16.mxu0 %v2739
    %2799 = vmatpush1.bf16.msra.mxu0 %v2738
    %2800 = vmatprep.subr.bf16.mxu0 %v2743
    %2801 = vmatpush1.bf16.msra.mxu0 %v2742
    %2802 = vmatprep.subr.bf16.mxu0 %v2747
    %2803 = vmatpush1.bf16.msra.mxu0 %v2746
    %2804 = vmatprep.subr.bf16.mxu0 %v2751
    %2805 = vmatpush1.bf16.msra.mxu0 %v2750
    %2806 = vmatprep.subr.bf16.mxu0 %v2755
    %2807 = vmatpush1.bf16.msra.mxu0 %v2754
    %2808 = vmatprep.subr.bf16.mxu0 %v2759
    %2809 = vmatpush1.bf16.msra.mxu0 %v2758
    %2810 = vmatprep.subr.bf16.mxu0 0
    %2811 = vmatpush1.bf16.msra.mxu0 0
    %2812 = vmatprep.subr.bf16.mxu0 0
    %2813 = vmatpush1.bf16.msra.mxu0 0
    %2814 = vmatprep.subr.bf16.mxu0 0
    %2815 = vmatpush1.bf16.msra.mxu0 0
    %2816 = vmatprep.subr.bf16.mxu0 0
    %2817 = vmatpush1.bf16.msra.mxu0 0
    %2818 = vmatprep.subr.bf16.mxu0 0
    %2819 = vmatpush1.bf16.msra.mxu0 0
    %2820 = vmatprep.subr.bf16.mxu0 0
    %2821 = vmatpush1.bf16.msra.mxu0 0
    %2822 = vmatprep.subr.bf16.mxu0 0
    %2823 = vmatpush1.bf16.msra.mxu0 0
    %2824 = vmatprep.subr.bf16.mxu0 0
    %2825 = vmatpush1.bf16.msra.mxu0 0
    %2826 = vmatprep.mubr.bf16.mxu0 0
    %2827 = vmatmul.mubr.bf16.gmra.mrb[0].mxu0 %v2590
    %v2828 = vpop.f32.mrb[0].mxu0
    %v2829 = vadd.f32 0.0, %v2828
    %v2830 = vpop.f32.mrb[0].mxu0
    %v2831 = vadd.f32 0.0, %v2830
    %v2832 = vpop.f32.mrb[0].mxu0
    %v2833 = vadd.f32 0.0, %v2832
    %v2834 = vpop.f32.mrb[0].mxu0
    %v2835 = vadd.f32 0.0, %v2834
    %2836 = vdwg.mxu0
    %2837 = vmatprep.subr.bf16.mxu0 %v2733
    %2838 = vmatpush1.bf16.msra.mxu0 %v2732
    %2839 = vmatprep.subr.bf16.mxu0 %v2737
    %2840 = vmatpush1.bf16.msra.mxu0 %v2736
    %2841 = vmatprep.subr.bf16.mxu0 %v2741
    %2842 = vmatpush1.bf16.msra.mxu0 %v2740
    %2843 = vmatprep.subr.bf16.mxu0 %v2745
    %2844 = vmatpush1.bf16.msra.mxu0 %v2744
    %2845 = vmatprep.subr.bf16.mxu0 %v2749
    %2846 = vmatpush1.bf16.msra.mxu0 %v2748
    %2847 = vmatprep.subr.bf16.mxu0 %v2753
    %2848 = vmatpush1.bf16.msra.mxu0 %v2752
    %2849 = vmatprep.subr.bf16.mxu0 %v2757
    %2850 = vmatpush1.bf16.msra.mxu0 %v2756
    %2851 = vmatprep.subr.bf16.mxu0 %v2761
    %2852 = vmatpush1.bf16.msra.mxu0 %v2760
    %2853 = vmatprep.subr.bf16.mxu0 0
    %2854 = vmatpush1.bf16.msra.mxu0 0
    %2855 = vmatprep.subr.bf16.mxu0 0
    %2856 = vmatpush1.bf16.msra.mxu0 0
    %2857 = vmatprep.subr.bf16.mxu0 0
    %2858 = vmatpush1.bf16.msra.mxu0 0
    %2859 = vmatprep.subr.bf16.mxu0 0
    %2860 = vmatpush1.bf16.msra.mxu0 0
    %2861 = vmatprep.subr.bf16.mxu0 0
    %2862 = vmatpush1.bf16.msra.mxu0 0
    %2863 = vmatprep.subr.bf16.mxu0 0
    %2864 = vmatpush1.bf16.msra.mxu0 0
    %2865 = vmatprep.subr.bf16.mxu0 0
    %2866 = vmatpush1.bf16.msra.mxu0 0
    %2867 = vmatprep.subr.bf16.mxu0 0
    %2868 = vmatpush1.bf16.msra.mxu0 0
    %2869 = vmatprep.mubr.bf16.mxu0 0
    %2870 = vmatmul.mubr.bf16.gmra.mrb[0].mxu0 %v2590
    %v2871 = vpop.f32.mrb[0].mxu0
    %v2872 = vadd.f32 0.0, %v2871
    %v2873 = vpop.f32.mrb[0].mxu0
    %v2874 = vadd.f32 0.0, %v2873
    %v2875 = vpop.f32.mrb[0].mxu0
    %v2876 = vadd.f32 0.0, %v2875
    %v2877 = vpop.f32.mrb[0].mxu0
    %v2878 = vadd.f32 0.0, %v2877
    %2879 = vdwg.mxu0
    %v2880 = vadd.f32 %v2594, %v2829
    %v2881 = vadd.f32 %v2595, %v2831
    %v2882 = vadd.f32 %v2596, %v2872
    %v2883 = vadd.f32 %v2597, %v2874
    %v2884 = vadd.f32 %v2598, %v2833
    %v2885 = vadd.f32 %v2599, %v2835
    %v2886 = vadd.f32 %v2600, %v2876
    %v2887 = vadd.f32 %v2601, %v2878
    %v2888 = vxor.u32 %v2880, 2147483648
    %v2889 = vxor.u32 %v2884, 2147483648
    %v2890 = vmul.f32 %v2888, 1.442695
    %v2891 = vpow.pop %v2890
    %v2892 = vmul.f32 %v2889, 1.442695
    %v2893 = vpow.pop %v2892
    %v2894 = vadd.f32 %v2891, 1.0
    %v2895 = vadd.f32 %v2893, 1.0
    %v2896 = vrcp.pop %v2894
    %v2897 = vmul.f32 1.0, %v2896
    %v2898 = vrcp.pop %v2895
    %v2899 = vmul.f32 1.0, %v2898
    %v2900 = vxor.u32 %v2881, 2147483648
    %v2901 = vxor.u32 %v2885, 2147483648
    %v2902 = vmul.f32 %v2900, 1.442695
    %v2903 = vpow.pop %v2902
    %v2904 = vmul.f32 %v2901, 1.442695
    %v2905 = vpow.pop %v2904
    %v2906 = vadd.f32 %v2903, 1.0
    %v2907 = vadd.f32 %v2905, 1.0
    %v2908 = vrcp.pop %v2906
    %v2909 = vmul.f32 1.0, %v2908
    %v2910 = vrcp.pop %v2907
    %v2911 = vmul.f32 1.0, %v2910
    %v2912 = vtanh.pop %v2882
    %v2913 = vtanh.pop %v2886
    %v2914 = vxor.u32 %v2883, 2147483648
    %v2915 = vxor.u32 %v2887, 2147483648
    %v2916 = vmul.f32 %v2914, 1.442695
    %v2917 = vpow.pop %v2916
    %v2918 = vmul.f32 %v2915, 1.442695
    %v2919 = vpow.pop %v2918
    %v2920 = vadd.f32 %v2917, 1.0
    %v2921 = vadd.f32 %v2919, 1.0
    %v2922 = vrcp.pop %v2920
    %v2923 = vmul.f32 1.0, %v2922
    %v2924 = vrcp.pop %v2921
    %v2925 = vmul.f32 1.0, %v2924
    %v2926 = vmul.f32 %v2909, %v2584
    %v2927 = vmul.f32 %v2911, %v2585
    %v2928 = vmul.f32 %v2897, %v2912
    %v2929 = vmul.f32 %v2899, %v2913
    %v2930 = vadd.f32 %v2926, %v2928
    %v2931 = vadd.f32 %v2927, %v2929
    %v2932 = vtanh.pop %v2930
    %v2933 = vtanh.pop %v2931
    %v2934 = vmul.f32 %v2923, %v2932
    %v2935 = vmul.f32 %v2925, %v2933
    %v2936 = vpack.c.bf16 %v2935, %v2934
    %s2937 = scalar_lea.vmem [#allocation2], 48
    %2938 = vst [vmem:[%s2937] sm:$0xff] %v2936
    %s2939 = scalar_lea.vmem [#allocation3], 448
    %v2940 = vld [vmem:[%s2939] sm:$0xff]
    %v2941 = vld [vmem:[%s2939 + $0x8] sm:$0xff]
    %v2942 = vld [vmem:[%s2939 + $0x10] sm:$0xff]
    %v2943 = vld [vmem:[%s2939 + $0x18] sm:$0xff]
    %v2944 = vld [vmem:[%s2939 + $0x20] sm:$0xff]
    %v2945 = vld [vmem:[%s2939 + $0x28] sm:$0xff]
    %v2946 = vld [vmem:[%s2939 + $0x30] sm:$0xff]
    %v2947 = vld [vmem:[%s2939 + $0x38] sm:$0xff]
    %v2948 = vld [vmem:[#allocation9] sm:$0xff]
    %v2949 = vld [vmem:[#allocation9 + $0x8] sm:$0xff]
    %v2950 = vld [vmem:[#allocation9 + $0x10] sm:$0xff]
    %v2951 = vld [vmem:[#allocation9 + $0x18] sm:$0xff]
    %v2952 = vld [vmem:[#allocation9 + $0x20] sm:$0xff]
    %v2953 = vld [vmem:[#allocation9 + $0x28] sm:$0xff]
    %v2954 = vld [vmem:[#allocation9 + $0x30] sm:$0xff]
    %v2955 = vld [vmem:[#allocation9 + $0x38] sm:$0xff]
    %v2956 = vld [vmem:[#allocation9 + $0x40] sm:$0xff]
    %v2957 = vld [vmem:[#allocation9 + $0x48] sm:$0xff]
    %v2958 = vld [vmem:[#allocation9 + $0x50] sm:$0xff]
    %v2959 = vld [vmem:[#allocation9 + $0x58] sm:$0xff]
    %v2960 = vld [vmem:[#allocation9 + $0x60] sm:$0xff]
    %v2961 = vld [vmem:[#allocation9 + $0x68] sm:$0xff]
    %v2962 = vld [vmem:[#allocation9 + $0x70] sm:$0xff]
    %v2963 = vld [vmem:[#allocation9 + $0x78] sm:$0xff]
    %v2964 = vld [vmem:[#allocation9 + $0x80] sm:$0xff]
    %v2965 = vld [vmem:[#allocation9 + $0x88] sm:$0xff]
    %v2966 = vld [vmem:[#allocation9 + $0x90] sm:$0xff]
    %v2967 = vld [vmem:[#allocation9 + $0x98] sm:$0xff]
    %v2968 = vld [vmem:[#allocation9 + $0xa0] sm:$0xff]
    %v2969 = vld [vmem:[#allocation9 + $0xa8] sm:$0xff]
    %v2970 = vld [vmem:[#allocation9 + $0xb0] sm:$0xff]
    %v2971 = vld [vmem:[#allocation9 + $0xb8] sm:$0xff]
    %v2972 = vld [vmem:[#allocation9 + $0xc0] sm:$0xff]
    %v2973 = vld [vmem:[#allocation9 + $0xc8] sm:$0xff]
    %v2974 = vld [vmem:[#allocation9 + $0xd0] sm:$0xff]
    %v2975 = vld [vmem:[#allocation9 + $0xd8] sm:$0xff]
    %v2976 = vld [vmem:[#allocation9 + $0xe0] sm:$0xff]
    %v2977 = vld [vmem:[#allocation9 + $0xe8] sm:$0xff]
    %v2978 = vld [vmem:[#allocation9 + $0xf0] sm:$0xff]
    %v2979 = vld [vmem:[#allocation9 + $0xf8] sm:$0xff]
    %v3012 = vunpack.c.l.b16 %v2948
    %v3013 = vunpack.c.h.b16 %v2948
    %v3014 = vunpack.c.l.b16 %v2949
    %v3015 = vunpack.c.h.b16 %v2949
    %v3016 = vunpack.c.l.b16 %v2950
    %v3017 = vunpack.c.h.b16 %v2950
    %v3018 = vunpack.c.l.b16 %v2951
    %v3019 = vunpack.c.h.b16 %v2951
    %v3020 = vunpack.c.l.b16 %v2952
    %v3021 = vunpack.c.h.b16 %v2952
    %v3022 = vunpack.c.l.b16 %v2953
    %v3023 = vunpack.c.h.b16 %v2953
    %v3024 = vunpack.c.l.b16 %v2954
    %v3025 = vunpack.c.h.b16 %v2954
    %v3026 = vunpack.c.l.b16 %v2955
    %v3027 = vunpack.c.h.b16 %v2955
    %v3028 = vunpack.c.l.b16 %v2956
    %v3029 = vunpack.c.h.b16 %v2956
    %v3030 = vunpack.c.l.b16 %v2957
    %v3031 = vunpack.c.h.b16 %v2957
    %v3032 = vunpack.c.l.b16 %v2958
    %v3033 = vunpack.c.h.b16 %v2958
    %v3034 = vunpack.c.l.b16 %v2959
    %v3035 = vunpack.c.h.b16 %v2959
    %v3036 = vunpack.c.l.b16 %v2960
    %v3037 = vunpack.c.h.b16 %v2960
    %v3038 = vunpack.c.l.b16 %v2961
    %v3039 = vunpack.c.h.b16 %v2961
    %v3040 = vunpack.c.l.b16 %v2962
    %v3041 = vunpack.c.h.b16 %v2962
    %v3042 = vunpack.c.l.b16 %v2963
    %v3043 = vunpack.c.h.b16 %v2963
    %v3044 = vunpack.c.l.b16 %v2964
    %v3045 = vunpack.c.h.b16 %v2964
    %v3046 = vunpack.c.l.b16 %v2965
    %v3047 = vunpack.c.h.b16 %v2965
    %v3048 = vunpack.c.l.b16 %v2966
    %v3049 = vunpack.c.h.b16 %v2966
    %v3050 = vunpack.c.l.b16 %v2967
    %v3051 = vunpack.c.h.b16 %v2967
    %v3052 = vunpack.c.l.b16 %v2968
    %v3053 = vunpack.c.h.b16 %v2968
    %v3054 = vunpack.c.l.b16 %v2969
    %v3055 = vunpack.c.h.b16 %v2969
    %v3056 = vunpack.c.l.b16 %v2970
    %v3057 = vunpack.c.h.b16 %v2970
    %v3058 = vunpack.c.l.b16 %v2971
    %v3059 = vunpack.c.h.b16 %v2971
    %v3060 = vunpack.c.l.b16 %v2972
    %v3061 = vunpack.c.h.b16 %v2972
    %v3062 = vunpack.c.l.b16 %v2973
    %v3063 = vunpack.c.h.b16 %v2973
    %v3064 = vunpack.c.l.b16 %v2974
    %v3065 = vunpack.c.h.b16 %v2974
    %v3066 = vunpack.c.l.b16 %v2975
    %v3067 = vunpack.c.h.b16 %v2975
    %v3068 = vunpack.c.l.b16 %v2976
    %v3069 = vunpack.c.h.b16 %v2976
    %v3070 = vunpack.c.l.b16 %v2977
    %v3071 = vunpack.c.h.b16 %v2977
    %v3072 = vunpack.c.l.b16 %v2978
    %v3073 = vunpack.c.h.b16 %v2978
    %v3074 = vunpack.c.l.b16 %v2979
    %v3075 = vunpack.c.h.b16 %v2979
    %v3076 = vpack.c.b16 %v3016, %v3012
    %v3077 = vpack.c.b16 %v3017, %v3013
    %v3078 = vpack.c.b16 %v3018, %v3014
    %v3079 = vpack.c.b16 %v3019, %v3015
    %v3080 = vpack.c.b16 %v3024, %v3020
    %v3081 = vpack.c.b16 %v3025, %v3021
    %v3082 = vpack.c.b16 %v3026, %v3022
    %v3083 = vpack.c.b16 %v3027, %v3023
    %v3084 = vpack.c.b16 %v3032, %v3028
    %v3085 = vpack.c.b16 %v3033, %v3029
    %v3086 = vpack.c.b16 %v3034, %v3030
    %v3087 = vpack.c.b16 %v3035, %v3031
    %v3088 = vpack.c.b16 %v3040, %v3036
    %v3089 = vpack.c.b16 %v3041, %v3037
    %v3090 = vpack.c.b16 %v3042, %v3038
    %v3091 = vpack.c.b16 %v3043, %v3039
    %v3092 = vpack.c.b16 %v3048, %v3044
    %v3093 = vpack.c.b16 %v3049, %v3045
    %v3094 = vpack.c.b16 %v3050, %v3046
    %v3095 = vpack.c.b16 %v3051, %v3047
    %v3096 = vpack.c.b16 %v3056, %v3052
    %v3097 = vpack.c.b16 %v3057, %v3053
    %v3098 = vpack.c.b16 %v3058, %v3054
    %v3099 = vpack.c.b16 %v3059, %v3055
    %v3100 = vpack.c.b16 %v3064, %v3060
    %v3101 = vpack.c.b16 %v3065, %v3061
    %v3102 = vpack.c.b16 %v3066, %v3062
    %v3103 = vpack.c.b16 %v3067, %v3063
    %v3104 = vpack.c.b16 %v3072, %v3068
    %v3105 = vpack.c.b16 %v3073, %v3069
    %v3106 = vpack.c.b16 %v3074, %v3070
    %v3107 = vpack.c.b16 %v3075, %v3071
    %3140 = vmatprep.subr.bf16.mxu0 %v3077
    %3141 = vmatpush1.bf16.msra.mxu0 %v3076
    %3142 = vmatprep.subr.bf16.mxu0 %v3081
    %3143 = vmatpush1.bf16.msra.mxu0 %v3080
    %3144 = vmatprep.subr.bf16.mxu0 %v3085
    %3145 = vmatpush1.bf16.msra.mxu0 %v3084
    %3146 = vmatprep.subr.bf16.mxu0 %v3089
    %3147 = vmatpush1.bf16.msra.mxu0 %v3088
    %3148 = vmatprep.subr.bf16.mxu0 %v3093
    %3149 = vmatpush1.bf16.msra.mxu0 %v3092
    %3150 = vmatprep.subr.bf16.mxu0 %v3097
    %3151 = vmatpush1.bf16.msra.mxu0 %v3096
    %3152 = vmatprep.subr.bf16.mxu0 %v3101
    %3153 = vmatpush1.bf16.msra.mxu0 %v3100
    %3154 = vmatprep.subr.bf16.mxu0 %v3105
    %3155 = vmatpush1.bf16.msra.mxu0 %v3104
    %3156 = vmatprep.subr.bf16.mxu0 0
    %3157 = vmatpush1.bf16.msra.mxu0 0
    %3158 = vmatprep.subr.bf16.mxu0 0
    %3159 = vmatpush1.bf16.msra.mxu0 0
    %3160 = vmatprep.subr.bf16.mxu0 0
    %3161 = vmatpush1.bf16.msra.mxu0 0
    %3162 = vmatprep.subr.bf16.mxu0 0
    %3163 = vmatpush1.bf16.msra.mxu0 0
    %3164 = vmatprep.subr.bf16.mxu0 0
    %3165 = vmatpush1.bf16.msra.mxu0 0
    %3166 = vmatprep.subr.bf16.mxu0 0
    %3167 = vmatpush1.bf16.msra.mxu0 0
    %3168 = vmatprep.subr.bf16.mxu0 0
    %3169 = vmatpush1.bf16.msra.mxu0 0
    %3170 = vmatprep.subr.bf16.mxu0 0
    %3171 = vmatpush1.bf16.msra.mxu0 0
    %3172 = vmatprep.mubr.bf16.mxu0 0
    %3173 = vmatmul.mubr.bf16.gmra.mrb[0].mxu0 %v2936
    %v3174 = vpop.f32.mrb[0].mxu0
    %v3175 = vadd.f32 0.0, %v3174
    %v3176 = vpop.f32.mrb[0].mxu0
    %v3177 = vadd.f32 0.0, %v3176
    %v3178 = vpop.f32.mrb[0].mxu0
    %v3179 = vadd.f32 0.0, %v3178
    %v3180 = vpop.f32.mrb[0].mxu0
    %v3181 = vadd.f32 0.0, %v3180
    %3182 = vdwg.mxu0
    %3183 = vmatprep.subr.bf16.mxu0 %v3079
    %3184 = vmatpush1.bf16.msra.mxu0 %v3078
    %3185 = vmatprep.subr.bf16.mxu0 %v3083
    %3186 = vmatpush1.bf16.msra.mxu0 %v3082
    %3187 = vmatprep.subr.bf16.mxu0 %v3087
    %3188 = vmatpush1.bf16.msra.mxu0 %v3086
    %3189 = vmatprep.subr.bf16.mxu0 %v3091
    %3190 = vmatpush1.bf16.msra.mxu0 %v3090
    %3191 = vmatprep.subr.bf16.mxu0 %v3095
    %3192 = vmatpush1.bf16.msra.mxu0 %v3094
    %3193 = vmatprep.subr.bf16.mxu0 %v3099
    %3194 = vmatpush1.bf16.msra.mxu0 %v3098
    %3195 = vmatprep.subr.bf16.mxu0 %v3103
    %3196 = vmatpush1.bf16.msra.mxu0 %v3102
    %3197 = vmatprep.subr.bf16.mxu0 %v3107
    %3198 = vmatpush1.bf16.msra.mxu0 %v3106
    %3199 = vmatprep.subr.bf16.mxu0 0
    %3200 = vmatpush1.bf16.msra.mxu0 0
    %3201 = vmatprep.subr.bf16.mxu0 0
    %3202 = vmatpush1.bf16.msra.mxu0 0
    %3203 = vmatprep.subr.bf16.mxu0 0
    %3204 = vmatpush1.bf16.msra.mxu0 0
    %3205 = vmatprep.subr.bf16.mxu0 0
    %3206 = vmatpush1.bf16.msra.mxu0 0
    %3207 = vmatprep.subr.bf16.mxu0 0
    %3208 = vmatpush1.bf16.msra.mxu0 0
    %3209 = vmatprep.subr.bf16.mxu0 0
    %3210 = vmatpush1.bf16.msra.mxu0 0
    %3211 = vmatprep.subr.bf16.mxu0 0
    %3212 = vmatpush1.bf16.msra.mxu0 0
    %3213 = vmatprep.subr.bf16.mxu0 0
    %3214 = vmatpush1.bf16.msra.mxu0 0
    %3215 = vmatprep.mubr.bf16.mxu0 0
    %3216 = vmatmul.mubr.bf16.gmra.mrb[0].mxu0 %v2936
    %v3217 = vpop.f32.mrb[0].mxu0
    %v3218 = vadd.f32 0.0, %v3217
    %v3219 = vpop.f32.mrb[0].mxu0
    %v3220 = vadd.f32 0.0, %v3219
    %v3221 = vpop.f32.mrb[0].mxu0
    %v3222 = vadd.f32 0.0, %v3221
    %v3223 = vpop.f32.mrb[0].mxu0
    %v3224 = vadd.f32 0.0, %v3223
    %3225 = vdwg.mxu0
    %v3226 = vadd.f32 %v2940, %v3175
    %v3227 = vadd.f32 %v2941, %v3177
    %v3228 = vadd.f32 %v2942, %v3218
    %v3229 = vadd.f32 %v2943, %v3220
    %v3230 = vadd.f32 %v2944, %v3179
    %v3231 = vadd.f32 %v2945, %v3181
    %v3232 = vadd.f32 %v2946, %v3222
    %v3233 = vadd.f32 %v2947, %v3224
    %v3234 = vxor.u32 %v3226, 2147483648
    %v3235 = vxor.u32 %v3230, 2147483648
    %v3236 = vmul.f32 %v3234, 1.442695
    %v3237 = vpow.pop %v3236
    %v3238 = vmul.f32 %v3235, 1.442695
    %v3239 = vpow.pop %v3238
    %v3240 = vadd.f32 %v3237, 1.0
    %v3241 = vadd.f32 %v3239, 1.0
    %v3242 = vrcp.pop %v3240
    %v3243 = vmul.f32 1.0, %v3242
    %v3244 = vrcp.pop %v3241
    %v3245 = vmul.f32 1.0, %v3244
    %v3246 = vxor.u32 %v3227, 2147483648
    %v3247 = vxor.u32 %v3231, 2147483648
    %v3248 = vmul.f32 %v3246, 1.442695
    %v3249 = vpow.pop %v3248
    %v3250 = vmul.f32 %v3247, 1.442695
    %v3251 = vpow.pop %v3250
    %v3252 = vadd.f32 %v3249, 1.0
    %v3253 = vadd.f32 %v3251, 1.0
    %v3254 = vrcp.pop %v3252
    %v3255 = vmul.f32 1.0, %v3254
    %v3256 = vrcp.pop %v3253
    %v3257 = vmul.f32 1.0, %v3256
    %v3258 = vtanh.pop %v3228
    %v3259 = vtanh.pop %v3232
    %v3260 = vxor.u32 %v3229, 2147483648
    %v3261 = vxor.u32 %v3233, 2147483648
    %v3262 = vmul.f32 %v3260, 1.442695
    %v3263 = vpow.pop %v3262
    %v3264 = vmul.f32 %v3261, 1.442695
    %v3265 = vpow.pop %v3264
    %v3266 = vadd.f32 %v3263, 1.0
    %v3267 = vadd.f32 %v3265, 1.0
    %v3268 = vrcp.pop %v3266
    %v3269 = vmul.f32 1.0, %v3268
    %v3270 = vrcp.pop %v3267
    %v3271 = vmul.f32 1.0, %v3270
    %v3272 = vmul.f32 %v3255, %v2930
    %v3273 = vmul.f32 %v3257, %v2931
    %v3274 = vmul.f32 %v3243, %v3258
    %v3275 = vmul.f32 %v3245, %v3259
    %v3276 = vadd.f32 %v3272, %v3274
    %v3277 = vadd.f32 %v3273, %v3275
    %v3278 = vtanh.pop %v3276
    %v3279 = vtanh.pop %v3277
    %v3280 = vmul.f32 %v3269, %v3278
    %v3281 = vmul.f32 %v3271, %v3279
    %v3282 = vpack.c.bf16 %v3281, %v3280
    %s3283 = scalar_lea.vmem [#allocation2], 56
    %3284 = vst [vmem:[%s3283] sm:$0xff] %v3282
    %v3285 = vld [vmem:[#allocation2] sm:$0xff]
    %v3286 = vld [vmem:[#allocation2 + $0x8] sm:$0xff]
    %v3287 = vld [vmem:[#allocation2 + $0x10] sm:$0xff]
    %v3288 = vld [vmem:[#allocation2 + $0x18] sm:$0xff]
    %v3289 = vld [vmem:[#allocation2 + $0x20] sm:$0xff]
    %v3290 = vld [vmem:[#allocation2 + $0x28] sm:$0xff]
    %v3291 = vld [vmem:[#allocation2 + $0x30] sm:$0xff]
    %v3292 = vld [vmem:[#allocation2 + $0x38] sm:$0xff]
    %v3293 = vld [vmem:[#allocation10] sm:$0xff]
    %v3294 = vld [vmem:[#allocation10 + $0x8] sm:$0xff]
    %v3295 = vld [vmem:[#allocation10 + $0x10] sm:$0xff]
    %v3296 = vld [vmem:[#allocation10 + $0x18] sm:$0xff]
    %v3297 = vld [vmem:[#allocation10 + $0x20] sm:$0xff]
    %v3298 = vld [vmem:[#allocation10 + $0x28] sm:$0xff]
    %v3299 = vld [vmem:[#allocation10 + $0x30] sm:$0xff]
    %v3300 = vld [vmem:[#allocation10 + $0x38] sm:$0xff]
    %v3301 = vld [vmem:[#allocation10 + $0x40] sm:$0xff]
    %v3302 = vld [vmem:[#allocation10 + $0x48] sm:$0xff]
    %v3303 = vld [vmem:[#allocation10 + $0x50] sm:$0xff]
    %v3304 = vld [vmem:[#allocation10 + $0x58] sm:$0xff]
    %v3305 = vld [vmem:[#allocation10 + $0x60] sm:$0xff]
    %v3306 = vld [vmem:[#allocation10 + $0x68] sm:$0xff]
    %v3307 = vld [vmem:[#allocation10 + $0x70] sm:$0xff]
    %v3308 = vld [vmem:[#allocation10 + $0x78] sm:$0xff]
    %v3309 = vld [vmem:[#allocation10 + $0x80] sm:$0xff]
    %v3310 = vld [vmem:[#allocation10 + $0x88] sm:$0xff]
    %v3311 = vld [vmem:[#allocation10 + $0x90] sm:$0xff]
    %v3312 = vld [vmem:[#allocation10 + $0x98] sm:$0xff]
    %v3313 = vld [vmem:[#allocation10 + $0xa0] sm:$0xff]
    %v3314 = vld [vmem:[#allocation10 + $0xa8] sm:$0xff]
    %v3315 = vld [vmem:[#allocation10 + $0xb0] sm:$0xff]
    %v3316 = vld [vmem:[#allocation10 + $0xb8] sm:$0xff]
    %v3317 = vld [vmem:[#allocation10 + $0xc0] sm:$0xff]
    %v3318 = vld [vmem:[#allocation10 + $0xc8] sm:$0xff]
    %v3319 = vld [vmem:[#allocation10 + $0xd0] sm:$0xff]
    %v3320 = vld [vmem:[#allocation10 + $0xd8] sm:$0xff]
    %v3321 = vld [vmem:[#allocation10 + $0xe0] sm:$0xff]
    %v3322 = vld [vmem:[#allocation10 + $0xe8] sm:$0xff]
    %v3323 = vld [vmem:[#allocation10 + $0xf0] sm:$0xff]
    %v3324 = vld [vmem:[#allocation10 + $0xf8] sm:$0xff]
    %v3325 = vld [vmem:[%s6] sm:$0xf]
    %v3327 = vlaneseq
    %v3328 = vshrl.u32 %v3327, 7
    %v3329 = vsub.s32 0, %v3328
    %v3330 = vrot.slane %v3325, %v3329
    %v3331 = vlaneseq
    %v3332 = vshrl.u32 %v3331, 7
    %v3333 = vsub.s32 1, %v3332
    %v3334 = vrot.slane %v3325, %v3333
    %v3335 = vlaneseq
    %v3336 = vshrl.u32 %v3335, 7
    %v3337 = vsub.s32 2, %v3336
    %v3338 = vrot.slane %v3325, %v3337
    %v3339 = vlaneseq
    %v3340 = vshrl.u32 %v3339, 7
    %v3341 = vsub.s32 3, %v3340
    %v3342 = vrot.slane %v3325, %v3341
    %v3379 = vunpack.c.l.b16 %v3293
    %v3380 = vunpack.c.h.b16 %v3293
    %v3381 = vunpack.c.l.b16 %v3294
    %v3382 = vunpack.c.h.b16 %v3294
    %v3383 = vunpack.c.l.b16 %v3295
    %v3384 = vunpack.c.h.b16 %v3295
    %v3385 = vunpack.c.l.b16 %v3296
    %v3386 = vunpack.c.h.b16 %v3296
    %v3387 = vunpack.c.l.b16 %v3297
    %v3388 = vunpack.c.h.b16 %v3297
    %v3389 = vunpack.c.l.b16 %v3298
    %v3390 = vunpack.c.h.b16 %v3298
    %v3391 = vunpack.c.l.b16 %v3299
    %v3392 = vunpack.c.h.b16 %v3299
    %v3393 = vunpack.c.l.b16 %v3300
    %v3394 = vunpack.c.h.b16 %v3300
    %v3395 = vunpack.c.l.b16 %v3301
    %v3396 = vunpack.c.h.b16 %v3301
    %v3397 = vunpack.c.l.b16 %v3302
    %v3398 = vunpack.c.h.b16 %v3302
    %v3399 = vunpack.c.l.b16 %v3303
    %v3400 = vunpack.c.h.b16 %v3303
    %v3401 = vunpack.c.l.b16 %v3304
    %v3402 = vunpack.c.h.b16 %v3304
    %v3403 = vunpack.c.l.b16 %v3305
    %v3404 = vunpack.c.h.b16 %v3305
    %v3405 = vunpack.c.l.b16 %v3306
    %v3406 = vunpack.c.h.b16 %v3306
    %v3407 = vunpack.c.l.b16 %v3307
    %v3408 = vunpack.c.h.b16 %v3307
    %v3409 = vunpack.c.l.b16 %v3308
    %v3410 = vunpack.c.h.b16 %v3308
    %v3411 = vunpack.c.l.b16 %v3309
    %v3412 = vunpack.c.h.b16 %v3309
    %v3413 = vunpack.c.l.b16 %v3310
    %v3414 = vunpack.c.h.b16 %v3310
    %v3415 = vunpack.c.l.b16 %v3311
    %v3416 = vunpack.c.h.b16 %v3311
    %v3417 = vunpack.c.l.b16 %v3312
    %v3418 = vunpack.c.h.b16 %v3312
    %v3419 = vunpack.c.l.b16 %v3313
    %v3420 = vunpack.c.h.b16 %v3313
    %v3421 = vunpack.c.l.b16 %v3314
    %v3422 = vunpack.c.h.b16 %v3314
    %v3423 = vunpack.c.l.b16 %v3315
    %v3424 = vunpack.c.h.b16 %v3315
    %v3425 = vunpack.c.l.b16 %v3316
    %v3426 = vunpack.c.h.b16 %v3316
    %v3427 = vunpack.c.l.b16 %v3317
    %v3428 = vunpack.c.h.b16 %v3317
    %v3429 = vunpack.c.l.b16 %v3318
    %v3430 = vunpack.c.h.b16 %v3318
    %v3431 = vunpack.c.l.b16 %v3319
    %v3432 = vunpack.c.h.b16 %v3319
    %v3433 = vunpack.c.l.b16 %v3320
    %v3434 = vunpack.c.h.b16 %v3320
    %v3435 = vunpack.c.l.b16 %v3321
    %v3436 = vunpack.c.h.b16 %v3321
    %v3437 = vunpack.c.l.b16 %v3322
    %v3438 = vunpack.c.h.b16 %v3322
    %v3439 = vunpack.c.l.b16 %v3323
    %v3440 = vunpack.c.h.b16 %v3323
    %v3441 = vunpack.c.l.b16 %v3324
    %v3442 = vunpack.c.h.b16 %v3324
    %v3443 = vpack.c.b16 %v3383, %v3379
    %v3444 = vpack.c.b16 %v3384, %v3380
    %v3445 = vpack.c.b16 %v3385, %v3381
    %v3446 = vpack.c.b16 %v3386, %v3382
    %v3447 = vpack.c.b16 %v3391, %v3387
    %v3448 = vpack.c.b16 %v3392, %v3388
    %v3449 = vpack.c.b16 %v3393, %v3389
    %v3450 = vpack.c.b16 %v3394, %v3390
    %v3451 = vpack.c.b16 %v3399, %v3395
    %v3452 = vpack.c.b16 %v3400, %v3396
    %v3453 = vpack.c.b16 %v3401, %v3397
    %v3454 = vpack.c.b16 %v3402, %v3398
    %v3455 = vpack.c.b16 %v3407, %v3403
    %v3456 = vpack.c.b16 %v3408, %v3404
    %v3457 = vpack.c.b16 %v3409, %v3405
    %v3458 = vpack.c.b16 %v3410, %v3406
    %v3459 = vpack.c.b16 %v3415, %v3411
    %v3460 = vpack.c.b16 %v3416, %v3412
    %v3461 = vpack.c.b16 %v3417, %v3413
    %v3462 = vpack.c.b16 %v3418, %v3414
    %v3463 = vpack.c.b16 %v3423, %v3419
    %v3464 = vpack.c.b16 %v3424, %v3420
    %v3465 = vpack.c.b16 %v3425, %v3421
    %v3466 = vpack.c.b16 %v3426, %v3422
    %v3467 = vpack.c.b16 %v3431, %v3427
    %v3468 = vpack.c.b16 %v3432, %v3428
    %v3469 = vpack.c.b16 %v3433, %v3429
    %v3470 = vpack.c.b16 %v3434, %v3430
    %v3471 = vpack.c.b16 %v3439, %v3435
    %v3472 = vpack.c.b16 %v3440, %v3436
    %v3473 = vpack.c.b16 %v3441, %v3437
    %v3474 = vpack.c.b16 %v3442, %v3438
    %3507 = vmatprep.subr.bf16.mxu0 %v3444
    %3508 = vmatpush1.bf16.msra.mxu0 %v3443
    %3509 = vmatprep.subr.bf16.mxu0 %v3448
    %3510 = vmatpush1.bf16.msra.mxu0 %v3447
    %3511 = vmatprep.subr.bf16.mxu0 %v3452
    %3512 = vmatpush1.bf16.msra.mxu0 %v3451
    %3513 = vmatprep.subr.bf16.mxu0 %v3456
    %3514 = vmatpush1.bf16.msra.mxu0 %v3455
    %3515 = vmatprep.subr.bf16.mxu0 %v3460
    %3516 = vmatpush1.bf16.msra.mxu0 %v3459
    %3517 = vmatprep.subr.bf16.mxu0 %v3464
    %3518 = vmatpush1.bf16.msra.mxu0 %v3463
    %3519 = vmatprep.subr.bf16.mxu0 %v3468
    %3520 = vmatpush1.bf16.msra.mxu0 %v3467
    %3521 = vmatprep.subr.bf16.mxu0 %v3472
    %3522 = vmatpush1.bf16.msra.mxu0 %v3471
    %3523 = vmatprep.subr.bf16.mxu0 0
    %3524 = vmatpush1.bf16.msra.mxu0 0
    %3525 = vmatprep.subr.bf16.mxu0 0
    %3526 = vmatpush1.bf16.msra.mxu0 0
    %3527 = vmatprep.subr.bf16.mxu0 0
    %3528 = vmatpush1.bf16.msra.mxu0 0
    %3529 = vmatprep.subr.bf16.mxu0 0
    %3530 = vmatpush1.bf16.msra.mxu0 0
    %3531 = vmatprep.subr.bf16.mxu0 0
    %3532 = vmatpush1.bf16.msra.mxu0 0
    %3533 = vmatprep.subr.bf16.mxu0 0
    %3534 = vmatpush1.bf16.msra.mxu0 0
    %3535 = vmatprep.subr.bf16.mxu0 0
    %3536 = vmatpush1.bf16.msra.mxu0 0
    %3537 = vmatprep.subr.bf16.mxu0 0
    %3538 = vmatpush1.bf16.msra.mxu0 0
    %3539 = vmatprep.mubr.bf16.mxu0 0
    %3540 = vmatmul.mubr.bf16.gmra.mrb[0].mxu0 %v3285
    %v3541 = vpop.f32.mrb[0].mxu0
    %v3542 = vadd.f32 %v3330, %v3541
    %v3543 = vpop.f32.mrb[0].mxu0
    %v3544 = vadd.f32 %v3334, %v3543
    %v3545 = vpop.f32.mrb[0].mxu0
    %v3546 = vadd.f32 %v3330, %v3545
    %v3547 = vpop.f32.mrb[0].mxu0
    %v3548 = vadd.f32 %v3334, %v3547
    %3549 = vmatprep.mubr.bf16.mxu0 0
    %3550 = vmatmul.mubr.bf16.gmra.mrb[0].mxu0 %v3286
    %v3551 = vpop.f32.mrb[0].mxu0
    %v3552 = vadd.f32 %v3330, %v3551
    %v3553 = vpop.f32.mrb[0].mxu0
    %v3554 = vadd.f32 %v3334, %v3553
    %v3555 = vpop.f32.mrb[0].mxu0
    %v3556 = vadd.f32 %v3330, %v3555
    %v3557 = vpop.f32.mrb[0].mxu0
    %v3558 = vadd.f32 %v3334, %v3557
    %3559 = vmatprep.mubr.bf16.mxu0 0
    %3560 = vmatmul.mubr.bf16.gmra.mrb[0].mxu0 %v3287
    %v3561 = vpop.f32.mrb[0].mxu0
    %v3562 = vadd.f32 %v3330, %v3561
    %v3563 = vpop.f32.mrb[0].mxu0
    %v3564 = vadd.f32 %v3334, %v3563
    %v3565 = vpop.f32.mrb[0].mxu0
    %v3566 = vadd.f32 %v3330, %v3565
    %v3567 = vpop.f32.mrb[0].mxu0
    %v3568 = vadd.f32 %v3334, %v3567
    %3569 = vmatprep.mubr.bf16.mxu0 0
    %3570 = vmatmul.mubr.bf16.gmra.mrb[0].mxu0 %v3288
    %v3571 = vpop.f32.mrb[0].mxu0
    %v3572 = vadd.f32 %v3330, %v3571
    %v3573 = vpop.f32.mrb[0].mxu0
    %v3574 = vadd.f32 %v3334, %v3573
    %v3575 = vpop.f32.mrb[0].mxu0
    %v3576 = vadd.f32 %v3330, %v3575
    %v3577 = vpop.f32.mrb[0].mxu0
    %v3578 = vadd.f32 %v3334, %v3577
    %3579 = vmatprep.mubr.bf16.mxu0 0
    %3580 = vmatmul.mubr.bf16.gmra.mrb[0].mxu0 %v3289
    %v3581 = vpop.f32.mrb[0].mxu0
    %v3582 = vadd.f32 %v3330, %v3581
    %v3583 = vpop.f32.mrb[0].mxu0
    %v3584 = vadd.f32 %v3334, %v3583
    %v3585 = vpop.f32.mrb[0].mxu0
    %v3586 = vadd.f32 %v3330, %v3585
    %v3587 = vpop.f32.mrb[0].mxu0
    %v3588 = vadd.f32 %v3334, %v3587
    %3589 = vmatprep.mubr.bf16.mxu0 0
    %3590 = vmatmul.mubr.bf16.gmra.mrb[0].mxu0 %v3290
    %v3591 = vpop.f32.mrb[0].mxu0
    %v3592 = vadd.f32 %v3330, %v3591
    %v3593 = vpop.f32.mrb[0].mxu0
    %v3594 = vadd.f32 %v3334, %v3593
    %v3595 = vpop.f32.mrb[0].mxu0
    %v3596 = vadd.f32 %v3330, %v3595
    %v3597 = vpop.f32.mrb[0].mxu0
    %v3598 = vadd.f32 %v3334, %v3597
    %3599 = vmatprep.mubr.bf16.mxu0 0
    %3600 = vmatmul.mubr.bf16.gmra.mrb[0].mxu0 %v3291
    %v3601 = vpop.f32.mrb[0].mxu0
    %v3602 = vadd.f32 %v3330, %v3601
    %v3603 = vpop.f32.mrb[0].mxu0
    %v3604 = vadd.f32 %v3334, %v3603
    %v3605 = vpop.f32.mrb[0].mxu0
    %v3606 = vadd.f32 %v3330, %v3605
    %v3607 = vpop.f32.mrb[0].mxu0
    %v3608 = vadd.f32 %v3334, %v3607
    %3609 = vmatprep.mubr.bf16.mxu0 0
    %3610 = vmatmul.mubr.bf16.gmra.mrb[0].mxu0 %v3292
    %v3611 = vpop.f32.mrb[0].mxu0
    %v3612 = vadd.f32 %v3330, %v3611
    %v3613 = vpop.f32.mrb[0].mxu0
    %v3614 = vadd.f32 %v3334, %v3613
    %v3615 = vpop.f32.mrb[0].mxu0
    %v3616 = vadd.f32 %v3330, %v3615
    %v3617 = vpop.f32.mrb[0].mxu0
    %v3618 = vadd.f32 %v3334, %v3617
    %3619 = vdwg.mxu0
    %3620 = vmatprep.subr.bf16.mxu0 %v3446
    %3621 = vmatpush1.bf16.msra.mxu0 %v3445
    %3622 = vmatprep.subr.bf16.mxu0 %v3450
    %3623 = vmatpush1.bf16.msra.mxu0 %v3449
    %3624 = vmatprep.subr.bf16.mxu0 %v3454
    %3625 = vmatpush1.bf16.msra.mxu0 %v3453
    %3626 = vmatprep.subr.bf16.mxu0 %v3458
    %3627 = vmatpush1.bf16.msra.mxu0 %v3457
    %3628 = vmatprep.subr.bf16.mxu0 %v3462
    %3629 = vmatpush1.bf16.msra.mxu0 %v3461
    %3630 = vmatprep.subr.bf16.mxu0 %v3466
    %3631 = vmatpush1.bf16.msra.mxu0 %v3465
    %3632 = vmatprep.subr.bf16.mxu0 %v3470
    %3633 = vmatpush1.bf16.msra.mxu0 %v3469
    %3634 = vmatprep.subr.bf16.mxu0 %v3474
    %3635 = vmatpush1.bf16.msra.mxu0 %v3473
    %3636 = vmatprep.subr.bf16.mxu0 0
    %3637 = vmatpush1.bf16.msra.mxu0 0
    %3638 = vmatprep.subr.bf16.mxu0 0
    %3639 = vmatpush1.bf16.msra.mxu0 0
    %3640 = vmatprep.subr.bf16.mxu0 0
    %3641 = vmatpush1.bf16.msra.mxu0 0
    %3642 = vmatprep.subr.bf16.mxu0 0
    %3643 = vmatpush1.bf16.msra.mxu0 0
    %3644 = vmatprep.subr.bf16.mxu0 0
    %3645 = vmatpush1.bf16.msra.mxu0 0
    %3646 = vmatprep.subr.bf16.mxu0 0
    %3647 = vmatpush1.bf16.msra.mxu0 0
    %3648 = vmatprep.subr.bf16.mxu0 0
    %3649 = vmatpush1.bf16.msra.mxu0 0
    %3650 = vmatprep.subr.bf16.mxu0 0
    %3651 = vmatpush1.bf16.msra.mxu0 0
    %3652 = vmatprep.mubr.bf16.mxu0 0
    %3653 = vmatmul.mubr.bf16.gmra.mrb[0].mxu0 %v3285
    %v3654 = vpop.f32.mrb[0].mxu0
    %v3655 = vadd.f32 %v3338, %v3654
    %v3656 = vpop.f32.mrb[0].mxu0
    %v3657 = vadd.f32 %v3342, %v3656
    %v3658 = vpop.f32.mrb[0].mxu0
    %v3659 = vadd.f32 %v3338, %v3658
    %v3660 = vpop.f32.mrb[0].mxu0
    %v3661 = vadd.f32 %v3342, %v3660
    %3662 = vmatprep.mubr.bf16.mxu0 0
    %3663 = vmatmul.mubr.bf16.gmra.mrb[0].mxu0 %v3286
    %v3664 = vpop.f32.mrb[0].mxu0
    %v3665 = vadd.f32 %v3338, %v3664
    %v3666 = vpop.f32.mrb[0].mxu0
    %v3667 = vadd.f32 %v3342, %v3666
    %v3668 = vpop.f32.mrb[0].mxu0
    %v3669 = vadd.f32 %v3338, %v3668
    %v3670 = vpop.f32.mrb[0].mxu0
    %v3671 = vadd.f32 %v3342, %v3670
    %3672 = vmatprep.mubr.bf16.mxu0 0
    %3673 = vmatmul.mubr.bf16.gmra.mrb[0].mxu0 %v3287
    %v3674 = vpop.f32.mrb[0].mxu0
    %v3675 = vadd.f32 %v3338, %v3674
    %v3676 = vpop.f32.mrb[0].mxu0
    %v3677 = vadd.f32 %v3342, %v3676
    %v3678 = vpop.f32.mrb[0].mxu0
    %v3679 = vadd.f32 %v3338, %v3678
    %v3680 = vpop.f32.mrb[0].mxu0
    %v3681 = vadd.f32 %v3342, %v3680
    %3682 = vmatprep.mubr.bf16.mxu0 0
    %3683 = vmatmul.mubr.bf16.gmra.mrb[0].mxu0 %v3288
    %v3684 = vpop.f32.mrb[0].mxu0
    %v3685 = vadd.f32 %v3338, %v3684
    %v3686 = vpop.f32.mrb[0].mxu0
    %v3687 = vadd.f32 %v3342, %v3686
    %v3688 = vpop.f32.mrb[0].mxu0
    %v3689 = vadd.f32 %v3338, %v3688
    %v3690 = vpop.f32.mrb[0].mxu0
    %v3691 = vadd.f32 %v3342, %v3690
    %3692 = vmatprep.mubr.bf16.mxu0 0
    %3693 = vmatmul.mubr.bf16.gmra.mrb[0].mxu0 %v3289
    %v3694 = vpop.f32.mrb[0].mxu0
    %v3695 = vadd.f32 %v3338, %v3694
    %v3696 = vpop.f32.mrb[0].mxu0
    %v3697 = vadd.f32 %v3342, %v3696
    %v3698 = vpop.f32.mrb[0].mxu0
    %v3699 = vadd.f32 %v3338, %v3698
    %v3700 = vpop.f32.mrb[0].mxu0
    %v3701 = vadd.f32 %v3342, %v3700
    %3702 = vmatprep.mubr.bf16.mxu0 0
    %3703 = vmatmul.mubr.bf16.gmra.mrb[0].mxu0 %v3290
    %v3704 = vpop.f32.mrb[0].mxu0
    %v3705 = vadd.f32 %v3338, %v3704
    %v3706 = vpop.f32.mrb[0].mxu0
    %v3707 = vadd.f32 %v3342, %v3706
    %v3708 = vpop.f32.mrb[0].mxu0
    %v3709 = vadd.f32 %v3338, %v3708
    %v3710 = vpop.f32.mrb[0].mxu0
    %v3711 = vadd.f32 %v3342, %v3710
    %3712 = vmatprep.mubr.bf16.mxu0 0
    %3713 = vmatmul.mubr.bf16.gmra.mrb[0].mxu0 %v3291
    %v3714 = vpop.f32.mrb[0].mxu0
    %v3715 = vadd.f32 %v3338, %v3714
    %v3716 = vpop.f32.mrb[0].mxu0
    %v3717 = vadd.f32 %v3342, %v3716
    %v3718 = vpop.f32.mrb[0].mxu0
    %v3719 = vadd.f32 %v3338, %v3718
    %v3720 = vpop.f32.mrb[0].mxu0
    %v3721 = vadd.f32 %v3342, %v3720
    %3722 = vmatprep.mubr.bf16.mxu0 0
    %3723 = vmatmul.mubr.bf16.gmra.mrb[0].mxu0 %v3292
    %v3724 = vpop.f32.mrb[0].mxu0
    %v3725 = vadd.f32 %v3338, %v3724
    %v3726 = vpop.f32.mrb[0].mxu0
    %v3727 = vadd.f32 %v3342, %v3726
    %v3728 = vpop.f32.mrb[0].mxu0
    %v3729 = vadd.f32 %v3338, %v3728
    %v3730 = vpop.f32.mrb[0].mxu0
    %v3731 = vadd.f32 %v3342, %v3730
    %3732 = vdwg.mxu0
    %3733 = vst [vmem:[#allocation3] sm:$0xff] %v3542
    %3734 = vst [vmem:[#allocation3 + $0x8] sm:$0xff] %v3544
    %3735 = vst [vmem:[#allocation3 + $0x10] sm:$0xff] %v3655
    %3736 = vst [vmem:[#allocation3 + $0x18] sm:$0xff] %v3657
    %3737 = vst [vmem:[#allocation3 + $0x20] sm:$0xff] %v3546
    %3738 = vst [vmem:[#allocation3 + $0x28] sm:$0xff] %v3548
    %3739 = vst [vmem:[#allocation3 + $0x30] sm:$0xff] %v3659
    %3740 = vst [vmem:[#allocation3 + $0x38] sm:$0xff] %v3661
    %3741 = vst [vmem:[#allocation3 + $0x40] sm:$0xff] %v3552
    %3742 = vst [vmem:[#allocation3 + $0x48] sm:$0xff] %v3554
    %3743 = vst [vmem:[#allocation3 + $0x50] sm:$0xff] %v3665
    %3744 = vst [vmem:[#allocation3 + $0x58] sm:$0xff] %v3667
    %3745 = vst [vmem:[#allocation3 + $0x60] sm:$0xff] %v3556
    %3746 = vst [vmem:[#allocation3 + $0x68] sm:$0xff] %v3558
    %3747 = vst [vmem:[#allocation3 + $0x70] sm:$0xff] %v3669
    %3748 = vst [vmem:[#allocation3 + $0x78] sm:$0xff] %v3671
    %3749 = vst [vmem:[#allocation3 + $0x80] sm:$0xff] %v3562
    %3750 = vst [vmem:[#allocation3 + $0x88] sm:$0xff] %v3564
    %3751 = vst [vmem:[#allocation3 + $0x90] sm:$0xff] %v3675
    %3752 = vst [vmem:[#allocation3 + $0x98] sm:$0xff] %v3677
    %3753 = vst [vmem:[#allocation3 + $0xa0] sm:$0xff] %v3566
    %3754 = vst [vmem:[#allocation3 + $0xa8] sm:$0xff] %v3568
    %3755 = vst [vmem:[#allocation3 + $0xb0] sm:$0xff] %v3679
    %3756 = vst [vmem:[#allocation3 + $0xb8] sm:$0xff] %v3681
    %3757 = vst [vmem:[#allocation3 + $0xc0] sm:$0xff] %v3572
    %3758 = vst [vmem:[#allocation3 + $0xc8] sm:$0xff] %v3574
    %3759 = vst [vmem:[#allocation3 + $0xd0] sm:$0xff] %v3685
    %3760 = vst [vmem:[#allocation3 + $0xd8] sm:$0xff] %v3687
    %3761 = vst [vmem:[#allocation3 + $0xe0] sm:$0xff] %v3576
    %3762 = vst [vmem:[#allocation3 + $0xe8] sm:$0xff] %v3578
    %3763 = vst [vmem:[#allocation3 + $0xf0] sm:$0xff] %v3689
    %3764 = vst [vmem:[#allocation3 + $0xf8] sm:$0xff] %v3691
    %3765 = vst [vmem:[#allocation3 + $0x100] sm:$0xff] %v3582
    %3766 = vst [vmem:[#allocation3 + $0x108] sm:$0xff] %v3584
    %3767 = vst [vmem:[#allocation3 + $0x110] sm:$0xff] %v3695
    %3768 = vst [vmem:[#allocation3 + $0x118] sm:$0xff] %v3697
    %3769 = vst [vmem:[#allocation3 + $0x120] sm:$0xff] %v3586
    %3770 = vst [vmem:[#allocation3 + $0x128] sm:$0xff] %v3588
    %3771 = vst [vmem:[#allocation3 + $0x130] sm:$0xff] %v3699
    %3772 = vst [vmem:[#allocation3 + $0x138] sm:$0xff] %v3701
    %3773 = vst [vmem:[#allocation3 + $0x140] sm:$0xff] %v3592
    %3774 = vst [vmem:[#allocation3 + $0x148] sm:$0xff] %v3594
    %3775 = vst [vmem:[#allocation3 + $0x150] sm:$0xff] %v3705
    %3776 = vst [vmem:[#allocation3 + $0x158] sm:$0xff] %v3707
    %3777 = vst [vmem:[#allocation3 + $0x160] sm:$0xff] %v3596
    %3778 = vst [vmem:[#allocation3 + $0x168] sm:$0xff] %v3598
    %3779 = vst [vmem:[#allocation3 + $0x170] sm:$0xff] %v3709
    %3780 = vst [vmem:[#allocation3 + $0x178] sm:$0xff] %v3711
    %3781 = vst [vmem:[#allocation3 + $0x180] sm:$0xff] %v3602
    %3782 = vst [vmem:[#allocation3 + $0x188] sm:$0xff] %v3604
    %3783 = vst [vmem:[#allocation3 + $0x190] sm:$0xff] %v3715
    %3784 = vst [vmem:[#allocation3 + $0x198] sm:$0xff] %v3717
    %3785 = vst [vmem:[#allocation3 + $0x1a0] sm:$0xff] %v3606
    %3786 = vst [vmem:[#allocation3 + $0x1a8] sm:$0xff] %v3608
    %3787 = vst [vmem:[#allocation3 + $0x1b0] sm:$0xff] %v3719
    %3788 = vst [vmem:[#allocation3 + $0x1b8] sm:$0xff] %v3721
    %3789 = vst [vmem:[#allocation3 + $0x1c0] sm:$0xff] %v3612
    %3790 = vst [vmem:[#allocation3 + $0x1c8] sm:$0xff] %v3614
    %3791 = vst [vmem:[#allocation3 + $0x1d0] sm:$0xff] %v3725
    %3792 = vst [vmem:[#allocation3 + $0x1d8] sm:$0xff] %v3727
    %3793 = vst [vmem:[#allocation3 + $0x1e0] sm:$0xff] %v3616
    %3794 = vst [vmem:[#allocation3 + $0x1e8] sm:$0xff] %v3618
    %3795 = vst [vmem:[#allocation3 + $0x1f0] sm:$0xff] %v3729
    %3796 = vst [vmem:[#allocation3 + $0x1f8] sm:$0xff] %v3731
    %v3797 = vld [vmem:[#allocation3] sm:$0xff]
    %v3798 = vld [vmem:[#allocation3 + $0x8] sm:$0xff]
    %v3799 = vld [vmem:[#allocation3 + $0x10] sm:$0xff]
    %v3800 = vld [vmem:[#allocation3 + $0x18] sm:$0xff]
    %v3801 = vld [vmem:[#allocation3 + $0x20] sm:$0xff]
    %v3802 = vld [vmem:[#allocation3 + $0x28] sm:$0xff]
    %v3803 = vld [vmem:[#allocation3 + $0x30] sm:$0xff]
    %v3804 = vld [vmem:[#allocation3 + $0x38] sm:$0xff]
    %v3805 = vld [vmem:[#allocation12] sm:$0xff]
    %v3806 = vld [vmem:[#allocation12 + $0x8] sm:$0xff]
    %v3807 = vld [vmem:[#allocation12 + $0x10] sm:$0xff]
    %v3808 = vld [vmem:[#allocation12 + $0x18] sm:$0xff]
    %v3809 = vld [vmem:[#allocation12 + $0x20] sm:$0xff]
    %v3810 = vld [vmem:[#allocation12 + $0x28] sm:$0xff]
    %v3811 = vld [vmem:[#allocation12 + $0x30] sm:$0xff]
    %v3812 = vld [vmem:[#allocation12 + $0x38] sm:$0xff]
    %v3813 = vld [vmem:[#allocation12 + $0x40] sm:$0xff]
    %v3814 = vld [vmem:[#allocation12 + $0x48] sm:$0xff]
    %v3815 = vld [vmem:[#allocation12 + $0x50] sm:$0xff]
    %v3816 = vld [vmem:[#allocation12 + $0x58] sm:$0xff]
    %v3817 = vld [vmem:[#allocation12 + $0x60] sm:$0xff]
    %v3818 = vld [vmem:[#allocation12 + $0x68] sm:$0xff]
    %v3819 = vld [vmem:[#allocation12 + $0x70] sm:$0xff]
    %v3820 = vld [vmem:[#allocation12 + $0x78] sm:$0xff]
    %v3821 = vld [vmem:[#allocation12 + $0x80] sm:$0xff]
    %v3822 = vld [vmem:[#allocation12 + $0x88] sm:$0xff]
    %v3823 = vld [vmem:[#allocation12 + $0x90] sm:$0xff]
    %v3824 = vld [vmem:[#allocation12 + $0x98] sm:$0xff]
    %v3825 = vld [vmem:[#allocation12 + $0xa0] sm:$0xff]
    %v3826 = vld [vmem:[#allocation12 + $0xa8] sm:$0xff]
    %v3827 = vld [vmem:[#allocation12 + $0xb0] sm:$0xff]
    %v3828 = vld [vmem:[#allocation12 + $0xb8] sm:$0xff]
    %v3829 = vld [vmem:[#allocation12 + $0xc0] sm:$0xff]
    %v3830 = vld [vmem:[#allocation12 + $0xc8] sm:$0xff]
    %v3831 = vld [vmem:[#allocation12 + $0xd0] sm:$0xff]
    %v3832 = vld [vmem:[#allocation12 + $0xd8] sm:$0xff]
    %v3833 = vld [vmem:[#allocation12 + $0xe0] sm:$0xff]
    %v3834 = vld [vmem:[#allocation12 + $0xe8] sm:$0xff]
    %v3835 = vld [vmem:[#allocation12 + $0xf0] sm:$0xff]
    %v3836 = vld [vmem:[#allocation12 + $0xf8] sm:$0xff]
    %v3869 = vunpack.c.l.b16 %v3805
    %v3870 = vunpack.c.h.b16 %v3805
    %v3871 = vunpack.c.l.b16 %v3806
    %v3872 = vunpack.c.h.b16 %v3806
    %v3873 = vunpack.c.l.b16 %v3807
    %v3874 = vunpack.c.h.b16 %v3807
    %v3875 = vunpack.c.l.b16 %v3808
    %v3876 = vunpack.c.h.b16 %v3808
    %v3877 = vunpack.c.l.b16 %v3809
    %v3878 = vunpack.c.h.b16 %v3809
    %v3879 = vunpack.c.l.b16 %v3810
    %v3880 = vunpack.c.h.b16 %v3810
    %v3881 = vunpack.c.l.b16 %v3811
    %v3882 = vunpack.c.h.b16 %v3811
    %v3883 = vunpack.c.l.b16 %v3812
    %v3884 = vunpack.c.h.b16 %v3812
    %v3885 = vunpack.c.l.b16 %v3813
    %v3886 = vunpack.c.h.b16 %v3813
    %v3887 = vunpack.c.l.b16 %v3814
    %v3888 = vunpack.c.h.b16 %v3814
    %v3889 = vunpack.c.l.b16 %v3815
    %v3890 = vunpack.c.h.b16 %v3815
    %v3891 = vunpack.c.l.b16 %v3816
    %v3892 = vunpack.c.h.b16 %v3816
    %v3893 = vunpack.c.l.b16 %v3817
    %v3894 = vunpack.c.h.b16 %v3817
    %v3895 = vunpack.c.l.b16 %v3818
    %v3896 = vunpack.c.h.b16 %v3818
    %v3897 = vunpack.c.l.b16 %v3819
    %v3898 = vunpack.c.h.b16 %v3819
    %v3899 = vunpack.c.l.b16 %v3820
    %v3900 = vunpack.c.h.b16 %v3820
    %v3901 = vunpack.c.l.b16 %v3821
    %v3902 = vunpack.c.h.b16 %v3821
    %v3903 = vunpack.c.l.b16 %v3822
    %v3904 = vunpack.c.h.b16 %v3822
    %v3905 = vunpack.c.l.b16 %v3823
    %v3906 = vunpack.c.h.b16 %v3823
    %v3907 = vunpack.c.l.b16 %v3824
    %v3908 = vunpack.c.h.b16 %v3824
    %v3909 = vunpack.c.l.b16 %v3825
    %v3910 = vunpack.c.h.b16 %v3825
    %v3911 = vunpack.c.l.b16 %v3826
    %v3912 = vunpack.c.h.b16 %v3826
    %v3913 = vunpack.c.l.b16 %v3827
    %v3914 = vunpack.c.h.b16 %v3827
    %v3915 = vunpack.c.l.b16 %v3828
    %v3916 = vunpack.c.h.b16 %v3828
    %v3917 = vunpack.c.l.b16 %v3829
    %v3918 = vunpack.c.h.b16 %v3829
    %v3919 = vunpack.c.l.b16 %v3830
    %v3920 = vunpack.c.h.b16 %v3830
    %v3921 = vunpack.c.l.b16 %v3831
    %v3922 = vunpack.c.h.b16 %v3831
    %v3923 = vunpack.c.l.b16 %v3832
    %v3924 = vunpack.c.h.b16 %v3832
    %v3925 = vunpack.c.l.b16 %v3833
    %v3926 = vunpack.c.h.b16 %v3833
    %v3927 = vunpack.c.l.b16 %v3834
    %v3928 = vunpack.c.h.b16 %v3834
    %v3929 = vunpack.c.l.b16 %v3835
    %v3930 = vunpack.c.h.b16 %v3835
    %v3931 = vunpack.c.l.b16 %v3836
    %v3932 = vunpack.c.h.b16 %v3836
    %v3933 = vpack.c.b16 %v3873, %v3869
    %v3934 = vpack.c.b16 %v3874, %v3870
    %v3935 = vpack.c.b16 %v3875, %v3871
    %v3936 = vpack.c.b16 %v3876, %v3872
    %v3937 = vpack.c.b16 %v3881, %v3877
    %v3938 = vpack.c.b16 %v3882, %v3878
    %v3939 = vpack.c.b16 %v3883, %v3879
    %v3940 = vpack.c.b16 %v3884, %v3880
    %v3941 = vpack.c.b16 %v3889, %v3885
    %v3942 = vpack.c.b16 %v3890, %v3886
    %v3943 = vpack.c.b16 %v3891, %v3887
    %v3944 = vpack.c.b16 %v3892, %v3888
    %v3945 = vpack.c.b16 %v3897, %v3893
    %v3946 = vpack.c.b16 %v3898, %v3894
    %v3947 = vpack.c.b16 %v3899, %v3895
    %v3948 = vpack.c.b16 %v3900, %v3896
    %v3949 = vpack.c.b16 %v3905, %v3901
    %v3950 = vpack.c.b16 %v3906, %v3902
    %v3951 = vpack.c.b16 %v3907, %v3903
    %v3952 = vpack.c.b16 %v3908, %v3904
    %v3953 = vpack.c.b16 %v3913, %v3909
    %v3954 = vpack.c.b16 %v3914, %v3910
    %v3955 = vpack.c.b16 %v3915, %v3911
    %v3956 = vpack.c.b16 %v3916, %v3912
    %v3957 = vpack.c.b16 %v3921, %v3917
    %v3958 = vpack.c.b16 %v3922, %v3918
    %v3959 = vpack.c.b16 %v3923, %v3919
    %v3960 = vpack.c.b16 %v3924, %v3920
    %v3961 = vpack.c.b16 %v3929, %v3925
    %v3962 = vpack.c.b16 %v3930, %v3926
    %v3963 = vpack.c.b16 %v3931, %v3927
    %v3964 = vpack.c.b16 %v3932, %v3928
    %3997 = vmatprep.subr.bf16.mxu0 %v3934
    %3998 = vmatpush1.bf16.msra.mxu0 %v3933
    %3999 = vmatprep.subr.bf16.mxu0 %v3938
    %4000 = vmatpush1.bf16.msra.mxu0 %v3937
    %4001 = vmatprep.subr.bf16.mxu0 %v3942
    %4002 = vmatpush1.bf16.msra.mxu0 %v3941
    %4003 = vmatprep.subr.bf16.mxu0 %v3946
    %4004 = vmatpush1.bf16.msra.mxu0 %v3945
    %4005 = vmatprep.subr.bf16.mxu0 %v3950
    %4006 = vmatpush1.bf16.msra.mxu0 %v3949
    %4007 = vmatprep.subr.bf16.mxu0 %v3954
    %4008 = vmatpush1.bf16.msra.mxu0 %v3953
    %4009 = vmatprep.subr.bf16.mxu0 %v3958
    %4010 = vmatpush1.bf16.msra.mxu0 %v3957
    %4011 = vmatprep.subr.bf16.mxu0 %v3962
    %4012 = vmatpush1.bf16.msra.mxu0 %v3961
    %4013 = vmatprep.subr.bf16.mxu0 0
    %4014 = vmatpush1.bf16.msra.mxu0 0
    %4015 = vmatprep.subr.bf16.mxu0 0
    %4016 = vmatpush1.bf16.msra.mxu0 0
    %4017 = vmatprep.subr.bf16.mxu0 0
    %4018 = vmatpush1.bf16.msra.mxu0 0
    %4019 = vmatprep.subr.bf16.mxu0 0
    %4020 = vmatpush1.bf16.msra.mxu0 0
    %4021 = vmatprep.subr.bf16.mxu0 0
    %4022 = vmatpush1.bf16.msra.mxu0 0
    %4023 = vmatprep.subr.bf16.mxu0 0
    %4024 = vmatpush1.bf16.msra.mxu0 0
    %4025 = vmatprep.subr.bf16.mxu0 0
    %4026 = vmatpush1.bf16.msra.mxu0 0
    %4027 = vmatprep.subr.bf16.mxu0 0
    %4028 = vmatpush1.bf16.msra.mxu0 0
    %4029 = vmatprep.mubr.bf16.mxu0 0
    %4030 = vmatmul.mubr.bf16.gmra.mrb[0].mxu0 0
    %v4031 = vpop.f32.mrb[0].mxu0
    %v4032 = vadd.f32 0.0, %v4031
    %v4033 = vpop.f32.mrb[0].mxu0
    %v4034 = vadd.f32 0.0, %v4033
    %v4035 = vpop.f32.mrb[0].mxu0
    %v4036 = vadd.f32 0.0, %v4035
    %v4037 = vpop.f32.mrb[0].mxu0
    %v4038 = vadd.f32 0.0, %v4037
    %4039 = vdwg.mxu0
    %4040 = vmatprep.subr.bf16.mxu0 %v3936
    %4041 = vmatpush1.bf16.msra.mxu0 %v3935
    %4042 = vmatprep.subr.bf16.mxu0 %v3940
    %4043 = vmatpush1.bf16.msra.mxu0 %v3939
    %4044 = vmatprep.subr.bf16.mxu0 %v3944
    %4045 = vmatpush1.bf16.msra.mxu0 %v3943
    %4046 = vmatprep.subr.bf16.mxu0 %v3948
    %4047 = vmatpush1.bf16.msra.mxu0 %v3947
    %4048 = vmatprep.subr.bf16.mxu0 %v3952
    %4049 = vmatpush1.bf16.msra.mxu0 %v3951
    %4050 = vmatprep.subr.bf16.mxu0 %v3956
    %4051 = vmatpush1.bf16.msra.mxu0 %v3955
    %4052 = vmatprep.subr.bf16.mxu0 %v3960
    %4053 = vmatpush1.bf16.msra.mxu0 %v3959
    %4054 = vmatprep.subr.bf16.mxu0 %v3964
    %4055 = vmatpush1.bf16.msra.mxu0 %v3963
    %4056 = vmatprep.subr.bf16.mxu0 0
    %4057 = vmatpush1.bf16.msra.mxu0 0
    %4058 = vmatprep.subr.bf16.mxu0 0
    %4059 = vmatpush1.bf16.msra.mxu0 0
    %4060 = vmatprep.subr.bf16.mxu0 0
    %4061 = vmatpush1.bf16.msra.mxu0 0
    %4062 = vmatprep.subr.bf16.mxu0 0
    %4063 = vmatpush1.bf16.msra.mxu0 0
    %4064 = vmatprep.subr.bf16.mxu0 0
    %4065 = vmatpush1.bf16.msra.mxu0 0
    %4066 = vmatprep.subr.bf16.mxu0 0
    %4067 = vmatpush1.bf16.msra.mxu0 0
    %4068 = vmatprep.subr.bf16.mxu0 0
    %4069 = vmatpush1.bf16.msra.mxu0 0
    %4070 = vmatprep.subr.bf16.mxu0 0
    %4071 = vmatpush1.bf16.msra.mxu0 0
    %4072 = vmatprep.mubr.bf16.mxu0 0
    %4073 = vmatmul.mubr.bf16.gmra.mrb[0].mxu0 0
    %v4074 = vpop.f32.mrb[0].mxu0
    %v4075 = vadd.f32 0.0, %v4074
    %v4076 = vpop.f32.mrb[0].mxu0
    %v4077 = vadd.f32 0.0, %v4076
    %v4078 = vpop.f32.mrb[0].mxu0
    %v4079 = vadd.f32 0.0, %v4078
    %v4080 = vpop.f32.mrb[0].mxu0
    %v4081 = vadd.f32 0.0, %v4080
    %4082 = vdwg.mxu0
    %v4083 = vadd.f32 %v3797, %v4032
    %v4084 = vadd.f32 %v3798, %v4034
    %v4085 = vadd.f32 %v3799, %v4075
    %v4086 = vadd.f32 %v3800, %v4077
    %v4087 = vadd.f32 %v3801, %v4036
    %v4088 = vadd.f32 %v3802, %v4038
    %v4089 = vadd.f32 %v3803, %v4079
    %v4090 = vadd.f32 %v3804, %v4081
    %v4091 = vxor.u32 %v4083, 2147483648
    %v4092 = vxor.u32 %v4087, 2147483648
    %v4093 = vmul.f32 %v4091, 1.442695
    %v4094 = vpow.pop %v4093
    %v4095 = vmul.f32 %v4092, 1.442695
    %v4096 = vpow.pop %v4095
    %v4097 = vadd.f32 %v4094, 1.0
    %v4098 = vadd.f32 %v4096, 1.0
    %v4099 = vrcp.pop %v4097
    %v4100 = vmul.f32 1.0, %v4099
    %v4101 = vrcp.pop %v4098
    %v4102 = vmul.f32 1.0, %v4101
    %v4103 = vxor.u32 %v4084, 2147483648
    %v4104 = vxor.u32 %v4088, 2147483648
    %v4105 = vmul.f32 %v4103, 1.442695
    %v4106 = vpow.pop %v4105
    %v4107 = vmul.f32 %v4104, 1.442695
    %v4108 = vpow.pop %v4107
    %v4109 = vadd.f32 %v4106, 1.0
    %v4110 = vadd.f32 %v4108, 1.0
    %v4111 = vrcp.pop %v4109
    %v4112 = vmul.f32 1.0, %v4111
    %v4113 = vrcp.pop %v4110
    %v4114 = vmul.f32 1.0, %v4113
    %v4115 = vtanh.pop %v4085
    %v4116 = vtanh.pop %v4089
    %v4117 = vxor.u32 %v4086, 2147483648
    %v4118 = vxor.u32 %v4090, 2147483648
    %v4119 = vmul.f32 %v4117, 1.442695
    %v4120 = vpow.pop %v4119
    %v4121 = vmul.f32 %v4118, 1.442695
    %v4122 = vpow.pop %v4121
    %v4123 = vadd.f32 %v4120, 1.0
    %v4124 = vadd.f32 %v4122, 1.0
    %v4125 = vrcp.pop %v4123
    %v4126 = vmul.f32 1.0, %v4125
    %v4127 = vrcp.pop %v4124
    %v4128 = vmul.f32 1.0, %v4127
    %v4129 = vmul.f32 %v4112, 0.0
    %v4130 = vmul.f32 %v4114, 0.0
    %v4131 = vmul.f32 %v4100, %v4115
    %v4132 = vmul.f32 %v4102, %v4116
    %v4133 = vadd.f32 %v4129, %v4131
    %v4134 = vadd.f32 %v4130, %v4132
    %v4135 = vtanh.pop %v4133
    %v4136 = vtanh.pop %v4134
    %v4137 = vmul.f32 %v4126, %v4135
    %v4138 = vmul.f32 %v4128, %v4136
    %v4139 = vpack.c.bf16 %v4138, %v4137
    %4140 = vst [vmem:[#allocation2] sm:$0xff] %v4139
    %v4141 = vld [vmem:[%s863] sm:$0xff]
    %v4142 = vld [vmem:[%s863 + $0x8] sm:$0xff]
    %v4143 = vld [vmem:[%s863 + $0x10] sm:$0xff]
    %v4144 = vld [vmem:[%s863 + $0x18] sm:$0xff]
    %v4145 = vld [vmem:[%s863 + $0x20] sm:$0xff]
    %v4146 = vld [vmem:[%s863 + $0x28] sm:$0xff]
    %v4147 = vld [vmem:[%s863 + $0x30] sm:$0xff]
    %v4148 = vld [vmem:[%s863 + $0x38] sm:$0xff]
    %v4149 = vld [vmem:[#allocation12] sm:$0xff]
    %v4150 = vld [vmem:[#allocation12 + $0x8] sm:$0xff]
    %v4151 = vld [vmem:[#allocation12 + $0x10] sm:$0xff]
    %v4152 = vld [vmem:[#allocation12 + $0x18] sm:$0xff]
    %v4153 = vld [vmem:[#allocation12 + $0x20] sm:$0xff]
    %v4154 = vld [vmem:[#allocation12 + $0x28] sm:$0xff]
    %v4155 = vld [vmem:[#allocation12 + $0x30] sm:$0xff]
    %v4156 = vld [vmem:[#allocation12 + $0x38] sm:$0xff]
    %v4157 = vld [vmem:[#allocation12 + $0x40] sm:$0xff]
    %v4158 = vld [vmem:[#allocation12 + $0x48] sm:$0xff]
    %v4159 = vld [vmem:[#allocation12 + $0x50] sm:$0xff]
    %v4160 = vld [vmem:[#allocation12 + $0x58] sm:$0xff]
    %v4161 = vld [vmem:[#allocation12 + $0x60] sm:$0xff]
    %v4162 = vld [vmem:[#allocation12 + $0x68] sm:$0xff]
    %v4163 = vld [vmem:[#allocation12 + $0x70] sm:$0xff]
    %v4164 = vld [vmem:[#allocation12 + $0x78] sm:$0xff]
    %v4165 = vld [vmem:[#allocation12 + $0x80] sm:$0xff]
    %v4166 = vld [vmem:[#allocation12 + $0x88] sm:$0xff]
    %v4167 = vld [vmem:[#allocation12 + $0x90] sm:$0xff]
    %v4168 = vld [vmem:[#allocation12 + $0x98] sm:$0xff]
    %v4169 = vld [vmem:[#allocation12 + $0xa0] sm:$0xff]
    %v4170 = vld [vmem:[#allocation12 + $0xa8] sm:$0xff]
    %v4171 = vld [vmem:[#allocation12 + $0xb0] sm:$0xff]
    %v4172 = vld [vmem:[#allocation12 + $0xb8] sm:$0xff]
    %v4173 = vld [vmem:[#allocation12 + $0xc0] sm:$0xff]
    %v4174 = vld [vmem:[#allocation12 + $0xc8] sm:$0xff]
    %v4175 = vld [vmem:[#allocation12 + $0xd0] sm:$0xff]
    %v4176 = vld [vmem:[#allocation12 + $0xd8] sm:$0xff]
    %v4177 = vld [vmem:[#allocation12 + $0xe0] sm:$0xff]
    %v4178 = vld [vmem:[#allocation12 + $0xe8] sm:$0xff]
    %v4179 = vld [vmem:[#allocation12 + $0xf0] sm:$0xff]
    %v4180 = vld [vmem:[#allocation12 + $0xf8] sm:$0xff]
    %v4213 = vunpack.c.l.b16 %v4149
    %v4214 = vunpack.c.h.b16 %v4149
    %v4215 = vunpack.c.l.b16 %v4150
    %v4216 = vunpack.c.h.b16 %v4150
    %v4217 = vunpack.c.l.b16 %v4151
    %v4218 = vunpack.c.h.b16 %v4151
    %v4219 = vunpack.c.l.b16 %v4152
    %v4220 = vunpack.c.h.b16 %v4152
    %v4221 = vunpack.c.l.b16 %v4153
    %v4222 = vunpack.c.h.b16 %v4153
    %v4223 = vunpack.c.l.b16 %v4154
    %v4224 = vunpack.c.h.b16 %v4154
    %v4225 = vunpack.c.l.b16 %v4155
    %v4226 = vunpack.c.h.b16 %v4155
    %v4227 = vunpack.c.l.b16 %v4156
    %v4228 = vunpack.c.h.b16 %v4156
    %v4229 = vunpack.c.l.b16 %v4157
    %v4230 = vunpack.c.h.b16 %v4157
    %v4231 = vunpack.c.l.b16 %v4158
    %v4232 = vunpack.c.h.b16 %v4158
    %v4233 = vunpack.c.l.b16 %v4159
    %v4234 = vunpack.c.h.b16 %v4159
    %v4235 = vunpack.c.l.b16 %v4160
    %v4236 = vunpack.c.h.b16 %v4160
    %v4237 = vunpack.c.l.b16 %v4161
    %v4238 = vunpack.c.h.b16 %v4161
    %v4239 = vunpack.c.l.b16 %v4162
    %v4240 = vunpack.c.h.b16 %v4162
    %v4241 = vunpack.c.l.b16 %v4163
    %v4242 = vunpack.c.h.b16 %v4163
    %v4243 = vunpack.c.l.b16 %v4164
    %v4244 = vunpack.c.h.b16 %v4164
    %v4245 = vunpack.c.l.b16 %v4165
    %v4246 = vunpack.c.h.b16 %v4165
    %v4247 = vunpack.c.l.b16 %v4166
    %v4248 = vunpack.c.h.b16 %v4166
    %v4249 = vunpack.c.l.b16 %v4167
    %v4250 = vunpack.c.h.b16 %v4167
    %v4251 = vunpack.c.l.b16 %v4168
    %v4252 = vunpack.c.h.b16 %v4168
    %v4253 = vunpack.c.l.b16 %v4169
    %v4254 = vunpack.c.h.b16 %v4169
    %v4255 = vunpack.c.l.b16 %v4170
    %v4256 = vunpack.c.h.b16 %v4170
    %v4257 = vunpack.c.l.b16 %v4171
    %v4258 = vunpack.c.h.b16 %v4171
    %v4259 = vunpack.c.l.b16 %v4172
    %v4260 = vunpack.c.h.b16 %v4172
    %v4261 = vunpack.c.l.b16 %v4173
    %v4262 = vunpack.c.h.b16 %v4173
    %v4263 = vunpack.c.l.b16 %v4174
    %v4264 = vunpack.c.h.b16 %v4174
    %v4265 = vunpack.c.l.b16 %v4175
    %v4266 = vunpack.c.h.b16 %v4175
    %v4267 = vunpack.c.l.b16 %v4176
    %v4268 = vunpack.c.h.b16 %v4176
    %v4269 = vunpack.c.l.b16 %v4177
    %v4270 = vunpack.c.h.b16 %v4177
    %v4271 = vunpack.c.l.b16 %v4178
    %v4272 = vunpack.c.h.b16 %v4178
    %v4273 = vunpack.c.l.b16 %v4179
    %v4274 = vunpack.c.h.b16 %v4179
    %v4275 = vunpack.c.l.b16 %v4180
    %v4276 = vunpack.c.h.b16 %v4180
    %v4277 = vpack.c.b16 %v4217, %v4213
    %v4278 = vpack.c.b16 %v4218, %v4214
    %v4279 = vpack.c.b16 %v4219, %v4215
    %v4280 = vpack.c.b16 %v4220, %v4216
    %v4281 = vpack.c.b16 %v4225, %v4221
    %v4282 = vpack.c.b16 %v4226, %v4222
    %v4283 = vpack.c.b16 %v4227, %v4223
    %v4284 = vpack.c.b16 %v4228, %v4224
    %v4285 = vpack.c.b16 %v4233, %v4229
    %v4286 = vpack.c.b16 %v4234, %v4230
    %v4287 = vpack.c.b16 %v4235, %v4231
    %v4288 = vpack.c.b16 %v4236, %v4232
    %v4289 = vpack.c.b16 %v4241, %v4237
    %v4290 = vpack.c.b16 %v4242, %v4238
    %v4291 = vpack.c.b16 %v4243, %v4239
    %v4292 = vpack.c.b16 %v4244, %v4240
    %v4293 = vpack.c.b16 %v4249, %v4245
    %v4294 = vpack.c.b16 %v4250, %v4246
    %v4295 = vpack.c.b16 %v4251, %v4247
    %v4296 = vpack.c.b16 %v4252, %v4248
    %v4297 = vpack.c.b16 %v4257, %v4253
    %v4298 = vpack.c.b16 %v4258, %v4254
    %v4299 = vpack.c.b16 %v4259, %v4255
    %v4300 = vpack.c.b16 %v4260, %v4256
    %v4301 = vpack.c.b16 %v4265, %v4261
    %v4302 = vpack.c.b16 %v4266, %v4262
    %v4303 = vpack.c.b16 %v4267, %v4263
    %v4304 = vpack.c.b16 %v4268, %v4264
    %v4305 = vpack.c.b16 %v4273, %v4269
    %v4306 = vpack.c.b16 %v4274, %v4270
    %v4307 = vpack.c.b16 %v4275, %v4271
    %v4308 = vpack.c.b16 %v4276, %v4272
    %4341 = vmatprep.subr.bf16.mxu0 %v4278
    %4342 = vmatpush1.bf16.msra.mxu0 %v4277
    %4343 = vmatprep.subr.bf16.mxu0 %v4282
    %4344 = vmatpush1.bf16.msra.mxu0 %v4281
    %4345 = vmatprep.subr.bf16.mxu0 %v4286
    %4346 = vmatpush1.bf16.msra.mxu0 %v4285
    %4347 = vmatprep.subr.bf16.mxu0 %v4290
    %4348 = vmatpush1.bf16.msra.mxu0 %v4289
    %4349 = vmatprep.subr.bf16.mxu0 %v4294
    %4350 = vmatpush1.bf16.msra.mxu0 %v4293
    %4351 = vmatprep.subr.bf16.mxu0 %v4298
    %4352 = vmatpush1.bf16.msra.mxu0 %v4297
    %4353 = vmatprep.subr.bf16.mxu0 %v4302
    %4354 = vmatpush1.bf16.msra.mxu0 %v4301
    %4355 = vmatprep.subr.bf16.mxu0 %v4306
    %4356 = vmatpush1.bf16.msra.mxu0 %v4305
    %4357 = vmatprep.subr.bf16.mxu0 0
    %4358 = vmatpush1.bf16.msra.mxu0 0
    %4359 = vmatprep.subr.bf16.mxu0 0
    %4360 = vmatpush1.bf16.msra.mxu0 0
    %4361 = vmatprep.subr.bf16.mxu0 0
    %4362 = vmatpush1.bf16.msra.mxu0 0
    %4363 = vmatprep.subr.bf16.mxu0 0
    %4364 = vmatpush1.bf16.msra.mxu0 0
    %4365 = vmatprep.subr.bf16.mxu0 0
    %4366 = vmatpush1.bf16.msra.mxu0 0
    %4367 = vmatprep.subr.bf16.mxu0 0
    %4368 = vmatpush1.bf16.msra.mxu0 0
    %4369 = vmatprep.subr.bf16.mxu0 0
    %4370 = vmatpush1.bf16.msra.mxu0 0
    %4371 = vmatprep.subr.bf16.mxu0 0
    %4372 = vmatpush1.bf16.msra.mxu0 0
    %4373 = vmatprep.mubr.bf16.mxu0 0
    %4374 = vmatmul.mubr.bf16.gmra.mrb[0].mxu0 %v4139
    %v4375 = vpop.f32.mrb[0].mxu0
    %v4376 = vadd.f32 0.0, %v4375
    %v4377 = vpop.f32.mrb[0].mxu0
    %v4378 = vadd.f32 0.0, %v4377
    %v4379 = vpop.f32.mrb[0].mxu0
    %v4380 = vadd.f32 0.0, %v4379
    %v4381 = vpop.f32.mrb[0].mxu0
    %v4382 = vadd.f32 0.0, %v4381
    %4383 = vdwg.mxu0
    %4384 = vmatprep.subr.bf16.mxu0 %v4280
    %4385 = vmatpush1.bf16.msra.mxu0 %v4279
    %4386 = vmatprep.subr.bf16.mxu0 %v4284
    %4387 = vmatpush1.bf16.msra.mxu0 %v4283
    %4388 = vmatprep.subr.bf16.mxu0 %v4288
    %4389 = vmatpush1.bf16.msra.mxu0 %v4287
    %4390 = vmatprep.subr.bf16.mxu0 %v4292
    %4391 = vmatpush1.bf16.msra.mxu0 %v4291
    %4392 = vmatprep.subr.bf16.mxu0 %v4296
    %4393 = vmatpush1.bf16.msra.mxu0 %v4295
    %4394 = vmatprep.subr.bf16.mxu0 %v4300
    %4395 = vmatpush1.bf16.msra.mxu0 %v4299
    %4396 = vmatprep.subr.bf16.mxu0 %v4304
    %4397 = vmatpush1.bf16.msra.mxu0 %v4303
    %4398 = vmatprep.subr.bf16.mxu0 %v4308
    %4399 = vmatpush1.bf16.msra.mxu0 %v4307
    %4400 = vmatprep.subr.bf16.mxu0 0
    %4401 = vmatpush1.bf16.msra.mxu0 0
    %4402 = vmatprep.subr.bf16.mxu0 0
    %4403 = vmatpush1.bf16.msra.mxu0 0
    %4404 = vmatprep.subr.bf16.mxu0 0
    %4405 = vmatpush1.bf16.msra.mxu0 0
    %4406 = vmatprep.subr.bf16.mxu0 0
    %4407 = vmatpush1.bf16.msra.mxu0 0
    %4408 = vmatprep.subr.bf16.mxu0 0
    %4409 = vmatpush1.bf16.msra.mxu0 0
    %4410 = vmatprep.subr.bf16.mxu0 0
    %4411 = vmatpush1.bf16.msra.mxu0 0
    %4412 = vmatprep.subr.bf16.mxu0 0
    %4413 = vmatpush1.bf16.msra.mxu0 0
    %4414 = vmatprep.subr.bf16.mxu0 0
    %4415 = vmatpush1.bf16.msra.mxu0 0
    %4416 = vmatprep.mubr.bf16.mxu0 0
    %4417 = vmatmul.mubr.bf16.gmra.mrb[0].mxu0 %v4139
    %v4418 = vpop.f32.mrb[0].mxu0
    %v4419 = vadd.f32 0.0, %v4418
    %v4420 = vpop.f32.mrb[0].mxu0
    %v4421 = vadd.f32 0.0, %v4420
    %v4422 = vpop.f32.mrb[0].mxu0
    %v4423 = vadd.f32 0.0, %v4422
    %v4424 = vpop.f32.mrb[0].mxu0
    %v4425 = vadd.f32 0.0, %v4424
    %4426 = vdwg.mxu0
    %v4427 = vadd.f32 %v4141, %v4376
    %v4428 = vadd.f32 %v4142, %v4378
    %v4429 = vadd.f32 %v4143, %v4419
    %v4430 = vadd.f32 %v4144, %v4421
    %v4431 = vadd.f32 %v4145, %v4380
    %v4432 = vadd.f32 %v4146, %v4382
    %v4433 = vadd.f32 %v4147, %v4423
    %v4434 = vadd.f32 %v4148, %v4425
    %v4435 = vxor.u32 %v4427, 2147483648
    %v4436 = vxor.u32 %v4431, 2147483648
    %v4437 = vmul.f32 %v4435, 1.442695
    %v4438 = vpow.pop %v4437
    %v4439 = vmul.f32 %v4436, 1.442695
    %v4440 = vpow.pop %v4439
    %v4441 = vadd.f32 %v4438, 1.0
    %v4442 = vadd.f32 %v4440, 1.0
    %v4443 = vrcp.pop %v4441
    %v4444 = vmul.f32 1.0, %v4443
    %v4445 = vrcp.pop %v4442
    %v4446 = vmul.f32 1.0, %v4445
    %v4447 = vxor.u32 %v4428, 2147483648
    %v4448 = vxor.u32 %v4432, 2147483648
    %v4449 = vmul.f32 %v4447, 1.442695
    %v4450 = vpow.pop %v4449
    %v4451 = vmul.f32 %v4448, 1.442695
    %v4452 = vpow.pop %v4451
    %v4453 = vadd.f32 %v4450, 1.0
    %v4454 = vadd.f32 %v4452, 1.0
    %v4455 = vrcp.pop %v4453
    %v4456 = vmul.f32 1.0, %v4455
    %v4457 = vrcp.pop %v4454
    %v4458 = vmul.f32 1.0, %v4457
    %v4459 = vtanh.pop %v4429
    %v4460 = vtanh.pop %v4433
    %v4461 = vxor.u32 %v4430, 2147483648
    %v4462 = vxor.u32 %v4434, 2147483648
    %v4463 = vmul.f32 %v4461, 1.442695
    %v4464 = vpow.pop %v4463
    %v4465 = vmul.f32 %v4462, 1.442695
    %v4466 = vpow.pop %v4465
    %v4467 = vadd.f32 %v4464, 1.0
    %v4468 = vadd.f32 %v4466, 1.0
    %v4469 = vrcp.pop %v4467
    %v4470 = vmul.f32 1.0, %v4469
    %v4471 = vrcp.pop %v4468
    %v4472 = vmul.f32 1.0, %v4471
    %v4473 = vmul.f32 %v4456, %v4133
    %v4474 = vmul.f32 %v4458, %v4134
    %v4475 = vmul.f32 %v4444, %v4459
    %v4476 = vmul.f32 %v4446, %v4460
    %v4477 = vadd.f32 %v4473, %v4475
    %v4478 = vadd.f32 %v4474, %v4476
    %v4479 = vtanh.pop %v4477
    %v4480 = vtanh.pop %v4478
    %v4481 = vmul.f32 %v4470, %v4479
    %v4482 = vmul.f32 %v4472, %v4480
    %v4483 = vpack.c.bf16 %v4482, %v4481
    %4484 = vst [vmem:[%s1207] sm:$0xff] %v4483
    %v4485 = vld [vmem:[%s1209] sm:$0xff]
    %v4486 = vld [vmem:[%s1209 + $0x8] sm:$0xff]
    %v4487 = vld [vmem:[%s1209 + $0x10] sm:$0xff]
    %v4488 = vld [vmem:[%s1209 + $0x18] sm:$0xff]
    %v4489 = vld [vmem:[%s1209 + $0x20] sm:$0xff]
    %v4490 = vld [vmem:[%s1209 + $0x28] sm:$0xff]
    %v4491 = vld [vmem:[%s1209 + $0x30] sm:$0xff]
    %v4492 = vld [vmem:[%s1209 + $0x38] sm:$0xff]
    %v4493 = vld [vmem:[#allocation12] sm:$0xff]
    %v4494 = vld [vmem:[#allocation12 + $0x8] sm:$0xff]
    %v4495 = vld [vmem:[#allocation12 + $0x10] sm:$0xff]
    %v4496 = vld [vmem:[#allocation12 + $0x18] sm:$0xff]
    %v4497 = vld [vmem:[#allocation12 + $0x20] sm:$0xff]
    %v4498 = vld [vmem:[#allocation12 + $0x28] sm:$0xff]
    %v4499 = vld [vmem:[#allocation12 + $0x30] sm:$0xff]
    %v4500 = vld [vmem:[#allocation12 + $0x38] sm:$0xff]
    %v4501 = vld [vmem:[#allocation12 + $0x40] sm:$0xff]
    %v4502 = vld [vmem:[#allocation12 + $0x48] sm:$0xff]
    %v4503 = vld [vmem:[#allocation12 + $0x50] sm:$0xff]
    %v4504 = vld [vmem:[#allocation12 + $0x58] sm:$0xff]
    %v4505 = vld [vmem:[#allocation12 + $0x60] sm:$0xff]
    %v4506 = vld [vmem:[#allocation12 + $0x68] sm:$0xff]
    %v4507 = vld [vmem:[#allocation12 + $0x70] sm:$0xff]
    %v4508 = vld [vmem:[#allocation12 + $0x78] sm:$0xff]
    %v4509 = vld [vmem:[#allocation12 + $0x80] sm:$0xff]
    %v4510 = vld [vmem:[#allocation12 + $0x88] sm:$0xff]
    %v4511 = vld [vmem:[#allocation12 + $0x90] sm:$0xff]
    %v4512 = vld [vmem:[#allocation12 + $0x98] sm:$0xff]
    %v4513 = vld [vmem:[#allocation12 + $0xa0] sm:$0xff]
    %v4514 = vld [vmem:[#allocation12 + $0xa8] sm:$0xff]
    %v4515 = vld [vmem:[#allocation12 + $0xb0] sm:$0xff]
    %v4516 = vld [vmem:[#allocation12 + $0xb8] sm:$0xff]
    %v4517 = vld [vmem:[#allocation12 + $0xc0] sm:$0xff]
    %v4518 = vld [vmem:[#allocation12 + $0xc8] sm:$0xff]
    %v4519 = vld [vmem:[#allocation12 + $0xd0] sm:$0xff]
    %v4520 = vld [vmem:[#allocation12 + $0xd8] sm:$0xff]
    %v4521 = vld [vmem:[#allocation12 + $0xe0] sm:$0xff]
    %v4522 = vld [vmem:[#allocation12 + $0xe8] sm:$0xff]
    %v4523 = vld [vmem:[#allocation12 + $0xf0] sm:$0xff]
    %v4524 = vld [vmem:[#allocation12 + $0xf8] sm:$0xff]
    %v4557 = vunpack.c.l.b16 %v4493
    %v4558 = vunpack.c.h.b16 %v4493
    %v4559 = vunpack.c.l.b16 %v4494
    %v4560 = vunpack.c.h.b16 %v4494
    %v4561 = vunpack.c.l.b16 %v4495
    %v4562 = vunpack.c.h.b16 %v4495
    %v4563 = vunpack.c.l.b16 %v4496
    %v4564 = vunpack.c.h.b16 %v4496
    %v4565 = vunpack.c.l.b16 %v4497
    %v4566 = vunpack.c.h.b16 %v4497
    %v4567 = vunpack.c.l.b16 %v4498
    %v4568 = vunpack.c.h.b16 %v4498
    %v4569 = vunpack.c.l.b16 %v4499
    %v4570 = vunpack.c.h.b16 %v4499
    %v4571 = vunpack.c.l.b16 %v4500
    %v4572 = vunpack.c.h.b16 %v4500
    %v4573 = vunpack.c.l.b16 %v4501
    %v4574 = vunpack.c.h.b16 %v4501
    %v4575 = vunpack.c.l.b16 %v4502
    %v4576 = vunpack.c.h.b16 %v4502
    %v4577 = vunpack.c.l.b16 %v4503
    %v4578 = vunpack.c.h.b16 %v4503
    %v4579 = vunpack.c.l.b16 %v4504
    %v4580 = vunpack.c.h.b16 %v4504
    %v4581 = vunpack.c.l.b16 %v4505
    %v4582 = vunpack.c.h.b16 %v4505
    %v4583 = vunpack.c.l.b16 %v4506
    %v4584 = vunpack.c.h.b16 %v4506
    %v4585 = vunpack.c.l.b16 %v4507
    %v4586 = vunpack.c.h.b16 %v4507
    %v4587 = vunpack.c.l.b16 %v4508
    %v4588 = vunpack.c.h.b16 %v4508
    %v4589 = vunpack.c.l.b16 %v4509
    %v4590 = vunpack.c.h.b16 %v4509
    %v4591 = vunpack.c.l.b16 %v4510
    %v4592 = vunpack.c.h.b16 %v4510
    %v4593 = vunpack.c.l.b16 %v4511
    %v4594 = vunpack.c.h.b16 %v4511
    %v4595 = vunpack.c.l.b16 %v4512
    %v4596 = vunpack.c.h.b16 %v4512
    %v4597 = vunpack.c.l.b16 %v4513
    %v4598 = vunpack.c.h.b16 %v4513
    %v4599 = vunpack.c.l.b16 %v4514
    %v4600 = vunpack.c.h.b16 %v4514
    %v4601 = vunpack.c.l.b16 %v4515
    %v4602 = vunpack.c.h.b16 %v4515
    %v4603 = vunpack.c.l.b16 %v4516
    %v4604 = vunpack.c.h.b16 %v4516
    %v4605 = vunpack.c.l.b16 %v4517
    %v4606 = vunpack.c.h.b16 %v4517
    %v4607 = vunpack.c.l.b16 %v4518
    %v4608 = vunpack.c.h.b16 %v4518
    %v4609 = vunpack.c.l.b16 %v4519
    %v4610 = vunpack.c.h.b16 %v4519
    %v4611 = vunpack.c.l.b16 %v4520
    %v4612 = vunpack.c.h.b16 %v4520
    %v4613 = vunpack.c.l.b16 %v4521
    %v4614 = vunpack.c.h.b16 %v4521
    %v4615 = vunpack.c.l.b16 %v4522
    %v4616 = vunpack.c.h.b16 %v4522
    %v4617 = vunpack.c.l.b16 %v4523
    %v4618 = vunpack.c.h.b16 %v4523
    %v4619 = vunpack.c.l.b16 %v4524
    %v4620 = vunpack.c.h.b16 %v4524
    %v4621 = vpack.c.b16 %v4561, %v4557
    %v4622 = vpack.c.b16 %v4562, %v4558
    %v4623 = vpack.c.b16 %v4563, %v4559
    %v4624 = vpack.c.b16 %v4564, %v4560
    %v4625 = vpack.c.b16 %v4569, %v4565
    %v4626 = vpack.c.b16 %v4570, %v4566
    %v4627 = vpack.c.b16 %v4571, %v4567
    %v4628 = vpack.c.b16 %v4572, %v4568
    %v4629 = vpack.c.b16 %v4577, %v4573
    %v4630 = vpack.c.b16 %v4578, %v4574
    %v4631 = vpack.c.b16 %v4579, %v4575
    %v4632 = vpack.c.b16 %v4580, %v4576
    %v4633 = vpack.c.b16 %v4585, %v4581
    %v4634 = vpack.c.b16 %v4586, %v4582
    %v4635 = vpack.c.b16 %v4587, %v4583
    %v4636 = vpack.c.b16 %v4588, %v4584
    %v4637 = vpack.c.b16 %v4593, %v4589
    %v4638 = vpack.c.b16 %v4594, %v4590
    %v4639 = vpack.c.b16 %v4595, %v4591
    %v4640 = vpack.c.b16 %v4596, %v4592
    %v4641 = vpack.c.b16 %v4601, %v4597
    %v4642 = vpack.c.b16 %v4602, %v4598
    %v4643 = vpack.c.b16 %v4603, %v4599
    %v4644 = vpack.c.b16 %v4604, %v4600
    %v4645 = vpack.c.b16 %v4609, %v4605
    %v4646 = vpack.c.b16 %v4610, %v4606
    %v4647 = vpack.c.b16 %v4611, %v4607
    %v4648 = vpack.c.b16 %v4612, %v4608
    %v4649 = vpack.c.b16 %v4617, %v4613
    %v4650 = vpack.c.b16 %v4618, %v4614
    %v4651 = vpack.c.b16 %v4619, %v4615
    %v4652 = vpack.c.b16 %v4620, %v4616
    %4685 = vmatprep.subr.bf16.mxu0 %v4622
    %4686 = vmatpush1.bf16.msra.mxu0 %v4621
    %4687 = vmatprep.subr.bf16.mxu0 %v4626
    %4688 = vmatpush1.bf16.msra.mxu0 %v4625
    %4689 = vmatprep.subr.bf16.mxu0 %v4630
    %4690 = vmatpush1.bf16.msra.mxu0 %v4629
    %4691 = vmatprep.subr.bf16.mxu0 %v4634
    %4692 = vmatpush1.bf16.msra.mxu0 %v4633
    %4693 = vmatprep.subr.bf16.mxu0 %v4638
    %4694 = vmatpush1.bf16.msra.mxu0 %v4637
    %4695 = vmatprep.subr.bf16.mxu0 %v4642
    %4696 = vmatpush1.bf16.msra.mxu0 %v4641
    %4697 = vmatprep.subr.bf16.mxu0 %v4646
    %4698 = vmatpush1.bf16.msra.mxu0 %v4645
    %4699 = vmatprep.subr.bf16.mxu0 %v4650
    %4700 = vmatpush1.bf16.msra.mxu0 %v4649
    %4701 = vmatprep.subr.bf16.mxu0 0
    %4702 = vmatpush1.bf16.msra.mxu0 0
    %4703 = vmatprep.subr.bf16.mxu0 0
    %4704 = vmatpush1.bf16.msra.mxu0 0
    %4705 = vmatprep.subr.bf16.mxu0 0
    %4706 = vmatpush1.bf16.msra.mxu0 0
    %4707 = vmatprep.subr.bf16.mxu0 0
    %4708 = vmatpush1.bf16.msra.mxu0 0
    %4709 = vmatprep.subr.bf16.mxu0 0
    %4710 = vmatpush1.bf16.msra.mxu0 0
    %4711 = vmatprep.subr.bf16.mxu0 0
    %4712 = vmatpush1.bf16.msra.mxu0 0
    %4713 = vmatprep.subr.bf16.mxu0 0
    %4714 = vmatpush1.bf16.msra.mxu0 0
    %4715 = vmatprep.subr.bf16.mxu0 0
    %4716 = vmatpush1.bf16.msra.mxu0 0
    %4717 = vmatprep.mubr.bf16.mxu0 0
    %4718 = vmatmul.mubr.bf16.gmra.mrb[0].mxu0 %v4483
    %v4719 = vpop.f32.mrb[0].mxu0
    %v4720 = vadd.f32 0.0, %v4719
    %v4721 = vpop.f32.mrb[0].mxu0
    %v4722 = vadd.f32 0.0, %v4721
    %v4723 = vpop.f32.mrb[0].mxu0
    %v4724 = vadd.f32 0.0, %v4723
    %v4725 = vpop.f32.mrb[0].mxu0
    %v4726 = vadd.f32 0.0, %v4725
    %4727 = vdwg.mxu0
    %4728 = vmatprep.subr.bf16.mxu0 %v4624
    %4729 = vmatpush1.bf16.msra.mxu0 %v4623
    %4730 = vmatprep.subr.bf16.mxu0 %v4628
    %4731 = vmatpush1.bf16.msra.mxu0 %v4627
    %4732 = vmatprep.subr.bf16.mxu0 %v4632
    %4733 = vmatpush1.bf16.msra.mxu0 %v4631
    %4734 = vmatprep.subr.bf16.mxu0 %v4636
    %4735 = vmatpush1.bf16.msra.mxu0 %v4635
    %4736 = vmatprep.subr.bf16.mxu0 %v4640
    %4737 = vmatpush1.bf16.msra.mxu0 %v4639
    %4738 = vmatprep.subr.bf16.mxu0 %v4644
    %4739 = vmatpush1.bf16.msra.mxu0 %v4643
    %4740 = vmatprep.subr.bf16.mxu0 %v4648
    %4741 = vmatpush1.bf16.msra.mxu0 %v4647
    %4742 = vmatprep.subr.bf16.mxu0 %v4652
    %4743 = vmatpush1.bf16.msra.mxu0 %v4651
    %4744 = vmatprep.subr.bf16.mxu0 0
    %4745 = vmatpush1.bf16.msra.mxu0 0
    %4746 = vmatprep.subr.bf16.mxu0 0
    %4747 = vmatpush1.bf16.msra.mxu0 0
    %4748 = vmatprep.subr.bf16.mxu0 0
    %4749 = vmatpush1.bf16.msra.mxu0 0
    %4750 = vmatprep.subr.bf16.mxu0 0
    %4751 = vmatpush1.bf16.msra.mxu0 0
    %4752 = vmatprep.subr.bf16.mxu0 0
    %4753 = vmatpush1.bf16.msra.mxu0 0
    %4754 = vmatprep.subr.bf16.mxu0 0
    %4755 = vmatpush1.bf16.msra.mxu0 0
    %4756 = vmatprep.subr.bf16.mxu0 0
    %4757 = vmatpush1.bf16.msra.mxu0 0
    %4758 = vmatprep.subr.bf16.mxu0 0
    %4759 = vmatpush1.bf16.msra.mxu0 0
    %4760 = vmatprep.mubr.bf16.mxu0 0
    %4761 = vmatmul.mubr.bf16.gmra.mrb[0].mxu0 %v4483
    %v4762 = vpop.f32.mrb[0].mxu0
    %v4763 = vadd.f32 0.0, %v4762
    %v4764 = vpop.f32.mrb[0].mxu0
    %v4765 = vadd.f32 0.0, %v4764
    %v4766 = vpop.f32.mrb[0].mxu0
    %v4767 = vadd.f32 0.0, %v4766
    %v4768 = vpop.f32.mrb[0].mxu0
    %v4769 = vadd.f32 0.0, %v4768
    %4770 = vdwg.mxu0
    %v4771 = vadd.f32 %v4485, %v4720
    %v4772 = vadd.f32 %v4486, %v4722
    %v4773 = vadd.f32 %v4487, %v4763
    %v4774 = vadd.f32 %v4488, %v4765
    %v4775 = vadd.f32 %v4489, %v4724
    %v4776 = vadd.f32 %v4490, %v4726
    %v4777 = vadd.f32 %v4491, %v4767
    %v4778 = vadd.f32 %v4492, %v4769
    %v4779 = vxor.u32 %v4771, 2147483648
    %v4780 = vxor.u32 %v4775, 2147483648
    %v4781 = vmul.f32 %v4779, 1.442695
    %v4782 = vpow.pop %v4781
    %v4783 = vmul.f32 %v4780, 1.442695
    %v4784 = vpow.pop %v4783
    %v4785 = vadd.f32 %v4782, 1.0
    %v4786 = vadd.f32 %v4784, 1.0
    %v4787 = vrcp.pop %v4785
    %v4788 = vmul.f32 1.0, %v4787
    %v4789 = vrcp.pop %v4786
    %v4790 = vmul.f32 1.0, %v4789
    %v4791 = vxor.u32 %v4772, 2147483648
    %v4792 = vxor.u32 %v4776, 2147483648
    %v4793 = vmul.f32 %v4791, 1.442695
    %v4794 = vpow.pop %v4793
    %v4795 = vmul.f32 %v4792, 1.442695
    %v4796 = vpow.pop %v4795
    %v4797 = vadd.f32 %v4794, 1.0
    %v4798 = vadd.f32 %v4796, 1.0
    %v4799 = vrcp.pop %v4797
    %v4800 = vmul.f32 1.0, %v4799
    %v4801 = vrcp.pop %v4798
    %v4802 = vmul.f32 1.0, %v4801
    %v4803 = vtanh.pop %v4773
    %v4804 = vtanh.pop %v4777
    %v4805 = vxor.u32 %v4774, 2147483648
    %v4806 = vxor.u32 %v4778, 2147483648
    %v4807 = vmul.f32 %v4805, 1.442695
    %v4808 = vpow.pop %v4807
    %v4809 = vmul.f32 %v4806, 1.442695
    %v4810 = vpow.pop %v4809
    %v4811 = vadd.f32 %v4808, 1.0
    %v4812 = vadd.f32 %v4810, 1.0
    %v4813 = vrcp.pop %v4811
    %v4814 = vmul.f32 1.0, %v4813
    %v4815 = vrcp.pop %v4812
    %v4816 = vmul.f32 1.0, %v4815
    %v4817 = vmul.f32 %v4800, %v4477
    %v4818 = vmul.f32 %v4802, %v4478
    %v4819 = vmul.f32 %v4788, %v4803
    %v4820 = vmul.f32 %v4790, %v4804
    %v4821 = vadd.f32 %v4817, %v4819
    %v4822 = vadd.f32 %v4818, %v4820
    %v4823 = vtanh.pop %v4821
    %v4824 = vtanh.pop %v4822
    %v4825 = vmul.f32 %v4814, %v4823
    %v4826 = vmul.f32 %v4816, %v4824
    %v4827 = vpack.c.bf16 %v4826, %v4825
    %4828 = vst [vmem:[%s1553] sm:$0xff] %v4827
    %v4829 = vld [vmem:[%s1555] sm:$0xff]
    %v4830 = vld [vmem:[%s1555 + $0x8] sm:$0xff]
    %v4831 = vld [vmem:[%s1555 + $0x10] sm:$0xff]
    %v4832 = vld [vmem:[%s1555 + $0x18] sm:$0xff]
    %v4833 = vld [vmem:[%s1555 + $0x20] sm:$0xff]
    %v4834 = vld [vmem:[%s1555 + $0x28] sm:$0xff]
    %v4835 = vld [vmem:[%s1555 + $0x30] sm:$0xff]
    %v4836 = vld [vmem:[%s1555 + $0x38] sm:$0xff]
    %v4837 = vld [vmem:[#allocation12] sm:$0xff]
    %v4838 = vld [vmem:[#allocation12 + $0x8] sm:$0xff]
    %v4839 = vld [vmem:[#allocation12 + $0x10] sm:$0xff]
    %v4840 = vld [vmem:[#allocation12 + $0x18] sm:$0xff]
    %v4841 = vld [vmem:[#allocation12 + $0x20] sm:$0xff]
    %v4842 = vld [vmem:[#allocation12 + $0x28] sm:$0xff]
    %v4843 = vld [vmem:[#allocation12 + $0x30] sm:$0xff]
    %v4844 = vld [vmem:[#allocation12 + $0x38] sm:$0xff]
    %v4845 = vld [vmem:[#allocation12 + $0x40] sm:$0xff]
    %v4846 = vld [vmem:[#allocation12 + $0x48] sm:$0xff]
    %v4847 = vld [vmem:[#allocation12 + $0x50] sm:$0xff]
    %v4848 = vld [vmem:[#allocation12 + $0x58] sm:$0xff]
    %v4849 = vld [vmem:[#allocation12 + $0x60] sm:$0xff]
    %v4850 = vld [vmem:[#allocation12 + $0x68] sm:$0xff]
    %v4851 = vld [vmem:[#allocation12 + $0x70] sm:$0xff]
    %v4852 = vld [vmem:[#allocation12 + $0x78] sm:$0xff]
    %v4853 = vld [vmem:[#allocation12 + $0x80] sm:$0xff]
    %v4854 = vld [vmem:[#allocation12 + $0x88] sm:$0xff]
    %v4855 = vld [vmem:[#allocation12 + $0x90] sm:$0xff]
    %v4856 = vld [vmem:[#allocation12 + $0x98] sm:$0xff]
    %v4857 = vld [vmem:[#allocation12 + $0xa0] sm:$0xff]
    %v4858 = vld [vmem:[#allocation12 + $0xa8] sm:$0xff]
    %v4859 = vld [vmem:[#allocation12 + $0xb0] sm:$0xff]
    %v4860 = vld [vmem:[#allocation12 + $0xb8] sm:$0xff]
    %v4861 = vld [vmem:[#allocation12 + $0xc0] sm:$0xff]
    %v4862 = vld [vmem:[#allocation12 + $0xc8] sm:$0xff]
    %v4863 = vld [vmem:[#allocation12 + $0xd0] sm:$0xff]
    %v4864 = vld [vmem:[#allocation12 + $0xd8] sm:$0xff]
    %v4865 = vld [vmem:[#allocation12 + $0xe0] sm:$0xff]
    %v4866 = vld [vmem:[#allocation12 + $0xe8] sm:$0xff]
    %v4867 = vld [vmem:[#allocation12 + $0xf0] sm:$0xff]
    %v4868 = vld [vmem:[#allocation12 + $0xf8] sm:$0xff]
    %v4901 = vunpack.c.l.b16 %v4837
    %v4902 = vunpack.c.h.b16 %v4837
    %v4903 = vunpack.c.l.b16 %v4838
    %v4904 = vunpack.c.h.b16 %v4838
    %v4905 = vunpack.c.l.b16 %v4839
    %v4906 = vunpack.c.h.b16 %v4839
    %v4907 = vunpack.c.l.b16 %v4840
    %v4908 = vunpack.c.h.b16 %v4840
    %v4909 = vunpack.c.l.b16 %v4841
    %v4910 = vunpack.c.h.b16 %v4841
    %v4911 = vunpack.c.l.b16 %v4842
    %v4912 = vunpack.c.h.b16 %v4842
    %v4913 = vunpack.c.l.b16 %v4843
    %v4914 = vunpack.c.h.b16 %v4843
    %v4915 = vunpack.c.l.b16 %v4844
    %v4916 = vunpack.c.h.b16 %v4844
    %v4917 = vunpack.c.l.b16 %v4845
    %v4918 = vunpack.c.h.b16 %v4845
    %v4919 = vunpack.c.l.b16 %v4846
    %v4920 = vunpack.c.h.b16 %v4846
    %v4921 = vunpack.c.l.b16 %v4847
    %v4922 = vunpack.c.h.b16 %v4847
    %v4923 = vunpack.c.l.b16 %v4848
    %v4924 = vunpack.c.h.b16 %v4848
    %v4925 = vunpack.c.l.b16 %v4849
    %v4926 = vunpack.c.h.b16 %v4849
    %v4927 = vunpack.c.l.b16 %v4850
    %v4928 = vunpack.c.h.b16 %v4850
    %v4929 = vunpack.c.l.b16 %v4851
    %v4930 = vunpack.c.h.b16 %v4851
    %v4931 = vunpack.c.l.b16 %v4852
    %v4932 = vunpack.c.h.b16 %v4852
    %v4933 = vunpack.c.l.b16 %v4853
    %v4934 = vunpack.c.h.b16 %v4853
    %v4935 = vunpack.c.l.b16 %v4854
    %v4936 = vunpack.c.h.b16 %v4854
    %v4937 = vunpack.c.l.b16 %v4855
    %v4938 = vunpack.c.h.b16 %v4855
    %v4939 = vunpack.c.l.b16 %v4856
    %v4940 = vunpack.c.h.b16 %v4856
    %v4941 = vunpack.c.l.b16 %v4857
    %v4942 = vunpack.c.h.b16 %v4857
    %v4943 = vunpack.c.l.b16 %v4858
    %v4944 = vunpack.c.h.b16 %v4858
    %v4945 = vunpack.c.l.b16 %v4859
    %v4946 = vunpack.c.h.b16 %v4859
    %v4947 = vunpack.c.l.b16 %v4860
    %v4948 = vunpack.c.h.b16 %v4860
    %v4949 = vunpack.c.l.b16 %v4861
    %v4950 = vunpack.c.h.b16 %v4861
    %v4951 = vunpack.c.l.b16 %v4862
    %v4952 = vunpack.c.h.b16 %v4862
    %v4953 = vunpack.c.l.b16 %v4863
    %v4954 = vunpack.c.h.b16 %v4863
    %v4955 = vunpack.c.l.b16 %v4864
    %v4956 = vunpack.c.h.b16 %v4864
    %v4957 = vunpack.c.l.b16 %v4865
    %v4958 = vunpack.c.h.b16 %v4865
    %v4959 = vunpack.c.l.b16 %v4866
    %v4960 = vunpack.c.h.b16 %v4866
    %v4961 = vunpack.c.l.b16 %v4867
    %v4962 = vunpack.c.h.b16 %v4867
    %v4963 = vunpack.c.l.b16 %v4868
    %v4964 = vunpack.c.h.b16 %v4868
    %v4965 = vpack.c.b16 %v4905, %v4901
    %v4966 = vpack.c.b16 %v4906, %v4902
    %v4967 = vpack.c.b16 %v4907, %v4903
    %v4968 = vpack.c.b16 %v4908, %v4904
    %v4969 = vpack.c.b16 %v4913, %v4909
    %v4970 = vpack.c.b16 %v4914, %v4910
    %v4971 = vpack.c.b16 %v4915, %v4911
    %v4972 = vpack.c.b16 %v4916, %v4912
    %v4973 = vpack.c.b16 %v4921, %v4917
    %v4974 = vpack.c.b16 %v4922, %v4918
    %v4975 = vpack.c.b16 %v4923, %v4919
    %v4976 = vpack.c.b16 %v4924, %v4920
    %v4977 = vpack.c.b16 %v4929, %v4925
    %v4978 = vpack.c.b16 %v4930, %v4926
    %v4979 = vpack.c.b16 %v4931, %v4927
    %v4980 = vpack.c.b16 %v4932, %v4928
    %v4981 = vpack.c.b16 %v4937, %v4933
    %v4982 = vpack.c.b16 %v4938, %v4934
    %v4983 = vpack.c.b16 %v4939, %v4935
    %v4984 = vpack.c.b16 %v4940, %v4936
    %v4985 = vpack.c.b16 %v4945, %v4941
    %v4986 = vpack.c.b16 %v4946, %v4942
    %v4987 = vpack.c.b16 %v4947, %v4943
    %v4988 = vpack.c.b16 %v4948, %v4944
    %v4989 = vpack.c.b16 %v4953, %v4949
    %v4990 = vpack.c.b16 %v4954, %v4950
    %v4991 = vpack.c.b16 %v4955, %v4951
    %v4992 = vpack.c.b16 %v4956, %v4952
    %v4993 = vpack.c.b16 %v4961, %v4957
    %v4994 = vpack.c.b16 %v4962, %v4958
    %v4995 = vpack.c.b16 %v4963, %v4959
    %v4996 = vpack.c.b16 %v4964, %v4960
    %5029 = vmatprep.subr.bf16.mxu0 %v4966
    %5030 = vmatpush1.bf16.msra.mxu0 %v4965
    %5031 = vmatprep.subr.bf16.mxu0 %v4970
    %5032 = vmatpush1.bf16.msra.mxu0 %v4969
    %5033 = vmatprep.subr.bf16.mxu0 %v4974
    %5034 = vmatpush1.bf16.msra.mxu0 %v4973
    %5035 = vmatprep.subr.bf16.mxu0 %v4978
    %5036 = vmatpush1.bf16.msra.mxu0 %v4977
    %5037 = vmatprep.subr.bf16.mxu0 %v4982
    %5038 = vmatpush1.bf16.msra.mxu0 %v4981
    %5039 = vmatprep.subr.bf16.mxu0 %v4986
    %5040 = vmatpush1.bf16.msra.mxu0 %v4985
    %5041 = vmatprep.subr.bf16.mxu0 %v4990
    %5042 = vmatpush1.bf16.msra.mxu0 %v4989
    %5043 = vmatprep.subr.bf16.mxu0 %v4994
    %5044 = vmatpush1.bf16.msra.mxu0 %v4993
    %5045 = vmatprep.subr.bf16.mxu0 0
    %5046 = vmatpush1.bf16.msra.mxu0 0
    %5047 = vmatprep.subr.bf16.mxu0 0
    %5048 = vmatpush1.bf16.msra.mxu0 0
    %5049 = vmatprep.subr.bf16.mxu0 0
    %5050 = vmatpush1.bf16.msra.mxu0 0
    %5051 = vmatprep.subr.bf16.mxu0 0
    %5052 = vmatpush1.bf16.msra.mxu0 0
    %5053 = vmatprep.subr.bf16.mxu0 0
    %5054 = vmatpush1.bf16.msra.mxu0 0
    %5055 = vmatprep.subr.bf16.mxu0 0
    %5056 = vmatpush1.bf16.msra.mxu0 0
    %5057 = vmatprep.subr.bf16.mxu0 0
    %5058 = vmatpush1.bf16.msra.mxu0 0
    %5059 = vmatprep.subr.bf16.mxu0 0
    %5060 = vmatpush1.bf16.msra.mxu0 0
    %5061 = vmatprep.mubr.bf16.mxu0 0
    %5062 = vmatmul.mubr.bf16.gmra.mrb[0].mxu0 %v4827
    %v5063 = vpop.f32.mrb[0].mxu0
    %v5064 = vadd.f32 0.0, %v5063
    %v5065 = vpop.f32.mrb[0].mxu0
    %v5066 = vadd.f32 0.0, %v5065
    %v5067 = vpop.f32.mrb[0].mxu0
    %v5068 = vadd.f32 0.0, %v5067
    %v5069 = vpop.f32.mrb[0].mxu0
    %v5070 = vadd.f32 0.0, %v5069
    %5071 = vdwg.mxu0
    %5072 = vmatprep.subr.bf16.mxu0 %v4968
    %5073 = vmatpush1.bf16.msra.mxu0 %v4967
    %5074 = vmatprep.subr.bf16.mxu0 %v4972
    %5075 = vmatpush1.bf16.msra.mxu0 %v4971
    %5076 = vmatprep.subr.bf16.mxu0 %v4976
    %5077 = vmatpush1.bf16.msra.mxu0 %v4975
    %5078 = vmatprep.subr.bf16.mxu0 %v4980
    %5079 = vmatpush1.bf16.msra.mxu0 %v4979
    %5080 = vmatprep.subr.bf16.mxu0 %v4984
    %5081 = vmatpush1.bf16.msra.mxu0 %v4983
    %5082 = vmatprep.subr.bf16.mxu0 %v4988
    %5083 = vmatpush1.bf16.msra.mxu0 %v4987
    %5084 = vmatprep.subr.bf16.mxu0 %v4992
    %5085 = vmatpush1.bf16.msra.mxu0 %v4991
    %5086 = vmatprep.subr.bf16.mxu0 %v4996
    %5087 = vmatpush1.bf16.msra.mxu0 %v4995
    %5088 = vmatprep.subr.bf16.mxu0 0
    %5089 = vmatpush1.bf16.msra.mxu0 0
    %5090 = vmatprep.subr.bf16.mxu0 0
    %5091 = vmatpush1.bf16.msra.mxu0 0
    %5092 = vmatprep.subr.bf16.mxu0 0
    %5093 = vmatpush1.bf16.msra.mxu0 0
    %5094 = vmatprep.subr.bf16.mxu0 0
    %5095 = vmatpush1.bf16.msra.mxu0 0
    %5096 = vmatprep.subr.bf16.mxu0 0
    %5097 = vmatpush1.bf16.msra.mxu0 0
    %5098 = vmatprep.subr.bf16.mxu0 0
    %5099 = vmatpush1.bf16.msra.mxu0 0
    %5100 = vmatprep.subr.bf16.mxu0 0
    %5101 = vmatpush1.bf16.msra.mxu0 0
    %5102 = vmatprep.subr.bf16.mxu0 0
    %5103 = vmatpush1.bf16.msra.mxu0 0
    %5104 = vmatprep.mubr.bf16.mxu0 0
    %5105 = vmatmul.mubr.bf16.gmra.mrb[0].mxu0 %v4827
    %v5106 = vpop.f32.mrb[0].mxu0
    %v5107 = vadd.f32 0.0, %v5106
    %v5108 = vpop.f32.mrb[0].mxu0
    %v5109 = vadd.f32 0.0, %v5108
    %v5110 = vpop.f32.mrb[0].mxu0
    %v5111 = vadd.f32 0.0, %v5110
    %v5112 = vpop.f32.mrb[0].mxu0
    %v5113 = vadd.f32 0.0, %v5112
    %5114 = vdwg.mxu0
    %v5115 = vadd.f32 %v4829, %v5064
    %v5116 = vadd.f32 %v4830, %v5066
    %v5117 = vadd.f32 %v4831, %v5107
    %v5118 = vadd.f32 %v4832, %v5109
    %v5119 = vadd.f32 %v4833, %v5068
    %v5120 = vadd.f32 %v4834, %v5070
    %v5121 = vadd.f32 %v4835, %v5111
    %v5122 = vadd.f32 %v4836, %v5113
    %v5123 = vxor.u32 %v5115, 2147483648
    %v5124 = vxor.u32 %v5119, 2147483648
    %v5125 = vmul.f32 %v5123, 1.442695
    %v5126 = vpow.pop %v5125
    %v5127 = vmul.f32 %v5124, 1.442695
    %v5128 = vpow.pop %v5127
    %v5129 = vadd.f32 %v5126, 1.0
    %v5130 = vadd.f32 %v5128, 1.0
    %v5131 = vrcp.pop %v5129
    %v5132 = vmul.f32 1.0, %v5131
    %v5133 = vrcp.pop %v5130
    %v5134 = vmul.f32 1.0, %v5133
    %v5135 = vxor.u32 %v5116, 2147483648
    %v5136 = vxor.u32 %v5120, 2147483648
    %v5137 = vmul.f32 %v5135, 1.442695
    %v5138 = vpow.pop %v5137
    %v5139 = vmul.f32 %v5136, 1.442695
    %v5140 = vpow.pop %v5139
    %v5141 = vadd.f32 %v5138, 1.0
    %v5142 = vadd.f32 %v5140, 1.0
    %v5143 = vrcp.pop %v5141
    %v5144 = vmul.f32 1.0, %v5143
    %v5145 = vrcp.pop %v5142
    %v5146 = vmul.f32 1.0, %v5145
    %v5147 = vtanh.pop %v5117
    %v5148 = vtanh.pop %v5121
    %v5149 = vxor.u32 %v5118, 2147483648
    %v5150 = vxor.u32 %v5122, 2147483648
    %v5151 = vmul.f32 %v5149, 1.442695
    %v5152 = vpow.pop %v5151
    %v5153 = vmul.f32 %v5150, 1.442695
    %v5154 = vpow.pop %v5153
    %v5155 = vadd.f32 %v5152, 1.0
    %v5156 = vadd.f32 %v5154, 1.0
    %v5157 = vrcp.pop %v5155
    %v5158 = vmul.f32 1.0, %v5157
    %v5159 = vrcp.pop %v5156
    %v5160 = vmul.f32 1.0, %v5159
    %v5161 = vmul.f32 %v5144, %v4821
    %v5162 = vmul.f32 %v5146, %v4822
    %v5163 = vmul.f32 %v5132, %v5147
    %v5164 = vmul.f32 %v5134, %v5148
    %v5165 = vadd.f32 %v5161, %v5163
    %v5166 = vadd.f32 %v5162, %v5164
    %v5167 = vtanh.pop %v5165
    %v5168 = vtanh.pop %v5166
    %v5169 = vmul.f32 %v5158, %v5167
    %v5170 = vmul.f32 %v5160, %v5168
    %v5171 = vpack.c.bf16 %v5170, %v5169
    %5172 = vst [vmem:[%s1899] sm:$0xff] %v5171
    %v5173 = vld [vmem:[%s1901] sm:$0xff]
    %v5174 = vld [vmem:[%s1901 + $0x8] sm:$0xff]
    %v5175 = vld [vmem:[%s1901 + $0x10] sm:$0xff]
    %v5176 = vld [vmem:[%s1901 + $0x18] sm:$0xff]
    %v5177 = vld [vmem:[%s1901 + $0x20] sm:$0xff]
    %v5178 = vld [vmem:[%s1901 + $0x28] sm:$0xff]
    %v5179 = vld [vmem:[%s1901 + $0x30] sm:$0xff]
    %v5180 = vld [vmem:[%s1901 + $0x38] sm:$0xff]
    %v5181 = vld [vmem:[#allocation12] sm:$0xff]
    %v5182 = vld [vmem:[#allocation12 + $0x8] sm:$0xff]
    %v5183 = vld [vmem:[#allocation12 + $0x10] sm:$0xff]
    %v5184 = vld [vmem:[#allocation12 + $0x18] sm:$0xff]
    %v5185 = vld [vmem:[#allocation12 + $0x20] sm:$0xff]
    %v5186 = vld [vmem:[#allocation12 + $0x28] sm:$0xff]
    %v5187 = vld [vmem:[#allocation12 + $0x30] sm:$0xff]
    %v5188 = vld [vmem:[#allocation12 + $0x38] sm:$0xff]
    %v5189 = vld [vmem:[#allocation12 + $0x40] sm:$0xff]
    %v5190 = vld [vmem:[#allocation12 + $0x48] sm:$0xff]
    %v5191 = vld [vmem:[#allocation12 + $0x50] sm:$0xff]
    %v5192 = vld [vmem:[#allocation12 + $0x58] sm:$0xff]
    %v5193 = vld [vmem:[#allocation12 + $0x60] sm:$0xff]
    %v5194 = vld [vmem:[#allocation12 + $0x68] sm:$0xff]
    %v5195 = vld [vmem:[#allocation12 + $0x70] sm:$0xff]
    %v5196 = vld [vmem:[#allocation12 + $0x78] sm:$0xff]
    %v5197 = vld [vmem:[#allocation12 + $0x80] sm:$0xff]
    %v5198 = vld [vmem:[#allocation12 + $0x88] sm:$0xff]
    %v5199 = vld [vmem:[#allocation12 + $0x90] sm:$0xff]
    %v5200 = vld [vmem:[#allocation12 + $0x98] sm:$0xff]
    %v5201 = vld [vmem:[#allocation12 + $0xa0] sm:$0xff]
    %v5202 = vld [vmem:[#allocation12 + $0xa8] sm:$0xff]
    %v5203 = vld [vmem:[#allocation12 + $0xb0] sm:$0xff]
    %v5204 = vld [vmem:[#allocation12 + $0xb8] sm:$0xff]
    %v5205 = vld [vmem:[#allocation12 + $0xc0] sm:$0xff]
    %v5206 = vld [vmem:[#allocation12 + $0xc8] sm:$0xff]
    %v5207 = vld [vmem:[#allocation12 + $0xd0] sm:$0xff]
    %v5208 = vld [vmem:[#allocation12 + $0xd8] sm:$0xff]
    %v5209 = vld [vmem:[#allocation12 + $0xe0] sm:$0xff]
    %v5210 = vld [vmem:[#allocation12 + $0xe8] sm:$0xff]
    %v5211 = vld [vmem:[#allocation12 + $0xf0] sm:$0xff]
    %v5212 = vld [vmem:[#allocation12 + $0xf8] sm:$0xff]
    %v5245 = vunpack.c.l.b16 %v5181
    %v5246 = vunpack.c.h.b16 %v5181
    %v5247 = vunpack.c.l.b16 %v5182
    %v5248 = vunpack.c.h.b16 %v5182
    %v5249 = vunpack.c.l.b16 %v5183
    %v5250 = vunpack.c.h.b16 %v5183
    %v5251 = vunpack.c.l.b16 %v5184
    %v5252 = vunpack.c.h.b16 %v5184
    %v5253 = vunpack.c.l.b16 %v5185
    %v5254 = vunpack.c.h.b16 %v5185
    %v5255 = vunpack.c.l.b16 %v5186
    %v5256 = vunpack.c.h.b16 %v5186
    %v5257 = vunpack.c.l.b16 %v5187
    %v5258 = vunpack.c.h.b16 %v5187
    %v5259 = vunpack.c.l.b16 %v5188
    %v5260 = vunpack.c.h.b16 %v5188
    %v5261 = vunpack.c.l.b16 %v5189
    %v5262 = vunpack.c.h.b16 %v5189
    %v5263 = vunpack.c.l.b16 %v5190
    %v5264 = vunpack.c.h.b16 %v5190
    %v5265 = vunpack.c.l.b16 %v5191
    %v5266 = vunpack.c.h.b16 %v5191
    %v5267 = vunpack.c.l.b16 %v5192
    %v5268 = vunpack.c.h.b16 %v5192
    %v5269 = vunpack.c.l.b16 %v5193
    %v5270 = vunpack.c.h.b16 %v5193
    %v5271 = vunpack.c.l.b16 %v5194
    %v5272 = vunpack.c.h.b16 %v5194
    %v5273 = vunpack.c.l.b16 %v5195
    %v5274 = vunpack.c.h.b16 %v5195
    %v5275 = vunpack.c.l.b16 %v5196
    %v5276 = vunpack.c.h.b16 %v5196
    %v5277 = vunpack.c.l.b16 %v5197
    %v5278 = vunpack.c.h.b16 %v5197
    %v5279 = vunpack.c.l.b16 %v5198
    %v5280 = vunpack.c.h.b16 %v5198
    %v5281 = vunpack.c.l.b16 %v5199
    %v5282 = vunpack.c.h.b16 %v5199
    %v5283 = vunpack.c.l.b16 %v5200
    %v5284 = vunpack.c.h.b16 %v5200
    %v5285 = vunpack.c.l.b16 %v5201
    %v5286 = vunpack.c.h.b16 %v5201
    %v5287 = vunpack.c.l.b16 %v5202
    %v5288 = vunpack.c.h.b16 %v5202
    %v5289 = vunpack.c.l.b16 %v5203
    %v5290 = vunpack.c.h.b16 %v5203
    %v5291 = vunpack.c.l.b16 %v5204
    %v5292 = vunpack.c.h.b16 %v5204
    %v5293 = vunpack.c.l.b16 %v5205
    %v5294 = vunpack.c.h.b16 %v5205
    %v5295 = vunpack.c.l.b16 %v5206
    %v5296 = vunpack.c.h.b16 %v5206
    %v5297 = vunpack.c.l.b16 %v5207
    %v5298 = vunpack.c.h.b16 %v5207
    %v5299 = vunpack.c.l.b16 %v5208
    %v5300 = vunpack.c.h.b16 %v5208
    %v5301 = vunpack.c.l.b16 %v5209
    %v5302 = vunpack.c.h.b16 %v5209
    %v5303 = vunpack.c.l.b16 %v5210
    %v5304 = vunpack.c.h.b16 %v5210
    %v5305 = vunpack.c.l.b16 %v5211
    %v5306 = vunpack.c.h.b16 %v5211
    %v5307 = vunpack.c.l.b16 %v5212
    %v5308 = vunpack.c.h.b16 %v5212
    %v5309 = vpack.c.b16 %v5249, %v5245
    %v5310 = vpack.c.b16 %v5250, %v5246
    %v5311 = vpack.c.b16 %v5251, %v5247
    %v5312 = vpack.c.b16 %v5252, %v5248
    %v5313 = vpack.c.b16 %v5257, %v5253
    %v5314 = vpack.c.b16 %v5258, %v5254
    %v5315 = vpack.c.b16 %v5259, %v5255
    %v5316 = vpack.c.b16 %v5260, %v5256
    %v5317 = vpack.c.b16 %v5265, %v5261
    %v5318 = vpack.c.b16 %v5266, %v5262
    %v5319 = vpack.c.b16 %v5267, %v5263
    %v5320 = vpack.c.b16 %v5268, %v5264
    %v5321 = vpack.c.b16 %v5273, %v5269
    %v5322 = vpack.c.b16 %v5274, %v5270
    %v5323 = vpack.c.b16 %v5275, %v5271
    %v5324 = vpack.c.b16 %v5276, %v5272
    %v5325 = vpack.c.b16 %v5281, %v5277
    %v5326 = vpack.c.b16 %v5282, %v5278
    %v5327 = vpack.c.b16 %v5283, %v5279
    %v5328 = vpack.c.b16 %v5284, %v5280
    %v5329 = vpack.c.b16 %v5289, %v5285
    %v5330 = vpack.c.b16 %v5290, %v5286
    %v5331 = vpack.c.b16 %v5291, %v5287
    %v5332 = vpack.c.b16 %v5292, %v5288
    %v5333 = vpack.c.b16 %v5297, %v5293
    %v5334 = vpack.c.b16 %v5298, %v5294
    %v5335 = vpack.c.b16 %v5299, %v5295
    %v5336 = vpack.c.b16 %v5300, %v5296
    %v5337 = vpack.c.b16 %v5305, %v5301
    %v5338 = vpack.c.b16 %v5306, %v5302
    %v5339 = vpack.c.b16 %v5307, %v5303
    %v5340 = vpack.c.b16 %v5308, %v5304
    %5373 = vmatprep.subr.bf16.mxu0 %v5310
    %5374 = vmatpush1.bf16.msra.mxu0 %v5309
    %5375 = vmatprep.subr.bf16.mxu0 %v5314
    %5376 = vmatpush1.bf16.msra.mxu0 %v5313
    %5377 = vmatprep.subr.bf16.mxu0 %v5318
    %5378 = vmatpush1.bf16.msra.mxu0 %v5317
    %5379 = vmatprep.subr.bf16.mxu0 %v5322
    %5380 = vmatpush1.bf16.msra.mxu0 %v5321
    %5381 = vmatprep.subr.bf16.mxu0 %v5326
    %5382 = vmatpush1.bf16.msra.mxu0 %v5325
    %5383 = vmatprep.subr.bf16.mxu0 %v5330
    %5384 = vmatpush1.bf16.msra.mxu0 %v5329
    %5385 = vmatprep.subr.bf16.mxu0 %v5334
    %5386 = vmatpush1.bf16.msra.mxu0 %v5333
    %5387 = vmatprep.subr.bf16.mxu0 %v5338
    %5388 = vmatpush1.bf16.msra.mxu0 %v5337
    %5389 = vmatprep.subr.bf16.mxu0 0
    %5390 = vmatpush1.bf16.msra.mxu0 0
    %5391 = vmatprep.subr.bf16.mxu0 0
    %5392 = vmatpush1.bf16.msra.mxu0 0
    %5393 = vmatprep.subr.bf16.mxu0 0
    %5394 = vmatpush1.bf16.msra.mxu0 0
    %5395 = vmatprep.subr.bf16.mxu0 0
    %5396 = vmatpush1.bf16.msra.mxu0 0
    %5397 = vmatprep.subr.bf16.mxu0 0
    %5398 = vmatpush1.bf16.msra.mxu0 0
    %5399 = vmatprep.subr.bf16.mxu0 0
    %5400 = vmatpush1.bf16.msra.mxu0 0
    %5401 = vmatprep.subr.bf16.mxu0 0
    %5402 = vmatpush1.bf16.msra.mxu0 0
    %5403 = vmatprep.subr.bf16.mxu0 0
    %5404 = vmatpush1.bf16.msra.mxu0 0
    %5405 = vmatprep.mubr.bf16.mxu0 0
    %5406 = vmatmul.mubr.bf16.gmra.mrb[0].mxu0 %v5171
    %v5407 = vpop.f32.mrb[0].mxu0
    %v5408 = vadd.f32 0.0, %v5407
    %v5409 = vpop.f32.mrb[0].mxu0
    %v5410 = vadd.f32 0.0, %v5409
    %v5411 = vpop.f32.mrb[0].mxu0
    %v5412 = vadd.f32 0.0, %v5411
    %v5413 = vpop.f32.mrb[0].mxu0
    %v5414 = vadd.f32 0.0, %v5413
    %5415 = vdwg.mxu0
    %5416 = vmatprep.subr.bf16.mxu0 %v5312
    %5417 = vmatpush1.bf16.msra.mxu0 %v5311
    %5418 = vmatprep.subr.bf16.mxu0 %v5316
    %5419 = vmatpush1.bf16.msra.mxu0 %v5315
    %5420 = vmatprep.subr.bf16.mxu0 %v5320
    %5421 = vmatpush1.bf16.msra.mxu0 %v5319
    %5422 = vmatprep.subr.bf16.mxu0 %v5324
    %5423 = vmatpush1.bf16.msra.mxu0 %v5323
    %5424 = vmatprep.subr.bf16.mxu0 %v5328
    %5425 = vmatpush1.bf16.msra.mxu0 %v5327
    %5426 = vmatprep.subr.bf16.mxu0 %v5332
    %5427 = vmatpush1.bf16.msra.mxu0 %v5331
    %5428 = vmatprep.subr.bf16.mxu0 %v5336
    %5429 = vmatpush1.bf16.msra.mxu0 %v5335
    %5430 = vmatprep.subr.bf16.mxu0 %v5340
    %5431 = vmatpush1.bf16.msra.mxu0 %v5339
    %5432 = vmatprep.subr.bf16.mxu0 0
    %5433 = vmatpush1.bf16.msra.mxu0 0
    %5434 = vmatprep.subr.bf16.mxu0 0
    %5435 = vmatpush1.bf16.msra.mxu0 0
    %5436 = vmatprep.subr.bf16.mxu0 0
    %5437 = vmatpush1.bf16.msra.mxu0 0
    %5438 = vmatprep.subr.bf16.mxu0 0
    %5439 = vmatpush1.bf16.msra.mxu0 0
    %5440 = vmatprep.subr.bf16.mxu0 0
    %5441 = vmatpush1.bf16.msra.mxu0 0
    %5442 = vmatprep.subr.bf16.mxu0 0
    %5443 = vmatpush1.bf16.msra.mxu0 0
    %5444 = vmatprep.subr.bf16.mxu0 0
    %5445 = vmatpush1.bf16.msra.mxu0 0
    %5446 = vmatprep.subr.bf16.mxu0 0
    %5447 = vmatpush1.bf16.msra.mxu0 0
    %5448 = vmatprep.mubr.bf16.mxu0 0
    %5449 = vmatmul.mubr.bf16.gmra.mrb[0].mxu0 %v5171
    %v5450 = vpop.f32.mrb[0].mxu0
    %v5451 = vadd.f32 0.0, %v5450
    %v5452 = vpop.f32.mrb[0].mxu0
    %v5453 = vadd.f32 0.0, %v5452
    %v5454 = vpop.f32.mrb[0].mxu0
    %v5455 = vadd.f32 0.0, %v5454
    %v5456 = vpop.f32.mrb[0].mxu0
    %v5457 = vadd.f32 0.0, %v5456
    %5458 = vdwg.mxu0
    %v5459 = vadd.f32 %v5173, %v5408
    %v5460 = vadd.f32 %v5174, %v5410
    %v5461 = vadd.f32 %v5175, %v5451
    %v5462 = vadd.f32 %v5176, %v5453
    %v5463 = vadd.f32 %v5177, %v5412
    %v5464 = vadd.f32 %v5178, %v5414
    %v5465 = vadd.f32 %v5179, %v5455
    %v5466 = vadd.f32 %v5180, %v5457
    %v5467 = vxor.u32 %v5459, 2147483648
    %v5468 = vxor.u32 %v5463, 2147483648
    %v5469 = vmul.f32 %v5467, 1.442695
    %v5470 = vpow.pop %v5469
    %v5471 = vmul.f32 %v5468, 1.442695
    %v5472 = vpow.pop %v5471
    %v5473 = vadd.f32 %v5470, 1.0
    %v5474 = vadd.f32 %v5472, 1.0
    %v5475 = vrcp.pop %v5473
    %v5476 = vmul.f32 1.0, %v5475
    %v5477 = vrcp.pop %v5474
    %v5478 = vmul.f32 1.0, %v5477
    %v5479 = vxor.u32 %v5460, 2147483648
    %v5480 = vxor.u32 %v5464, 2147483648
    %v5481 = vmul.f32 %v5479, 1.442695
    %v5482 = vpow.pop %v5481
    %v5483 = vmul.f32 %v5480, 1.442695
    %v5484 = vpow.pop %v5483
    %v5485 = vadd.f32 %v5482, 1.0
    %v5486 = vadd.f32 %v5484, 1.0
    %v5487 = vrcp.pop %v5485
    %v5488 = vmul.f32 1.0, %v5487
    %v5489 = vrcp.pop %v5486
    %v5490 = vmul.f32 1.0, %v5489
    %v5491 = vtanh.pop %v5461
    %v5492 = vtanh.pop %v5465
    %v5493 = vxor.u32 %v5462, 2147483648
    %v5494 = vxor.u32 %v5466, 2147483648
    %v5495 = vmul.f32 %v5493, 1.442695
    %v5496 = vpow.pop %v5495
    %v5497 = vmul.f32 %v5494, 1.442695
    %v5498 = vpow.pop %v5497
    %v5499 = vadd.f32 %v5496, 1.0
    %v5500 = vadd.f32 %v5498, 1.0
    %v5501 = vrcp.pop %v5499
    %v5502 = vmul.f32 1.0, %v5501
    %v5503 = vrcp.pop %v5500
    %v5504 = vmul.f32 1.0, %v5503
    %v5505 = vmul.f32 %v5488, %v5165
    %v5506 = vmul.f32 %v5490, %v5166
    %v5507 = vmul.f32 %v5476, %v5491
    %v5508 = vmul.f32 %v5478, %v5492
    %v5509 = vadd.f32 %v5505, %v5507
    %v5510 = vadd.f32 %v5506, %v5508
    %v5511 = vtanh.pop %v5509
    %v5512 = vtanh.pop %v5510
    %v5513 = vmul.f32 %v5502, %v5511
    %v5514 = vmul.f32 %v5504, %v5512
    %v5515 = vpack.c.bf16 %v5514, %v5513
    %5516 = vst [vmem:[%s2245] sm:$0xff] %v5515
    %v5517 = vld [vmem:[%s2247] sm:$0xff]
    %v5518 = vld [vmem:[%s2247 + $0x8] sm:$0xff]
    %v5519 = vld [vmem:[%s2247 + $0x10] sm:$0xff]
    %v5520 = vld [vmem:[%s2247 + $0x18] sm:$0xff]
    %v5521 = vld [vmem:[%s2247 + $0x20] sm:$0xff]
    %v5522 = vld [vmem:[%s2247 + $0x28] sm:$0xff]
    %v5523 = vld [vmem:[%s2247 + $0x30] sm:$0xff]
    %v5524 = vld [vmem:[%s2247 + $0x38] sm:$0xff]
    %v5525 = vld [vmem:[#allocation12] sm:$0xff]
    %v5526 = vld [vmem:[#allocation12 + $0x8] sm:$0xff]
    %v5527 = vld [vmem:[#allocation12 + $0x10] sm:$0xff]
    %v5528 = vld [vmem:[#allocation12 + $0x18] sm:$0xff]
    %v5529 = vld [vmem:[#allocation12 + $0x20] sm:$0xff]
    %v5530 = vld [vmem:[#allocation12 + $0x28] sm:$0xff]
    %v5531 = vld [vmem:[#allocation12 + $0x30] sm:$0xff]
    %v5532 = vld [vmem:[#allocation12 + $0x38] sm:$0xff]
    %v5533 = vld [vmem:[#allocation12 + $0x40] sm:$0xff]
    %v5534 = vld [vmem:[#allocation12 + $0x48] sm:$0xff]
    %v5535 = vld [vmem:[#allocation12 + $0x50] sm:$0xff]
    %v5536 = vld [vmem:[#allocation12 + $0x58] sm:$0xff]
    %v5537 = vld [vmem:[#allocation12 + $0x60] sm:$0xff]
    %v5538 = vld [vmem:[#allocation12 + $0x68] sm:$0xff]
    %v5539 = vld [vmem:[#allocation12 + $0x70] sm:$0xff]
    %v5540 = vld [vmem:[#allocation12 + $0x78] sm:$0xff]
    %v5541 = vld [vmem:[#allocation12 + $0x80] sm:$0xff]
    %v5542 = vld [vmem:[#allocation12 + $0x88] sm:$0xff]
    %v5543 = vld [vmem:[#allocation12 + $0x90] sm:$0xff]
    %v5544 = vld [vmem:[#allocation12 + $0x98] sm:$0xff]
    %v5545 = vld [vmem:[#allocation12 + $0xa0] sm:$0xff]
    %v5546 = vld [vmem:[#allocation12 + $0xa8] sm:$0xff]
    %v5547 = vld [vmem:[#allocation12 + $0xb0] sm:$0xff]
    %v5548 = vld [vmem:[#allocation12 + $0xb8] sm:$0xff]
    %v5549 = vld [vmem:[#allocation12 + $0xc0] sm:$0xff]
    %v5550 = vld [vmem:[#allocation12 + $0xc8] sm:$0xff]
    %v5551 = vld [vmem:[#allocation12 + $0xd0] sm:$0xff]
    %v5552 = vld [vmem:[#allocation12 + $0xd8] sm:$0xff]
    %v5553 = vld [vmem:[#allocation12 + $0xe0] sm:$0xff]
    %v5554 = vld [vmem:[#allocation12 + $0xe8] sm:$0xff]
    %v5555 = vld [vmem:[#allocation12 + $0xf0] sm:$0xff]
    %v5556 = vld [vmem:[#allocation12 + $0xf8] sm:$0xff]
    %v5589 = vunpack.c.l.b16 %v5525
    %v5590 = vunpack.c.h.b16 %v5525
    %v5591 = vunpack.c.l.b16 %v5526
    %v5592 = vunpack.c.h.b16 %v5526
    %v5593 = vunpack.c.l.b16 %v5527
    %v5594 = vunpack.c.h.b16 %v5527
    %v5595 = vunpack.c.l.b16 %v5528
    %v5596 = vunpack.c.h.b16 %v5528
    %v5597 = vunpack.c.l.b16 %v5529
    %v5598 = vunpack.c.h.b16 %v5529
    %v5599 = vunpack.c.l.b16 %v5530
    %v5600 = vunpack.c.h.b16 %v5530
    %v5601 = vunpack.c.l.b16 %v5531
    %v5602 = vunpack.c.h.b16 %v5531
    %v5603 = vunpack.c.l.b16 %v5532
    %v5604 = vunpack.c.h.b16 %v5532
    %v5605 = vunpack.c.l.b16 %v5533
    %v5606 = vunpack.c.h.b16 %v5533
    %v5607 = vunpack.c.l.b16 %v5534
    %v5608 = vunpack.c.h.b16 %v5534
    %v5609 = vunpack.c.l.b16 %v5535
    %v5610 = vunpack.c.h.b16 %v5535
    %v5611 = vunpack.c.l.b16 %v5536
    %v5612 = vunpack.c.h.b16 %v5536
    %v5613 = vunpack.c.l.b16 %v5537
    %v5614 = vunpack.c.h.b16 %v5537
    %v5615 = vunpack.c.l.b16 %v5538
    %v5616 = vunpack.c.h.b16 %v5538
    %v5617 = vunpack.c.l.b16 %v5539
    %v5618 = vunpack.c.h.b16 %v5539
    %v5619 = vunpack.c.l.b16 %v5540
    %v5620 = vunpack.c.h.b16 %v5540
    %v5621 = vunpack.c.l.b16 %v5541
    %v5622 = vunpack.c.h.b16 %v5541
    %v5623 = vunpack.c.l.b16 %v5542
    %v5624 = vunpack.c.h.b16 %v5542
    %v5625 = vunpack.c.l.b16 %v5543
    %v5626 = vunpack.c.h.b16 %v5543
    %v5627 = vunpack.c.l.b16 %v5544
    %v5628 = vunpack.c.h.b16 %v5544
    %v5629 = vunpack.c.l.b16 %v5545
    %v5630 = vunpack.c.h.b16 %v5545
    %v5631 = vunpack.c.l.b16 %v5546
    %v5632 = vunpack.c.h.b16 %v5546
    %v5633 = vunpack.c.l.b16 %v5547
    %v5634 = vunpack.c.h.b16 %v5547
    %v5635 = vunpack.c.l.b16 %v5548
    %v5636 = vunpack.c.h.b16 %v5548
    %v5637 = vunpack.c.l.b16 %v5549
    %v5638 = vunpack.c.h.b16 %v5549
    %v5639 = vunpack.c.l.b16 %v5550
    %v5640 = vunpack.c.h.b16 %v5550
    %v5641 = vunpack.c.l.b16 %v5551
    %v5642 = vunpack.c.h.b16 %v5551
    %v5643 = vunpack.c.l.b16 %v5552
    %v5644 = vunpack.c.h.b16 %v5552
    %v5645 = vunpack.c.l.b16 %v5553
    %v5646 = vunpack.c.h.b16 %v5553
    %v5647 = vunpack.c.l.b16 %v5554
    %v5648 = vunpack.c.h.b16 %v5554
    %v5649 = vunpack.c.l.b16 %v5555
    %v5650 = vunpack.c.h.b16 %v5555
    %v5651 = vunpack.c.l.b16 %v5556
    %v5652 = vunpack.c.h.b16 %v5556
    %v5653 = vpack.c.b16 %v5593, %v5589
    %v5654 = vpack.c.b16 %v5594, %v5590
    %v5655 = vpack.c.b16 %v5595, %v5591
    %v5656 = vpack.c.b16 %v5596, %v5592
    %v5657 = vpack.c.b16 %v5601, %v5597
    %v5658 = vpack.c.b16 %v5602, %v5598
    %v5659 = vpack.c.b16 %v5603, %v5599
    %v5660 = vpack.c.b16 %v5604, %v5600
    %v5661 = vpack.c.b16 %v5609, %v5605
    %v5662 = vpack.c.b16 %v5610, %v5606
    %v5663 = vpack.c.b16 %v5611, %v5607
    %v5664 = vpack.c.b16 %v5612, %v5608
    %v5665 = vpack.c.b16 %v5617, %v5613
    %v5666 = vpack.c.b16 %v5618, %v5614
    %v5667 = vpack.c.b16 %v5619, %v5615
    %v5668 = vpack.c.b16 %v5620, %v5616
    %v5669 = vpack.c.b16 %v5625, %v5621
    %v5670 = vpack.c.b16 %v5626, %v5622
    %v5671 = vpack.c.b16 %v5627, %v5623
    %v5672 = vpack.c.b16 %v5628, %v5624
    %v5673 = vpack.c.b16 %v5633, %v5629
    %v5674 = vpack.c.b16 %v5634, %v5630
    %v5675 = vpack.c.b16 %v5635, %v5631
    %v5676 = vpack.c.b16 %v5636, %v5632
    %v5677 = vpack.c.b16 %v5641, %v5637
    %v5678 = vpack.c.b16 %v5642, %v5638
    %v5679 = vpack.c.b16 %v5643, %v5639
    %v5680 = vpack.c.b16 %v5644, %v5640
    %v5681 = vpack.c.b16 %v5649, %v5645
    %v5682 = vpack.c.b16 %v5650, %v5646
    %v5683 = vpack.c.b16 %v5651, %v5647
    %v5684 = vpack.c.b16 %v5652, %v5648
    %5717 = vmatprep.subr.bf16.mxu0 %v5654
    %5718 = vmatpush1.bf16.msra.mxu0 %v5653
    %5719 = vmatprep.subr.bf16.mxu0 %v5658
    %5720 = vmatpush1.bf16.msra.mxu0 %v5657
    %5721 = vmatprep.subr.bf16.mxu0 %v5662
    %5722 = vmatpush1.bf16.msra.mxu0 %v5661
    %5723 = vmatprep.subr.bf16.mxu0 %v5666
    %5724 = vmatpush1.bf16.msra.mxu0 %v5665
    %5725 = vmatprep.subr.bf16.mxu0 %v5670
    %5726 = vmatpush1.bf16.msra.mxu0 %v5669
    %5727 = vmatprep.subr.bf16.mxu0 %v5674
    %5728 = vmatpush1.bf16.msra.mxu0 %v5673
    %5729 = vmatprep.subr.bf16.mxu0 %v5678
    %5730 = vmatpush1.bf16.msra.mxu0 %v5677
    %5731 = vmatprep.subr.bf16.mxu0 %v5682
    %5732 = vmatpush1.bf16.msra.mxu0 %v5681
    %5733 = vmatprep.subr.bf16.mxu0 0
    %5734 = vmatpush1.bf16.msra.mxu0 0
    %5735 = vmatprep.subr.bf16.mxu0 0
    %5736 = vmatpush1.bf16.msra.mxu0 0
    %5737 = vmatprep.subr.bf16.mxu0 0
    %5738 = vmatpush1.bf16.msra.mxu0 0
    %5739 = vmatprep.subr.bf16.mxu0 0
    %5740 = vmatpush1.bf16.msra.mxu0 0
    %5741 = vmatprep.subr.bf16.mxu0 0
    %5742 = vmatpush1.bf16.msra.mxu0 0
    %5743 = vmatprep.subr.bf16.mxu0 0
    %5744 = vmatpush1.bf16.msra.mxu0 0
    %5745 = vmatprep.subr.bf16.mxu0 0
    %5746 = vmatpush1.bf16.msra.mxu0 0
    %5747 = vmatprep.subr.bf16.mxu0 0
    %5748 = vmatpush1.bf16.msra.mxu0 0
    %5749 = vmatprep.mubr.bf16.mxu0 0
    %5750 = vmatmul.mubr.bf16.gmra.mrb[0].mxu0 %v5515
    %v5751 = vpop.f32.mrb[0].mxu0
    %v5752 = vadd.f32 0.0, %v5751
    %v5753 = vpop.f32.mrb[0].mxu0
    %v5754 = vadd.f32 0.0, %v5753
    %v5755 = vpop.f32.mrb[0].mxu0
    %v5756 = vadd.f32 0.0, %v5755
    %v5757 = vpop.f32.mrb[0].mxu0
    %v5758 = vadd.f32 0.0, %v5757
    %5759 = vdwg.mxu0
    %5760 = vmatprep.subr.bf16.mxu0 %v5656
    %5761 = vmatpush1.bf16.msra.mxu0 %v5655
    %5762 = vmatprep.subr.bf16.mxu0 %v5660
    %5763 = vmatpush1.bf16.msra.mxu0 %v5659
    %5764 = vmatprep.subr.bf16.mxu0 %v5664
    %5765 = vmatpush1.bf16.msra.mxu0 %v5663
    %5766 = vmatprep.subr.bf16.mxu0 %v5668
    %5767 = vmatpush1.bf16.msra.mxu0 %v5667
    %5768 = vmatprep.subr.bf16.mxu0 %v5672
    %5769 = vmatpush1.bf16.msra.mxu0 %v5671
    %5770 = vmatprep.subr.bf16.mxu0 %v5676
    %5771 = vmatpush1.bf16.msra.mxu0 %v5675
    %5772 = vmatprep.subr.bf16.mxu0 %v5680
    %5773 = vmatpush1.bf16.msra.mxu0 %v5679
    %5774 = vmatprep.subr.bf16.mxu0 %v5684
    %5775 = vmatpush1.bf16.msra.mxu0 %v5683
    %5776 = vmatprep.subr.bf16.mxu0 0
    %5777 = vmatpush1.bf16.msra.mxu0 0
    %5778 = vmatprep.subr.bf16.mxu0 0
    %5779 = vmatpush1.bf16.msra.mxu0 0
    %5780 = vmatprep.subr.bf16.mxu0 0
    %5781 = vmatpush1.bf16.msra.mxu0 0
    %5782 = vmatprep.subr.bf16.mxu0 0
    %5783 = vmatpush1.bf16.msra.mxu0 0
    %5784 = vmatprep.subr.bf16.mxu0 0
    %5785 = vmatpush1.bf16.msra.mxu0 0
    %5786 = vmatprep.subr.bf16.mxu0 0
    %5787 = vmatpush1.bf16.msra.mxu0 0
    %5788 = vmatprep.subr.bf16.mxu0 0
    %5789 = vmatpush1.bf16.msra.mxu0 0
    %5790 = vmatprep.subr.bf16.mxu0 0
    %5791 = vmatpush1.bf16.msra.mxu0 0
    %5792 = vmatprep.mubr.bf16.mxu0 0
    %5793 = vmatmul.mubr.bf16.gmra.mrb[0].mxu0 %v5515
    %v5794 = vpop.f32.mrb[0].mxu0
    %v5795 = vadd.f32 0.0, %v5794
    %v5796 = vpop.f32.mrb[0].mxu0
    %v5797 = vadd.f32 0.0, %v5796
    %v5798 = vpop.f32.mrb[0].mxu0
    %v5799 = vadd.f32 0.0, %v5798
    %v5800 = vpop.f32.mrb[0].mxu0
    %v5801 = vadd.f32 0.0, %v5800
    %5802 = vdwg.mxu0
    %v5803 = vadd.f32 %v5517, %v5752
    %v5804 = vadd.f32 %v5518, %v5754
    %v5805 = vadd.f32 %v5519, %v5795
    %v5806 = vadd.f32 %v5520, %v5797
    %v5807 = vadd.f32 %v5521, %v5756
    %v5808 = vadd.f32 %v5522, %v5758
    %v5809 = vadd.f32 %v5523, %v5799
    %v5810 = vadd.f32 %v5524, %v5801
    %v5811 = vxor.u32 %v5803, 2147483648
    %v5812 = vxor.u32 %v5807, 2147483648
    %v5813 = vmul.f32 %v5811, 1.442695
    %v5814 = vpow.pop %v5813
    %v5815 = vmul.f32 %v5812, 1.442695
    %v5816 = vpow.pop %v5815
    %v5817 = vadd.f32 %v5814, 1.0
    %v5818 = vadd.f32 %v5816, 1.0
    %v5819 = vrcp.pop %v5817
    %v5820 = vmul.f32 1.0, %v5819
    %v5821 = vrcp.pop %v5818
    %v5822 = vmul.f32 1.0, %v5821
    %v5823 = vxor.u32 %v5804, 2147483648
    %v5824 = vxor.u32 %v5808, 2147483648
    %v5825 = vmul.f32 %v5823, 1.442695
    %v5826 = vpow.pop %v5825
    %v5827 = vmul.f32 %v5824, 1.442695
    %v5828 = vpow.pop %v5827
    %v5829 = vadd.f32 %v5826, 1.0
    %v5830 = vadd.f32 %v5828, 1.0
    %v5831 = vrcp.pop %v5829
    %v5832 = vmul.f32 1.0, %v5831
    %v5833 = vrcp.pop %v5830
    %v5834 = vmul.f32 1.0, %v5833
    %v5835 = vtanh.pop %v5805
    %v5836 = vtanh.pop %v5809
    %v5837 = vxor.u32 %v5806, 2147483648
    %v5838 = vxor.u32 %v5810, 2147483648
    %v5839 = vmul.f32 %v5837, 1.442695
    %v5840 = vpow.pop %v5839
    %v5841 = vmul.f32 %v5838, 1.442695
    %v5842 = vpow.pop %v5841
    %v5843 = vadd.f32 %v5840, 1.0
    %v5844 = vadd.f32 %v5842, 1.0
    %v5845 = vrcp.pop %v5843
    %v5846 = vmul.f32 1.0, %v5845
    %v5847 = vrcp.pop %v5844
    %v5848 = vmul.f32 1.0, %v5847
    %v5849 = vmul.f32 %v5832, %v5509
    %v5850 = vmul.f32 %v5834, %v5510
    %v5851 = vmul.f32 %v5820, %v5835
    %v5852 = vmul.f32 %v5822, %v5836
    %v5853 = vadd.f32 %v5849, %v5851
    %v5854 = vadd.f32 %v5850, %v5852
    %v5855 = vtanh.pop %v5853
    %v5856 = vtanh.pop %v5854
    %v5857 = vmul.f32 %v5846, %v5855
    %v5858 = vmul.f32 %v5848, %v5856
    %v5859 = vpack.c.bf16 %v5858, %v5857
    %5860 = vst [vmem:[%s2591] sm:$0xff] %v5859
    %v5861 = vld [vmem:[%s2593] sm:$0xff]
    %v5862 = vld [vmem:[%s2593 + $0x8] sm:$0xff]
    %v5863 = vld [vmem:[%s2593 + $0x10] sm:$0xff]
    %v5864 = vld [vmem:[%s2593 + $0x18] sm:$0xff]
    %v5865 = vld [vmem:[%s2593 + $0x20] sm:$0xff]
    %v5866 = vld [vmem:[%s2593 + $0x28] sm:$0xff]
    %v5867 = vld [vmem:[%s2593 + $0x30] sm:$0xff]
    %v5868 = vld [vmem:[%s2593 + $0x38] sm:$0xff]
    %v5869 = vld [vmem:[#allocation12] sm:$0xff]
    %v5870 = vld [vmem:[#allocation12 + $0x8] sm:$0xff]
    %v5871 = vld [vmem:[#allocation12 + $0x10] sm:$0xff]
    %v5872 = vld [vmem:[#allocation12 + $0x18] sm:$0xff]
    %v5873 = vld [vmem:[#allocation12 + $0x20] sm:$0xff]
    %v5874 = vld [vmem:[#allocation12 + $0x28] sm:$0xff]
    %v5875 = vld [vmem:[#allocation12 + $0x30] sm:$0xff]
    %v5876 = vld [vmem:[#allocation12 + $0x38] sm:$0xff]
    %v5877 = vld [vmem:[#allocation12 + $0x40] sm:$0xff]
    %v5878 = vld [vmem:[#allocation12 + $0x48] sm:$0xff]
    %v5879 = vld [vmem:[#allocation12 + $0x50] sm:$0xff]
    %v5880 = vld [vmem:[#allocation12 + $0x58] sm:$0xff]
    %v5881 = vld [vmem:[#allocation12 + $0x60] sm:$0xff]
    %v5882 = vld [vmem:[#allocation12 + $0x68] sm:$0xff]
    %v5883 = vld [vmem:[#allocation12 + $0x70] sm:$0xff]
    %v5884 = vld [vmem:[#allocation12 + $0x78] sm:$0xff]
    %v5885 = vld [vmem:[#allocation12 + $0x80] sm:$0xff]
    %v5886 = vld [vmem:[#allocation12 + $0x88] sm:$0xff]
    %v5887 = vld [vmem:[#allocation12 + $0x90] sm:$0xff]
    %v5888 = vld [vmem:[#allocation12 + $0x98] sm:$0xff]
    %v5889 = vld [vmem:[#allocation12 + $0xa0] sm:$0xff]
    %v5890 = vld [vmem:[#allocation12 + $0xa8] sm:$0xff]
    %v5891 = vld [vmem:[#allocation12 + $0xb0] sm:$0xff]
    %v5892 = vld [vmem:[#allocation12 + $0xb8] sm:$0xff]
    %v5893 = vld [vmem:[#allocation12 + $0xc0] sm:$0xff]
    %v5894 = vld [vmem:[#allocation12 + $0xc8] sm:$0xff]
    %v5895 = vld [vmem:[#allocation12 + $0xd0] sm:$0xff]
    %v5896 = vld [vmem:[#allocation12 + $0xd8] sm:$0xff]
    %v5897 = vld [vmem:[#allocation12 + $0xe0] sm:$0xff]
    %v5898 = vld [vmem:[#allocation12 + $0xe8] sm:$0xff]
    %v5899 = vld [vmem:[#allocation12 + $0xf0] sm:$0xff]
    %v5900 = vld [vmem:[#allocation12 + $0xf8] sm:$0xff]
    %v5933 = vunpack.c.l.b16 %v5869
    %v5934 = vunpack.c.h.b16 %v5869
    %v5935 = vunpack.c.l.b16 %v5870
    %v5936 = vunpack.c.h.b16 %v5870
    %v5937 = vunpack.c.l.b16 %v5871
    %v5938 = vunpack.c.h.b16 %v5871
    %v5939 = vunpack.c.l.b16 %v5872
    %v5940 = vunpack.c.h.b16 %v5872
    %v5941 = vunpack.c.l.b16 %v5873
    %v5942 = vunpack.c.h.b16 %v5873
    %v5943 = vunpack.c.l.b16 %v5874
    %v5944 = vunpack.c.h.b16 %v5874
    %v5945 = vunpack.c.l.b16 %v5875
    %v5946 = vunpack.c.h.b16 %v5875
    %v5947 = vunpack.c.l.b16 %v5876
    %v5948 = vunpack.c.h.b16 %v5876
    %v5949 = vunpack.c.l.b16 %v5877
    %v5950 = vunpack.c.h.b16 %v5877
    %v5951 = vunpack.c.l.b16 %v5878
    %v5952 = vunpack.c.h.b16 %v5878
    %v5953 = vunpack.c.l.b16 %v5879
    %v5954 = vunpack.c.h.b16 %v5879
    %v5955 = vunpack.c.l.b16 %v5880
    %v5956 = vunpack.c.h.b16 %v5880
    %v5957 = vunpack.c.l.b16 %v5881
    %v5958 = vunpack.c.h.b16 %v5881
    %v5959 = vunpack.c.l.b16 %v5882
    %v5960 = vunpack.c.h.b16 %v5882
    %v5961 = vunpack.c.l.b16 %v5883
    %v5962 = vunpack.c.h.b16 %v5883
    %v5963 = vunpack.c.l.b16 %v5884
    %v5964 = vunpack.c.h.b16 %v5884
    %v5965 = vunpack.c.l.b16 %v5885
    %v5966 = vunpack.c.h.b16 %v5885
    %v5967 = vunpack.c.l.b16 %v5886
    %v5968 = vunpack.c.h.b16 %v5886
    %v5969 = vunpack.c.l.b16 %v5887
    %v5970 = vunpack.c.h.b16 %v5887
    %v5971 = vunpack.c.l.b16 %v5888
    %v5972 = vunpack.c.h.b16 %v5888
    %v5973 = vunpack.c.l.b16 %v5889
    %v5974 = vunpack.c.h.b16 %v5889
    %v5975 = vunpack.c.l.b16 %v5890
    %v5976 = vunpack.c.h.b16 %v5890
    %v5977 = vunpack.c.l.b16 %v5891
    %v5978 = vunpack.c.h.b16 %v5891
    %v5979 = vunpack.c.l.b16 %v5892
    %v5980 = vunpack.c.h.b16 %v5892
    %v5981 = vunpack.c.l.b16 %v5893
    %v5982 = vunpack.c.h.b16 %v5893
    %v5983 = vunpack.c.l.b16 %v5894
    %v5984 = vunpack.c.h.b16 %v5894
    %v5985 = vunpack.c.l.b16 %v5895
    %v5986 = vunpack.c.h.b16 %v5895
    %v5987 = vunpack.c.l.b16 %v5896
    %v5988 = vunpack.c.h.b16 %v5896
    %v5989 = vunpack.c.l.b16 %v5897
    %v5990 = vunpack.c.h.b16 %v5897
    %v5991 = vunpack.c.l.b16 %v5898
    %v5992 = vunpack.c.h.b16 %v5898
    %v5993 = vunpack.c.l.b16 %v5899
    %v5994 = vunpack.c.h.b16 %v5899
    %v5995 = vunpack.c.l.b16 %v5900
    %v5996 = vunpack.c.h.b16 %v5900
    %v5997 = vpack.c.b16 %v5937, %v5933
    %v5998 = vpack.c.b16 %v5938, %v5934
    %v5999 = vpack.c.b16 %v5939, %v5935
    %v6000 = vpack.c.b16 %v5940, %v5936
    %v6001 = vpack.c.b16 %v5945, %v5941
    %v6002 = vpack.c.b16 %v5946, %v5942
    %v6003 = vpack.c.b16 %v5947, %v5943
    %v6004 = vpack.c.b16 %v5948, %v5944
    %v6005 = vpack.c.b16 %v5953, %v5949
    %v6006 = vpack.c.b16 %v5954, %v5950
    %v6007 = vpack.c.b16 %v5955, %v5951
    %v6008 = vpack.c.b16 %v5956, %v5952
    %v6009 = vpack.c.b16 %v5961, %v5957
    %v6010 = vpack.c.b16 %v5962, %v5958
    %v6011 = vpack.c.b16 %v5963, %v5959
    %v6012 = vpack.c.b16 %v5964, %v5960
    %v6013 = vpack.c.b16 %v5969, %v5965
    %v6014 = vpack.c.b16 %v5970, %v5966
    %v6015 = vpack.c.b16 %v5971, %v5967
    %v6016 = vpack.c.b16 %v5972, %v5968
    %v6017 = vpack.c.b16 %v5977, %v5973
    %v6018 = vpack.c.b16 %v5978, %v5974
    %v6019 = vpack.c.b16 %v5979, %v5975
    %v6020 = vpack.c.b16 %v5980, %v5976
    %v6021 = vpack.c.b16 %v5985, %v5981
    %v6022 = vpack.c.b16 %v5986, %v5982
    %v6023 = vpack.c.b16 %v5987, %v5983
    %v6024 = vpack.c.b16 %v5988, %v5984
    %v6025 = vpack.c.b16 %v5993, %v5989
    %v6026 = vpack.c.b16 %v5994, %v5990
    %v6027 = vpack.c.b16 %v5995, %v5991
    %v6028 = vpack.c.b16 %v5996, %v5992
    %6061 = vmatprep.subr.bf16.mxu0 %v5998
    %6062 = vmatpush1.bf16.msra.mxu0 %v5997
    %6063 = vmatprep.subr.bf16.mxu0 %v6002
    %6064 = vmatpush1.bf16.msra.mxu0 %v6001
    %6065 = vmatprep.subr.bf16.mxu0 %v6006
    %6066 = vmatpush1.bf16.msra.mxu0 %v6005
    %6067 = vmatprep.subr.bf16.mxu0 %v6010
    %6068 = vmatpush1.bf16.msra.mxu0 %v6009
    %6069 = vmatprep.subr.bf16.mxu0 %v6014
    %6070 = vmatpush1.bf16.msra.mxu0 %v6013
    %6071 = vmatprep.subr.bf16.mxu0 %v6018
    %6072 = vmatpush1.bf16.msra.mxu0 %v6017
    %6073 = vmatprep.subr.bf16.mxu0 %v6022
    %6074 = vmatpush1.bf16.msra.mxu0 %v6021
    %6075 = vmatprep.subr.bf16.mxu0 %v6026
    %6076 = vmatpush1.bf16.msra.mxu0 %v6025
    %6077 = vmatprep.subr.bf16.mxu0 0
    %6078 = vmatpush1.bf16.msra.mxu0 0
    %6079 = vmatprep.subr.bf16.mxu0 0
    %6080 = vmatpush1.bf16.msra.mxu0 0
    %6081 = vmatprep.subr.bf16.mxu0 0
    %6082 = vmatpush1.bf16.msra.mxu0 0
    %6083 = vmatprep.subr.bf16.mxu0 0
    %6084 = vmatpush1.bf16.msra.mxu0 0
    %6085 = vmatprep.subr.bf16.mxu0 0
    %6086 = vmatpush1.bf16.msra.mxu0 0
    %6087 = vmatprep.subr.bf16.mxu0 0
    %6088 = vmatpush1.bf16.msra.mxu0 0
    %6089 = vmatprep.subr.bf16.mxu0 0
    %6090 = vmatpush1.bf16.msra.mxu0 0
    %6091 = vmatprep.subr.bf16.mxu0 0
    %6092 = vmatpush1.bf16.msra.mxu0 0
    %6093 = vmatprep.mubr.bf16.mxu0 0
    %6094 = vmatmul.mubr.bf16.gmra.mrb[0].mxu0 %v5859
    %v6095 = vpop.f32.mrb[0].mxu0
    %v6096 = vadd.f32 0.0, %v6095
    %v6097 = vpop.f32.mrb[0].mxu0
    %v6098 = vadd.f32 0.0, %v6097
    %v6099 = vpop.f32.mrb[0].mxu0
    %v6100 = vadd.f32 0.0, %v6099
    %v6101 = vpop.f32.mrb[0].mxu0
    %v6102 = vadd.f32 0.0, %v6101
    %6103 = vdwg.mxu0
    %6104 = vmatprep.subr.bf16.mxu0 %v6000
    %6105 = vmatpush1.bf16.msra.mxu0 %v5999
    %6106 = vmatprep.subr.bf16.mxu0 %v6004
    %6107 = vmatpush1.bf16.msra.mxu0 %v6003
    %6108 = vmatprep.subr.bf16.mxu0 %v6008
    %6109 = vmatpush1.bf16.msra.mxu0 %v6007
    %6110 = vmatprep.subr.bf16.mxu0 %v6012
    %6111 = vmatpush1.bf16.msra.mxu0 %v6011
    %6112 = vmatprep.subr.bf16.mxu0 %v6016
    %6113 = vmatpush1.bf16.msra.mxu0 %v6015
    %6114 = vmatprep.subr.bf16.mxu0 %v6020
    %6115 = vmatpush1.bf16.msra.mxu0 %v6019
    %6116 = vmatprep.subr.bf16.mxu0 %v6024
    %6117 = vmatpush1.bf16.msra.mxu0 %v6023
    %6118 = vmatprep.subr.bf16.mxu0 %v6028
    %6119 = vmatpush1.bf16.msra.mxu0 %v6027
    %6120 = vmatprep.subr.bf16.mxu0 0
    %6121 = vmatpush1.bf16.msra.mxu0 0
    %6122 = vmatprep.subr.bf16.mxu0 0
    %6123 = vmatpush1.bf16.msra.mxu0 0
    %6124 = vmatprep.subr.bf16.mxu0 0
    %6125 = vmatpush1.bf16.msra.mxu0 0
    %6126 = vmatprep.subr.bf16.mxu0 0
    %6127 = vmatpush1.bf16.msra.mxu0 0
    %6128 = vmatprep.subr.bf16.mxu0 0
    %6129 = vmatpush1.bf16.msra.mxu0 0
    %6130 = vmatprep.subr.bf16.mxu0 0
    %6131 = vmatpush1.bf16.msra.mxu0 0
    %6132 = vmatprep.subr.bf16.mxu0 0
    %6133 = vmatpush1.bf16.msra.mxu0 0
    %6134 = vmatprep.subr.bf16.mxu0 0
    %6135 = vmatpush1.bf16.msra.mxu0 0
    %6136 = vmatprep.mubr.bf16.mxu0 0
    %6137 = vmatmul.mubr.bf16.gmra.mrb[0].mxu0 %v5859
    %v6138 = vpop.f32.mrb[0].mxu0
    %v6139 = vadd.f32 0.0, %v6138
    %v6140 = vpop.f32.mrb[0].mxu0
    %v6141 = vadd.f32 0.0, %v6140
    %v6142 = vpop.f32.mrb[0].mxu0
    %v6143 = vadd.f32 0.0, %v6142
    %v6144 = vpop.f32.mrb[0].mxu0
    %v6145 = vadd.f32 0.0, %v6144
    %6146 = vdwg.mxu0
    %v6147 = vadd.f32 %v5861, %v6096
    %v6148 = vadd.f32 %v5862, %v6098
    %v6149 = vadd.f32 %v5863, %v6139
    %v6150 = vadd.f32 %v5864, %v6141
    %v6151 = vadd.f32 %v5865, %v6100
    %v6152 = vadd.f32 %v5866, %v6102
    %v6153 = vadd.f32 %v5867, %v6143
    %v6154 = vadd.f32 %v5868, %v6145
    %v6155 = vxor.u32 %v6147, 2147483648
    %v6156 = vxor.u32 %v6151, 2147483648
    %v6157 = vmul.f32 %v6155, 1.442695
    %v6158 = vpow.pop %v6157
    %v6159 = vmul.f32 %v6156, 1.442695
    %v6160 = vpow.pop %v6159
    %v6161 = vadd.f32 %v6158, 1.0
    %v6162 = vadd.f32 %v6160, 1.0
    %v6163 = vrcp.pop %v6161
    %v6164 = vmul.f32 1.0, %v6163
    %v6165 = vrcp.pop %v6162
    %v6166 = vmul.f32 1.0, %v6165
    %v6167 = vxor.u32 %v6148, 2147483648
    %v6168 = vxor.u32 %v6152, 2147483648
    %v6169 = vmul.f32 %v6167, 1.442695
    %v6170 = vpow.pop %v6169
    %v6171 = vmul.f32 %v6168, 1.442695
    %v6172 = vpow.pop %v6171
    %v6173 = vadd.f32 %v6170, 1.0
    %v6174 = vadd.f32 %v6172, 1.0
    %v6175 = vrcp.pop %v6173
    %v6176 = vmul.f32 1.0, %v6175
    %v6177 = vrcp.pop %v6174
    %v6178 = vmul.f32 1.0, %v6177
    %v6179 = vtanh.pop %v6149
    %v6180 = vtanh.pop %v6153
    %v6181 = vxor.u32 %v6150, 2147483648
    %v6182 = vxor.u32 %v6154, 2147483648
    %v6183 = vmul.f32 %v6181, 1.442695
    %v6184 = vpow.pop %v6183
    %v6185 = vmul.f32 %v6182, 1.442695
    %v6186 = vpow.pop %v6185
    %v6187 = vadd.f32 %v6184, 1.0
    %v6188 = vadd.f32 %v6186, 1.0
    %v6189 = vrcp.pop %v6187
    %v6190 = vmul.f32 1.0, %v6189
    %v6191 = vrcp.pop %v6188
    %v6192 = vmul.f32 1.0, %v6191
    %v6193 = vmul.f32 %v6176, %v5853
    %v6194 = vmul.f32 %v6178, %v5854
    %v6195 = vmul.f32 %v6164, %v6179
    %v6196 = vmul.f32 %v6166, %v6180
    %v6197 = vadd.f32 %v6193, %v6195
    %v6198 = vadd.f32 %v6194, %v6196
    %v6199 = vtanh.pop %v6197
    %v6200 = vtanh.pop %v6198
    %v6201 = vmul.f32 %v6190, %v6199
    %v6202 = vmul.f32 %v6192, %v6200
    %v6203 = vpack.c.bf16 %v6202, %v6201
    %6204 = vst [vmem:[%s2937] sm:$0xff] %v6203
    %v6205 = vld [vmem:[%s2939] sm:$0xff]
    %v6206 = vld [vmem:[%s2939 + $0x8] sm:$0xff]
    %v6207 = vld [vmem:[%s2939 + $0x10] sm:$0xff]
    %v6208 = vld [vmem:[%s2939 + $0x18] sm:$0xff]
    %v6209 = vld [vmem:[%s2939 + $0x20] sm:$0xff]
    %v6210 = vld [vmem:[%s2939 + $0x28] sm:$0xff]
    %v6211 = vld [vmem:[%s2939 + $0x30] sm:$0xff]
    %v6212 = vld [vmem:[%s2939 + $0x38] sm:$0xff]
    %v6213 = vld [vmem:[#allocation12] sm:$0xff]
    %v6214 = vld [vmem:[#allocation12 + $0x8] sm:$0xff]
    %v6215 = vld [vmem:[#allocation12 + $0x10] sm:$0xff]
    %v6216 = vld [vmem:[#allocation12 + $0x18] sm:$0xff]
    %v6217 = vld [vmem:[#allocation12 + $0x20] sm:$0xff]
    %v6218 = vld [vmem:[#allocation12 + $0x28] sm:$0xff]
    %v6219 = vld [vmem:[#allocation12 + $0x30] sm:$0xff]
    %v6220 = vld [vmem:[#allocation12 + $0x38] sm:$0xff]
    %v6221 = vld [vmem:[#allocation12 + $0x40] sm:$0xff]
    %v6222 = vld [vmem:[#allocation12 + $0x48] sm:$0xff]
    %v6223 = vld [vmem:[#allocation12 + $0x50] sm:$0xff]
    %v6224 = vld [vmem:[#allocation12 + $0x58] sm:$0xff]
    %v6225 = vld [vmem:[#allocation12 + $0x60] sm:$0xff]
    %v6226 = vld [vmem:[#allocation12 + $0x68] sm:$0xff]
    %v6227 = vld [vmem:[#allocation12 + $0x70] sm:$0xff]
    %v6228 = vld [vmem:[#allocation12 + $0x78] sm:$0xff]
    %v6229 = vld [vmem:[#allocation12 + $0x80] sm:$0xff]
    %v6230 = vld [vmem:[#allocation12 + $0x88] sm:$0xff]
    %v6231 = vld [vmem:[#allocation12 + $0x90] sm:$0xff]
    %v6232 = vld [vmem:[#allocation12 + $0x98] sm:$0xff]
    %v6233 = vld [vmem:[#allocation12 + $0xa0] sm:$0xff]
    %v6234 = vld [vmem:[#allocation12 + $0xa8] sm:$0xff]
    %v6235 = vld [vmem:[#allocation12 + $0xb0] sm:$0xff]
    %v6236 = vld [vmem:[#allocation12 + $0xb8] sm:$0xff]
    %v6237 = vld [vmem:[#allocation12 + $0xc0] sm:$0xff]
    %v6238 = vld [vmem:[#allocation12 + $0xc8] sm:$0xff]
    %v6239 = vld [vmem:[#allocation12 + $0xd0] sm:$0xff]
    %v6240 = vld [vmem:[#allocation12 + $0xd8] sm:$0xff]
    %v6241 = vld [vmem:[#allocation12 + $0xe0] sm:$0xff]
    %v6242 = vld [vmem:[#allocation12 + $0xe8] sm:$0xff]
    %v6243 = vld [vmem:[#allocation12 + $0xf0] sm:$0xff]
    %v6244 = vld [vmem:[#allocation12 + $0xf8] sm:$0xff]
    %v6277 = vunpack.c.l.b16 %v6213
    %v6278 = vunpack.c.h.b16 %v6213
    %v6279 = vunpack.c.l.b16 %v6214
    %v6280 = vunpack.c.h.b16 %v6214
    %v6281 = vunpack.c.l.b16 %v6215
    %v6282 = vunpack.c.h.b16 %v6215
    %v6283 = vunpack.c.l.b16 %v6216
    %v6284 = vunpack.c.h.b16 %v6216
    %v6285 = vunpack.c.l.b16 %v6217
    %v6286 = vunpack.c.h.b16 %v6217
    %v6287 = vunpack.c.l.b16 %v6218
    %v6288 = vunpack.c.h.b16 %v6218
    %v6289 = vunpack.c.l.b16 %v6219
    %v6290 = vunpack.c.h.b16 %v6219
    %v6291 = vunpack.c.l.b16 %v6220
    %v6292 = vunpack.c.h.b16 %v6220
    %v6293 = vunpack.c.l.b16 %v6221
    %v6294 = vunpack.c.h.b16 %v6221
    %v6295 = vunpack.c.l.b16 %v6222
    %v6296 = vunpack.c.h.b16 %v6222
    %v6297 = vunpack.c.l.b16 %v6223
    %v6298 = vunpack.c.h.b16 %v6223
    %v6299 = vunpack.c.l.b16 %v6224
    %v6300 = vunpack.c.h.b16 %v6224
    %v6301 = vunpack.c.l.b16 %v6225
    %v6302 = vunpack.c.h.b16 %v6225
    %v6303 = vunpack.c.l.b16 %v6226
    %v6304 = vunpack.c.h.b16 %v6226
    %v6305 = vunpack.c.l.b16 %v6227
    %v6306 = vunpack.c.h.b16 %v6227
    %v6307 = vunpack.c.l.b16 %v6228
    %v6308 = vunpack.c.h.b16 %v6228
    %v6309 = vunpack.c.l.b16 %v6229
    %v6310 = vunpack.c.h.b16 %v6229
    %v6311 = vunpack.c.l.b16 %v6230
    %v6312 = vunpack.c.h.b16 %v6230
    %v6313 = vunpack.c.l.b16 %v6231
    %v6314 = vunpack.c.h.b16 %v6231
    %v6315 = vunpack.c.l.b16 %v6232
    %v6316 = vunpack.c.h.b16 %v6232
    %v6317 = vunpack.c.l.b16 %v6233
    %v6318 = vunpack.c.h.b16 %v6233
    %v6319 = vunpack.c.l.b16 %v6234
    %v6320 = vunpack.c.h.b16 %v6234
    %v6321 = vunpack.c.l.b16 %v6235
    %v6322 = vunpack.c.h.b16 %v6235
    %v6323 = vunpack.c.l.b16 %v6236
    %v6324 = vunpack.c.h.b16 %v6236
    %v6325 = vunpack.c.l.b16 %v6237
    %v6326 = vunpack.c.h.b16 %v6237
    %v6327 = vunpack.c.l.b16 %v6238
    %v6328 = vunpack.c.h.b16 %v6238
    %v6329 = vunpack.c.l.b16 %v6239
    %v6330 = vunpack.c.h.b16 %v6239
    %v6331 = vunpack.c.l.b16 %v6240
    %v6332 = vunpack.c.h.b16 %v6240
    %v6333 = vunpack.c.l.b16 %v6241
    %v6334 = vunpack.c.h.b16 %v6241
    %v6335 = vunpack.c.l.b16 %v6242
    %v6336 = vunpack.c.h.b16 %v6242
    %v6337 = vunpack.c.l.b16 %v6243
    %v6338 = vunpack.c.h.b16 %v6243
    %v6339 = vunpack.c.l.b16 %v6244
    %v6340 = vunpack.c.h.b16 %v6244
    %v6341 = vpack.c.b16 %v6281, %v6277
    %v6342 = vpack.c.b16 %v6282, %v6278
    %v6343 = vpack.c.b16 %v6283, %v6279
    %v6344 = vpack.c.b16 %v6284, %v6280
    %v6345 = vpack.c.b16 %v6289, %v6285
    %v6346 = vpack.c.b16 %v6290, %v6286
    %v6347 = vpack.c.b16 %v6291, %v6287
    %v6348 = vpack.c.b16 %v6292, %v6288
    %v6349 = vpack.c.b16 %v6297, %v6293
    %v6350 = vpack.c.b16 %v6298, %v6294
    %v6351 = vpack.c.b16 %v6299, %v6295
    %v6352 = vpack.c.b16 %v6300, %v6296
    %v6353 = vpack.c.b16 %v6305, %v6301
    %v6354 = vpack.c.b16 %v6306, %v6302
    %v6355 = vpack.c.b16 %v6307, %v6303
    %v6356 = vpack.c.b16 %v6308, %v6304
    %v6357 = vpack.c.b16 %v6313, %v6309
    %v6358 = vpack.c.b16 %v6314, %v6310
    %v6359 = vpack.c.b16 %v6315, %v6311
    %v6360 = vpack.c.b16 %v6316, %v6312
    %v6361 = vpack.c.b16 %v6321, %v6317
    %v6362 = vpack.c.b16 %v6322, %v6318
    %v6363 = vpack.c.b16 %v6323, %v6319
    %v6364 = vpack.c.b16 %v6324, %v6320
    %v6365 = vpack.c.b16 %v6329, %v6325
    %v6366 = vpack.c.b16 %v6330, %v6326
    %v6367 = vpack.c.b16 %v6331, %v6327
    %v6368 = vpack.c.b16 %v6332, %v6328
    %v6369 = vpack.c.b16 %v6337, %v6333
    %v6370 = vpack.c.b16 %v6338, %v6334
    %v6371 = vpack.c.b16 %v6339, %v6335
    %v6372 = vpack.c.b16 %v6340, %v6336
    %6405 = vmatprep.subr.bf16.mxu0 %v6342
    %6406 = vmatpush1.bf16.msra.mxu0 %v6341
    %6407 = vmatprep.subr.bf16.mxu0 %v6346
    %6408 = vmatpush1.bf16.msra.mxu0 %v6345
    %6409 = vmatprep.subr.bf16.mxu0 %v6350
    %6410 = vmatpush1.bf16.msra.mxu0 %v6349
    %6411 = vmatprep.subr.bf16.mxu0 %v6354
    %6412 = vmatpush1.bf16.msra.mxu0 %v6353
    %6413 = vmatprep.subr.bf16.mxu0 %v6358
    %6414 = vmatpush1.bf16.msra.mxu0 %v6357
    %6415 = vmatprep.subr.bf16.mxu0 %v6362
    %6416 = vmatpush1.bf16.msra.mxu0 %v6361
    %6417 = vmatprep.subr.bf16.mxu0 %v6366
    %6418 = vmatpush1.bf16.msra.mxu0 %v6365
    %6419 = vmatprep.subr.bf16.mxu0 %v6370
    %6420 = vmatpush1.bf16.msra.mxu0 %v6369
    %6421 = vmatprep.subr.bf16.mxu0 0
    %6422 = vmatpush1.bf16.msra.mxu0 0
    %6423 = vmatprep.subr.bf16.mxu0 0
    %6424 = vmatpush1.bf16.msra.mxu0 0
    %6425 = vmatprep.subr.bf16.mxu0 0
    %6426 = vmatpush1.bf16.msra.mxu0 0
    %6427 = vmatprep.subr.bf16.mxu0 0
    %6428 = vmatpush1.bf16.msra.mxu0 0
    %6429 = vmatprep.subr.bf16.mxu0 0
    %6430 = vmatpush1.bf16.msra.mxu0 0
    %6431 = vmatprep.subr.bf16.mxu0 0
    %6432 = vmatpush1.bf16.msra.mxu0 0
    %6433 = vmatprep.subr.bf16.mxu0 0
    %6434 = vmatpush1.bf16.msra.mxu0 0
    %6435 = vmatprep.subr.bf16.mxu0 0
    %6436 = vmatpush1.bf16.msra.mxu0 0
    %6437 = vmatprep.mubr.bf16.mxu0 0
    %6438 = vmatmul.mubr.bf16.gmra.mrb[0].mxu0 %v6203
    %v6439 = vpop.f32.mrb[0].mxu0
    %v6440 = vadd.f32 0.0, %v6439
    %v6441 = vpop.f32.mrb[0].mxu0
    %v6442 = vadd.f32 0.0, %v6441
    %v6443 = vpop.f32.mrb[0].mxu0
    %v6444 = vadd.f32 0.0, %v6443
    %v6445 = vpop.f32.mrb[0].mxu0
    %v6446 = vadd.f32 0.0, %v6445
    %6447 = vdwg.mxu0
    %6448 = vmatprep.subr.bf16.mxu0 %v6344
    %6449 = vmatpush1.bf16.msra.mxu0 %v6343
    %6450 = vmatprep.subr.bf16.mxu0 %v6348
    %6451 = vmatpush1.bf16.msra.mxu0 %v6347
    %6452 = vmatprep.subr.bf16.mxu0 %v6352
    %6453 = vmatpush1.bf16.msra.mxu0 %v6351
    %6454 = vmatprep.subr.bf16.mxu0 %v6356
    %6455 = vmatpush1.bf16.msra.mxu0 %v6355
    %6456 = vmatprep.subr.bf16.mxu0 %v6360
    %6457 = vmatpush1.bf16.msra.mxu0 %v6359
    %6458 = vmatprep.subr.bf16.mxu0 %v6364
    %6459 = vmatpush1.bf16.msra.mxu0 %v6363
    %6460 = vmatprep.subr.bf16.mxu0 %v6368
    %6461 = vmatpush1.bf16.msra.mxu0 %v6367
    %6462 = vmatprep.subr.bf16.mxu0 %v6372
    %6463 = vmatpush1.bf16.msra.mxu0 %v6371
    %6464 = vmatprep.subr.bf16.mxu0 0
    %6465 = vmatpush1.bf16.msra.mxu0 0
    %6466 = vmatprep.subr.bf16.mxu0 0
    %6467 = vmatpush1.bf16.msra.mxu0 0
    %6468 = vmatprep.subr.bf16.mxu0 0
    %6469 = vmatpush1.bf16.msra.mxu0 0
    %6470 = vmatprep.subr.bf16.mxu0 0
    %6471 = vmatpush1.bf16.msra.mxu0 0
    %6472 = vmatprep.subr.bf16.mxu0 0
    %6473 = vmatpush1.bf16.msra.mxu0 0
    %6474 = vmatprep.subr.bf16.mxu0 0
    %6475 = vmatpush1.bf16.msra.mxu0 0
    %6476 = vmatprep.subr.bf16.mxu0 0
    %6477 = vmatpush1.bf16.msra.mxu0 0
    %6478 = vmatprep.subr.bf16.mxu0 0
    %6479 = vmatpush1.bf16.msra.mxu0 0
    %6480 = vmatprep.mubr.bf16.mxu0 0
    %6481 = vmatmul.mubr.bf16.gmra.mrb[0].mxu0 %v6203
    %v6482 = vpop.f32.mrb[0].mxu0
    %v6483 = vadd.f32 0.0, %v6482
    %v6484 = vpop.f32.mrb[0].mxu0
    %v6485 = vadd.f32 0.0, %v6484
    %v6486 = vpop.f32.mrb[0].mxu0
    %v6487 = vadd.f32 0.0, %v6486
    %v6488 = vpop.f32.mrb[0].mxu0
    %v6489 = vadd.f32 0.0, %v6488
    %6490 = vdwg.mxu0
    %v6491 = vadd.f32 %v6205, %v6440
    %v6492 = vadd.f32 %v6206, %v6442
    %v6493 = vadd.f32 %v6207, %v6483
    %v6494 = vadd.f32 %v6208, %v6485
    %v6495 = vadd.f32 %v6209, %v6444
    %v6496 = vadd.f32 %v6210, %v6446
    %v6497 = vadd.f32 %v6211, %v6487
    %v6498 = vadd.f32 %v6212, %v6489
    %v6499 = vxor.u32 %v6491, 2147483648
    %v6500 = vxor.u32 %v6495, 2147483648
    %v6501 = vmul.f32 %v6499, 1.442695
    %v6502 = vpow.pop %v6501
    %v6503 = vmul.f32 %v6500, 1.442695
    %v6504 = vpow.pop %v6503
    %v6505 = vadd.f32 %v6502, 1.0
    %v6506 = vadd.f32 %v6504, 1.0
    %v6507 = vrcp.pop %v6505
    %v6508 = vmul.f32 1.0, %v6507
    %v6509 = vrcp.pop %v6506
    %v6510 = vmul.f32 1.0, %v6509
    %v6511 = vxor.u32 %v6492, 2147483648
    %v6512 = vxor.u32 %v6496, 2147483648
    %v6513 = vmul.f32 %v6511, 1.442695
    %v6514 = vpow.pop %v6513
    %v6515 = vmul.f32 %v6512, 1.442695
    %v6516 = vpow.pop %v6515
    %v6517 = vadd.f32 %v6514, 1.0
    %v6518 = vadd.f32 %v6516, 1.0
    %v6519 = vrcp.pop %v6517
    %v6520 = vmul.f32 1.0, %v6519
    %v6521 = vrcp.pop %v6518
    %v6522 = vmul.f32 1.0, %v6521
    %v6523 = vtanh.pop %v6493
    %v6524 = vtanh.pop %v6497
    %v6525 = vxor.u32 %v6494, 2147483648
    %v6526 = vxor.u32 %v6498, 2147483648
    %v6527 = vmul.f32 %v6525, 1.442695
    %v6528 = vpow.pop %v6527
    %v6529 = vmul.f32 %v6526, 1.442695
    %v6530 = vpow.pop %v6529
    %v6531 = vadd.f32 %v6528, 1.0
    %v6532 = vadd.f32 %v6530, 1.0
    %v6533 = vrcp.pop %v6531
    %v6534 = vmul.f32 1.0, %v6533
    %v6535 = vrcp.pop %v6532
    %v6536 = vmul.f32 1.0, %v6535
    %v6537 = vmul.f32 %v6520, %v6197
    %v6538 = vmul.f32 %v6522, %v6198
    %v6539 = vmul.f32 %v6508, %v6523
    %v6540 = vmul.f32 %v6510, %v6524
    %v6541 = vadd.f32 %v6537, %v6539
    %v6542 = vadd.f32 %v6538, %v6540
    %v6543 = vtanh.pop %v6541
    %v6544 = vtanh.pop %v6542
    %v6545 = vmul.f32 %v6534, %v6543
    %v6546 = vmul.f32 %v6536, %v6544
    %v6547 = vpack.c.bf16 %v6546, %v6545
    %6548 = vst [vmem:[%s3283] sm:$0xff] %v6547
    %v6549 = vld [vmem:[#allocation2] sm:$0xff]
    %v6550 = vld [vmem:[#allocation2 + $0x8] sm:$0xff]
    %v6551 = vld [vmem:[#allocation2 + $0x10] sm:$0xff]
    %v6552 = vld [vmem:[#allocation2 + $0x18] sm:$0xff]
    %v6553 = vld [vmem:[#allocation2 + $0x20] sm:$0xff]
    %v6554 = vld [vmem:[#allocation2 + $0x28] sm:$0xff]
    %v6555 = vld [vmem:[#allocation2 + $0x30] sm:$0xff]
    %v6556 = vld [vmem:[#allocation2 + $0x38] sm:$0xff]
    %v6557 = vunpack.c.l.bf16 %v6549
    %v6558 = vunpack.c.h.bf16 %v6549
    %v6559 = vunpack.c.l.bf16 %v6550
    %v6560 = vunpack.c.h.bf16 %v6550
    %v6561 = vunpack.c.l.bf16 %v6551
    %v6562 = vunpack.c.h.bf16 %v6551
    %v6563 = vunpack.c.l.bf16 %v6552
    %v6564 = vunpack.c.h.bf16 %v6552
    %v6565 = vunpack.c.l.bf16 %v6553
    %v6566 = vunpack.c.h.bf16 %v6553
    %v6567 = vunpack.c.l.bf16 %v6554
    %v6568 = vunpack.c.h.bf16 %v6554
    %v6569 = vunpack.c.l.bf16 %v6555
    %v6570 = vunpack.c.h.bf16 %v6555
    %v6571 = vunpack.c.l.bf16 %v6556
    %v6572 = vunpack.c.h.bf16 %v6556
    %v6573 = vmul.f32 %v6557, %v6545
    %v6574 = vmul.f32 %v6558, %v6546
    %v6575 = vmul.f32 %v6559, %v6545
    %v6576 = vmul.f32 %v6560, %v6546
    %v6577 = vmul.f32 %v6561, %v6545
    %v6578 = vmul.f32 %v6562, %v6546
    %v6579 = vmul.f32 %v6563, %v6545
    %v6580 = vmul.f32 %v6564, %v6546
    %v6581 = vmul.f32 %v6565, %v6545
    %v6582 = vmul.f32 %v6566, %v6546
    %v6583 = vmul.f32 %v6567, %v6545
    %v6584 = vmul.f32 %v6568, %v6546
    %v6585 = vmul.f32 %v6569, %v6545
    %v6586 = vmul.f32 %v6570, %v6546
    %v6587 = vmul.f32 %v6571, %v6545
    %v6588 = vmul.f32 %v6572, %v6546
    %6589 = vadd.xlane.f32.xlu0 %v6573
    %v6590 = vpop.xlane.xlu0 %6589
    %6591 = vadd.xlane.f32.xlu0 %v6574
    %v6592 = vpop.xlane.xlu0 %6591
    %6593 = vadd.xlane.f32.xlu0 %v6575
    %v6594 = vpop.xlane.xlu0 %6593
    %6595 = vadd.xlane.f32.xlu0 %v6576
    %v6596 = vpop.xlane.xlu0 %6595
    %6597 = vadd.xlane.f32.xlu0 %v6577
    %v6598 = vpop.xlane.xlu0 %6597
    %6599 = vadd.xlane.f32.xlu0 %v6578
    %v6600 = vpop.xlane.xlu0 %6599
    %6601 = vadd.xlane.f32.xlu0 %v6579
    %v6602 = vpop.xlane.xlu0 %6601
    %6603 = vadd.xlane.f32.xlu0 %v6580
    %v6604 = vpop.xlane.xlu0 %6603
    %6605 = vadd.xlane.f32.xlu0 %v6581
    %v6606 = vpop.xlane.xlu0 %6605
    %6607 = vadd.xlane.f32.xlu0 %v6582
    %v6608 = vpop.xlane.xlu0 %6607
    %6609 = vadd.xlane.f32.xlu0 %v6583
    %v6610 = vpop.xlane.xlu0 %6609
    %6611 = vadd.xlane.f32.xlu0 %v6584
    %v6612 = vpop.xlane.xlu0 %6611
    %6613 = vadd.xlane.f32.xlu0 %v6585
    %v6614 = vpop.xlane.xlu0 %6613
    %6615 = vadd.xlane.f32.xlu0 %v6586
    %v6616 = vpop.xlane.xlu0 %6615
    %6617 = vadd.xlane.f32.xlu0 %v6587
    %v6618 = vpop.xlane.xlu0 %6617
    %6619 = vadd.xlane.f32.xlu0 %v6588
    %v6620 = vpop.xlane.xlu0 %6619
    %v6621 = vmax.f32 %v6590, %v6598
    %v6622 = vmax.f32 %v6594, %v6602
    %v6623 = vmax.f32 %v6621, %v6606
    %v6624 = vmax.f32 %v6622, %v6610
    %v6625 = vmax.f32 %v6623, %v6614
    %v6626 = vmax.f32 %v6624, %v6618
    %v6627 = vmax.f32 %v6625, %v6626
    %v6628 = vmax.f32 %v6592, %v6600
    %v6629 = vmax.f32 %v6596, %v6604
    %v6630 = vmax.f32 %v6628, %v6608
    %v6631 = vmax.f32 %v6629, %v6612
    %v6632 = vmax.f32 %v6630, %v6616
    %v6633 = vmax.f32 %v6631, %v6620
    %v6634 = vmax.f32 %v6632, %v6633
    %v6635 = vsub.f32 %v6590, %v6627
    %v6636 = vsub.f32 %v6592, %v6634
    %v6637 = vsub.f32 %v6594, %v6627
    %v6638 = vsub.f32 %v6596, %v6634
    %v6639 = vsub.f32 %v6598, %v6627
    %v6640 = vsub.f32 %v6600, %v6634
    %v6641 = vsub.f32 %v6602, %v6627
    %v6642 = vsub.f32 %v6604, %v6634
    %v6643 = vsub.f32 %v6606, %v6627
    %v6644 = vsub.f32 %v6608, %v6634
    %v6645 = vsub.f32 %v6610, %v6627
    %v6646 = vsub.f32 %v6612, %v6634
    %v6647 = vsub.f32 %v6614, %v6627
    %v6648 = vsub.f32 %v6616, %v6634
    %v6649 = vsub.f32 %v6618, %v6627
    %v6650 = vsub.f32 %v6620, %v6634
    %v6651 = vmul.f32 %v6635, 1.442695
    %v6652 = vpow.pop %v6651
    %v6653 = vmul.f32 %v6636, 1.442695
    %v6654 = vpow.pop %v6653
    %v6655 = vmul.f32 %v6637, 1.442695
    %v6656 = vpow.pop %v6655
    %v6657 = vmul.f32 %v6638, 1.442695
    %v6658 = vpow.pop %v6657
    %v6659 = vmul.f32 %v6639, 1.442695
    %v6660 = vpow.pop %v6659
    %v6661 = vmul.f32 %v6640, 1.442695
    %v6662 = vpow.pop %v6661
    %v6663 = vmul.f32 %v6641, 1.442695
    %v6664 = vpow.pop %v6663
    %v6665 = vmul.f32 %v6642, 1.442695
    %v6666 = vpow.pop %v6665
    %v6667 = vmul.f32 %v6643, 1.442695
    %v6668 = vpow.pop %v6667
    %v6669 = vmul.f32 %v6644, 1.442695
    %v6670 = vpow.pop %v6669
    %v6671 = vmul.f32 %v6645, 1.442695
    %v6672 = vpow.pop %v6671
    %v6673 = vmul.f32 %v6646, 1.442695
    %v6674 = vpow.pop %v6673
    %v6675 = vmul.f32 %v6647, 1.442695
    %v6676 = vpow.pop %v6675
    %v6677 = vmul.f32 %v6648, 1.442695
    %v6678 = vpow.pop %v6677
    %v6679 = vmul.f32 %v6649, 1.442695
    %v6680 = vpow.pop %v6679
    %v6681 = vmul.f32 %v6650, 1.442695
    %v6682 = vpow.pop %v6681
    %v6683 = vadd.f32 %v6652, %v6656
    %v6684 = vadd.f32 %v6683, %v6660
    %v6685 = vadd.f32 %v6684, %v6664
    %v6686 = vadd.f32 %v6685, %v6668
    %v6687 = vadd.f32 %v6686, %v6672
    %v6688 = vadd.f32 %v6687, %v6676
    %v6689 = vadd.f32 %v6688, %v6680
    %v6690 = vadd.f32 %v6654, %v6658
    %v6691 = vadd.f32 %v6690, %v6662
    %v6692 = vadd.f32 %v6691, %v6666
    %v6693 = vadd.f32 %v6692, %v6670
    %v6694 = vadd.f32 %v6693, %v6674
    %v6695 = vadd.f32 %v6694, %v6678
    %v6696 = vadd.f32 %v6695, %v6682
    %v6697 = vrcp.pop %v6689
    %v6698 = vmul.f32 %v6652, %v6697
    %v6699 = vrcp.pop %v6696
    %v6700 = vmul.f32 %v6654, %v6699
    %v6701 = vmul.f32 %v6656, %v6697
    %v6702 = vmul.f32 %v6658, %v6699
    %v6703 = vmul.f32 %v6660, %v6697
    %v6704 = vmul.f32 %v6662, %v6699
    %v6705 = vmul.f32 %v6664, %v6697
    %v6706 = vmul.f32 %v6666, %v6699
    %v6707 = vmul.f32 %v6668, %v6697
    %v6708 = vmul.f32 %v6670, %v6699
    %v6709 = vmul.f32 %v6672, %v6697
    %v6710 = vmul.f32 %v6674, %v6699
    %v6711 = vmul.f32 %v6676, %v6697
    %v6712 = vmul.f32 %v6678, %v6699
    %v6713 = vmul.f32 %v6680, %v6697
    %v6714 = vmul.f32 %v6682, %v6699
    %v6715 = vmul.f32 %v6698, %v6557
    %v6716 = vmul.f32 %v6700, %v6558
    %v6717 = vmul.f32 %v6701, %v6559
    %v6718 = vmul.f32 %v6702, %v6560
    %v6719 = vmul.f32 %v6703, %v6561
    %v6720 = vmul.f32 %v6704, %v6562
    %v6721 = vmul.f32 %v6705, %v6563
    %v6722 = vmul.f32 %v6706, %v6564
    %v6723 = vmul.f32 %v6707, %v6565
    %v6724 = vmul.f32 %v6708, %v6566
    %v6725 = vmul.f32 %v6709, %v6567
    %v6726 = vmul.f32 %v6710, %v6568
    %v6727 = vmul.f32 %v6711, %v6569
    %v6728 = vmul.f32 %v6712, %v6570
    %v6729 = vmul.f32 %v6713, %v6571
    %v6730 = vmul.f32 %v6714, %v6572
    %v6731 = vadd.f32 %v6715, %v6717
    %v6732 = vadd.f32 %v6731, %v6719
    %v6733 = vadd.f32 %v6732, %v6721
    %v6734 = vadd.f32 %v6733, %v6723
    %v6735 = vadd.f32 %v6734, %v6725
    %v6736 = vadd.f32 %v6735, %v6727
    %v6737 = vadd.f32 %v6736, %v6729
    %v6738 = vadd.f32 %v6716, %v6718
    %v6739 = vadd.f32 %v6738, %v6720
    %v6740 = vadd.f32 %v6739, %v6722
    %v6741 = vadd.f32 %v6740, %v6724
    %v6742 = vadd.f32 %v6741, %v6726
    %v6743 = vadd.f32 %v6742, %v6728
    %v6744 = vadd.f32 %v6743, %v6730
    %v6745 = vlaneseq
    %v6746 = vand.u32 %v6745, 127
    %vm6747 = vcmp.lt.s32.totalorder %v6746, 32
    %v6748 = vsel %vm6747, 1, 0
    %v6749 = vcvt.s32.f32 %v6748
    %6750 = vadd.xlane.f32.xlu0 %v6737
    %v6751 = vpop.xlane.xlu0 %6750
    %6752 = vadd.xlane.f32.xlu0 %v6744
    %v6753 = vpop.xlane.xlu0 %6752
    %v6754 = vmul.f32 %v6751, 0.03125
    %v6755 = vmul.f32 %v6753, 0.03125
    %v6756 = vsub.f32 %v6737, %v6754
    %v6757 = vsub.f32 %v6744, %v6755
    %v6758 = vmul.f32 %v6756, %v6749
    %v6759 = vmul.f32 %v6757, %v6749
    %v6760 = vmul.f32 %v6758, %v6758
    %v6761 = vmul.f32 %v6759, %v6759
    %6762 = vadd.xlane.f32.xlu0 %v6760
    %v6763 = vpop.xlane.xlu0 %6762
    %6764 = vadd.xlane.f32.xlu0 %v6761
    %v6765 = vpop.xlane.xlu0 %6764
    %v6766 = vmul.f32 %v6763, 0.03125
    %v6767 = vmul.f32 %v6765, 0.03125
    %v6768 = vadd.f32 %v6766, 1e-05
    %v6769 = vadd.f32 %v6767, 1e-05
    %v6770 = vrsqrt.pop %v6768
    %v6771 = vrsqrt.pop %v6769
    %v6772 = vmul.f32 %v6758, %v6770
    %v6773 = vmul.f32 %v6759, %v6771
    %v6774 = vld [vmem:[%s7] sm:$0x1]
    %v6776 = vlaneseq
    %v6777 = vshrl.u32 %v6776, 7
    %v6778 = vsub.s32 0, %v6777
    %v6779 = vrot.slane %v6774, %v6778
    %v6781 = vmul.f32 %v6772, %v6779
    %v6782 = vmul.f32 %v6773, %v6779
    %v6783 = vld [vmem:[%s8] sm:$0x1]
    %v6785 = vlaneseq
    %v6786 = vshrl.u32 %v6785, 7
    %v6787 = vsub.s32 0, %v6786
    %v6788 = vrot.slane %v6783, %v6787
    %v6790 = vadd.f32 %v6781, %v6788
    %v6791 = vadd.f32 %v6782, %v6788
    %6792 = vst [vmem:[#allocation13] sm:$0xff] %v6790
    %6793 = vst [vmem:[#allocation13 + $0x8] sm:$0xff] %v6791
    // Predicated region
    $region58: #{tpu_custom_call.1} parent=1 // pred_check
      _
    $region59: #{tpu_custom_call.1} parent=1 // pred_check_branch
      %6795 = sbr.rel (0) target = $region61
    $region60: #{tpu_custom_call.1} parent=1 // pred_region
      %s6797 = ssub.s32 256, 256
      %6798 = vsyncadd [#allocation6], %s6797
      %s6799 = sshll.u32 [#allocation13], 4
      %s6800 = int_to_ptr.vmem [resolvable:$true] %s6799
      %6805 = dma.vmem_to_hbm [thread:$0]  %s6800, 256, %s9, [#allocation6], 128, 128, 8
    $region61: #{tpu_custom_call.1} parent=1 // pred_fallthru
      _
    // Predicated region
    $region62: #{tpu_custom_call.1} parent=1 // pred_check
      _
    $region63: #{tpu_custom_call.1} parent=1 // pred_check_branch
      %6807 = sbr.rel (0) target = $region65
    $region64: #{tpu_custom_call.1} parent=1 // pred_region
      %6808 = dma.done [#allocation6], 256
    $region65: #{tpu_custom_call.1} parent=1 // pred_fallthru
      _
    %6809 = vsyncpa [#allocation5], 1
    %6810 = vsyncpa [#allocation8], 1
    %6811 = vsyncpa [#allocation11], 1
    %6812 = vsyncpa [#allocation6], 1

</llo_original>
